<compile_context>
chip_gen: v6e
topology: v6e:2x2x1
jax: 0.10.0
libtpu: 0.0.40
codegen_flags: <defaults>
</compile_context>

<pallas_src>
import functools

import jax
import jax.numpy as jnp
from jax.experimental import pallas as pl
from jax.experimental.pallas import tpu as pltpu


_VMEM_LIMIT = 48 * 1024 * 1024   # scoped VMEM cap: safe on v7x (64 MiB phys), ample on v5e/v6e
_SLOPE = 0.01                    # PyTorch F.leaky_relu default negative_slope


# ---------------------------------------------------------------------------
# In-kernel helpers: conv3x3 as 9 shifted sub-matmuls (im2col fused away)
# ---------------------------------------------------------------------------
def _accum_conv_s1(x_ref, w_ref, ho, wo):
    """Stride-1 conv. x_ref: (1, H+2, W+2, Cin) zero-padded; w_ref: (9, Cin, Cout)."""
    acc = None
    for ky in range(3):
        for kx in range(3):
            patch = x_ref[0, ky:ky + ho, kx:kx + wo, :]            # (ho, wo, Cin)
            lhs = patch.reshape(ho * wo, patch.shape[-1])
            t = jnp.dot(lhs, w_ref[3 * ky + kx],
                        preferred_element_type=jnp.float32)
            acc = t if acc is None else acc + t
    return acc                                                      # (ho*wo, Cout) f32


def _accum_conv_s2(x_ref, w_ref, ho, wo):
    """Stride-2 conv. x_ref: (1, 4, Hh, Wh, Cin) parity planes of the padded
    input (plane 2*p+q holds rows p::2 / cols q::2); w_ref: (9, Cin, Cout)."""
    acc = None
    for ky in range(3):
        for kx in range(3):
            p, dy = ky % 2, ky // 2
            q, dx = kx % 2, kx // 2
            patch = x_ref[0, 2 * p + q, dy:dy + ho, dx:dx + wo, :]  # (ho, wo, Cin)
            lhs = patch.reshape(ho * wo, patch.shape[-1])
            t = jnp.dot(lhs, w_ref[3 * ky + kx],
                        preferred_element_type=jnp.float32)
            acc = t if acc is None else acc + t
    return acc


def _bn_lrelu(acc, scale, shift, slope):
    y = acc * scale + shift                  # folded conv-bias + BatchNorm (inference)
    return jnp.maximum(y, slope * y)         # leaky_relu without compare+select


# ---------------------------------------------------------------------------
# Pallas kernels (one image per grid step; grid over batch)
# ---------------------------------------------------------------------------
def _conv_s1_kernel(x_ref, w_ref, scale_ref, shift_ref, o_ref, *, slope):
    _, ho, wo, cout = o_ref.shape
    acc = _accum_conv_s1(x_ref, w_ref, ho, wo)
    y = _bn_lrelu(acc, scale_ref[...], shift_ref[...], slope)
    o_ref[...] = y.reshape(1, ho, wo, cout).astype(o_ref.dtype)


def _conv_s2_kernel(x_ref, w_ref, scale_ref, shift_ref, o_ref, *, slope):
    _, ho, wo, cout = o_ref.shape
    acc = _accum_conv_s2(x_ref, w_ref, ho, wo)
    y = _bn_lrelu(acc, scale_ref[...], shift_ref[...], slope)
    o_ref[...] = y.reshape(1, ho, wo, cout).astype(o_ref.dtype)


def _conv4_tail_kernel(x_ref, w_ref, scale_ref, shift_ref, fcw_ref, fcb_ref,
                       o_ref, *, slope, ho, wo):
    # conv4 + BN + leaky_relu + adaptive avg pool + fc + tanh, all fused.
    acc = _accum_conv_s2(x_ref, w_ref, ho, wo)                      # (ho*wo, 256) f32
    y = _bn_lrelu(acc, scale_ref[...], shift_ref[...], slope)
    pooled = jnp.mean(y, axis=0, keepdims=True)                     # (1, 256)
    z = jnp.dot(pooled.astype(fcw_ref.dtype), fcw_ref[...],
                preferred_element_type=jnp.float32)                 # (1, 512)
    z = jnp.tanh(z + fcb_ref[...])
    o_ref[...] = z.reshape(1, 1, z.shape[-1])


# ---------------------------------------------------------------------------
# Wrapper-side layout plumbing (zero-padding / parity split only — no im2col)
# ---------------------------------------------------------------------------
def _pad1(x):
    return jnp.pad(x, ((0, 0), (1, 1), (1, 1), (0, 0)))


def _pad1_parity_split(x):
    """Zero-pad 1 on H/W and split into the 4 stride-2 parity planes:
    out[n, 2*p+q, i, j, c] == padded[n, 2*i+p, 2*j+q, c]."""
    xp = _pad1(x)
    n, hp, wp, c = xp.shape
    if hp % 2:
        xp = jnp.pad(xp, ((0, 0), (0, 1), (0, 0), (0, 0)))
        hp += 1
    if wp % 2:
        xp = jnp.pad(xp, ((0, 0), (0, 0), (0, 1), (0, 0)))
        wp += 1
    x6 = xp.reshape(n, hp // 2, 2, wp // 2, 2, c)
    x6 = jnp.transpose(x6, (0, 2, 4, 1, 3, 5))          # (n, 2, 2, Hh, Wh, c)
    return x6.reshape(n, 4, hp // 2, wp // 2, c)


def _compiler_params():
    return pltpu.CompilerParams(dimension_semantics=("parallel",),
                                vmem_limit_bytes=_VMEM_LIMIT)


def conv3x3_s1_bn_lrelu(x, w9, scale, shift, *, slope=_SLOPE,
                        out_dtype=jnp.bfloat16):
    """x: (N,H,W,Cin) bf16; w9: (9,Cin,Cout) bf16; scale/shift: (1,Cout) f32."""
    n, h, w_, cin = x.shape
    cout = w9.shape[-1]
    xp = _pad1(x)
    return pl.pallas_call(
        functools.partial(_conv_s1_kernel, slope=slope),
        out_shape=jax.ShapeDtypeStruct((n, h, w_, cout), out_dtype),
        grid=(n,),
        in_specs=[
            pl.BlockSpec((1, h + 2, w_ + 2, cin), lambda i: (i, 0, 0, 0)),
            pl.BlockSpec((9, cin, cout), lambda i: (0, 0, 0)),      # resident weights
            pl.BlockSpec((1, cout), lambda i: (0, 0)),
            pl.BlockSpec((1, cout), lambda i: (0, 0)),
        ],
        out_specs=pl.BlockSpec((1, h, w_, cout), lambda i: (i, 0, 0, 0)),
        compiler_params=_compiler_params(),
    )(xp, w9, scale, shift)


def conv3x3_s2_bn_lrelu(x, w9, scale, shift, *, slope=_SLOPE,
                        out_dtype=jnp.bfloat16):
    """Stride-2, padding-1 conv + folded BN + leaky_relu."""
    n, h, w_, cin = x.shape
    cout = w9.shape[-1]
    ho, wo = (h + 1) // 2, (w_ + 1) // 2
    xs = _pad1_parity_split(x)
    _, _, hh, wh, _ = xs.shape
    return pl.pallas_call(
        functools.partial(_conv_s2_kernel, slope=slope),
        out_shape=jax.ShapeDtypeStruct((n, ho, wo, cout), out_dtype),
        grid=(n,),
        in_specs=[
            pl.BlockSpec((1, 4, hh, wh, cin), lambda i: (i, 0, 0, 0, 0)),
            pl.BlockSpec((9, cin, cout), lambda i: (0, 0, 0)),
            pl.BlockSpec((1, cout), lambda i: (0, 0)),
            pl.BlockSpec((1, cout), lambda i: (0, 0)),
        ],
        out_specs=pl.BlockSpec((1, ho, wo, cout), lambda i: (i, 0, 0, 0)),
        compiler_params=_compiler_params(),
    )(xs, w9, scale, shift)


def conv4_pool_fc_tanh(x, w9, scale, shift, fc_w, fc_b, *, slope=_SLOPE):
    """Fused tail: conv4(s2) + BN + leaky_relu + avg-pool + fc + tanh."""
    n, h, w_, cin = x.shape
    cout = w9.shape[-1]
    f = fc_w.shape[-1]
    ho, wo = (h + 1) // 2, (w_ + 1) // 2
    xs = _pad1_parity_split(x)
    _, _, hh, wh, _ = xs.shape
    out = pl.pallas_call(
        functools.partial(_conv4_tail_kernel, slope=slope, ho=ho, wo=wo),
        out_shape=jax.ShapeDtypeStruct((n, 1, f), jnp.float32),
        grid=(n,),
        in_specs=[
            pl.BlockSpec((1, 4, hh, wh, cin), lambda i: (i, 0, 0, 0, 0)),
            pl.BlockSpec((9, cin, cout), lambda i: (0, 0, 0)),
            pl.BlockSpec((1, cout), lambda i: (0, 0)),
            pl.BlockSpec((1, cout), lambda i: (0, 0)),
            pl.BlockSpec((cout, f), lambda i: (0, 0)),
            pl.BlockSpec((1, f), lambda i: (0, 0)),
        ],
        out_specs=pl.BlockSpec((1, 1, f), lambda i: (i, 0, 0)),
        compiler_params=_compiler_params(),
    )(xs, w9, scale, shift, fc_w, fc_b)
    return out[:, 0, :]


# ---------------------------------------------------------------------------
# Parameter folding / initialization
# ---------------------------------------------------------------------------
def fold_bn(conv_b, gamma, beta, mean, var, eps=1e-5):
    """Fold BatchNorm (inference) + conv bias into per-channel scale/shift."""
    scale = gamma / jnp.sqrt(var + eps)
    shift = (conv_b - mean) * scale + beta
    return (scale.reshape(1, -1).astype(jnp.float32),
            shift.reshape(1, -1).astype(jnp.float32))


def init_params(key, in_channels):
    ks = jax.random.split(key, 16)
    p = {}

    # Conv weights stored as (3, 3, Cin, Cout).  NOTE: real PyTorch Conv2d
    # weights are (Cout, Cin, kh, kw) and must be permuted (2, 3, 1, 0) before
    # the reshape to (9, Cin, Cout) used by the kernels.
    def conv_w(k, cin, cout):
        return 0.1 * jax.random.normal(k, (3, 3, cin, cout), jnp.float32)

    p["refine_w"] = conv_w(ks[0], in_channels, 32)
    p["refine_b"] = 0.05 * jax.random.normal(ks[1], (32,), jnp.float32)

    specs = [(32, 64), (64, 64), (64, 128), (128, 256)]
    for i, (cin, cout) in enumerate(specs, start=1):
        p[f"conv{i}_w"] = conv_w(ks[2 * i], cin, cout)
        p[f"conv{i}_b"] = 0.05 * jax.random.normal(ks[2 * i + 1], (cout,), jnp.float32)
        # deterministic, non-trivial BN stats (inference mode)
        p[f"bn{i}_gamma"] = 1.0 + 0.1 * jnp.cos(jnp.arange(cout, dtype=jnp.float32))
        p[f"bn{i}_beta"] = 0.05 * jnp.sin(jnp.arange(cout, dtype=jnp.float32))
        p[f"bn{i}_mean"] = 0.01 * jnp.arange(cout, dtype=jnp.float32) / cout
        p[f"bn{i}_var"] = 1.0 + 0.1 * jnp.sin(jnp.arange(cout, dtype=jnp.float32)) ** 2

    p["fc_w"] = 0.05 * jax.random.normal(ks[10], (256, 512), jnp.float32)
    p["fc_b"] = 0.05 * jax.random.normal(ks[11], (512,), jnp.float32)
    return p


# ---------------------------------------------------------------------------
# Forward pass (mirrors FontClassifier.forward)
# ---------------------------------------------------------------------------
def font_classifier_forward(x_nchw, params):
    in_channels = x_nchw.shape[1]
    # NCHW -> NHWC, bf16 activations (full-rate MXU path, halved HBM traffic).
    x = jnp.transpose(x_nchw, (0, 2, 3, 1)).astype(jnp.bfloat16)

    # refine: conv3x3 s1 p1 + leaky_relu (no BN -> scale=1, shift=conv bias).
    w = params["refine_w"].reshape(9, in_channels, 32).astype(jnp.bfloat16)
    x = conv3x3_s1_bn_lrelu(
        x, w, jnp.ones((1, 32), jnp.float32),
        params["refine_b"].reshape(1, 32).astype(jnp.float32))

    # conv1..conv3: conv3x3 s2 p1 + BN + leaky_relu, each one fused kernel.
    for idx, cin, cout in [(1, 32, 64), (2, 64, 64), (3, 64, 128)]:
        w = params[f"conv{idx}_w"].reshape(9, cin, cout).astype(jnp.bfloat16)
        scale, shift = fold_bn(params[f"conv{idx}_b"],
                               params[f"bn{idx}_gamma"], params[f"bn{idx}_beta"],
                               params[f"bn{idx}_mean"], params[f"bn{idx}_var"])
        x = conv3x3_s2_bn_lrelu(x, w, scale, shift)

    # conv4 + BN + leaky_relu + adaptive avg pool + fc + tanh in one kernel.
    w4 = params["conv4_w"].reshape(9, 128, 256).astype(jnp.bfloat16)
    scale4, shift4 = fold_bn(params["conv4_b"], params["bn4_gamma"],
                             params["bn4_beta"], params["bn4_mean"],
                             params["bn4_var"])
    return conv4_pool_fc_tanh(
        x, w4, scale4, shift4,
        params["fc_w"].astype(jnp.bfloat16),
        params["fc_b"].reshape(1, 512).astype(jnp.float32))   # (N, 512) f32


# TODO(synk): forward_pair / self.classifier are not exercised by forward(); not implemented.


if __name__ == "__main__":
    key = jax.random.PRNGKey(0)
    k_x, k_p = jax.random.split(key)
    in_channels = 4
    x = jax.random.normal(k_x, (2, in_channels, 16, 16), jnp.float32)  # NCHW like PyTorch
    params = init_params(k_p, in_channels)

    fwd = jax.jit(font_classifier_forward)
    out = jax.block_until_ready(fwd(x, params))
    assert out.shape == (2, 512), out.shape
    assert bool(jnp.all(jnp.isfinite(out)))
    print("KERNEL_OK")
</pallas_src>

<mosaic_0001>
module attributes {stable_mosaic.version = 11 : i64} {
  func.func @_conv_s1_kernel(%arg0: i32, %arg1: memref<1x18x18x4xbf16, #tpu.memory_space<vmem>>, %arg2: memref<9x4x32xbf16, #tpu.memory_space<vmem>>, %arg3: memref<1x32xf32, #tpu.memory_space<vmem>>, %arg4: memref<1x32xf32, #tpu.memory_space<vmem>>, %arg5: memref<1x16x16x32xbf16, #tpu.memory_space<vmem>>) attributes {dimension_semantics = [#tpu.dimension_semantics<parallel>], iteration_bounds = array<i64: 2>, scalar_prefetch = 0 : i64, scratch_operands = 0 : i64, tpu.core_type = #tpu.core_type<tc>, window_params = [{transform_indices = @transform_0, window_bounds = array<i64: 1, 18, 18, 4>}, {pipeline_mode = #tpu.pipeline_mode<synchronous>, transform_indices = @transform_1, window_bounds = array<i64: 9, 4, 32>}, {pipeline_mode = #tpu.pipeline_mode<synchronous>, transform_indices = @transform_2, window_bounds = array<i64: 1, 32>}, {pipeline_mode = #tpu.pipeline_mode<synchronous>, transform_indices = @transform_3, window_bounds = array<i64: 1, 32>}, {transform_indices = @transform_4, window_bounds = array<i64: 1, 16, 16, 32>}]} {
    %c0 = arith.constant 0 : index
    %c0_0 = arith.constant 0 : index
    %c0_1 = arith.constant 0 : index
    %c0_2 = arith.constant 0 : index
    %0 = vector.load %arg1[%c0, %c0_0, %c0_1, %c0_2] : memref<1x18x18x4xbf16, #tpu.memory_space<vmem>>, vector<1x16x16x4xbf16>
    %1 = vector.shape_cast %0 : vector<1x16x16x4xbf16> to vector<16x16x4xbf16>
    %2 = vector.shape_cast %1 : vector<16x16x4xbf16> to vector<256x4xbf16>
    %c0_3 = arith.constant 0 : index
    %c0_4 = arith.constant 0 : index
    %c0_5 = arith.constant 0 : index
    %3 = vector.load %arg2[%c0_3, %c0_4, %c0_5] : memref<9x4x32xbf16, #tpu.memory_space<vmem>>, vector<1x4x32xbf16>
    %4 = vector.shape_cast %3 : vector<1x4x32xbf16> to vector<4x32xbf16>
    %cst = arith.constant dense<0.000000e+00> : vector<256x32xf32>
    %5 = tpu.matmul %2, %4, %cst {dimension_numbers = #tpu.dot_dimension_numbers<[1], [0], [0], [1], [0, 0, 1, 1], [], []>} : vector<256x4xbf16>, vector<4x32xbf16>, vector<256x32xf32> -> vector<256x32xf32>
    %c0_6 = arith.constant 0 : index
    %c0_7 = arith.constant 0 : index
    %c1 = arith.constant 1 : index
    %c0_8 = arith.constant 0 : index
    %6 = vector.load %arg1[%c0_6, %c0_7, %c1, %c0_8] : memref<1x18x18x4xbf16, #tpu.memory_space<vmem>>, vector<1x16x16x4xbf16>
    %7 = vector.shape_cast %6 : vector<1x16x16x4xbf16> to vector<16x16x4xbf16>
    %8 = vector.shape_cast %7 : vector<16x16x4xbf16> to vector<256x4xbf16>
    %c1_9 = arith.constant 1 : index
    %c0_10 = arith.constant 0 : index
    %c0_11 = arith.constant 0 : index
    %9 = vector.load %arg2[%c1_9, %c0_10, %c0_11] : memref<9x4x32xbf16, #tpu.memory_space<vmem>>, vector<1x4x32xbf16>
    %10 = vector.shape_cast %9 : vector<1x4x32xbf16> to vector<4x32xbf16>
    %cst_12 = arith.constant dense<0.000000e+00> : vector<256x32xf32>
    %11 = tpu.matmul %8, %10, %cst_12 {dimension_numbers = #tpu.dot_dimension_numbers<[1], [0], [0], [1], [0, 0, 1, 1], [], []>} : vector<256x4xbf16>, vector<4x32xbf16>, vector<256x32xf32> -> vector<256x32xf32>
    %12 = arith.addf %5, %11 : vector<256x32xf32>
    %c0_13 = arith.constant 0 : index
    %c0_14 = arith.constant 0 : index
    %c2 = arith.constant 2 : index
    %c0_15 = arith.constant 0 : index
    %13 = vector.load %arg1[%c0_13, %c0_14, %c2, %c0_15] : memref<1x18x18x4xbf16, #tpu.memory_space<vmem>>, vector<1x16x16x4xbf16>
    %14 = vector.shape_cast %13 : vector<1x16x16x4xbf16> to vector<16x16x4xbf16>
    %15 = vector.shape_cast %14 : vector<16x16x4xbf16> to vector<256x4xbf16>
    %c2_16 = arith.constant 2 : index
    %c0_17 = arith.constant 0 : index
    %c0_18 = arith.constant 0 : index
    %16 = vector.load %arg2[%c2_16, %c0_17, %c0_18] : memref<9x4x32xbf16, #tpu.memory_space<vmem>>, vector<1x4x32xbf16>
    %17 = vector.shape_cast %16 : vector<1x4x32xbf16> to vector<4x32xbf16>
    %cst_19 = arith.constant dense<0.000000e+00> : vector<256x32xf32>
    %18 = tpu.matmul %15, %17, %cst_19 {dimension_numbers = #tpu.dot_dimension_numbers<[1], [0], [0], [1], [0, 0, 1, 1], [], []>} : vector<256x4xbf16>, vector<4x32xbf16>, vector<256x32xf32> -> vector<256x32xf32>
    %19 = arith.addf %12, %18 : vector<256x32xf32>
    %c0_20 = arith.constant 0 : index
    %c1_21 = arith.constant 1 : index
    %c0_22 = arith.constant 0 : index
    %c0_23 = arith.constant 0 : index
    %20 = vector.load %arg1[%c0_20, %c1_21, %c0_22, %c0_23] : memref<1x18x18x4xbf16, #tpu.memory_space<vmem>>, vector<1x16x16x4xbf16>
    %21 = vector.shape_cast %20 : vector<1x16x16x4xbf16> to vector<16x16x4xbf16>
    %22 = vector.shape_cast %21 : vector<16x16x4xbf16> to vector<256x4xbf16>
    %c3 = arith.constant 3 : index
    %c0_24 = arith.constant 0 : index
    %c0_25 = arith.constant 0 : index
    %23 = vector.load %arg2[%c3, %c0_24, %c0_25] : memref<9x4x32xbf16, #tpu.memory_space<vmem>>, vector<1x4x32xbf16>
    %24 = vector.shape_cast %23 : vector<1x4x32xbf16> to vector<4x32xbf16>
    %cst_26 = arith.constant dense<0.000000e+00> : vector<256x32xf32>
    %25 = tpu.matmul %22, %24, %cst_26 {dimension_numbers = #tpu.dot_dimension_numbers<[1], [0], [0], [1], [0, 0, 1, 1], [], []>} : vector<256x4xbf16>, vector<4x32xbf16>, vector<256x32xf32> -> vector<256x32xf32>
    %26 = arith.addf %19, %25 : vector<256x32xf32>
    %c0_27 = arith.constant 0 : index
    %c1_28 = arith.constant 1 : index
    %c1_29 = arith.constant 1 : index
    %c0_30 = arith.constant 0 : index
    %27 = vector.load %arg1[%c0_27, %c1_28, %c1_29, %c0_30] : memref<1x18x18x4xbf16, #tpu.memory_space<vmem>>, vector<1x16x16x4xbf16>
    %28 = vector.shape_cast %27 : vector<1x16x16x4xbf16> to vector<16x16x4xbf16>
    %29 = vector.shape_cast %28 : vector<16x16x4xbf16> to vector<256x4xbf16>
    %c4 = arith.constant 4 : index
    %c0_31 = arith.constant 0 : index
    %c0_32 = arith.constant 0 : index
    %30 = vector.load %arg2[%c4, %c0_31, %c0_32] : memref<9x4x32xbf16, #tpu.memory_space<vmem>>, vector<1x4x32xbf16>
    %31 = vector.shape_cast %30 : vector<1x4x32xbf16> to vector<4x32xbf16>
    %cst_33 = arith.constant dense<0.000000e+00> : vector<256x32xf32>
    %32 = tpu.matmul %29, %31, %cst_33 {dimension_numbers = #tpu.dot_dimension_numbers<[1], [0], [0], [1], [0, 0, 1, 1], [], []>} : vector<256x4xbf16>, vector<4x32xbf16>, vector<256x32xf32> -> vector<256x32xf32>
    %33 = arith.addf %26, %32 : vector<256x32xf32>
    %c0_34 = arith.constant 0 : index
    %c1_35 = arith.constant 1 : index
    %c2_36 = arith.constant 2 : index
    %c0_37 = arith.constant 0 : index
    %34 = vector.load %arg1[%c0_34, %c1_35, %c2_36, %c0_37] : memref<1x18x18x4xbf16, #tpu.memory_space<vmem>>, vector<1x16x16x4xbf16>
    %35 = vector.shape_cast %34 : vector<1x16x16x4xbf16> to vector<16x16x4xbf16>
    %36 = vector.shape_cast %35 : vector<16x16x4xbf16> to vector<256x4xbf16>
    %c5 = arith.constant 5 : index
    %c0_38 = arith.constant 0 : index
    %c0_39 = arith.constant 0 : index
    %37 = vector.load %arg2[%c5, %c0_38, %c0_39] : memref<9x4x32xbf16, #tpu.memory_space<vmem>>, vector<1x4x32xbf16>
    %38 = vector.shape_cast %37 : vector<1x4x32xbf16> to vector<4x32xbf16>
    %cst_40 = arith.constant dense<0.000000e+00> : vector<256x32xf32>
    %39 = tpu.matmul %36, %38, %cst_40 {dimension_numbers = #tpu.dot_dimension_numbers<[1], [0], [0], [1], [0, 0, 1, 1], [], []>} : vector<256x4xbf16>, vector<4x32xbf16>, vector<256x32xf32> -> vector<256x32xf32>
    %40 = arith.addf %33, %39 : vector<256x32xf32>
    %c0_41 = arith.constant 0 : index
    %c2_42 = arith.constant 2 : index
    %c0_43 = arith.constant 0 : index
    %c0_44 = arith.constant 0 : index
    %41 = vector.load %arg1[%c0_41, %c2_42, %c0_43, %c0_44] : memref<1x18x18x4xbf16, #tpu.memory_space<vmem>>, vector<1x16x16x4xbf16>
    %42 = vector.shape_cast %41 : vector<1x16x16x4xbf16> to vector<16x16x4xbf16>
    %43 = vector.shape_cast %42 : vector<16x16x4xbf16> to vector<256x4xbf16>
    %c6 = arith.constant 6 : index
    %c0_45 = arith.constant 0 : index
    %c0_46 = arith.constant 0 : index
    %44 = vector.load %arg2[%c6, %c0_45, %c0_46] : memref<9x4x32xbf16, #tpu.memory_space<vmem>>, vector<1x4x32xbf16>
    %45 = vector.shape_cast %44 : vector<1x4x32xbf16> to vector<4x32xbf16>
    %cst_47 = arith.constant dense<0.000000e+00> : vector<256x32xf32>
    %46 = tpu.matmul %43, %45, %cst_47 {dimension_numbers = #tpu.dot_dimension_numbers<[1], [0], [0], [1], [0, 0, 1, 1], [], []>} : vector<256x4xbf16>, vector<4x32xbf16>, vector<256x32xf32> -> vector<256x32xf32>
    %47 = arith.addf %40, %46 : vector<256x32xf32>
    %c0_48 = arith.constant 0 : index
    %c2_49 = arith.constant 2 : index
    %c1_50 = arith.constant 1 : index
    %c0_51 = arith.constant 0 : index
    %48 = vector.load %arg1[%c0_48, %c2_49, %c1_50, %c0_51] : memref<1x18x18x4xbf16, #tpu.memory_space<vmem>>, vector<1x16x16x4xbf16>
    %49 = vector.shape_cast %48 : vector<1x16x16x4xbf16> to vector<16x16x4xbf16>
    %50 = vector.shape_cast %49 : vector<16x16x4xbf16> to vector<256x4xbf16>
    %c7 = arith.constant 7 : index
    %c0_52 = arith.constant 0 : index
    %c0_53 = arith.constant 0 : index
    %51 = vector.load %arg2[%c7, %c0_52, %c0_53] : memref<9x4x32xbf16, #tpu.memory_space<vmem>>, vector<1x4x32xbf16>
    %52 = vector.shape_cast %51 : vector<1x4x32xbf16> to vector<4x32xbf16>
    %cst_54 = arith.constant dense<0.000000e+00> : vector<256x32xf32>
    %53 = tpu.matmul %50, %52, %cst_54 {dimension_numbers = #tpu.dot_dimension_numbers<[1], [0], [0], [1], [0, 0, 1, 1], [], []>} : vector<256x4xbf16>, vector<4x32xbf16>, vector<256x32xf32> -> vector<256x32xf32>
    %54 = arith.addf %47, %53 : vector<256x32xf32>
    %c0_55 = arith.constant 0 : index
    %c2_56 = arith.constant 2 : index
    %c2_57 = arith.constant 2 : index
    %c0_58 = arith.constant 0 : index
    %55 = vector.load %arg1[%c0_55, %c2_56, %c2_57, %c0_58] : memref<1x18x18x4xbf16, #tpu.memory_space<vmem>>, vector<1x16x16x4xbf16>
    %56 = vector.shape_cast %55 : vector<1x16x16x4xbf16> to vector<16x16x4xbf16>
    %57 = vector.shape_cast %56 : vector<16x16x4xbf16> to vector<256x4xbf16>
    %c8 = arith.constant 8 : index
    %c0_59 = arith.constant 0 : index
    %c0_60 = arith.constant 0 : index
    %58 = vector.load %arg2[%c8, %c0_59, %c0_60] : memref<9x4x32xbf16, #tpu.memory_space<vmem>>, vector<1x4x32xbf16>
    %59 = vector.shape_cast %58 : vector<1x4x32xbf16> to vector<4x32xbf16>
    %cst_61 = arith.constant dense<0.000000e+00> : vector<256x32xf32>
    %60 = tpu.matmul %57, %59, %cst_61 {dimension_numbers = #tpu.dot_dimension_numbers<[1], [0], [0], [1], [0, 0, 1, 1], [], []>} : vector<256x4xbf16>, vector<4x32xbf16>, vector<256x32xf32> -> vector<256x32xf32>
    %61 = arith.addf %54, %60 : vector<256x32xf32>
    %c0_62 = arith.constant 0 : index
    %c0_63 = arith.constant 0 : index
    %62 = vector.load %arg3[%c0_62, %c0_63] : memref<1x32xf32, #tpu.memory_space<vmem>>, vector<1x32xf32>
    %c0_64 = arith.constant 0 : index
    %c0_65 = arith.constant 0 : index
    %63 = vector.load %arg4[%c0_64, %c0_65] : memref<1x32xf32, #tpu.memory_space<vmem>>, vector<1x32xf32>
    %64 = vector.broadcast %62 : vector<1x32xf32> to vector<256x32xf32>
    %65 = arith.mulf %61, %64 : vector<256x32xf32>
    %66 = vector.broadcast %63 : vector<1x32xf32> to vector<256x32xf32>
    %67 = arith.addf %65, %66 : vector<256x32xf32>
    %cst_66 = arith.constant 0.00999999977 : f32
    %68 = vector.broadcast %cst_66 : f32 to vector<256x32xf32>
    %69 = arith.mulf %68, %67 : vector<256x32xf32>
    %70 = arith.maximumf %67, %69 : vector<256x32xf32>
    %71 = vector.shape_cast %70 : vector<256x32xf32> to vector<1x16x16x32xf32>
    %72 = arith.truncf %71 : vector<1x16x16x32xf32> to vector<1x16x16x32xbf16>
    %c0_67 = arith.constant 0 : index
    %c0_68 = arith.constant 0 : index
    %c0_69 = arith.constant 0 : index
    %c0_70 = arith.constant 0 : index
    %73 = vector.load %arg5[%c0_67, %c0_68, %c0_69, %c0_70] : memref<1x16x16x32xbf16, #tpu.memory_space<vmem>>, vector<1x16x16x32xbf16>
    tpu.vector_store %arg5[%c0_67, %c0_68, %c0_69, %c0_70], %72 {strides = array<i32>} : memref<1x16x16x32xbf16, #tpu.memory_space<vmem>>, vector<1x16x16x32xbf16>,
    return
  }
  func.func @transform_0(%arg0: i32) -> (i32, i32, i32, i32) {
    %c0_i32 = arith.constant 0 : i32
    %c0_i32_0 = arith.constant 0 : i32
    %c0_i32_1 = arith.constant 0 : i32
    %c0_i32_2 = arith.constant 0 : i32
    return %arg0, %c0_i32, %c0_i32_0, %c0_i32_1 : i32, i32, i32, i32
  }
  func.func @transform_1(%arg0: i32) -> (i32, i32, i32) {
    %c0_i32 = arith.constant 0 : i32
    %c0_i32_0 = arith.constant 0 : i32
    %c0_i32_1 = arith.constant 0 : i32
    %c0_i32_2 = arith.constant 0 : i32
    return %c0_i32, %c0_i32_0, %c0_i32_1 : i32, i32, i32
  }
  func.func @transform_2(%arg0: i32) -> (i32, i32) {
    %c0_i32 = arith.constant 0 : i32
    %c0_i32_0 = arith.constant 0 : i32
    %c0_i32_1 = arith.constant 0 : i32
    return %c0_i32, %c0_i32_0 : i32, i32
  }
  func.func @transform_3(%arg0: i32) -> (i32, i32) {
    %c0_i32 = arith.constant 0 : i32
    %c0_i32_0 = arith.constant 0 : i32
    %c0_i32_1 = arith.constant 0 : i32
    return %c0_i32, %c0_i32_0 : i32, i32
  }
  func.func @transform_4(%arg0: i32) -> (i32, i32, i32, i32) {
    %c0_i32 = arith.constant 0 : i32
    %c0_i32_0 = arith.constant 0 : i32
    %c0_i32_1 = arith.constant 0 : i32
    %c0_i32_2 = arith.constant 0 : i32
    return %arg0, %c0_i32, %c0_i32_0, %c0_i32_1 : i32, i32, i32, i32
  }
}

module attributes {stable_mosaic.version = 11 : i64} {
  func.func @_conv_s2_kernel(%arg0: i32, %arg1: memref<1x4x9x9x32xbf16, #tpu.memory_space<vmem>>, %arg2: memref<9x32x64xbf16, #tpu.memory_space<vmem>>, %arg3: memref<1x64xf32, #tpu.memory_space<vmem>>, %arg4: memref<1x64xf32, #tpu.memory_space<vmem>>, %arg5: memref<1x8x8x64xbf16, #tpu.memory_space<vmem>>) attributes {dimension_semantics = [#tpu.dimension_semantics<parallel>], iteration_bounds = array<i64: 2>, scalar_prefetch = 0 : i64, scratch_operands = 0 : i64, tpu.core_type = #tpu.core_type<tc>, window_params = [{transform_indices = @transform_0, window_bounds = array<i64: 1, 4, 9, 9, 32>}, {pipeline_mode = #tpu.pipeline_mode<synchronous>, transform_indices = @transform_1, window_bounds = array<i64: 9, 32, 64>}, {pipeline_mode = #tpu.pipeline_mode<synchronous>, transform_indices = @transform_2, window_bounds = array<i64: 1, 64>}, {pipeline_mode = #tpu.pipeline_mode<synchronous>, transform_indices = @transform_3, window_bounds = array<i64: 1, 64>}, {transform_indices = @transform_4, window_bounds = array<i64: 1, 8, 8, 64>}]} {
    %c0 = arith.constant 0 : index
    %c0_0 = arith.constant 0 : index
    %c0_1 = arith.constant 0 : index
    %c0_2 = arith.constant 0 : index
    %c0_3 = arith.constant 0 : index
    %0 = vector.load %arg1[%c0, %c0_0, %c0_1, %c0_2, %c0_3] : memref<1x4x9x9x32xbf16, #tpu.memory_space<vmem>>, vector<1x1x8x8x32xbf16>
    %1 = vector.shape_cast %0 : vector<1x1x8x8x32xbf16> to vector<8x8x32xbf16>
    %2 = vector.shape_cast %1 : vector<8x8x32xbf16> to vector<64x32xbf16>
    %c0_4 = arith.constant 0 : index
    %c0_5 = arith.constant 0 : index
    %c0_6 = arith.constant 0 : index
    %3 = vector.load %arg2[%c0_4, %c0_5, %c0_6] : memref<9x32x64xbf16, #tpu.memory_space<vmem>>, vector<1x32x64xbf16>
    %4 = vector.shape_cast %3 : vector<1x32x64xbf16> to vector<32x64xbf16>
    %cst = arith.constant dense<0.000000e+00> : vector<64x64xf32>
    %5 = tpu.matmul %2, %4, %cst {dimension_numbers = #tpu.dot_dimension_numbers<[1], [0], [0], [1], [0, 0, 1, 1], [], []>} : vector<64x32xbf16>, vector<32x64xbf16>, vector<64x64xf32> -> vector<64x64xf32>
    %c0_7 = arith.constant 0 : index
    %c1 = arith.constant 1 : index
    %c0_8 = arith.constant 0 : index
    %c0_9 = arith.constant 0 : index
    %c0_10 = arith.constant 0 : index
    %6 = vector.load %arg1[%c0_7, %c1, %c0_8, %c0_9, %c0_10] : memref<1x4x9x9x32xbf16, #tpu.memory_space<vmem>>, vector<1x1x8x8x32xbf16>
    %7 = vector.shape_cast %6 : vector<1x1x8x8x32xbf16> to vector<8x8x32xbf16>
    %8 = vector.shape_cast %7 : vector<8x8x32xbf16> to vector<64x32xbf16>
    %c1_11 = arith.constant 1 : index
    %c0_12 = arith.constant 0 : index
    %c0_13 = arith.constant 0 : index
    %9 = vector.load %arg2[%c1_11, %c0_12, %c0_13] : memref<9x32x64xbf16, #tpu.memory_space<vmem>>, vector<1x32x64xbf16>
    %10 = vector.shape_cast %9 : vector<1x32x64xbf16> to vector<32x64xbf16>
    %cst_14 = arith.constant dense<0.000000e+00> : vector<64x64xf32>
    %11 = tpu.matmul %8, %10, %cst_14 {dimension_numbers = #tpu.dot_dimension_numbers<[1], [0], [0], [1], [0, 0, 1, 1], [], []>} : vector<64x32xbf16>, vector<32x64xbf16>, vector<64x64xf32> -> vector<64x64xf32>
    %12 = arith.addf %5, %11 : vector<64x64xf32>
    %c0_15 = arith.constant 0 : index
    %c0_16 = arith.constant 0 : index
    %c0_17 = arith.constant 0 : index
    %c1_18 = arith.constant 1 : index
    %c0_19 = arith.constant 0 : index
    %13 = vector.load %arg1[%c0_15, %c0_16, %c0_17, %c1_18, %c0_19] : memref<1x4x9x9x32xbf16, #tpu.memory_space<vmem>>, vector<1x1x8x8x32xbf16>
    %14 = vector.shape_cast %13 : vector<1x1x8x8x32xbf16> to vector<8x8x32xbf16>
    %15 = vector.shape_cast %14 : vector<8x8x32xbf16> to vector<64x32xbf16>
    %c2 = arith.constant 2 : index
    %c0_20 = arith.constant 0 : index
    %c0_21 = arith.constant 0 : index
    %16 = vector.load %arg2[%c2, %c0_20, %c0_21] : memref<9x32x64xbf16, #tpu.memory_space<vmem>>, vector<1x32x64xbf16>
    %17 = vector.shape_cast %16 : vector<1x32x64xbf16> to vector<32x64xbf16>
    %cst_22 = arith.constant dense<0.000000e+00> : vector<64x64xf32>
    %18 = tpu.matmul %15, %17, %cst_22 {dimension_numbers = #tpu.dot_dimension_numbers<[1], [0], [0], [1], [0, 0, 1, 1], [], []>} : vector<64x32xbf16>, vector<32x64xbf16>, vector<64x64xf32> -> vector<64x64xf32>
    %19 = arith.addf %12, %18 : vector<64x64xf32>
    %c0_23 = arith.constant 0 : index
    %c2_24 = arith.constant 2 : index
    %c0_25 = arith.constant 0 : index
    %c0_26 = arith.constant 0 : index
    %c0_27 = arith.constant 0 : index
    %20 = vector.load %arg1[%c0_23, %c2_24, %c0_25, %c0_26, %c0_27] : memref<1x4x9x9x32xbf16, #tpu.memory_space<vmem>>, vector<1x1x8x8x32xbf16>
    %21 = vector.shape_cast %20 : vector<1x1x8x8x32xbf16> to vector<8x8x32xbf16>
    %22 = vector.shape_cast %21 : vector<8x8x32xbf16> to vector<64x32xbf16>
    %c3 = arith.constant 3 : index
    %c0_28 = arith.constant 0 : index
    %c0_29 = arith.constant 0 : index
    %23 = vector.load %arg2[%c3, %c0_28, %c0_29] : memref<9x32x64xbf16, #tpu.memory_space<vmem>>, vector<1x32x64xbf16>
    %24 = vector.shape_cast %23 : vector<1x32x64xbf16> to vector<32x64xbf16>
    %cst_30 = arith.constant dense<0.000000e+00> : vector<64x64xf32>
    %25 = tpu.matmul %22, %24, %cst_30 {dimension_numbers = #tpu.dot_dimension_numbers<[1], [0], [0], [1], [0, 0, 1, 1], [], []>} : vector<64x32xbf16>, vector<32x64xbf16>, vector<64x64xf32> -> vector<64x64xf32>
    %26 = arith.addf %19, %25 : vector<64x64xf32>
    %c0_31 = arith.constant 0 : index
    %c3_32 = arith.constant 3 : index
    %c0_33 = arith.constant 0 : index
    %c0_34 = arith.constant 0 : index
    %c0_35 = arith.constant 0 : index
    %27 = vector.load %arg1[%c0_31, %c3_32, %c0_33, %c0_34, %c0_35] : memref<1x4x9x9x32xbf16, #tpu.memory_space<vmem>>, vector<1x1x8x8x32xbf16>
    %28 = vector.shape_cast %27 : vector<1x1x8x8x32xbf16> to vector<8x8x32xbf16>
    %29 = vector.shape_cast %28 : vector<8x8x32xbf16> to vector<64x32xbf16>
    %c4 = arith.constant 4 : index
    %c0_36 = arith.constant 0 : index
    %c0_37 = arith.constant 0 : index
    %30 = vector.load %arg2[%c4, %c0_36, %c0_37] : memref<9x32x64xbf16, #tpu.memory_space<vmem>>, vector<1x32x64xbf16>
    %31 = vector.shape_cast %30 : vector<1x32x64xbf16> to vector<32x64xbf16>
    %cst_38 = arith.constant dense<0.000000e+00> : vector<64x64xf32>
    %32 = tpu.matmul %29, %31, %cst_38 {dimension_numbers = #tpu.dot_dimension_numbers<[1], [0], [0], [1], [0, 0, 1, 1], [], []>} : vector<64x32xbf16>, vector<32x64xbf16>, vector<64x64xf32> -> vector<64x64xf32>
    %33 = arith.addf %26, %32 : vector<64x64xf32>
    %c0_39 = arith.constant 0 : index
    %c2_40 = arith.constant 2 : index
    %c0_41 = arith.constant 0 : index
    %c1_42 = arith.constant 1 : index
    %c0_43 = arith.constant 0 : index
    %34 = vector.load %arg1[%c0_39, %c2_40, %c0_41, %c1_42, %c0_43] : memref<1x4x9x9x32xbf16, #tpu.memory_space<vmem>>, vector<1x1x8x8x32xbf16>
    %35 = vector.shape_cast %34 : vector<1x1x8x8x32xbf16> to vector<8x8x32xbf16>
    %36 = vector.shape_cast %35 : vector<8x8x32xbf16> to vector<64x32xbf16>
    %c5 = arith.constant 5 : index
    %c0_44 = arith.constant 0 : index
    %c0_45 = arith.constant 0 : index
    %37 = vector.load %arg2[%c5, %c0_44, %c0_45] : memref<9x32x64xbf16, #tpu.memory_space<vmem>>, vector<1x32x64xbf16>
    %38 = vector.shape_cast %37 : vector<1x32x64xbf16> to vector<32x64xbf16>
    %cst_46 = arith.constant dense<0.000000e+00> : vector<64x64xf32>
    %39 = tpu.matmul %36, %38, %cst_46 {dimension_numbers = #tpu.dot_dimension_numbers<[1], [0], [0], [1], [0, 0, 1, 1], [], []>} : vector<64x32xbf16>, vector<32x64xbf16>, vector<64x64xf32> -> vector<64x64xf32>
    %40 = arith.addf %33, %39 : vector<64x64xf32>
    %c0_47 = arith.constant 0 : index
    %c0_48 = arith.constant 0 : index
    %c1_49 = arith.constant 1 : index
    %c0_50 = arith.constant 0 : index
    %c0_51 = arith.constant 0 : index
    %41 = vector.load %arg1[%c0_47, %c0_48, %c1_49, %c0_50, %c0_51] : memref<1x4x9x9x32xbf16, #tpu.memory_space<vmem>>, vector<1x1x8x8x32xbf16>
    %42 = vector.shape_cast %41 : vector<1x1x8x8x32xbf16> to vector<8x8x32xbf16>
    %43 = vector.shape_cast %42 : vector<8x8x32xbf16> to vector<64x32xbf16>
    %c6 = arith.constant 6 : index
    %c0_52 = arith.constant 0 : index
    %c0_53 = arith.constant 0 : index
    %44 = vector.load %arg2[%c6, %c0_52, %c0_53] : memref<9x32x64xbf16, #tpu.memory_space<vmem>>, vector<1x32x64xbf16>
    %45 = vector.shape_cast %44 : vector<1x32x64xbf16> to vector<32x64xbf16>
    %cst_54 = arith.constant dense<0.000000e+00> : vector<64x64xf32>
    %46 = tpu.matmul %43, %45, %cst_54 {dimension_numbers = #tpu.dot_dimension_numbers<[1], [0], [0], [1], [0, 0, 1, 1], [], []>} : vector<64x32xbf16>, vector<32x64xbf16>, vector<64x64xf32> -> vector<64x64xf32>
    %47 = arith.addf %40, %46 : vector<64x64xf32>
    %c0_55 = arith.constant 0 : index
    %c1_56 = arith.constant 1 : index
    %c1_57 = arith.constant 1 : index
    %c0_58 = arith.constant 0 : index
    %c0_59 = arith.constant 0 : index
    %48 = vector.load %arg1[%c0_55, %c1_56, %c1_57, %c0_58, %c0_59] : memref<1x4x9x9x32xbf16, #tpu.memory_space<vmem>>, vector<1x1x8x8x32xbf16>
    %49 = vector.shape_cast %48 : vector<1x1x8x8x32xbf16> to vector<8x8x32xbf16>
    %50 = vector.shape_cast %49 : vector<8x8x32xbf16> to vector<64x32xbf16>
    %c7 = arith.constant 7 : index
    %c0_60 = arith.constant 0 : index
    %c0_61 = arith.constant 0 : index
    %51 = vector.load %arg2[%c7, %c0_60, %c0_61] : memref<9x32x64xbf16, #tpu.memory_space<vmem>>, vector<1x32x64xbf16>
    %52 = vector.shape_cast %51 : vector<1x32x64xbf16> to vector<32x64xbf16>
    %cst_62 = arith.constant dense<0.000000e+00> : vector<64x64xf32>
    %53 = tpu.matmul %50, %52, %cst_62 {dimension_numbers = #tpu.dot_dimension_numbers<[1], [0], [0], [1], [0, 0, 1, 1], [], []>} : vector<64x32xbf16>, vector<32x64xbf16>, vector<64x64xf32> -> vector<64x64xf32>
    %54 = arith.addf %47, %53 : vector<64x64xf32>
    %c0_63 = arith.constant 0 : index
    %c0_64 = arith.constant 0 : index
    %c1_65 = arith.constant 1 : index
    %c1_66 = arith.constant 1 : index
    %c0_67 = arith.constant 0 : index
    %55 = vector.load %arg1[%c0_63, %c0_64, %c1_65, %c1_66, %c0_67] : memref<1x4x9x9x32xbf16, #tpu.memory_space<vmem>>, vector<1x1x8x8x32xbf16>
    %56 = vector.shape_cast %55 : vector<1x1x8x8x32xbf16> to vector<8x8x32xbf16>
    %57 = vector.shape_cast %56 : vector<8x8x32xbf16> to vector<64x32xbf16>
    %c8 = arith.constant 8 : index
    %c0_68 = arith.constant 0 : index
    %c0_69 = arith.constant 0 : index
    %58 = vector.load %arg2[%c8, %c0_68, %c0_69] : memref<9x32x64xbf16, #tpu.memory_space<vmem>>, vector<1x32x64xbf16>
    %59 = vector.shape_cast %58 : vector<1x32x64xbf16> to vector<32x64xbf16>
    %cst_70 = arith.constant dense<0.000000e+00> : vector<64x64xf32>
    %60 = tpu.matmul %57, %59, %cst_70 {dimension_numbers = #tpu.dot_dimension_numbers<[1], [0], [0], [1], [0, 0, 1, 1], [], []>} : vector<64x32xbf16>, vector<32x64xbf16>, vector<64x64xf32> -> vector<64x64xf32>
    %61 = arith.addf %54, %60 : vector<64x64xf32>
    %c0_71 = arith.constant 0 : index
    %c0_72 = arith.constant 0 : index
    %62 = vector.load %arg3[%c0_71, %c0_72] : memref<1x64xf32, #tpu.memory_space<vmem>>, vector<1x64xf32>
    %c0_73 = arith.constant 0 : index
    %c0_74 = arith.constant 0 : index
    %63 = vector.load %arg4[%c0_73, %c0_74] : memref<1x64xf32, #tpu.memory_space<vmem>>, vector<1x64xf32>
    %64 = vector.broadcast %62 : vector<1x64xf32> to vector<64x64xf32>
    %65 = arith.mulf %61, %64 : vector<64x64xf32>
    %66 = vector.broadcast %63 : vector<1x64xf32> to vector<64x64xf32>
    %67 = arith.addf %65, %66 : vector<64x64xf32>
    %cst_75 = arith.constant 0.00999999977 : f32
    %68 = vector.broadcast %cst_75 : f32 to vector<64x64xf32>
    %69 = arith.mulf %68, %67 : vector<64x64xf32>
    %70 = arith.maximumf %67, %69 : vector<64x64xf32>
    %71 = vector.shape_cast %70 : vector<64x64xf32> to vector<1x8x8x64xf32>
    %72 = arith.truncf %71 : vector<1x8x8x64xf32> to vector<1x8x8x64xbf16>
    %c0_76 = arith.constant 0 : index
    %c0_77 = arith.constant 0 : index
    %c0_78 = arith.constant 0 : index
    %c0_79 = arith.constant 0 : index
    %73 = vector.load %arg5[%c0_76, %c0_77, %c0_78, %c0_79] : memref<1x8x8x64xbf16, #tpu.memory_space<vmem>>, vector<1x8x8x64xbf16>
    tpu.vector_store %arg5[%c0_76, %c0_77, %c0_78, %c0_79], %72 {strides = array<i32>} : memref<1x8x8x64xbf16, #tpu.memory_space<vmem>>, vector<1x8x8x64xbf16>,
    return
  }
  func.func @transform_0(%arg0: i32) -> (i32, i32, i32, i32, i32) {
    %c0_i32 = arith.constant 0 : i32
    %c0_i32_0 = arith.constant 0 : i32
    %c0_i32_1 = arith.constant 0 : i32
    %c0_i32_2 = arith.constant 0 : i32
    %c0_i32_3 = arith.constant 0 : i32
    return %arg0, %c0_i32, %c0_i32_0, %c0_i32_1, %c0_i32_2 : i32, i32, i32, i32, i32
  }
  func.func @transform_1(%arg0: i32) -> (i32, i32, i32) {
    %c0_i32 = arith.constant 0 : i32
    %c0_i32_0 = arith.constant 0 : i32
    %c0_i32_1 = arith.constant 0 : i32
    %c0_i32_2 = arith.constant 0 : i32
    return %c0_i32, %c0_i32_0, %c0_i32_1 : i32, i32, i32
  }
  func.func @transform_2(%arg0: i32) -> (i32, i32) {
    %c0_i32 = arith.constant 0 : i32
    %c0_i32_0 = arith.constant 0 : i32
    %c0_i32_1 = arith.constant 0 : i32
    return %c0_i32, %c0_i32_0 : i32, i32
  }
  func.func @transform_3(%arg0: i32) -> (i32, i32) {
    %c0_i32 = arith.constant 0 : i32
    %c0_i32_0 = arith.constant 0 : i32
    %c0_i32_1 = arith.constant 0 : i32
    return %c0_i32, %c0_i32_0 : i32, i32
  }
  func.func @transform_4(%arg0: i32) -> (i32, i32, i32, i32) {
    %c0_i32 = arith.constant 0 : i32
    %c0_i32_0 = arith.constant 0 : i32
    %c0_i32_1 = arith.constant 0 : i32
    %c0_i32_2 = arith.constant 0 : i32
    return %arg0, %c0_i32, %c0_i32_0, %c0_i32_1 : i32, i32, i32, i32
  }
}

module attributes {stable_mosaic.version = 11 : i64} {
  func.func @_conv_s2_kernel(%arg0: i32, %arg1: memref<1x4x5x5x64xbf16, #tpu.memory_space<vmem>>, %arg2: memref<9x64x64xbf16, #tpu.memory_space<vmem>>, %arg3: memref<1x64xf32, #tpu.memory_space<vmem>>, %arg4: memref<1x64xf32, #tpu.memory_space<vmem>>, %arg5: memref<1x4x4x64xbf16, #tpu.memory_space<vmem>>) attributes {dimension_semantics = [#tpu.dimension_semantics<parallel>], iteration_bounds = array<i64: 2>, scalar_prefetch = 0 : i64, scratch_operands = 0 : i64, tpu.core_type = #tpu.core_type<tc>, window_params = [{transform_indices = @transform_0, window_bounds = array<i64: 1, 4, 5, 5, 64>}, {pipeline_mode = #tpu.pipeline_mode<synchronous>, transform_indices = @transform_1, window_bounds = array<i64: 9, 64, 64>}, {pipeline_mode = #tpu.pipeline_mode<synchronous>, transform_indices = @transform_2, window_bounds = array<i64: 1, 64>}, {pipeline_mode = #tpu.pipeline_mode<synchronous>, transform_indices = @transform_3, window_bounds = array<i64: 1, 64>}, {transform_indices = @transform_4, window_bounds = array<i64: 1, 4, 4, 64>}]} {
    %c0 = arith.constant 0 : index
    %c0_0 = arith.constant 0 : index
    %c0_1 = arith.constant 0 : index
    %c0_2 = arith.constant 0 : index
    %c0_3 = arith.constant 0 : index
    %0 = vector.load %arg1[%c0, %c0_0, %c0_1, %c0_2, %c0_3] : memref<1x4x5x5x64xbf16, #tpu.memory_space<vmem>>, vector<1x1x4x4x64xbf16>
    %1 = vector.shape_cast %0 : vector<1x1x4x4x64xbf16> to vector<4x4x64xbf16>
    %2 = vector.shape_cast %1 : vector<4x4x64xbf16> to vector<16x64xbf16>
    %c0_4 = arith.constant 0 : index
    %c0_5 = arith.constant 0 : index
    %c0_6 = arith.constant 0 : index
    %3 = vector.load %arg2[%c0_4, %c0_5, %c0_6] : memref<9x64x64xbf16, #tpu.memory_space<vmem>>, vector<1x64x64xbf16>
    %4 = vector.shape_cast %3 : vector<1x64x64xbf16> to vector<64x64xbf16>
    %cst = arith.constant dense<0.000000e+00> : vector<16x64xf32>
    %5 = tpu.matmul %2, %4, %cst {dimension_numbers = #tpu.dot_dimension_numbers<[1], [0], [0], [1], [0, 0, 1, 1], [], []>} : vector<16x64xbf16>, vector<64x64xbf16>, vector<16x64xf32> -> vector<16x64xf32>
    %c0_7 = arith.constant 0 : index
    %c1 = arith.constant 1 : index
    %c0_8 = arith.constant 0 : index
    %c0_9 = arith.constant 0 : index
    %c0_10 = arith.constant 0 : index
    %6 = vector.load %arg1[%c0_7, %c1, %c0_8, %c0_9, %c0_10] : memref<1x4x5x5x64xbf16, #tpu.memory_space<vmem>>, vector<1x1x4x4x64xbf16>
    %7 = vector.shape_cast %6 : vector<1x1x4x4x64xbf16> to vector<4x4x64xbf16>
    %8 = vector.shape_cast %7 : vector<4x4x64xbf16> to vector<16x64xbf16>
    %c1_11 = arith.constant 1 : index
    %c0_12 = arith.constant 0 : index
    %c0_13 = arith.constant 0 : index
    %9 = vector.load %arg2[%c1_11, %c0_12, %c0_13] : memref<9x64x64xbf16, #tpu.memory_space<vmem>>, vector<1x64x64xbf16>
    %10 = vector.shape_cast %9 : vector<1x64x64xbf16> to vector<64x64xbf16>
    %cst_14 = arith.constant dense<0.000000e+00> : vector<16x64xf32>
    %11 = tpu.matmul %8, %10, %cst_14 {dimension_numbers = #tpu.dot_dimension_numbers<[1], [0], [0], [1], [0, 0, 1, 1], [], []>} : vector<16x64xbf16>, vector<64x64xbf16>, vector<16x64xf32> -> vector<16x64xf32>
    %12 = arith.addf %5, %11 : vector<16x64xf32>
    %c0_15 = arith.constant 0 : index
    %c0_16 = arith.constant 0 : index
    %c0_17 = arith.constant 0 : index
    %c1_18 = arith.constant 1 : index
    %c0_19 = arith.constant 0 : index
    %13 = vector.load %arg1[%c0_15, %c0_16, %c0_17, %c1_18, %c0_19] : memref<1x4x5x5x64xbf16, #tpu.memory_space<vmem>>, vector<1x1x4x4x64xbf16>
    %14 = vector.shape_cast %13 : vector<1x1x4x4x64xbf16> to vector<4x4x64xbf16>
    %15 = vector.shape_cast %14 : vector<4x4x64xbf16> to vector<16x64xbf16>
    %c2 = arith.constant 2 : index
    %c0_20 = arith.constant 0 : index
    %c0_21 = arith.constant 0 : index
    %16 = vector.load %arg2[%c2, %c0_20, %c0_21] : memref<9x64x64xbf16, #tpu.memory_space<vmem>>, vector<1x64x64xbf16>
    %17 = vector.shape_cast %16 : vector<1x64x64xbf16> to vector<64x64xbf16>
    %cst_22 = arith.constant dense<0.000000e+00> : vector<16x64xf32>
    %18 = tpu.matmul %15, %17, %cst_22 {dimension_numbers = #tpu.dot_dimension_numbers<[1], [0], [0], [1], [0, 0, 1, 1], [], []>} : vector<16x64xbf16>, vector<64x64xbf16>, vector<16x64xf32> -> vector<16x64xf32>
    %19 = arith.addf %12, %18 : vector<16x64xf32>
    %c0_23 = arith.constant 0 : index
    %c2_24 = arith.constant 2 : index
    %c0_25 = arith.constant 0 : index
    %c0_26 = arith.constant 0 : index
    %c0_27 = arith.constant 0 : index
    %20 = vector.load %arg1[%c0_23, %c2_24, %c0_25, %c0_26, %c0_27] : memref<1x4x5x5x64xbf16, #tpu.memory_space<vmem>>, vector<1x1x4x4x64xbf16>
    %21 = vector.shape_cast %20 : vector<1x1x4x4x64xbf16> to vector<4x4x64xbf16>
    %22 = vector.shape_cast %21 : vector<4x4x64xbf16> to vector<16x64xbf16>
    %c3 = arith.constant 3 : index
    %c0_28 = arith.constant 0 : index
    %c0_29 = arith.constant 0 : index
    %23 = vector.load %arg2[%c3, %c0_28, %c0_29] : memref<9x64x64xbf16, #tpu.memory_space<vmem>>, vector<1x64x64xbf16>
    %24 = vector.shape_cast %23 : vector<1x64x64xbf16> to vector<64x64xbf16>
    %cst_30 = arith.constant dense<0.000000e+00> : vector<16x64xf32>
    %25 = tpu.matmul %22, %24, %cst_30 {dimension_numbers = #tpu.dot_dimension_numbers<[1], [0], [0], [1], [0, 0, 1, 1], [], []>} : vector<16x64xbf16>, vector<64x64xbf16>, vector<16x64xf32> -> vector<16x64xf32>
    %26 = arith.addf %19, %25 : vector<16x64xf32>
    %c0_31 = arith.constant 0 : index
    %c3_32 = arith.constant 3 : index
    %c0_33 = arith.constant 0 : index
    %c0_34 = arith.constant 0 : index
    %c0_35 = arith.constant 0 : index
    %27 = vector.load %arg1[%c0_31, %c3_32, %c0_33, %c0_34, %c0_35] : memref<1x4x5x5x64xbf16, #tpu.memory_space<vmem>>, vector<1x1x4x4x64xbf16>
    %28 = vector.shape_cast %27 : vector<1x1x4x4x64xbf16> to vector<4x4x64xbf16>
    %29 = vector.shape_cast %28 : vector<4x4x64xbf16> to vector<16x64xbf16>
    %c4 = arith.constant 4 : index
    %c0_36 = arith.constant 0 : index
    %c0_37 = arith.constant 0 : index
    %30 = vector.load %arg2[%c4, %c0_36, %c0_37] : memref<9x64x64xbf16, #tpu.memory_space<vmem>>, vector<1x64x64xbf16>
    %31 = vector.shape_cast %30 : vector<1x64x64xbf16> to vector<64x64xbf16>
    %cst_38 = arith.constant dense<0.000000e+00> : vector<16x64xf32>
    %32 = tpu.matmul %29, %31, %cst_38 {dimension_numbers = #tpu.dot_dimension_numbers<[1], [0], [0], [1], [0, 0, 1, 1], [], []>} : vector<16x64xbf16>, vector<64x64xbf16>, vector<16x64xf32> -> vector<16x64xf32>
    %33 = arith.addf %26, %32 : vector<16x64xf32>
    %c0_39 = arith.constant 0 : index
    %c2_40 = arith.constant 2 : index
    %c0_41 = arith.constant 0 : index
    %c1_42 = arith.constant 1 : index
    %c0_43 = arith.constant 0 : index
    %34 = vector.load %arg1[%c0_39, %c2_40, %c0_41, %c1_42, %c0_43] : memref<1x4x5x5x64xbf16, #tpu.memory_space<vmem>>, vector<1x1x4x4x64xbf16>
    %35 = vector.shape_cast %34 : vector<1x1x4x4x64xbf16> to vector<4x4x64xbf16>
    %36 = vector.shape_cast %35 : vector<4x4x64xbf16> to vector<16x64xbf16>
    %c5 = arith.constant 5 : index
    %c0_44 = arith.constant 0 : index
    %c0_45 = arith.constant 0 : index
    %37 = vector.load %arg2[%c5, %c0_44, %c0_45] : memref<9x64x64xbf16, #tpu.memory_space<vmem>>, vector<1x64x64xbf16>
    %38 = vector.shape_cast %37 : vector<1x64x64xbf16> to vector<64x64xbf16>
    %cst_46 = arith.constant dense<0.000000e+00> : vector<16x64xf32>
    %39 = tpu.matmul %36, %38, %cst_46 {dimension_numbers = #tpu.dot_dimension_numbers<[1], [0], [0], [1], [0, 0, 1, 1], [], []>} : vector<16x64xbf16>, vector<64x64xbf16>, vector<16x64xf32> -> vector<16x64xf32>
    %40 = arith.addf %33, %39 : vector<16x64xf32>
    %c0_47 = arith.constant 0 : index
    %c0_48 = arith.constant 0 : index
    %c1_49 = arith.constant 1 : index
    %c0_50 = arith.constant 0 : index
    %c0_51 = arith.constant 0 : index
    %41 = vector.load %arg1[%c0_47, %c0_48, %c1_49, %c0_50, %c0_51] : memref<1x4x5x5x64xbf16, #tpu.memory_space<vmem>>, vector<1x1x4x4x64xbf16>
    %42 = vector.shape_cast %41 : vector<1x1x4x4x64xbf16> to vector<4x4x64xbf16>
    %43 = vector.shape_cast %42 : vector<4x4x64xbf16> to vector<16x64xbf16>
    %c6 = arith.constant 6 : index
    %c0_52 = arith.constant 0 : index
    %c0_53 = arith.constant 0 : index
    %44 = vector.load %arg2[%c6, %c0_52, %c0_53] : memref<9x64x64xbf16, #tpu.memory_space<vmem>>, vector<1x64x64xbf16>
    %45 = vector.shape_cast %44 : vector<1x64x64xbf16> to vector<64x64xbf16>
    %cst_54 = arith.constant dense<0.000000e+00> : vector<16x64xf32>
    %46 = tpu.matmul %43, %45, %cst_54 {dimension_numbers = #tpu.dot_dimension_numbers<[1], [0], [0], [1], [0, 0, 1, 1], [], []>} : vector<16x64xbf16>, vector<64x64xbf16>, vector<16x64xf32> -> vector<16x64xf32>
    %47 = arith.addf %40, %46 : vector<16x64xf32>
    %c0_55 = arith.constant 0 : index
    %c1_56 = arith.constant 1 : index
    %c1_57 = arith.constant 1 : index
    %c0_58 = arith.constant 0 : index
    %c0_59 = arith.constant 0 : index
    %48 = vector.load %arg1[%c0_55, %c1_56, %c1_57, %c0_58, %c0_59] : memref<1x4x5x5x64xbf16, #tpu.memory_space<vmem>>, vector<1x1x4x4x64xbf16>
    %49 = vector.shape_cast %48 : vector<1x1x4x4x64xbf16> to vector<4x4x64xbf16>
    %50 = vector.shape_cast %49 : vector<4x4x64xbf16> to vector<16x64xbf16>
    %c7 = arith.constant 7 : index
    %c0_60 = arith.constant 0 : index
    %c0_61 = arith.constant 0 : index
    %51 = vector.load %arg2[%c7, %c0_60, %c0_61] : memref<9x64x64xbf16, #tpu.memory_space<vmem>>, vector<1x64x64xbf16>
    %52 = vector.shape_cast %51 : vector<1x64x64xbf16> to vector<64x64xbf16>
    %cst_62 = arith.constant dense<0.000000e+00> : vector<16x64xf32>
    %53 = tpu.matmul %50, %52, %cst_62 {dimension_numbers = #tpu.dot_dimension_numbers<[1], [0], [0], [1], [0, 0, 1, 1], [], []>} : vector<16x64xbf16>, vector<64x64xbf16>, vector<16x64xf32> -> vector<16x64xf32>
    %54 = arith.addf %47, %53 : vector<16x64xf32>
    %c0_63 = arith.constant 0 : index
    %c0_64 = arith.constant 0 : index
    %c1_65 = arith.constant 1 : index
    %c1_66 = arith.constant 1 : index
    %c0_67 = arith.constant 0 : index
    %55 = vector.load %arg1[%c0_63, %c0_64, %c1_65, %c1_66, %c0_67] : memref<1x4x5x5x64xbf16, #tpu.memory_space<vmem>>, vector<1x1x4x4x64xbf16>
    %56 = vector.shape_cast %55 : vector<1x1x4x4x64xbf16> to vector<4x4x64xbf16>
    %57 = vector.shape_cast %56 : vector<4x4x64xbf16> to vector<16x64xbf16>
    %c8 = arith.constant 8 : index
    %c0_68 = arith.constant 0 : index
    %c0_69 = arith.constant 0 : index
    %58 = vector.load %arg2[%c8, %c0_68, %c0_69] : memref<9x64x64xbf16, #tpu.memory_space<vmem>>, vector<1x64x64xbf16>
    %59 = vector.shape_cast %58 : vector<1x64x64xbf16> to vector<64x64xbf16>
    %cst_70 = arith.constant dense<0.000000e+00> : vector<16x64xf32>
    %60 = tpu.matmul %57, %59, %cst_70 {dimension_numbers = #tpu.dot_dimension_numbers<[1], [0], [0], [1], [0, 0, 1, 1], [], []>} : vector<16x64xbf16>, vector<64x64xbf16>, vector<16x64xf32> -> vector<16x64xf32>
    %61 = arith.addf %54, %60 : vector<16x64xf32>
    %c0_71 = arith.constant 0 : index
    %c0_72 = arith.constant 0 : index
    %62 = vector.load %arg3[%c0_71, %c0_72] : memref<1x64xf32, #tpu.memory_space<vmem>>, vector<1x64xf32>
    %c0_73 = arith.constant 0 : index
    %c0_74 = arith.constant 0 : index
    %63 = vector.load %arg4[%c0_73, %c0_74] : memref<1x64xf32, #tpu.memory_space<vmem>>, vector<1x64xf32>
    %64 = vector.broadcast %62 : vector<1x64xf32> to vector<16x64xf32>
    %65 = arith.mulf %61, %64 : vector<16x64xf32>
    %66 = vector.broadcast %63 : vector<1x64xf32> to vector<16x64xf32>
    %67 = arith.addf %65, %66 : vector<16x64xf32>
    %cst_75 = arith.constant 0.00999999977 : f32
    %68 = vector.broadcast %cst_75 : f32 to vector<16x64xf32>
    %69 = arith.mulf %68, %67 : vector<16x64xf32>
    %70 = arith.maximumf %67, %69 : vector<16x64xf32>
    %71 = vector.shape_cast %70 : vector<16x64xf32> to vector<1x4x4x64xf32>
    %72 = arith.truncf %71 : vector<1x4x4x64xf32> to vector<1x4x4x64xbf16>
    %c0_76 = arith.constant 0 : index
    %c0_77 = arith.constant 0 : index
    %c0_78 = arith.constant 0 : index
    %c0_79 = arith.constant 0 : index
    %73 = vector.load %arg5[%c0_76, %c0_77, %c0_78, %c0_79] : memref<1x4x4x64xbf16, #tpu.memory_space<vmem>>, vector<1x4x4x64xbf16>
    tpu.vector_store %arg5[%c0_76, %c0_77, %c0_78, %c0_79], %72 {strides = array<i32>} : memref<1x4x4x64xbf16, #tpu.memory_space<vmem>>, vector<1x4x4x64xbf16>,
    return
  }
  func.func @transform_0(%arg0: i32) -> (i32, i32, i32, i32, i32) {
    %c0_i32 = arith.constant 0 : i32
    %c0_i32_0 = arith.constant 0 : i32
    %c0_i32_1 = arith.constant 0 : i32
    %c0_i32_2 = arith.constant 0 : i32
    %c0_i32_3 = arith.constant 0 : i32
    return %arg0, %c0_i32, %c0_i32_0, %c0_i32_1, %c0_i32_2 : i32, i32, i32, i32, i32
  }
  func.func @transform_1(%arg0: i32) -> (i32, i32, i32) {
    %c0_i32 = arith.constant 0 : i32
    %c0_i32_0 = arith.constant 0 : i32
    %c0_i32_1 = arith.constant 0 : i32
    %c0_i32_2 = arith.constant 0 : i32
    return %c0_i32, %c0_i32_0, %c0_i32_1 : i32, i32, i32
  }
  func.func @transform_2(%arg0: i32) -> (i32, i32) {
    %c0_i32 = arith.constant 0 : i32
    %c0_i32_0 = arith.constant 0 : i32
    %c0_i32_1 = arith.constant 0 : i32
    return %c0_i32, %c0_i32_0 : i32, i32
  }
  func.func @transform_3(%arg0: i32) -> (i32, i32) {
    %c0_i32 = arith.constant 0 : i32
    %c0_i32_0 = arith.constant 0 : i32
    %c0_i32_1 = arith.constant 0 : i32
    return %c0_i32, %c0_i32_0 : i32, i32
  }
  func.func @transform_4(%arg0: i32) -> (i32, i32, i32, i32) {
    %c0_i32 = arith.constant 0 : i32
    %c0_i32_0 = arith.constant 0 : i32
    %c0_i32_1 = arith.constant 0 : i32
    %c0_i32_2 = arith.constant 0 : i32
    return %arg0, %c0_i32, %c0_i32_0, %c0_i32_1 : i32, i32, i32, i32
  }
}

module attributes {stable_mosaic.version = 11 : i64} {
  func.func @_conv_s2_kernel(%arg0: i32, %arg1: memref<1x4x3x3x64xbf16, #tpu.memory_space<vmem>>, %arg2: memref<9x64x128xbf16, #tpu.memory_space<vmem>>, %arg3: memref<1x128xf32, #tpu.memory_space<vmem>>, %arg4: memref<1x128xf32, #tpu.memory_space<vmem>>, %arg5: memref<1x2x2x128xbf16, #tpu.memory_space<vmem>>) attributes {dimension_semantics = [#tpu.dimension_semantics<parallel>], iteration_bounds = array<i64: 2>, scalar_prefetch = 0 : i64, scratch_operands = 0 : i64, tpu.core_type = #tpu.core_type<tc>, window_params = [{transform_indices = @transform_0, window_bounds = array<i64: 1, 4, 3, 3, 64>}, {pipeline_mode = #tpu.pipeline_mode<synchronous>, transform_indices = @transform_1, window_bounds = array<i64: 9, 64, 128>}, {pipeline_mode = #tpu.pipeline_mode<synchronous>, transform_indices = @transform_2, window_bounds = array<i64: 1, 128>}, {pipeline_mode = #tpu.pipeline_mode<synchronous>, transform_indices = @transform_3, window_bounds = array<i64: 1, 128>}, {transform_indices = @transform_4, window_bounds = array<i64: 1, 2, 2, 128>}]} {
    %c0 = arith.constant 0 : index
    %c0_0 = arith.constant 0 : index
    %c0_1 = arith.constant 0 : index
    %c0_2 = arith.constant 0 : index
    %c0_3 = arith.constant 0 : index
    %0 = vector.load %arg1[%c0, %c0_0, %c0_1, %c0_2, %c0_3] : memref<1x4x3x3x64xbf16, #tpu.memory_space<vmem>>, vector<1x1x2x2x64xbf16>
    %1 = vector.shape_cast %0 : vector<1x1x2x2x64xbf16> to vector<2x2x64xbf16>
    %2 = vector.shape_cast %1 : vector<2x2x64xbf16> to vector<4x64xbf16>
    %c0_4 = arith.constant 0 : index
    %c0_5 = arith.constant 0 : index
    %c0_6 = arith.constant 0 : index
    %3 = vector.load %arg2[%c0_4, %c0_5, %c0_6] : memref<9x64x128xbf16, #tpu.memory_space<vmem>>, vector<1x64x128xbf16>
    %4 = vector.shape_cast %3 : vector<1x64x128xbf16> to vector<64x128xbf16>
    %cst = arith.constant dense<0.000000e+00> : vector<4x128xf32>
    %5 = tpu.matmul %2, %4, %cst {dimension_numbers = #tpu.dot_dimension_numbers<[1], [0], [0], [1], [0, 0, 1, 1], [], []>} : vector<4x64xbf16>, vector<64x128xbf16>, vector<4x128xf32> -> vector<4x128xf32>
    %c0_7 = arith.constant 0 : index
    %c1 = arith.constant 1 : index
    %c0_8 = arith.constant 0 : index
    %c0_9 = arith.constant 0 : index
    %c0_10 = arith.constant 0 : index
    %6 = vector.load %arg1[%c0_7, %c1, %c0_8, %c0_9, %c0_10] : memref<1x4x3x3x64xbf16, #tpu.memory_space<vmem>>, vector<1x1x2x2x64xbf16>
    %7 = vector.shape_cast %6 : vector<1x1x2x2x64xbf16> to vector<2x2x64xbf16>
    %8 = vector.shape_cast %7 : vector<2x2x64xbf16> to vector<4x64xbf16>
    %c1_11 = arith.constant 1 : index
    %c0_12 = arith.constant 0 : index
    %c0_13 = arith.constant 0 : index
    %9 = vector.load %arg2[%c1_11, %c0_12, %c0_13] : memref<9x64x128xbf16, #tpu.memory_space<vmem>>, vector<1x64x128xbf16>
    %10 = vector.shape_cast %9 : vector<1x64x128xbf16> to vector<64x128xbf16>
    %cst_14 = arith.constant dense<0.000000e+00> : vector<4x128xf32>
    %11 = tpu.matmul %8, %10, %cst_14 {dimension_numbers = #tpu.dot_dimension_numbers<[1], [0], [0], [1], [0, 0, 1, 1], [], []>} : vector<4x64xbf16>, vector<64x128xbf16>, vector<4x128xf32> -> vector<4x128xf32>
    %12 = arith.addf %5, %11 : vector<4x128xf32>
    %c0_15 = arith.constant 0 : index
    %c0_16 = arith.constant 0 : index
    %c0_17 = arith.constant 0 : index
    %c1_18 = arith.constant 1 : index
    %c0_19 = arith.constant 0 : index
    %13 = vector.load %arg1[%c0_15, %c0_16, %c0_17, %c1_18, %c0_19] : memref<1x4x3x3x64xbf16, #tpu.memory_space<vmem>>, vector<1x1x2x2x64xbf16>
    %14 = vector.shape_cast %13 : vector<1x1x2x2x64xbf16> to vector<2x2x64xbf16>
    %15 = vector.shape_cast %14 : vector<2x2x64xbf16> to vector<4x64xbf16>
    %c2 = arith.constant 2 : index
    %c0_20 = arith.constant 0 : index
    %c0_21 = arith.constant 0 : index
    %16 = vector.load %arg2[%c2, %c0_20, %c0_21] : memref<9x64x128xbf16, #tpu.memory_space<vmem>>, vector<1x64x128xbf16>
    %17 = vector.shape_cast %16 : vector<1x64x128xbf16> to vector<64x128xbf16>
    %cst_22 = arith.constant dense<0.000000e+00> : vector<4x128xf32>
    %18 = tpu.matmul %15, %17, %cst_22 {dimension_numbers = #tpu.dot_dimension_numbers<[1], [0], [0], [1], [0, 0, 1, 1], [], []>} : vector<4x64xbf16>, vector<64x128xbf16>, vector<4x128xf32> -> vector<4x128xf32>
    %19 = arith.addf %12, %18 : vector<4x128xf32>
    %c0_23 = arith.constant 0 : index
    %c2_24 = arith.constant 2 : index
    %c0_25 = arith.constant 0 : index
    %c0_26 = arith.constant 0 : index
    %c0_27 = arith.constant 0 : index
    %20 = vector.load %arg1[%c0_23, %c2_24, %c0_25, %c0_26, %c0_27] : memref<1x4x3x3x64xbf16, #tpu.memory_space<vmem>>, vector<1x1x2x2x64xbf16>
    %21 = vector.shape_cast %20 : vector<1x1x2x2x64xbf16> to vector<2x2x64xbf16>
    %22 = vector.shape_cast %21 : vector<2x2x64xbf16> to vector<4x64xbf16>
    %c3 = arith.constant 3 : index
    %c0_28 = arith.constant 0 : index
    %c0_29 = arith.constant 0 : index
    %23 = vector.load %arg2[%c3, %c0_28, %c0_29] : memref<9x64x128xbf16, #tpu.memory_space<vmem>>, vector<1x64x128xbf16>
    %24 = vector.shape_cast %23 : vector<1x64x128xbf16> to vector<64x128xbf16>
    %cst_30 = arith.constant dense<0.000000e+00> : vector<4x128xf32>
    %25 = tpu.matmul %22, %24, %cst_30 {dimension_numbers = #tpu.dot_dimension_numbers<[1], [0], [0], [1], [0, 0, 1, 1], [], []>} : vector<4x64xbf16>, vector<64x128xbf16>, vector<4x128xf32> -> vector<4x128xf32>
    %26 = arith.addf %19, %25 : vector<4x128xf32>
    %c0_31 = arith.constant 0 : index
    %c3_32 = arith.constant 3 : index
    %c0_33 = arith.constant 0 : index
    %c0_34 = arith.constant 0 : index
    %c0_35 = arith.constant 0 : index
    %27 = vector.load %arg1[%c0_31, %c3_32, %c0_33, %c0_34, %c0_35] : memref<1x4x3x3x64xbf16, #tpu.memory_space<vmem>>, vector<1x1x2x2x64xbf16>
    %28 = vector.shape_cast %27 : vector<1x1x2x2x64xbf16> to vector<2x2x64xbf16>
    %29 = vector.shape_cast %28 : vector<2x2x64xbf16> to vector<4x64xbf16>
    %c4 = arith.constant 4 : index
    %c0_36 = arith.constant 0 : index
    %c0_37 = arith.constant 0 : index
    %30 = vector.load %arg2[%c4, %c0_36, %c0_37] : memref<9x64x128xbf16, #tpu.memory_space<vmem>>, vector<1x64x128xbf16>
    %31 = vector.shape_cast %30 : vector<1x64x128xbf16> to vector<64x128xbf16>
    %cst_38 = arith.constant dense<0.000000e+00> : vector<4x128xf32>
    %32 = tpu.matmul %29, %31, %cst_38 {dimension_numbers = #tpu.dot_dimension_numbers<[1], [0], [0], [1], [0, 0, 1, 1], [], []>} : vector<4x64xbf16>, vector<64x128xbf16>, vector<4x128xf32> -> vector<4x128xf32>
    %33 = arith.addf %26, %32 : vector<4x128xf32>
    %c0_39 = arith.constant 0 : index
    %c2_40 = arith.constant 2 : index
    %c0_41 = arith.constant 0 : index
    %c1_42 = arith.constant 1 : index
    %c0_43 = arith.constant 0 : index
    %34 = vector.load %arg1[%c0_39, %c2_40, %c0_41, %c1_42, %c0_43] : memref<1x4x3x3x64xbf16, #tpu.memory_space<vmem>>, vector<1x1x2x2x64xbf16>
    %35 = vector.shape_cast %34 : vector<1x1x2x2x64xbf16> to vector<2x2x64xbf16>
    %36 = vector.shape_cast %35 : vector<2x2x64xbf16> to vector<4x64xbf16>
    %c5 = arith.constant 5 : index
    %c0_44 = arith.constant 0 : index
    %c0_45 = arith.constant 0 : index
    %37 = vector.load %arg2[%c5, %c0_44, %c0_45] : memref<9x64x128xbf16, #tpu.memory_space<vmem>>, vector<1x64x128xbf16>
    %38 = vector.shape_cast %37 : vector<1x64x128xbf16> to vector<64x128xbf16>
    %cst_46 = arith.constant dense<0.000000e+00> : vector<4x128xf32>
    %39 = tpu.matmul %36, %38, %cst_46 {dimension_numbers = #tpu.dot_dimension_numbers<[1], [0], [0], [1], [0, 0, 1, 1], [], []>} : vector<4x64xbf16>, vector<64x128xbf16>, vector<4x128xf32> -> vector<4x128xf32>
    %40 = arith.addf %33, %39 : vector<4x128xf32>
    %c0_47 = arith.constant 0 : index
    %c0_48 = arith.constant 0 : index
    %c1_49 = arith.constant 1 : index
    %c0_50 = arith.constant 0 : index
    %c0_51 = arith.constant 0 : index
    %41 = vector.load %arg1[%c0_47, %c0_48, %c1_49, %c0_50, %c0_51] : memref<1x4x3x3x64xbf16, #tpu.memory_space<vmem>>, vector<1x1x2x2x64xbf16>
    %42 = vector.shape_cast %41 : vector<1x1x2x2x64xbf16> to vector<2x2x64xbf16>
    %43 = vector.shape_cast %42 : vector<2x2x64xbf16> to vector<4x64xbf16>
    %c6 = arith.constant 6 : index
    %c0_52 = arith.constant 0 : index
    %c0_53 = arith.constant 0 : index
    %44 = vector.load %arg2[%c6, %c0_52, %c0_53] : memref<9x64x128xbf16, #tpu.memory_space<vmem>>, vector<1x64x128xbf16>
    %45 = vector.shape_cast %44 : vector<1x64x128xbf16> to vector<64x128xbf16>
    %cst_54 = arith.constant dense<0.000000e+00> : vector<4x128xf32>
    %46 = tpu.matmul %43, %45, %cst_54 {dimension_numbers = #tpu.dot_dimension_numbers<[1], [0], [0], [1], [0, 0, 1, 1], [], []>} : vector<4x64xbf16>, vector<64x128xbf16>, vector<4x128xf32> -> vector<4x128xf32>
    %47 = arith.addf %40, %46 : vector<4x128xf32>
    %c0_55 = arith.constant 0 : index
    %c1_56 = arith.constant 1 : index
    %c1_57 = arith.constant 1 : index
    %c0_58 = arith.constant 0 : index
    %c0_59 = arith.constant 0 : index
    %48 = vector.load %arg1[%c0_55, %c1_56, %c1_57, %c0_58, %c0_59] : memref<1x4x3x3x64xbf16, #tpu.memory_space<vmem>>, vector<1x1x2x2x64xbf16>
    %49 = vector.shape_cast %48 : vector<1x1x2x2x64xbf16> to vector<2x2x64xbf16>
    %50 = vector.shape_cast %49 : vector<2x2x64xbf16> to vector<4x64xbf16>
    %c7 = arith.constant 7 : index
    %c0_60 = arith.constant 0 : index
    %c0_61 = arith.constant 0 : index
    %51 = vector.load %arg2[%c7, %c0_60, %c0_61] : memref<9x64x128xbf16, #tpu.memory_space<vmem>>, vector<1x64x128xbf16>
    %52 = vector.shape_cast %51 : vector<1x64x128xbf16> to vector<64x128xbf16>
    %cst_62 = arith.constant dense<0.000000e+00> : vector<4x128xf32>
    %53 = tpu.matmul %50, %52, %cst_62 {dimension_numbers = #tpu.dot_dimension_numbers<[1], [0], [0], [1], [0, 0, 1, 1], [], []>} : vector<4x64xbf16>, vector<64x128xbf16>, vector<4x128xf32> -> vector<4x128xf32>
    %54 = arith.addf %47, %53 : vector<4x128xf32>
    %c0_63 = arith.constant 0 : index
    %c0_64 = arith.constant 0 : index
    %c1_65 = arith.constant 1 : index
    %c1_66 = arith.constant 1 : index
    %c0_67 = arith.constant 0 : index
    %55 = vector.load %arg1[%c0_63, %c0_64, %c1_65, %c1_66, %c0_67] : memref<1x4x3x3x64xbf16, #tpu.memory_space<vmem>>, vector<1x1x2x2x64xbf16>
    %56 = vector.shape_cast %55 : vector<1x1x2x2x64xbf16> to vector<2x2x64xbf16>
    %57 = vector.shape_cast %56 : vector<2x2x64xbf16> to vector<4x64xbf16>
    %c8 = arith.constant 8 : index
    %c0_68 = arith.constant 0 : index
    %c0_69 = arith.constant 0 : index
    %58 = vector.load %arg2[%c8, %c0_68, %c0_69] : memref<9x64x128xbf16, #tpu.memory_space<vmem>>, vector<1x64x128xbf16>
    %59 = vector.shape_cast %58 : vector<1x64x128xbf16> to vector<64x128xbf16>
    %cst_70 = arith.constant dense<0.000000e+00> : vector<4x128xf32>
    %60 = tpu.matmul %57, %59, %cst_70 {dimension_numbers = #tpu.dot_dimension_numbers<[1], [0], [0], [1], [0, 0, 1, 1], [], []>} : vector<4x64xbf16>, vector<64x128xbf16>, vector<4x128xf32> -> vector<4x128xf32>
    %61 = arith.addf %54, %60 : vector<4x128xf32>
    %c0_71 = arith.constant 0 : index
    %c0_72 = arith.constant 0 : index
    %62 = vector.load %arg3[%c0_71, %c0_72] : memref<1x128xf32, #tpu.memory_space<vmem>>, vector<1x128xf32>
    %c0_73 = arith.constant 0 : index
    %c0_74 = arith.constant 0 : index
    %63 = vector.load %arg4[%c0_73, %c0_74] : memref<1x128xf32, #tpu.memory_space<vmem>>, vector<1x128xf32>
    %64 = vector.broadcast %62 : vector<1x128xf32> to vector<4x128xf32>
    %65 = arith.mulf %61, %64 : vector<4x128xf32>
    %66 = vector.broadcast %63 : vector<1x128xf32> to vector<4x128xf32>
    %67 = arith.addf %65, %66 : vector<4x128xf32>
    %cst_75 = arith.constant 0.00999999977 : f32
    %68 = vector.broadcast %cst_75 : f32 to vector<4x128xf32>
    %69 = arith.mulf %68, %67 : vector<4x128xf32>
    %70 = arith.maximumf %67, %69 : vector<4x128xf32>
    %71 = vector.shape_cast %70 : vector<4x128xf32> to vector<1x2x2x128xf32>
    %72 = arith.truncf %71 : vector<1x2x2x128xf32> to vector<1x2x2x128xbf16>
    %c0_76 = arith.constant 0 : index
    %c0_77 = arith.constant 0 : index
    %c0_78 = arith.constant 0 : index
    %c0_79 = arith.constant 0 : index
    %73 = vector.load %arg5[%c0_76, %c0_77, %c0_78, %c0_79] : memref<1x2x2x128xbf16, #tpu.memory_space<vmem>>, vector<1x2x2x128xbf16>
    tpu.vector_store %arg5[%c0_76, %c0_77, %c0_78, %c0_79], %72 {strides = array<i32>} : memref<1x2x2x128xbf16, #tpu.memory_space<vmem>>, vector<1x2x2x128xbf16>,
    return
  }
  func.func @transform_0(%arg0: i32) -> (i32, i32, i32, i32, i32) {
    %c0_i32 = arith.constant 0 : i32
    %c0_i32_0 = arith.constant 0 : i32
    %c0_i32_1 = arith.constant 0 : i32
    %c0_i32_2 = arith.constant 0 : i32
    %c0_i32_3 = arith.constant 0 : i32
    return %arg0, %c0_i32, %c0_i32_0, %c0_i32_1, %c0_i32_2 : i32, i32, i32, i32, i32
  }
  func.func @transform_1(%arg0: i32) -> (i32, i32, i32) {
    %c0_i32 = arith.constant 0 : i32
    %c0_i32_0 = arith.constant 0 : i32
    %c0_i32_1 = arith.constant 0 : i32
    %c0_i32_2 = arith.constant 0 : i32
    return %c0_i32, %c0_i32_0, %c0_i32_1 : i32, i32, i32
  }
  func.func @transform_2(%arg0: i32) -> (i32, i32) {
    %c0_i32 = arith.constant 0 : i32
    %c0_i32_0 = arith.constant 0 : i32
    %c0_i32_1 = arith.constant 0 : i32
    return %c0_i32, %c0_i32_0 : i32, i32
  }
  func.func @transform_3(%arg0: i32) -> (i32, i32) {
    %c0_i32 = arith.constant 0 : i32
    %c0_i32_0 = arith.constant 0 : i32
    %c0_i32_1 = arith.constant 0 : i32
    return %c0_i32, %c0_i32_0 : i32, i32
  }
  func.func @transform_4(%arg0: i32) -> (i32, i32, i32, i32) {
    %c0_i32 = arith.constant 0 : i32
    %c0_i32_0 = arith.constant 0 : i32
    %c0_i32_1 = arith.constant 0 : i32
    %c0_i32_2 = arith.constant 0 : i32
    return %arg0, %c0_i32, %c0_i32_0, %c0_i32_1 : i32, i32, i32, i32
  }
}

module attributes {stable_mosaic.version = 11 : i64} {
  func.func @_conv4_tail_kernel(%arg0: i32, %arg1: memref<1x4x2x2x128xbf16, #tpu.memory_space<vmem>>, %arg2: memref<9x128x256xbf16, #tpu.memory_space<vmem>>, %arg3: memref<1x256xf32, #tpu.memory_space<vmem>>, %arg4: memref<1x256xf32, #tpu.memory_space<vmem>>, %arg5: memref<256x512xbf16, #tpu.memory_space<vmem>>, %arg6: memref<1x512xf32, #tpu.memory_space<vmem>>, %arg7: memref<1x1x512xf32, #tpu.memory_space<vmem>>) attributes {dimension_semantics = [#tpu.dimension_semantics<parallel>], iteration_bounds = array<i64: 2>, scalar_prefetch = 0 : i64, scratch_operands = 0 : i64, tpu.core_type = #tpu.core_type<tc>, window_params = [{transform_indices = @transform_0, window_bounds = array<i64: 1, 4, 2, 2, 128>}, {pipeline_mode = #tpu.pipeline_mode<synchronous>, transform_indices = @transform_1, window_bounds = array<i64: 9, 128, 256>}, {pipeline_mode = #tpu.pipeline_mode<synchronous>, transform_indices = @transform_2, window_bounds = array<i64: 1, 256>}, {pipeline_mode = #tpu.pipeline_mode<synchronous>, transform_indices = @transform_3, window_bounds = array<i64: 1, 256>}, {pipeline_mode = #tpu.pipeline_mode<synchronous>, transform_indices = @transform_4, window_bounds = array<i64: 256, 512>}, {pipeline_mode = #tpu.pipeline_mode<synchronous>, transform_indices = @transform_5, window_bounds = array<i64: 1, 512>}, {transform_indices = @transform_6, window_bounds = array<i64: 1, 1, 512>}]} {
    %c0 = arith.constant 0 : index
    %c0_0 = arith.constant 0 : index
    %c0_1 = arith.constant 0 : index
    %c0_2 = arith.constant 0 : index
    %c0_3 = arith.constant 0 : index
    %0 = vector.load %arg1[%c0, %c0_0, %c0_1, %c0_2, %c0_3] : memref<1x4x2x2x128xbf16, #tpu.memory_space<vmem>>, vector<1x1x1x1x128xbf16>
    %1 = vector.shape_cast %0 : vector<1x1x1x1x128xbf16> to vector<1x1x128xbf16>
    %2 = vector.shape_cast %1 : vector<1x1x128xbf16> to vector<1x128xbf16>
    %c0_4 = arith.constant 0 : index
    %c0_5 = arith.constant 0 : index
    %c0_6 = arith.constant 0 : index
    %3 = vector.load %arg2[%c0_4, %c0_5, %c0_6] : memref<9x128x256xbf16, #tpu.memory_space<vmem>>, vector<1x128x256xbf16>
    %4 = vector.shape_cast %3 : vector<1x128x256xbf16> to vector<128x256xbf16>
    %cst = arith.constant dense<0.000000e+00> : vector<1x256xf32>
    %5 = tpu.matmul %2, %4, %cst {dimension_numbers = #tpu.dot_dimension_numbers<[1], [0], [0], [1], [0, 0, 1, 1], [], []>} : vector<1x128xbf16>, vector<128x256xbf16>, vector<1x256xf32> -> vector<1x256xf32>
    %c0_7 = arith.constant 0 : index
    %c1 = arith.constant 1 : index
    %c0_8 = arith.constant 0 : index
    %c0_9 = arith.constant 0 : index
    %c0_10 = arith.constant 0 : index
    %6 = vector.load %arg1[%c0_7, %c1, %c0_8, %c0_9, %c0_10] : memref<1x4x2x2x128xbf16, #tpu.memory_space<vmem>>, vector<1x1x1x1x128xbf16>
    %7 = vector.shape_cast %6 : vector<1x1x1x1x128xbf16> to vector<1x1x128xbf16>
    %8 = vector.shape_cast %7 : vector<1x1x128xbf16> to vector<1x128xbf16>
    %c1_11 = arith.constant 1 : index
    %c0_12 = arith.constant 0 : index
    %c0_13 = arith.constant 0 : index
    %9 = vector.load %arg2[%c1_11, %c0_12, %c0_13] : memref<9x128x256xbf16, #tpu.memory_space<vmem>>, vector<1x128x256xbf16>
    %10 = vector.shape_cast %9 : vector<1x128x256xbf16> to vector<128x256xbf16>
    %cst_14 = arith.constant dense<0.000000e+00> : vector<1x256xf32>
    %11 = tpu.matmul %8, %10, %cst_14 {dimension_numbers = #tpu.dot_dimension_numbers<[1], [0], [0], [1], [0, 0, 1, 1], [], []>} : vector<1x128xbf16>, vector<128x256xbf16>, vector<1x256xf32> -> vector<1x256xf32>
    %12 = arith.addf %5, %11 : vector<1x256xf32>
    %c0_15 = arith.constant 0 : index
    %c0_16 = arith.constant 0 : index
    %c0_17 = arith.constant 0 : index
    %c1_18 = arith.constant 1 : index
    %c0_19 = arith.constant 0 : index
    %13 = vector.load %arg1[%c0_15, %c0_16, %c0_17, %c1_18, %c0_19] : memref<1x4x2x2x128xbf16, #tpu.memory_space<vmem>>, vector<1x1x1x1x128xbf16>
    %14 = vector.shape_cast %13 : vector<1x1x1x1x128xbf16> to vector<1x1x128xbf16>
    %15 = vector.shape_cast %14 : vector<1x1x128xbf16> to vector<1x128xbf16>
    %c2 = arith.constant 2 : index
    %c0_20 = arith.constant 0 : index
    %c0_21 = arith.constant 0 : index
    %16 = vector.load %arg2[%c2, %c0_20, %c0_21] : memref<9x128x256xbf16, #tpu.memory_space<vmem>>, vector<1x128x256xbf16>
    %17 = vector.shape_cast %16 : vector<1x128x256xbf16> to vector<128x256xbf16>
    %cst_22 = arith.constant dense<0.000000e+00> : vector<1x256xf32>
    %18 = tpu.matmul %15, %17, %cst_22 {dimension_numbers = #tpu.dot_dimension_numbers<[1], [0], [0], [1], [0, 0, 1, 1], [], []>} : vector<1x128xbf16>, vector<128x256xbf16>, vector<1x256xf32> -> vector<1x256xf32>
    %19 = arith.addf %12, %18 : vector<1x256xf32>
    %c0_23 = arith.constant 0 : index
    %c2_24 = arith.constant 2 : index
    %c0_25 = arith.constant 0 : index
    %c0_26 = arith.constant 0 : index
    %c0_27 = arith.constant 0 : index
    %20 = vector.load %arg1[%c0_23, %c2_24, %c0_25, %c0_26, %c0_27] : memref<1x4x2x2x128xbf16, #tpu.memory_space<vmem>>, vector<1x1x1x1x128xbf16>
    %21 = vector.shape_cast %20 : vector<1x1x1x1x128xbf16> to vector<1x1x128xbf16>
    %22 = vector.shape_cast %21 : vector<1x1x128xbf16> to vector<1x128xbf16>
    %c3 = arith.constant 3 : index
    %c0_28 = arith.constant 0 : index
    %c0_29 = arith.constant 0 : index
    %23 = vector.load %arg2[%c3, %c0_28, %c0_29] : memref<9x128x256xbf16, #tpu.memory_space<vmem>>, vector<1x128x256xbf16>
    %24 = vector.shape_cast %23 : vector<1x128x256xbf16> to vector<128x256xbf16>
    %cst_30 = arith.constant dense<0.000000e+00> : vector<1x256xf32>
    %25 = tpu.matmul %22, %24, %cst_30 {dimension_numbers = #tpu.dot_dimension_numbers<[1], [0], [0], [1], [0, 0, 1, 1], [], []>} : vector<1x128xbf16>, vector<128x256xbf16>, vector<1x256xf32> -> vector<1x256xf32>
    %26 = arith.addf %19, %25 : vector<1x256xf32>
    %c0_31 = arith.constant 0 : index
    %c3_32 = arith.constant 3 : index
    %c0_33 = arith.constant 0 : index
    %c0_34 = arith.constant 0 : index
    %c0_35 = arith.constant 0 : index
    %27 = vector.load %arg1[%c0_31, %c3_32, %c0_33, %c0_34, %c0_35] : memref<1x4x2x2x128xbf16, #tpu.memory_space<vmem>>, vector<1x1x1x1x128xbf16>
    %28 = vector.shape_cast %27 : vector<1x1x1x1x128xbf16> to vector<1x1x128xbf16>
    %29 = vector.shape_cast %28 : vector<1x1x128xbf16> to vector<1x128xbf16>
    %c4 = arith.constant 4 : index
    %c0_36 = arith.constant 0 : index
    %c0_37 = arith.constant 0 : index
    %30 = vector.load %arg2[%c4, %c0_36, %c0_37] : memref<9x128x256xbf16, #tpu.memory_space<vmem>>, vector<1x128x256xbf16>
    %31 = vector.shape_cast %30 : vector<1x128x256xbf16> to vector<128x256xbf16>
    %cst_38 = arith.constant dense<0.000000e+00> : vector<1x256xf32>
    %32 = tpu.matmul %29, %31, %cst_38 {dimension_numbers = #tpu.dot_dimension_numbers<[1], [0], [0], [1], [0, 0, 1, 1], [], []>} : vector<1x128xbf16>, vector<128x256xbf16>, vector<1x256xf32> -> vector<1x256xf32>
    %33 = arith.addf %26, %32 : vector<1x256xf32>
    %c0_39 = arith.constant 0 : index
    %c2_40 = arith.constant 2 : index
    %c0_41 = arith.constant 0 : index
    %c1_42 = arith.constant 1 : index
    %c0_43 = arith.constant 0 : index
    %34 = vector.load %arg1[%c0_39, %c2_40, %c0_41, %c1_42, %c0_43] : memref<1x4x2x2x128xbf16, #tpu.memory_space<vmem>>, vector<1x1x1x1x128xbf16>
    %35 = vector.shape_cast %34 : vector<1x1x1x1x128xbf16> to vector<1x1x128xbf16>
    %36 = vector.shape_cast %35 : vector<1x1x128xbf16> to vector<1x128xbf16>
    %c5 = arith.constant 5 : index
    %c0_44 = arith.constant 0 : index
    %c0_45 = arith.constant 0 : index
    %37 = vector.load %arg2[%c5, %c0_44, %c0_45] : memref<9x128x256xbf16, #tpu.memory_space<vmem>>, vector<1x128x256xbf16>
    %38 = vector.shape_cast %37 : vector<1x128x256xbf16> to vector<128x256xbf16>
    %cst_46 = arith.constant dense<0.000000e+00> : vector<1x256xf32>
    %39 = tpu.matmul %36, %38, %cst_46 {dimension_numbers = #tpu.dot_dimension_numbers<[1], [0], [0], [1], [0, 0, 1, 1], [], []>} : vector<1x128xbf16>, vector<128x256xbf16>, vector<1x256xf32> -> vector<1x256xf32>
    %40 = arith.addf %33, %39 : vector<1x256xf32>
    %c0_47 = arith.constant 0 : index
    %c0_48 = arith.constant 0 : index
    %c1_49 = arith.constant 1 : index
    %c0_50 = arith.constant 0 : index
    %c0_51 = arith.constant 0 : index
    %41 = vector.load %arg1[%c0_47, %c0_48, %c1_49, %c0_50, %c0_51] : memref<1x4x2x2x128xbf16, #tpu.memory_space<vmem>>, vector<1x1x1x1x128xbf16>
    %42 = vector.shape_cast %41 : vector<1x1x1x1x128xbf16> to vector<1x1x128xbf16>
    %43 = vector.shape_cast %42 : vector<1x1x128xbf16> to vector<1x128xbf16>
    %c6 = arith.constant 6 : index
    %c0_52 = arith.constant 0 : index
    %c0_53 = arith.constant 0 : index
    %44 = vector.load %arg2[%c6, %c0_52, %c0_53] : memref<9x128x256xbf16, #tpu.memory_space<vmem>>, vector<1x128x256xbf16>
    %45 = vector.shape_cast %44 : vector<1x128x256xbf16> to vector<128x256xbf16>
    %cst_54 = arith.constant dense<0.000000e+00> : vector<1x256xf32>
    %46 = tpu.matmul %43, %45, %cst_54 {dimension_numbers = #tpu.dot_dimension_numbers<[1], [0], [0], [1], [0, 0, 1, 1], [], []>} : vector<1x128xbf16>, vector<128x256xbf16>, vector<1x256xf32> -> vector<1x256xf32>
    %47 = arith.addf %40, %46 : vector<1x256xf32>
    %c0_55 = arith.constant 0 : index
    %c1_56 = arith.constant 1 : index
    %c1_57 = arith.constant 1 : index
    %c0_58 = arith.constant 0 : index
    %c0_59 = arith.constant 0 : index
    %48 = vector.load %arg1[%c0_55, %c1_56, %c1_57, %c0_58, %c0_59] : memref<1x4x2x2x128xbf16, #tpu.memory_space<vmem>>, vector<1x1x1x1x128xbf16>
    %49 = vector.shape_cast %48 : vector<1x1x1x1x128xbf16> to vector<1x1x128xbf16>
    %50 = vector.shape_cast %49 : vector<1x1x128xbf16> to vector<1x128xbf16>
    %c7 = arith.constant 7 : index
    %c0_60 = arith.constant 0 : index
    %c0_61 = arith.constant 0 : index
    %51 = vector.load %arg2[%c7, %c0_60, %c0_61] : memref<9x128x256xbf16, #tpu.memory_space<vmem>>, vector<1x128x256xbf16>
    %52 = vector.shape_cast %51 : vector<1x128x256xbf16> to vector<128x256xbf16>
    %cst_62 = arith.constant dense<0.000000e+00> : vector<1x256xf32>
    %53 = tpu.matmul %50, %52, %cst_62 {dimension_numbers = #tpu.dot_dimension_numbers<[1], [0], [0], [1], [0, 0, 1, 1], [], []>} : vector<1x128xbf16>, vector<128x256xbf16>, vector<1x256xf32> -> vector<1x256xf32>
    %54 = arith.addf %47, %53 : vector<1x256xf32>
    %c0_63 = arith.constant 0 : index
    %c0_64 = arith.constant 0 : index
    %c1_65 = arith.constant 1 : index
    %c1_66 = arith.constant 1 : index
    %c0_67 = arith.constant 0 : index
    %55 = vector.load %arg1[%c0_63, %c0_64, %c1_65, %c1_66, %c0_67] : memref<1x4x2x2x128xbf16, #tpu.memory_space<vmem>>, vector<1x1x1x1x128xbf16>
    %56 = vector.shape_cast %55 : vector<1x1x1x1x128xbf16> to vector<1x1x128xbf16>
    %57 = vector.shape_cast %56 : vector<1x1x128xbf16> to vector<1x128xbf16>
    %c8 = arith.constant 8 : index
    %c0_68 = arith.constant 0 : index
    %c0_69 = arith.constant 0 : index
    %58 = vector.load %arg2[%c8, %c0_68, %c0_69] : memref<9x128x256xbf16, #tpu.memory_space<vmem>>, vector<1x128x256xbf16>
    %59 = vector.shape_cast %58 : vector<1x128x256xbf16> to vector<128x256xbf16>
    %cst_70 = arith.constant dense<0.000000e+00> : vector<1x256xf32>
    %60 = tpu.matmul %57, %59, %cst_70 {dimension_numbers = #tpu.dot_dimension_numbers<[1], [0], [0], [1], [0, 0, 1, 1], [], []>} : vector<1x128xbf16>, vector<128x256xbf16>, vector<1x256xf32> -> vector<1x256xf32>
    %61 = arith.addf %54, %60 : vector<1x256xf32>
    %c0_71 = arith.constant 0 : index
    %c0_72 = arith.constant 0 : index
    %62 = vector.load %arg3[%c0_71, %c0_72] : memref<1x256xf32, #tpu.memory_space<vmem>>, vector<1x256xf32>
    %c0_73 = arith.constant 0 : index
    %c0_74 = arith.constant 0 : index
    %63 = vector.load %arg4[%c0_73, %c0_74] : memref<1x256xf32, #tpu.memory_space<vmem>>, vector<1x256xf32>
    %64 = arith.mulf %61, %62 : vector<1x256xf32>
    %65 = arith.addf %64, %63 : vector<1x256xf32>
    %cst_75 = arith.constant 0.00999999977 : f32
    %66 = vector.broadcast %cst_75 : f32 to vector<1x256xf32>
    %67 = arith.mulf %66, %65 : vector<1x256xf32>
    %68 = arith.maximumf %65, %67 : vector<1x256xf32>
    %cst_76 = arith.constant dense<0.000000e+00> : vector<256xf32>
    %69 = vector.multi_reduction <add>, %68, %cst_76 [0] : vector<1x256xf32> to vector<256xf32>
    %70 = vector.shape_cast %69 : vector<256xf32> to vector<1x256xf32>
    %cst_77 = arith.constant 1.000000e+00 : f32
    %71 = vector.broadcast %cst_77 : f32 to vector<1x256xf32>
    %72 = arith.divf %70, %71 : vector<1x256xf32>
    %73 = arith.truncf %72 : vector<1x256xf32> to vector<1x256xbf16>
    %c0_78 = arith.constant 0 : index
    %c0_79 = arith.constant 0 : index
    %74 = vector.load %arg5[%c0_78, %c0_79] : memref<256x512xbf16, #tpu.memory_space<vmem>>, vector<256x512xbf16>
    %cst_80 = arith.constant dense<0.000000e+00> : vector<1x512xf32>
    %75 = tpu.matmul %73, %74, %cst_80 {dimension_numbers = #tpu.dot_dimension_numbers<[1], [0], [0], [1], [0, 0, 1, 1], [], []>} : vector<1x256xbf16>, vector<256x512xbf16>, vector<1x512xf32> -> vector<1x512xf32>
    %c0_81 = arith.constant 0 : index
    %c0_82 = arith.constant 0 : index
    %76 = vector.load %arg6[%c0_81, %c0_82] : memref<1x512xf32, #tpu.memory_space<vmem>>, vector<1x512xf32>
    %77 = arith.addf %75, %76 : vector<1x512xf32>
    %78 = math.tanh %77 : vector<1x512xf32>
    %79 = vector.shape_cast %78 : vector<1x512xf32> to vector<1x1x512xf32>
    %c0_83 = arith.constant 0 : index
    %c0_84 = arith.constant 0 : index
    %c0_85 = arith.constant 0 : index
    %80 = vector.load %arg7[%c0_83, %c0_84, %c0_85] : memref<1x1x512xf32, #tpu.memory_space<vmem>>, vector<1x1x512xf32>
    tpu.vector_store %arg7[%c0_83, %c0_84, %c0_85], %79 {strides = array<i32>} : memref<1x1x512xf32, #tpu.memory_space<vmem>>, vector<1x1x512xf32>,
    return
  }
  func.func @transform_0(%arg0: i32) -> (i32, i32, i32, i32, i32) {
    %c0_i32 = arith.constant 0 : i32
    %c0_i32_0 = arith.constant 0 : i32
    %c0_i32_1 = arith.constant 0 : i32
    %c0_i32_2 = arith.constant 0 : i32
    %c0_i32_3 = arith.constant 0 : i32
    return %arg0, %c0_i32, %c0_i32_0, %c0_i32_1, %c0_i32_2 : i32, i32, i32, i32, i32
  }
  func.func @transform_1(%arg0: i32) -> (i32, i32, i32) {
    %c0_i32 = arith.constant 0 : i32
    %c0_i32_0 = arith.constant 0 : i32
    %c0_i32_1 = arith.constant 0 : i32
    %c0_i32_2 = arith.constant 0 : i32
    return %c0_i32, %c0_i32_0, %c0_i32_1 : i32, i32, i32
  }
  func.func @transform_2(%arg0: i32) -> (i32, i32) {
    %c0_i32 = arith.constant 0 : i32
    %c0_i32_0 = arith.constant 0 : i32
    %c0_i32_1 = arith.constant 0 : i32
    return %c0_i32, %c0_i32_0 : i32, i32
  }
  func.func @transform_3(%arg0: i32) -> (i32, i32) {
    %c0_i32 = arith.constant 0 : i32
    %c0_i32_0 = arith.constant 0 : i32
    %c0_i32_1 = arith.constant 0 : i32
    return %c0_i32, %c0_i32_0 : i32, i32
  }
  func.func @transform_4(%arg0: i32) -> (i32, i32) {
    %c0_i32 = arith.constant 0 : i32
    %c0_i32_0 = arith.constant 0 : i32
    %c0_i32_1 = arith.constant 0 : i32
    return %c0_i32, %c0_i32_0 : i32, i32
  }
  func.func @transform_5(%arg0: i32) -> (i32, i32) {
    %c0_i32 = arith.constant 0 : i32
    %c0_i32_0 = arith.constant 0 : i32
    %c0_i32_1 = arith.constant 0 : i32
    return %c0_i32, %c0_i32_0 : i32, i32
  }
  func.func @transform_6(%arg0: i32) -> (i32, i32, i32) {
    %c0_i32 = arith.constant 0 : i32
    %c0_i32_0 = arith.constant 0 : i32
    %c0_i32_1 = arith.constant 0 : i32
    return %arg0, %c0_i32, %c0_i32_0 : i32, i32, i32
  }
}

</mosaic_0001>

<llo_original>
// kernel: font_classifier_forward.6
$region0: #{font_classifier_forward.6}
  #allocation0 [shape = 'u32[]', space=smem, size = 0x4, offset = 0x4, fixed_abs, tag = 'smem constant byte address 0x4 - core index']
  #allocation1 [shape = 'u32[144,128]{1,0:T(1,128)}', space=vmem, size = 0x12000, scoped, tag = 'internal scratch']
  %s0 = inlined_call_operand.vmem [shape: bf16[2,4,9,9,32], index: 0, kind: input, shape index: {}]
  %s1 = inlined_call_operand.vmem [shape: bf16[9,32,64], index: 1, kind: input, shape index: {}]
  %s2 = inlined_call_operand.vmem [shape: f32[1,64], index: 2, kind: input, shape index: {}]
  %s3 = inlined_call_operand.vmem [shape: f32[1,64], index: 3, kind: input, shape index: {}]
  %s4 = inlined_call_operand.vmem [shape: bf16[2,8,8,64], index: 4, kind: output, shape index: {}]
  %s5 = sld [smem:[#allocation0]]
  $region49: #{font_classifier_forward.6} parent=0
    _
  %s7 = ssub.s32 1, %s5
  %s8 = scalar_select 0, %s7, %s5
  loop: start=0, step=1, limit=4
  $region2: #{font_classifier_forward.6} parent=0 // loop_pre_header
    _
  $region3: #{font_classifier_forward.6} parent=0 // loop_header
    %s10 = sphi 0, %s14
    %p11 = scmp.ge.s32.totalorder %s10, 4
    %s20 = sphi 0, %s22
    %s23 = sphi 0, %s20
    %s24 = sphi 0, %s23
    %s40 = sphi 0, %s24
    %s44 = sphi 0, %s44
    %s46 = sphi 0, %s44
    %s47 = sphi 0, %s46
    %s61 = sphi 0, %s47
    %s65 = sphi 0, %s65
    %s67 = sphi 0, %s65
    %s68 = sphi 0, %s67
    %s82 = sphi 0, %s68
    %s86 = sphi 0, %s86
    %s88 = sphi 0, %s86
    %s89 = sphi 0, %s88
    %s103 = sphi 0, %s89
    %s109 = sphi 0, %s111
    %s112 = sphi 0, %s109
    %s113 = sphi 0, %s112
    %s129 = sphi 0, %s113
  $region4: #{font_classifier_forward.6} parent=0 // loop_header_branch
    %13 = sbr.rel (%p11) target = $region8
  $region5: #{font_classifier_forward.6} parent=0 // loop_body
    %s15 = ssub.s32 %s10, 1
    %s16 = ssub.s32 %s10, 2
    %s17 = sadd.s32 %s10, 1
    %s18 = ssub.s32 %s10, %s17
    %p19 = scmp.eq.s32.totalorder %s18, 0
    %s21 = sadd.s32 %s20, 1
    %s22 = scalar_select %p19, %s20, %s21
    %p25 = pneg %p19
    %p26 = scmp.eq.s32.totalorder %s10, 1
    %p27 = por %p25, %p26
    %p28 = scmp.ne.s32.totalorder %s20, %s23
    %p29 = scmp.eq.s32.totalorder %s10, 0
    %p30 = por %p28, %p29
    %p31 = scmp.ne.s32.totalorder %s20, %s23
    %p32 = scmp.eq.s32.totalorder %s15, 1
    %p33 = por %p31, %p32
    %p34 = scmp.ne.s32.totalorder %s23, %s24
    %p35 = scmp.eq.s32.totalorder %s15, 0
    %p36 = por %p34, %p35
    %p37 = scmp.ne.s32.totalorder %s23, %s24
    %p38 = scmp.eq.s32.totalorder %s16, 1
    %p39 = por %p37, %p38
    %p41 = scmp.ne.s32.totalorder %s24, %s40
    %p42 = scmp.eq.s32.totalorder %s16, 0
    %p43 = por %p41, %p42
    %s45 = sadd.s32 %s44, 1
    %p48 = scmp.eq.s32.totalorder %s10, 1
    %p49 = scmp.ne.s32.totalorder %s44, %s46
    %p50 = scmp.eq.s32.totalorder %s10, 0
    %p51 = por %p49, %p50
    %p52 = scmp.ne.s32.totalorder %s44, %s46
    %p53 = scmp.eq.s32.totalorder %s15, 1
    %p54 = por %p52, %p53
    %p55 = scmp.ne.s32.totalorder %s46, %s47
    %p56 = scmp.eq.s32.totalorder %s15, 0
    %p57 = por %p55, %p56
    %p58 = scmp.ne.s32.totalorder %s46, %s47
    %p59 = scmp.eq.s32.totalorder %s16, 1
    %p60 = por %p58, %p59
    %p62 = scmp.ne.s32.totalorder %s47, %s61
    %p63 = scmp.eq.s32.totalorder %s16, 0
    %p64 = por %p62, %p63
    %s66 = sadd.s32 %s65, 1
    %p69 = scmp.eq.s32.totalorder %s10, 1
    %p70 = scmp.ne.s32.totalorder %s65, %s67
    %p71 = scmp.eq.s32.totalorder %s10, 0
    %p72 = por %p70, %p71
    %p73 = scmp.ne.s32.totalorder %s65, %s67
    %p74 = scmp.eq.s32.totalorder %s15, 1
    %p75 = por %p73, %p74
    %p76 = scmp.ne.s32.totalorder %s67, %s68
    %p77 = scmp.eq.s32.totalorder %s15, 0
    %p78 = por %p76, %p77
    %p79 = scmp.ne.s32.totalorder %s67, %s68
    %p80 = scmp.eq.s32.totalorder %s16, 1
    %p81 = por %p79, %p80
    %p83 = scmp.ne.s32.totalorder %s68, %s82
    %p84 = scmp.eq.s32.totalorder %s16, 0
    %p85 = por %p83, %p84
    %s87 = sadd.s32 %s86, 1
    %p90 = scmp.eq.s32.totalorder %s10, 1
    %p91 = scmp.ne.s32.totalorder %s86, %s88
    %p92 = scmp.eq.s32.totalorder %s10, 0
    %p93 = por %p91, %p92
    %p94 = scmp.ne.s32.totalorder %s86, %s88
    %p95 = scmp.eq.s32.totalorder %s15, 1
    %p96 = por %p94, %p95
    %p97 = scmp.ne.s32.totalorder %s88, %s89
    %p98 = scmp.eq.s32.totalorder %s15, 0
    %p99 = por %p97, %p98
    %p100 = scmp.ne.s32.totalorder %s88, %s89
    %p101 = scmp.eq.s32.totalorder %s16, 1
    %p102 = por %p100, %p101
    %p104 = scmp.ne.s32.totalorder %s89, %s103
    %p105 = scmp.eq.s32.totalorder %s16, 0
    %p106 = por %p104, %p105
    %s107 = ssub.s32 %s10, %s17
    %p108 = scmp.eq.s32.totalorder %s107, 0
    %s110 = sadd.s32 %s109, 1
    %s111 = scalar_select %p108, %s109, %s110
    %p114 = pneg %p108
    %p115 = scmp.eq.s32.totalorder %s10, 1
    %p116 = por %p114, %p115
    %p117 = scmp.ne.s32.totalorder %s109, %s112
    %p118 = scmp.eq.s32.totalorder %s10, 0
    %p119 = por %p117, %p118
    %p120 = scmp.ne.s32.totalorder %s109, %s112
    %p121 = scmp.eq.s32.totalorder %s15, 1
    %p122 = por %p120, %p121
    %p123 = scmp.ne.s32.totalorder %s112, %s113
    %p124 = scmp.eq.s32.totalorder %s15, 0
    %p125 = por %p123, %p124
    %p126 = scmp.ne.s32.totalorder %s112, %s113
    %p127 = scmp.eq.s32.totalorder %s16, 1
    %p128 = por %p126, %p127
    %p130 = scmp.ne.s32.totalorder %s113, %s129
    %p131 = scmp.eq.s32.totalorder %s16, 0
    %p132 = por %p130, %p131
    %p133 = scmp.le.s32.totalorder 1, %s10
    %p134 = scmp.lt.s32.totalorder %s10, 3
    %p135 = pnand %p133, %p134
    %p136 = pneg %p135
    // Predicated region
    $region9: #{font_classifier_forward.6} parent=5 // pred_check
      _
    $region10: #{font_classifier_forward.6} parent=5 // pred_check_branch
      %138 = sbr.rel (%p135) target = $region12
    $region11: #{font_classifier_forward.6} parent=5 // pred_region
      %s139 = ssub.s32 %s10, 1
      // Predicated region
      $region13: #{font_classifier_forward.6} parent=11 // pred_check
        %p140 = pneg %p57
      $region14: #{font_classifier_forward.6} parent=11 // pred_check_branch
        %142 = sbr.rel (%p140) target = $region16
      $region15: #{font_classifier_forward.6} parent=11 // pred_region
        _
      $region16: #{font_classifier_forward.6} parent=11 // pred_fallthru
        _
      // Predicated region
      $region17: #{font_classifier_forward.6} parent=11 // pred_check
        %p143 = pneg %p78
      $region18: #{font_classifier_forward.6} parent=11 // pred_check_branch
        %145 = sbr.rel (%p143) target = $region20
      $region19: #{font_classifier_forward.6} parent=11 // pred_region
        _
      $region20: #{font_classifier_forward.6} parent=11 // pred_fallthru
        _
      // Predicated region
      $region21: #{font_classifier_forward.6} parent=11 // pred_check
        %p146 = pneg %p99
      $region22: #{font_classifier_forward.6} parent=11 // pred_check_branch
        %148 = sbr.rel (%p146) target = $region24
      $region23: #{font_classifier_forward.6} parent=11 // pred_region
        _
      $region24: #{font_classifier_forward.6} parent=11 // pred_fallthru
        _
    $region12: #{font_classifier_forward.6} parent=5 // pred_fallthru
      _
    %p149 = scmp.lt.s32.totalorder %s10, 2
    // Predicated region
    $region25: #{font_classifier_forward.6} parent=5 // pred_check
      %p150 = pneg %p149
    $region26: #{font_classifier_forward.6} parent=5 // pred_check_branch
      %152 = sbr.rel (%p150) target = $region28
    $region27: #{font_classifier_forward.6} parent=5 // pred_region
      // Predicated region
      $region29: #{font_classifier_forward.6} parent=27 // pred_check
        %p153 = pneg %p30
      $region30: #{font_classifier_forward.6} parent=27 // pred_check_branch
        %155 = sbr.rel (%p153) target = $region32
      $region31: #{font_classifier_forward.6} parent=27 // pred_region
        %p156 = scmp.lt.s32.totalorder %s10, 1
        %s157 = scalar_select %p156, %s10, 1
        %s158 = smul.addr %s157, 72
        %s159 = smul.addr %s158, 4
        %s160 = scalar_lea.vmem %s0, %s159
      $region32: #{font_classifier_forward.6} parent=27 // pred_fallthru
        _
    $region28: #{font_classifier_forward.6} parent=5 // pred_fallthru
      _
    %p161 = scmp.le.s32.totalorder 1, %s10
    %p162 = scmp.lt.s32.totalorder %s10, 3
    %p163 = pnand %p161, %p162
    %p164 = pneg %p163
    // Predicated region
    $region33: #{font_classifier_forward.6} parent=5 // pred_check
      _
    $region34: #{font_classifier_forward.6} parent=5 // pred_check_branch
      %166 = sbr.rel (%p163) target = $region36
    $region35: #{font_classifier_forward.6} parent=5 // pred_region
      %s167 = ssub.s32 %s10, 1
      %p168 = scmp.lt.s32.totalorder %s15, 1
      %s169 = scalar_select %p168, %s15, 1
      %s170 = smul.addr %s169, 72
      %s171 = smul.addr %s170, 4
      %s172 = scalar_lea.vmem %s0, %s171
      %p173 = pneg %p36
      %p174 = pneg %p33
      %p175 = pneg %p57
      %p176 = pneg %p54
      %p177 = pneg %p78
      %p178 = pneg %p75
      %p179 = pneg %p99
      %p180 = pneg %p96
      %p181 = pneg %p125
      %p182 = pneg %p122
      %p183 = scmp.lt.s32.totalorder %s15, 1
      %s184 = scalar_select %p183, %s15, 1
      %s185 = smul.addr %s184, 8
      %s186 = smul.addr %s185, 4
      %s187 = scalar_lea.vmem %s4, %s186
      %p188 = scmp.lt.s32.totalorder %s15, 1
      %s189 = scalar_select %p188, %s15, 1
      %s190 = smul.addr %s189, 72
      %s191 = smul.addr %s190, 4
      %s192 = scalar_lea.vmem %s0, %s191
      %p193 = scmp.lt.s32.totalorder %s15, 1
      %s194 = scalar_select %p193, %s15, 1
      %s195 = smul.addr %s194, 8
      %s196 = smul.addr %s195, 4
      %s197 = scalar_lea.vmem %s4, %s196
      %v199 = vld [vmem:[%s192] sm:$0xf]
      %v200 = vld [vmem:[%s192 + $0x8] sm:$0xf]
      %v201 = vld [vmem:[%s192 + $0x10] sm:$0xf]
      %v202 = vld [vmem:[%s192 + $0x18] sm:$0xf]
      %v203 = vld [vmem:[%s192 + $0x20] sm:$0xf]
      %v204 = vld [vmem:[%s192 + $0x28] sm:$0xf]
      %v205 = vld [vmem:[%s192 + $0x30] sm:$0xf]
      %v206 = vld [vmem:[%s192 + $0x38] sm:$0xf]
      %v207 = vld [vmem:[%s1] sm:$0xf]
      %v208 = vld [vmem:[%s1 + $0x4] sm:$0xf]
      %v209 = vld [vmem:[%s1 + $0x8] sm:$0xf]
      %v210 = vld [vmem:[%s1 + $0xc] sm:$0xf]
      %s211 = scalar_lea.vmem %s192, 72
      %v212 = vld [vmem:[%s211] sm:$0xf]
      %v213 = vld [vmem:[%s211 + $0x8] sm:$0xf]
      %v214 = vld [vmem:[%s211 + $0x10] sm:$0xf]
      %v215 = vld [vmem:[%s211 + $0x18] sm:$0xf]
      %v216 = vld [vmem:[%s211 + $0x20] sm:$0xf]
      %v217 = vld [vmem:[%s211 + $0x28] sm:$0xf]
      %v218 = vld [vmem:[%s211 + $0x30] sm:$0xf]
      %v219 = vld [vmem:[%s211 + $0x38] sm:$0xf]
      %s220 = scalar_lea.vmem %s1, 16
      %v221 = vld [vmem:[%s220] sm:$0xf]
      %v222 = vld [vmem:[%s220 + $0x4] sm:$0xf]
      %v223 = vld [vmem:[%s220 + $0x8] sm:$0xf]
      %v224 = vld [vmem:[%s220 + $0xc] sm:$0xf]
      %v233 = vunpack.c.l.b16 %v212
      %v234 = vunpack.c.l.b16 %v213
      %v235 = vunpack.c.l.b16 %v214
      %v236 = vunpack.c.l.b16 %v215
      %v237 = vunpack.c.l.b16 %v216
      %v238 = vunpack.c.l.b16 %v217
      %v239 = vunpack.c.l.b16 %v218
      %v240 = vunpack.c.l.b16 %v219
      %v241 = vpack.c.b16 %v234, %v233
      %v242 = vpack.c.b16 %v236, %v235
      %v243 = vpack.c.b16 %v238, %v237
      %v244 = vpack.c.b16 %v240, %v239
      %v249 = vunpack.c.l.b16 %v221
      %v250 = vunpack.c.l.b16 %v222
      %v251 = vunpack.c.l.b16 %v223
      %v252 = vunpack.c.l.b16 %v224
      %v253 = vpack.c.b16 %v250, %v249
      %v254 = vpack.c.b16 %v252, %v251
      %vm257 = vcmask 261120
      %v259 = vsel %vm257, %v241, 0
      %v262 = vsel %vm257, %v242, 0
      %v265 = vsel %vm257, %v243, 0
      %v268 = vsel %vm257, %v244, 0
      %270 = vmatprep.subr.bf16.mxu0 0
      %271 = vmatpush1.bf16.msra.mxu0 0
      %272 = vmatprep.subr.bf16.mxu0 0
      %273 = vmatpush1.bf16.msra.mxu0 0
      %274 = vmatprep.subr.bf16.mxu0 0
      %275 = vmatpush1.bf16.msra.mxu0 0
      %276 = vmatprep.subr.bf16.mxu0 0
      %277 = vmatpush1.bf16.msra.mxu0 0
      %278 = vmatprep.subr.bf16.mxu0 0
      %279 = vmatpush1.bf16.msra.mxu0 0
      %280 = vmatprep.subr.bf16.mxu0 0
      %281 = vmatpush1.bf16.msra.mxu0 0
      %282 = vmatprep.subr.bf16.mxu0 0
      %283 = vmatpush1.bf16.msra.mxu0 %v254
      %284 = vmatprep.subr.bf16.mxu0 0
      %285 = vmatpush1.bf16.msra.mxu0 %v253
      %286 = vmatprep.subr.bf16.mxu0 0
      %287 = vmatpush2.bf16.msra.mxu0 0
      %288 = vmatprep.subr.bf16.mxu0 0
      %289 = vmatpush2.bf16.msra.mxu0 0
      %290 = vmatprep.subr.bf16.mxu0 0
      %291 = vmatpush2.bf16.msra.mxu0 0
      %292 = vmatprep.subr.bf16.mxu0 0
      %293 = vmatpush2.bf16.msra.mxu0 0
      %294 = vmatprep.subr.bf16.mxu0 0
      %295 = vmatpush2.bf16.msra.mxu0 0
      %296 = vmatprep.subr.bf16.mxu0 0
      %297 = vmatpush2.bf16.msra.mxu0 0
      %298 = vmatprep.subr.bf16.mxu0 0
      %299 = vmatpush2.bf16.msra.mxu0 0
      %300 = vmatprep.subr.bf16.mxu0 0
      %301 = vmatpush2.bf16.msra.mxu0 0
      %302 = vmatprep.mubr.bf16.mxu0 0
      %303 = vmatmul.mubr.bf16.gmra.mxu0 %v259
      %v304 = vpop.f32.mrf.mxu0
      %v305 = vadd.f32 0.0, %v304
      %v306 = vpop.f32.mrf.mxu0
      %v307 = vpop.f32.mrf.mxu0
      %v308 = vadd.f32 0.0, %v307
      %v309 = vpop.f32.mrf.mxu0
      %310 = vmatprep.mubr.bf16.mxu0 0
      %311 = vmatmul.mubr.bf16.gmra.mxu0 %v262
      %v312 = vpop.f32.mrf.mxu0
      %v313 = vadd.f32 0.0, %v312
      %v314 = vpop.f32.mrf.mxu0
      %v315 = vpop.f32.mrf.mxu0
      %v316 = vadd.f32 0.0, %v315
      %v317 = vpop.f32.mrf.mxu0
      %318 = vmatprep.mubr.bf16.mxu0 0
      %319 = vmatmul.mubr.bf16.gmra.mxu0 %v265
      %v320 = vpop.f32.mrf.mxu0
      %v321 = vadd.f32 0.0, %v320
      %v322 = vpop.f32.mrf.mxu0
      %v323 = vpop.f32.mrf.mxu0
      %v324 = vadd.f32 0.0, %v323
      %v325 = vpop.f32.mrf.mxu0
      %326 = vmatprep.mubr.bf16.mxu0 0
      %327 = vmatmul.mubr.bf16.gmra.mxu0 %v268
      %v328 = vpop.f32.mrf.mxu0
      %v329 = vadd.f32 0.0, %v328
      %v330 = vpop.f32.mrf.mxu0
      %v331 = vpop.f32.mrf.mxu0
      %v332 = vadd.f32 0.0, %v331
      %v333 = vpop.f32.mrf.mxu0
      %334 = vdwg.mxu0
      %v343 = vunpack.c.l.b16 %v199
      %v344 = vunpack.c.l.b16 %v200
      %v345 = vunpack.c.l.b16 %v201
      %v346 = vunpack.c.l.b16 %v202
      %v347 = vunpack.c.l.b16 %v203
      %v348 = vunpack.c.l.b16 %v204
      %v349 = vunpack.c.l.b16 %v205
      %v350 = vunpack.c.l.b16 %v206
      %v351 = vpack.c.b16 %v344, %v343
      %v352 = vpack.c.b16 %v346, %v345
      %v353 = vpack.c.b16 %v348, %v347
      %v354 = vpack.c.b16 %v350, %v349
      %v359 = vunpack.c.l.b16 %v207
      %v360 = vunpack.c.l.b16 %v208
      %v361 = vunpack.c.l.b16 %v209
      %v362 = vunpack.c.l.b16 %v210
      %v363 = vpack.c.b16 %v360, %v359
      %v364 = vpack.c.b16 %v362, %v361
      %v368 = vsel %vm257, %v351, 0
      %v371 = vsel %vm257, %v352, 0
      %v374 = vsel %vm257, %v353, 0
      %v377 = vsel %vm257, %v354, 0
      %379 = vmatprep.subr.bf16.mxu0 0
      %380 = vmatpush1.bf16.msra.mxu0 0
      %381 = vmatprep.subr.bf16.mxu0 0
      %382 = vmatpush1.bf16.msra.mxu0 0
      %383 = vmatprep.subr.bf16.mxu0 0
      %384 = vmatpush1.bf16.msra.mxu0 0
      %385 = vmatprep.subr.bf16.mxu0 0
      %386 = vmatpush1.bf16.msra.mxu0 0
      %387 = vmatprep.subr.bf16.mxu0 0
      %388 = vmatpush1.bf16.msra.mxu0 0
      %389 = vmatprep.subr.bf16.mxu0 0
      %390 = vmatpush1.bf16.msra.mxu0 0
      %391 = vmatprep.subr.bf16.mxu0 0
      %392 = vmatpush1.bf16.msra.mxu0 %v364
      %393 = vmatprep.subr.bf16.mxu0 0
      %394 = vmatpush1.bf16.msra.mxu0 %v363
      %395 = vmatprep.subr.bf16.mxu0 0
      %396 = vmatpush2.bf16.msra.mxu0 0
      %397 = vmatprep.subr.bf16.mxu0 0
      %398 = vmatpush2.bf16.msra.mxu0 0
      %399 = vmatprep.subr.bf16.mxu0 0
      %400 = vmatpush2.bf16.msra.mxu0 0
      %401 = vmatprep.subr.bf16.mxu0 0
      %402 = vmatpush2.bf16.msra.mxu0 0
      %403 = vmatprep.subr.bf16.mxu0 0
      %404 = vmatpush2.bf16.msra.mxu0 0
      %405 = vmatprep.subr.bf16.mxu0 0
      %406 = vmatpush2.bf16.msra.mxu0 0
      %407 = vmatprep.subr.bf16.mxu0 0
      %408 = vmatpush2.bf16.msra.mxu0 0
      %409 = vmatprep.subr.bf16.mxu0 0
      %410 = vmatpush2.bf16.msra.mxu0 0
      %411 = vmatprep.mubr.bf16.mxu0 0
      %412 = vmatmul.mubr.bf16.gmra.mxu0 %v368
      %v413 = vpop.f32.mrf.mxu0
      %v414 = vadd.f32 %v305, %v413
      %v415 = vpop.f32.mrf.mxu0
      %v416 = vpop.f32.mrf.mxu0
      %v417 = vadd.f32 %v308, %v416
      %v418 = vpop.f32.mrf.mxu0
      %419 = vmatprep.mubr.bf16.mxu0 0
      %420 = vmatmul.mubr.bf16.gmra.mxu0 %v371
      %v421 = vpop.f32.mrf.mxu0
      %v422 = vadd.f32 %v313, %v421
      %v423 = vpop.f32.mrf.mxu0
      %v424 = vpop.f32.mrf.mxu0
      %v425 = vadd.f32 %v316, %v424
      %v426 = vpop.f32.mrf.mxu0
      %427 = vmatprep.mubr.bf16.mxu0 0
      %428 = vmatmul.mubr.bf16.gmra.mxu0 %v374
      %v429 = vpop.f32.mrf.mxu0
      %v430 = vadd.f32 %v321, %v429
      %v431 = vpop.f32.mrf.mxu0
      %v432 = vpop.f32.mrf.mxu0
      %v433 = vadd.f32 %v324, %v432
      %v434 = vpop.f32.mrf.mxu0
      %435 = vmatprep.mubr.bf16.mxu0 0
      %436 = vmatmul.mubr.bf16.gmra.mxu0 %v377
      %v437 = vpop.f32.mrf.mxu0
      %v438 = vadd.f32 %v329, %v437
      %v439 = vpop.f32.mrf.mxu0
      %v440 = vpop.f32.mrf.mxu0
      %v441 = vadd.f32 %v332, %v440
      %v442 = vpop.f32.mrf.mxu0
      %443 = vdwg.mxu0
      %v444 = vld [vmem:[%s192] sm:$0xf]
      %v445 = vld [vmem:[%s192 + $0x4] sm:$0x1]
      %v446 = vld [vmem:[%s192 + $0x8] sm:$0xf]
      %v447 = vld [vmem:[%s192 + $0xc] sm:$0x1]
      %v448 = vld [vmem:[%s192 + $0x10] sm:$0xf]
      %v449 = vld [vmem:[%s192 + $0x14] sm:$0x1]
      %v450 = vld [vmem:[%s192 + $0x18] sm:$0xf]
      %v451 = vld [vmem:[%s192 + $0x1c] sm:$0x1]
      %v452 = vld [vmem:[%s192 + $0x20] sm:$0xf]
      %v453 = vld [vmem:[%s192 + $0x24] sm:$0x1]
      %v454 = vld [vmem:[%s192 + $0x28] sm:$0xf]
      %v455 = vld [vmem:[%s192 + $0x2c] sm:$0x1]
      %v456 = vld [vmem:[%s192 + $0x30] sm:$0xf]
      %v457 = vld [vmem:[%s192 + $0x34] sm:$0x1]
      %v458 = vld [vmem:[%s192 + $0x38] sm:$0xf]
      %v459 = vld [vmem:[%s192 + $0x3c] sm:$0x1]
      %vm460 = vsmask.f32 3328
      %vm461 = vsmask.f32 7440
      %vm462 = vmor %vm460, %vm461
      %v464 = vshrl.u32 %v444, 16
      %v466 = vrot.slane %v464, 4
      %v467 = vshll.u32 %v444, 16
      %v469 = vrot.slane %v467, 5
      %v470 = vor.u32 %v466, %v469
      %v471 = vrot.slane %v470, 4
      %v473 = vshll.u32 %v445, 16
      %v475 = vrot.slane %v473, 5
      %v476 = vsel %vm462, %v471, %v475
      %v478 = vshrl.u32 %v446, 16
      %v480 = vrot.slane %v478, 4
      %v481 = vshll.u32 %v446, 16
      %v483 = vrot.slane %v481, 5
      %v484 = vor.u32 %v480, %v483
      %v485 = vrot.slane %v484, 4
      %v487 = vshll.u32 %v447, 16
      %v489 = vrot.slane %v487, 5
      %v490 = vsel %vm462, %v485, %v489
      %v492 = vshrl.u32 %v448, 16
      %v494 = vrot.slane %v492, 4
      %v495 = vshll.u32 %v448, 16
      %v497 = vrot.slane %v495, 5
      %v498 = vor.u32 %v494, %v497
      %v499 = vrot.slane %v498, 4
      %v501 = vshll.u32 %v449, 16
      %v503 = vrot.slane %v501, 5
      %v504 = vsel %vm462, %v499, %v503
      %v506 = vshrl.u32 %v450, 16
      %v508 = vrot.slane %v506, 4
      %v509 = vshll.u32 %v450, 16
      %v511 = vrot.slane %v509, 5
      %v512 = vor.u32 %v508, %v511
      %v513 = vrot.slane %v512, 4
      %v515 = vshll.u32 %v451, 16
      %v517 = vrot.slane %v515, 5
      %v518 = vsel %vm462, %v513, %v517
      %v520 = vshrl.u32 %v452, 16
      %v522 = vrot.slane %v520, 4
      %v523 = vshll.u32 %v452, 16
      %v525 = vrot.slane %v523, 5
      %v526 = vor.u32 %v522, %v525
      %v527 = vrot.slane %v526, 4
      %v529 = vshll.u32 %v453, 16
      %v531 = vrot.slane %v529, 5
      %v532 = vsel %vm462, %v527, %v531
      %v534 = vshrl.u32 %v454, 16
      %v536 = vrot.slane %v534, 4
      %v537 = vshll.u32 %v454, 16
      %v539 = vrot.slane %v537, 5
      %v540 = vor.u32 %v536, %v539
      %v541 = vrot.slane %v540, 4
      %v543 = vshll.u32 %v455, 16
      %v545 = vrot.slane %v543, 5
      %v546 = vsel %vm462, %v541, %v545
      %v548 = vshrl.u32 %v456, 16
      %v550 = vrot.slane %v548, 4
      %v551 = vshll.u32 %v456, 16
      %v553 = vrot.slane %v551, 5
      %v554 = vor.u32 %v550, %v553
      %v555 = vrot.slane %v554, 4
      %v557 = vshll.u32 %v457, 16
      %v559 = vrot.slane %v557, 5
      %v560 = vsel %vm462, %v555, %v559
      %v562 = vshrl.u32 %v458, 16
      %v564 = vrot.slane %v562, 4
      %v565 = vshll.u32 %v458, 16
      %v567 = vrot.slane %v565, 5
      %v568 = vor.u32 %v564, %v567
      %v569 = vrot.slane %v568, 4
      %v571 = vshll.u32 %v459, 16
      %v573 = vrot.slane %v571, 5
      %v574 = vsel %vm462, %v569, %v573
      %s575 = scalar_lea.vmem %s1, 32
      %v576 = vld [vmem:[%s575] sm:$0xf]
      %v577 = vld [vmem:[%s575 + $0x4] sm:$0xf]
      %v578 = vld [vmem:[%s575 + $0x8] sm:$0xf]
      %v579 = vld [vmem:[%s575 + $0xc] sm:$0xf]
      %v580 = vunpack.c.l.b16 %v476
      %v581 = vunpack.c.l.b16 %v490
      %v582 = vunpack.c.l.b16 %v504
      %v583 = vunpack.c.l.b16 %v518
      %v584 = vunpack.c.l.b16 %v532
      %v585 = vunpack.c.l.b16 %v546
      %v586 = vunpack.c.l.b16 %v560
      %v587 = vunpack.c.l.b16 %v574
      %v588 = vpack.c.b16 %v581, %v580
      %v589 = vpack.c.b16 %v583, %v582
      %v590 = vpack.c.b16 %v585, %v584
      %v591 = vpack.c.b16 %v587, %v586
      %v596 = vunpack.c.l.b16 %v576
      %v597 = vunpack.c.l.b16 %v577
      %v598 = vunpack.c.l.b16 %v578
      %v599 = vunpack.c.l.b16 %v579
      %v600 = vpack.c.b16 %v597, %v596
      %v601 = vpack.c.b16 %v599, %v598
      %v605 = vsel %vm257, %v588, 0
      %v608 = vsel %vm257, %v589, 0
      %v611 = vsel %vm257, %v590, 0
      %v614 = vsel %vm257, %v591, 0
      %616 = vmatprep.subr.bf16.mxu0 0
      %617 = vmatpush1.bf16.msra.mxu0 0
      %618 = vmatprep.subr.bf16.mxu0 0
      %619 = vmatpush1.bf16.msra.mxu0 0
      %620 = vmatprep.subr.bf16.mxu0 0
      %621 = vmatpush1.bf16.msra.mxu0 0
      %622 = vmatprep.subr.bf16.mxu0 0
      %623 = vmatpush1.bf16.msra.mxu0 0
      %624 = vmatprep.subr.bf16.mxu0 0
      %625 = vmatpush1.bf16.msra.mxu0 0
      %626 = vmatprep.subr.bf16.mxu0 0
      %627 = vmatpush1.bf16.msra.mxu0 0
      %628 = vmatprep.subr.bf16.mxu0 0
      %629 = vmatpush1.bf16.msra.mxu0 %v601
      %630 = vmatprep.subr.bf16.mxu0 0
      %631 = vmatpush1.bf16.msra.mxu0 %v600
      %632 = vmatprep.subr.bf16.mxu0 0
      %633 = vmatpush2.bf16.msra.mxu0 0
      %634 = vmatprep.subr.bf16.mxu0 0
      %635 = vmatpush2.bf16.msra.mxu0 0
      %636 = vmatprep.subr.bf16.mxu0 0
      %637 = vmatpush2.bf16.msra.mxu0 0
      %638 = vmatprep.subr.bf16.mxu0 0
      %639 = vmatpush2.bf16.msra.mxu0 0
      %640 = vmatprep.subr.bf16.mxu0 0
      %641 = vmatpush2.bf16.msra.mxu0 0
      %642 = vmatprep.subr.bf16.mxu0 0
      %643 = vmatpush2.bf16.msra.mxu0 0
      %644 = vmatprep.subr.bf16.mxu0 0
      %645 = vmatpush2.bf16.msra.mxu0 0
      %646 = vmatprep.subr.bf16.mxu0 0
      %647 = vmatpush2.bf16.msra.mxu0 0
      %648 = vmatprep.mubr.bf16.mxu0 0
      %649 = vmatmul.mubr.bf16.gmra.mxu0 %v605
      %v650 = vpop.f32.mrf.mxu0
      %v651 = vadd.f32 0.0, %v650
      %v652 = vpop.f32.mrf.mxu0
      %v653 = vpop.f32.mrf.mxu0
      %v654 = vadd.f32 0.0, %v653
      %v655 = vpop.f32.mrf.mxu0
      %656 = vmatprep.mubr.bf16.mxu0 0
      %657 = vmatmul.mubr.bf16.gmra.mxu0 %v608
      %v658 = vpop.f32.mrf.mxu0
      %v659 = vadd.f32 0.0, %v658
      %v660 = vpop.f32.mrf.mxu0
      %v661 = vpop.f32.mrf.mxu0
      %v662 = vadd.f32 0.0, %v661
      %v663 = vpop.f32.mrf.mxu0
      %664 = vmatprep.mubr.bf16.mxu0 0
      %665 = vmatmul.mubr.bf16.gmra.mxu0 %v611
      %v666 = vpop.f32.mrf.mxu0
      %v667 = vadd.f32 0.0, %v666
      %v668 = vpop.f32.mrf.mxu0
      %v669 = vpop.f32.mrf.mxu0
      %v670 = vadd.f32 0.0, %v669
      %v671 = vpop.f32.mrf.mxu0
      %672 = vmatprep.mubr.bf16.mxu0 0
      %673 = vmatmul.mubr.bf16.gmra.mxu0 %v614
      %v674 = vpop.f32.mrf.mxu0
      %v675 = vadd.f32 0.0, %v674
      %v676 = vpop.f32.mrf.mxu0
      %v677 = vpop.f32.mrf.mxu0
      %v678 = vadd.f32 0.0, %v677
      %v679 = vpop.f32.mrf.mxu0
      %680 = vdwg.mxu0
      %v681 = vadd.f32 %v414, %v651
      %v682 = vadd.f32 %v417, %v654
      %v683 = vadd.f32 %v422, %v659
      %v684 = vadd.f32 %v425, %v662
      %v685 = vadd.f32 %v430, %v667
      %v686 = vadd.f32 %v433, %v670
      %v687 = vadd.f32 %v438, %v675
      %v688 = vadd.f32 %v441, %v678
      %s689 = scalar_lea.vmem %s192, 144
      %v690 = vld [vmem:[%s689] sm:$0xf]
      %v691 = vld [vmem:[%s689 + $0x8] sm:$0xf]
      %v692 = vld [vmem:[%s689 + $0x10] sm:$0xf]
      %v693 = vld [vmem:[%s689 + $0x18] sm:$0xf]
      %v694 = vld [vmem:[%s689 + $0x20] sm:$0xf]
      %v695 = vld [vmem:[%s689 + $0x28] sm:$0xf]
      %v696 = vld [vmem:[%s689 + $0x30] sm:$0xf]
      %v697 = vld [vmem:[%s689 + $0x38] sm:$0xf]
      %s698 = scalar_lea.vmem %s1, 48
      %v699 = vld [vmem:[%s698] sm:$0xf]
      %v700 = vld [vmem:[%s698 + $0x4] sm:$0xf]
      %v701 = vld [vmem:[%s698 + $0x8] sm:$0xf]
      %v702 = vld [vmem:[%s698 + $0xc] sm:$0xf]
      %v711 = vunpack.c.l.b16 %v690
      %v712 = vunpack.c.l.b16 %v691
      %v713 = vunpack.c.l.b16 %v692
      %v714 = vunpack.c.l.b16 %v693
      %v715 = vunpack.c.l.b16 %v694
      %v716 = vunpack.c.l.b16 %v695
      %v717 = vunpack.c.l.b16 %v696
      %v718 = vunpack.c.l.b16 %v697
      %v719 = vpack.c.b16 %v712, %v711
      %v720 = vpack.c.b16 %v714, %v713
      %v721 = vpack.c.b16 %v716, %v715
      %v722 = vpack.c.b16 %v718, %v717
      %v727 = vunpack.c.l.b16 %v699
      %v728 = vunpack.c.l.b16 %v700
      %v729 = vunpack.c.l.b16 %v701
      %v730 = vunpack.c.l.b16 %v702
      %v731 = vpack.c.b16 %v728, %v727
      %v732 = vpack.c.b16 %v730, %v729
      %v736 = vsel %vm257, %v719, 0
      %v739 = vsel %vm257, %v720, 0
      %v742 = vsel %vm257, %v721, 0
      %v745 = vsel %vm257, %v722, 0
      %747 = vmatprep.subr.bf16.mxu0 0
      %748 = vmatpush1.bf16.msra.mxu0 0
      %749 = vmatprep.subr.bf16.mxu0 0
      %750 = vmatpush1.bf16.msra.mxu0 0
      %751 = vmatprep.subr.bf16.mxu0 0
      %752 = vmatpush1.bf16.msra.mxu0 0
      %753 = vmatprep.subr.bf16.mxu0 0
      %754 = vmatpush1.bf16.msra.mxu0 0
      %755 = vmatprep.subr.bf16.mxu0 0
      %756 = vmatpush1.bf16.msra.mxu0 0
      %757 = vmatprep.subr.bf16.mxu0 0
      %758 = vmatpush1.bf16.msra.mxu0 0
      %759 = vmatprep.subr.bf16.mxu0 0
      %760 = vmatpush1.bf16.msra.mxu0 %v732
      %761 = vmatprep.subr.bf16.mxu0 0
      %762 = vmatpush1.bf16.msra.mxu0 %v731
      %763 = vmatprep.subr.bf16.mxu0 0
      %764 = vmatpush2.bf16.msra.mxu0 0
      %765 = vmatprep.subr.bf16.mxu0 0
      %766 = vmatpush2.bf16.msra.mxu0 0
      %767 = vmatprep.subr.bf16.mxu0 0
      %768 = vmatpush2.bf16.msra.mxu0 0
      %769 = vmatprep.subr.bf16.mxu0 0
      %770 = vmatpush2.bf16.msra.mxu0 0
      %771 = vmatprep.subr.bf16.mxu0 0
      %772 = vmatpush2.bf16.msra.mxu0 0
      %773 = vmatprep.subr.bf16.mxu0 0
      %774 = vmatpush2.bf16.msra.mxu0 0
      %775 = vmatprep.subr.bf16.mxu0 0
      %776 = vmatpush2.bf16.msra.mxu0 0
      %777 = vmatprep.subr.bf16.mxu0 0
      %778 = vmatpush2.bf16.msra.mxu0 0
      %779 = vmatprep.mubr.bf16.mxu0 0
      %780 = vmatmul.mubr.bf16.gmra.mxu0 %v736
      %v781 = vpop.f32.mrf.mxu0
      %v782 = vadd.f32 0.0, %v781
      %v783 = vpop.f32.mrf.mxu0
      %v784 = vpop.f32.mrf.mxu0
      %v785 = vadd.f32 0.0, %v784
      %v786 = vpop.f32.mrf.mxu0
      %787 = vmatprep.mubr.bf16.mxu0 0
      %788 = vmatmul.mubr.bf16.gmra.mxu0 %v739
      %v789 = vpop.f32.mrf.mxu0
      %v790 = vadd.f32 0.0, %v789
      %v791 = vpop.f32.mrf.mxu0
      %v792 = vpop.f32.mrf.mxu0
      %v793 = vadd.f32 0.0, %v792
      %v794 = vpop.f32.mrf.mxu0
      %795 = vmatprep.mubr.bf16.mxu0 0
      %796 = vmatmul.mubr.bf16.gmra.mxu0 %v742
      %v797 = vpop.f32.mrf.mxu0
      %v798 = vadd.f32 0.0, %v797
      %v799 = vpop.f32.mrf.mxu0
      %v800 = vpop.f32.mrf.mxu0
      %v801 = vadd.f32 0.0, %v800
      %v802 = vpop.f32.mrf.mxu0
      %803 = vmatprep.mubr.bf16.mxu0 0
      %804 = vmatmul.mubr.bf16.gmra.mxu0 %v745
      %v805 = vpop.f32.mrf.mxu0
      %v806 = vadd.f32 0.0, %v805
      %v807 = vpop.f32.mrf.mxu0
      %v808 = vpop.f32.mrf.mxu0
      %v809 = vadd.f32 0.0, %v808
      %v810 = vpop.f32.mrf.mxu0
      %811 = vdwg.mxu0
      %v812 = vadd.f32 %v681, %v782
      %v813 = vadd.f32 %v682, %v785
      %v814 = vadd.f32 %v683, %v790
      %v815 = vadd.f32 %v684, %v793
      %v816 = vadd.f32 %v685, %v798
      %v817 = vadd.f32 %v686, %v801
      %v818 = vadd.f32 %v687, %v806
      %v819 = vadd.f32 %v688, %v809
      %s820 = scalar_lea.vmem %s192, 216
      %v821 = vld [vmem:[%s820] sm:$0xf]
      %v822 = vld [vmem:[%s820 + $0x8] sm:$0xf]
      %v823 = vld [vmem:[%s820 + $0x10] sm:$0xf]
      %v824 = vld [vmem:[%s820 + $0x18] sm:$0xf]
      %v825 = vld [vmem:[%s820 + $0x20] sm:$0xf]
      %v826 = vld [vmem:[%s820 + $0x28] sm:$0xf]
      %v827 = vld [vmem:[%s820 + $0x30] sm:$0xf]
      %v828 = vld [vmem:[%s820 + $0x38] sm:$0xf]
      %s829 = scalar_lea.vmem %s1, 64
      %v830 = vld [vmem:[%s829] sm:$0xf]
      %v831 = vld [vmem:[%s829 + $0x4] sm:$0xf]
      %v832 = vld [vmem:[%s829 + $0x8] sm:$0xf]
      %v833 = vld [vmem:[%s829 + $0xc] sm:$0xf]
      %v842 = vunpack.c.l.b16 %v821
      %v843 = vunpack.c.l.b16 %v822
      %v844 = vunpack.c.l.b16 %v823
      %v845 = vunpack.c.l.b16 %v824
      %v846 = vunpack.c.l.b16 %v825
      %v847 = vunpack.c.l.b16 %v826
      %v848 = vunpack.c.l.b16 %v827
      %v849 = vunpack.c.l.b16 %v828
      %v850 = vpack.c.b16 %v843, %v842
      %v851 = vpack.c.b16 %v845, %v844
      %v852 = vpack.c.b16 %v847, %v846
      %v853 = vpack.c.b16 %v849, %v848
      %v858 = vunpack.c.l.b16 %v830
      %v859 = vunpack.c.l.b16 %v831
      %v860 = vunpack.c.l.b16 %v832
      %v861 = vunpack.c.l.b16 %v833
      %v862 = vpack.c.b16 %v859, %v858
      %v863 = vpack.c.b16 %v861, %v860
      %v867 = vsel %vm257, %v850, 0
      %v870 = vsel %vm257, %v851, 0
      %v873 = vsel %vm257, %v852, 0
      %v876 = vsel %vm257, %v853, 0
      %878 = vmatprep.subr.bf16.mxu0 0
      %879 = vmatpush1.bf16.msra.mxu0 0
      %880 = vmatprep.subr.bf16.mxu0 0
      %881 = vmatpush1.bf16.msra.mxu0 0
      %882 = vmatprep.subr.bf16.mxu0 0
      %883 = vmatpush1.bf16.msra.mxu0 0
      %884 = vmatprep.subr.bf16.mxu0 0
      %885 = vmatpush1.bf16.msra.mxu0 0
      %886 = vmatprep.subr.bf16.mxu0 0
      %887 = vmatpush1.bf16.msra.mxu0 0
      %888 = vmatprep.subr.bf16.mxu0 0
      %889 = vmatpush1.bf16.msra.mxu0 0
      %890 = vmatprep.subr.bf16.mxu0 0
      %891 = vmatpush1.bf16.msra.mxu0 %v863
      %892 = vmatprep.subr.bf16.mxu0 0
      %893 = vmatpush1.bf16.msra.mxu0 %v862
      %894 = vmatprep.subr.bf16.mxu0 0
      %895 = vmatpush2.bf16.msra.mxu0 0
      %896 = vmatprep.subr.bf16.mxu0 0
      %897 = vmatpush2.bf16.msra.mxu0 0
      %898 = vmatprep.subr.bf16.mxu0 0
      %899 = vmatpush2.bf16.msra.mxu0 0
      %900 = vmatprep.subr.bf16.mxu0 0
      %901 = vmatpush2.bf16.msra.mxu0 0
      %902 = vmatprep.subr.bf16.mxu0 0
      %903 = vmatpush2.bf16.msra.mxu0 0
      %904 = vmatprep.subr.bf16.mxu0 0
      %905 = vmatpush2.bf16.msra.mxu0 0
      %906 = vmatprep.subr.bf16.mxu0 0
      %907 = vmatpush2.bf16.msra.mxu0 0
      %908 = vmatprep.subr.bf16.mxu0 0
      %909 = vmatpush2.bf16.msra.mxu0 0
      %910 = vmatprep.mubr.bf16.mxu0 0
      %911 = vmatmul.mubr.bf16.gmra.mxu0 %v867
      %v912 = vpop.f32.mrf.mxu0
      %v913 = vadd.f32 0.0, %v912
      %v914 = vpop.f32.mrf.mxu0
      %v915 = vpop.f32.mrf.mxu0
      %v916 = vadd.f32 0.0, %v915
      %v917 = vpop.f32.mrf.mxu0
      %918 = vmatprep.mubr.bf16.mxu0 0
      %919 = vmatmul.mubr.bf16.gmra.mxu0 %v870
      %v920 = vpop.f32.mrf.mxu0
      %v921 = vadd.f32 0.0, %v920
      %v922 = vpop.f32.mrf.mxu0
      %v923 = vpop.f32.mrf.mxu0
      %v924 = vadd.f32 0.0, %v923
      %v925 = vpop.f32.mrf.mxu0
      %926 = vmatprep.mubr.bf16.mxu0 0
      %927 = vmatmul.mubr.bf16.gmra.mxu0 %v873
      %v928 = vpop.f32.mrf.mxu0
      %v929 = vadd.f32 0.0, %v928
      %v930 = vpop.f32.mrf.mxu0
      %v931 = vpop.f32.mrf.mxu0
      %v932 = vadd.f32 0.0, %v931
      %v933 = vpop.f32.mrf.mxu0
      %934 = vmatprep.mubr.bf16.mxu0 0
      %935 = vmatmul.mubr.bf16.gmra.mxu0 %v876
      %v936 = vpop.f32.mrf.mxu0
      %v937 = vadd.f32 0.0, %v936
      %v938 = vpop.f32.mrf.mxu0
      %v939 = vpop.f32.mrf.mxu0
      %v940 = vadd.f32 0.0, %v939
      %v941 = vpop.f32.mrf.mxu0
      %942 = vdwg.mxu0
      %v943 = vadd.f32 %v812, %v913
      %v944 = vadd.f32 %v813, %v916
      %v945 = vadd.f32 %v814, %v921
      %v946 = vadd.f32 %v815, %v924
      %v947 = vadd.f32 %v816, %v929
      %v948 = vadd.f32 %v817, %v932
      %v949 = vadd.f32 %v818, %v937
      %v950 = vadd.f32 %v819, %v940
      %v951 = vld [vmem:[%s689] sm:$0xf]
      %v952 = vld [vmem:[%s689 + $0x4] sm:$0x1]
      %v953 = vld [vmem:[%s689 + $0x8] sm:$0xf]
      %v954 = vld [vmem:[%s689 + $0xc] sm:$0x1]
      %v955 = vld [vmem:[%s689 + $0x10] sm:$0xf]
      %v956 = vld [vmem:[%s689 + $0x14] sm:$0x1]
      %v957 = vld [vmem:[%s689 + $0x18] sm:$0xf]
      %v958 = vld [vmem:[%s689 + $0x1c] sm:$0x1]
      %v959 = vld [vmem:[%s689 + $0x20] sm:$0xf]
      %v960 = vld [vmem:[%s689 + $0x24] sm:$0x1]
      %v961 = vld [vmem:[%s689 + $0x28] sm:$0xf]
      %v962 = vld [vmem:[%s689 + $0x2c] sm:$0x1]
      %v963 = vld [vmem:[%s689 + $0x30] sm:$0xf]
      %v964 = vld [vmem:[%s689 + $0x34] sm:$0x1]
      %v965 = vld [vmem:[%s689 + $0x38] sm:$0xf]
      %v966 = vld [vmem:[%s689 + $0x3c] sm:$0x1]
      %v968 = vshrl.u32 %v951, 16
      %v970 = vrot.slane %v968, 4
      %v971 = vshll.u32 %v951, 16
      %v973 = vrot.slane %v971, 5
      %v974 = vor.u32 %v970, %v973
      %v975 = vrot.slane %v974, 4
      %v977 = vshll.u32 %v952, 16
      %v979 = vrot.slane %v977, 5
      %v980 = vsel %vm462, %v975, %v979
      %v982 = vshrl.u32 %v953, 16
      %v984 = vrot.slane %v982, 4
      %v985 = vshll.u32 %v953, 16
      %v987 = vrot.slane %v985, 5
      %v988 = vor.u32 %v984, %v987
      %v989 = vrot.slane %v988, 4
      %v991 = vshll.u32 %v954, 16
      %v993 = vrot.slane %v991, 5
      %v994 = vsel %vm462, %v989, %v993
      %v996 = vshrl.u32 %v955, 16
      %v998 = vrot.slane %v996, 4
      %v999 = vshll.u32 %v955, 16
      %v1001 = vrot.slane %v999, 5
      %v1002 = vor.u32 %v998, %v1001
      %v1003 = vrot.slane %v1002, 4
      %v1005 = vshll.u32 %v956, 16
      %v1007 = vrot.slane %v1005, 5
      %v1008 = vsel %vm462, %v1003, %v1007
      %v1010 = vshrl.u32 %v957, 16
      %v1012 = vrot.slane %v1010, 4
      %v1013 = vshll.u32 %v957, 16
      %v1015 = vrot.slane %v1013, 5
      %v1016 = vor.u32 %v1012, %v1015
      %v1017 = vrot.slane %v1016, 4
      %v1019 = vshll.u32 %v958, 16
      %v1021 = vrot.slane %v1019, 5
      %v1022 = vsel %vm462, %v1017, %v1021
      %v1024 = vshrl.u32 %v959, 16
      %v1026 = vrot.slane %v1024, 4
      %v1027 = vshll.u32 %v959, 16
      %v1029 = vrot.slane %v1027, 5
      %v1030 = vor.u32 %v1026, %v1029
      %v1031 = vrot.slane %v1030, 4
      %v1033 = vshll.u32 %v960, 16
      %v1035 = vrot.slane %v1033, 5
      %v1036 = vsel %vm462, %v1031, %v1035
      %v1038 = vshrl.u32 %v961, 16
      %v1040 = vrot.slane %v1038, 4
      %v1041 = vshll.u32 %v961, 16
      %v1043 = vrot.slane %v1041, 5
      %v1044 = vor.u32 %v1040, %v1043
      %v1045 = vrot.slane %v1044, 4
      %v1047 = vshll.u32 %v962, 16
      %v1049 = vrot.slane %v1047, 5
      %v1050 = vsel %vm462, %v1045, %v1049
      %v1052 = vshrl.u32 %v963, 16
      %v1054 = vrot.slane %v1052, 4
      %v1055 = vshll.u32 %v963, 16
      %v1057 = vrot.slane %v1055, 5
      %v1058 = vor.u32 %v1054, %v1057
      %v1059 = vrot.slane %v1058, 4
      %v1061 = vshll.u32 %v964, 16
      %v1063 = vrot.slane %v1061, 5
      %v1064 = vsel %vm462, %v1059, %v1063
      %v1066 = vshrl.u32 %v965, 16
      %v1068 = vrot.slane %v1066, 4
      %v1069 = vshll.u32 %v965, 16
      %v1071 = vrot.slane %v1069, 5
      %v1072 = vor.u32 %v1068, %v1071
      %v1073 = vrot.slane %v1072, 4
      %v1075 = vshll.u32 %v966, 16
      %v1077 = vrot.slane %v1075, 5
      %v1078 = vsel %vm462, %v1073, %v1077
      %s1079 = scalar_lea.vmem %s1, 80
      %v1080 = vld [vmem:[%s1079] sm:$0xf]
      %v1081 = vld [vmem:[%s1079 + $0x4] sm:$0xf]
      %v1082 = vld [vmem:[%s1079 + $0x8] sm:$0xf]
      %v1083 = vld [vmem:[%s1079 + $0xc] sm:$0xf]
      %v1084 = vunpack.c.l.b16 %v980
      %v1085 = vunpack.c.l.b16 %v994
      %v1086 = vunpack.c.l.b16 %v1008
      %v1087 = vunpack.c.l.b16 %v1022
      %v1088 = vunpack.c.l.b16 %v1036
      %v1089 = vunpack.c.l.b16 %v1050
      %v1090 = vunpack.c.l.b16 %v1064
      %v1091 = vunpack.c.l.b16 %v1078
      %v1092 = vpack.c.b16 %v1085, %v1084
      %v1093 = vpack.c.b16 %v1087, %v1086
      %v1094 = vpack.c.b16 %v1089, %v1088
      %v1095 = vpack.c.b16 %v1091, %v1090
      %v1100 = vunpack.c.l.b16 %v1080
      %v1101 = vunpack.c.l.b16 %v1081
      %v1102 = vunpack.c.l.b16 %v1082
      %v1103 = vunpack.c.l.b16 %v1083
      %v1104 = vpack.c.b16 %v1101, %v1100
      %v1105 = vpack.c.b16 %v1103, %v1102
      %v1109 = vsel %vm257, %v1092, 0
      %v1112 = vsel %vm257, %v1093, 0
      %v1115 = vsel %vm257, %v1094, 0
      %v1118 = vsel %vm257, %v1095, 0
      %1120 = vmatprep.subr.bf16.mxu0 0
      %1121 = vmatpush1.bf16.msra.mxu0 0
      %1122 = vmatprep.subr.bf16.mxu0 0
      %1123 = vmatpush1.bf16.msra.mxu0 0
      %1124 = vmatprep.subr.bf16.mxu0 0
      %1125 = vmatpush1.bf16.msra.mxu0 0
      %1126 = vmatprep.subr.bf16.mxu0 0
      %1127 = vmatpush1.bf16.msra.mxu0 0
      %1128 = vmatprep.subr.bf16.mxu0 0
      %1129 = vmatpush1.bf16.msra.mxu0 0
      %1130 = vmatprep.subr.bf16.mxu0 0
      %1131 = vmatpush1.bf16.msra.mxu0 0
      %1132 = vmatprep.subr.bf16.mxu0 0
      %1133 = vmatpush1.bf16.msra.mxu0 %v1105
      %1134 = vmatprep.subr.bf16.mxu0 0
      %1135 = vmatpush1.bf16.msra.mxu0 %v1104
      %1136 = vmatprep.subr.bf16.mxu0 0
      %1137 = vmatpush2.bf16.msra.mxu0 0
      %1138 = vmatprep.subr.bf16.mxu0 0
      %1139 = vmatpush2.bf16.msra.mxu0 0
      %1140 = vmatprep.subr.bf16.mxu0 0
      %1141 = vmatpush2.bf16.msra.mxu0 0
      %1142 = vmatprep.subr.bf16.mxu0 0
      %1143 = vmatpush2.bf16.msra.mxu0 0
      %1144 = vmatprep.subr.bf16.mxu0 0
      %1145 = vmatpush2.bf16.msra.mxu0 0
      %1146 = vmatprep.subr.bf16.mxu0 0
      %1147 = vmatpush2.bf16.msra.mxu0 0
      %1148 = vmatprep.subr.bf16.mxu0 0
      %1149 = vmatpush2.bf16.msra.mxu0 0
      %1150 = vmatprep.subr.bf16.mxu0 0
      %1151 = vmatpush2.bf16.msra.mxu0 0
      %1152 = vmatprep.mubr.bf16.mxu0 0
      %1153 = vmatmul.mubr.bf16.gmra.mxu0 %v1109
      %v1154 = vpop.f32.mrf.mxu0
      %v1155 = vadd.f32 0.0, %v1154
      %v1156 = vpop.f32.mrf.mxu0
      %v1157 = vpop.f32.mrf.mxu0
      %v1158 = vadd.f32 0.0, %v1157
      %v1159 = vpop.f32.mrf.mxu0
      %1160 = vmatprep.mubr.bf16.mxu0 0
      %1161 = vmatmul.mubr.bf16.gmra.mxu0 %v1112
      %v1162 = vpop.f32.mrf.mxu0
      %v1163 = vadd.f32 0.0, %v1162
      %v1164 = vpop.f32.mrf.mxu0
      %v1165 = vpop.f32.mrf.mxu0
      %v1166 = vadd.f32 0.0, %v1165
      %v1167 = vpop.f32.mrf.mxu0
      %1168 = vmatprep.mubr.bf16.mxu0 0
      %1169 = vmatmul.mubr.bf16.gmra.mxu0 %v1115
      %v1170 = vpop.f32.mrf.mxu0
      %v1171 = vadd.f32 0.0, %v1170
      %v1172 = vpop.f32.mrf.mxu0
      %v1173 = vpop.f32.mrf.mxu0
      %v1174 = vadd.f32 0.0, %v1173
      %v1175 = vpop.f32.mrf.mxu0
      %1176 = vmatprep.mubr.bf16.mxu0 0
      %1177 = vmatmul.mubr.bf16.gmra.mxu0 %v1118
      %v1178 = vpop.f32.mrf.mxu0
      %v1179 = vadd.f32 0.0, %v1178
      %v1180 = vpop.f32.mrf.mxu0
      %v1181 = vpop.f32.mrf.mxu0
      %v1182 = vadd.f32 0.0, %v1181
      %v1183 = vpop.f32.mrf.mxu0
      %1184 = vdwg.mxu0
      %v1185 = vadd.f32 %v943, %v1155
      %v1186 = vadd.f32 %v944, %v1158
      %v1187 = vadd.f32 %v945, %v1163
      %v1188 = vadd.f32 %v946, %v1166
      %v1189 = vadd.f32 %v947, %v1171
      %v1190 = vadd.f32 %v948, %v1174
      %v1191 = vadd.f32 %v949, %v1179
      %v1192 = vadd.f32 %v950, %v1182
      %s1193 = scalar_lea.vmem %s192, 8
      %v1194 = vld [vmem:[%s1193] sm:$0xf]
      %v1195 = vld [vmem:[%s1193 + $0x8] sm:$0xf]
      %v1196 = vld [vmem:[%s1193 + $0x10] sm:$0xf]
      %v1197 = vld [vmem:[%s1193 + $0x18] sm:$0xf]
      %v1198 = vld [vmem:[%s1193 + $0x20] sm:$0xf]
      %v1199 = vld [vmem:[%s1193 + $0x28] sm:$0xf]
      %v1200 = vld [vmem:[%s1193 + $0x30] sm:$0xf]
      %v1201 = vld [vmem:[%s1193 + $0x38] sm:$0xf]
      %s1202 = scalar_lea.vmem %s1, 96
      %v1203 = vld [vmem:[%s1202] sm:$0xf]
      %v1204 = vld [vmem:[%s1202 + $0x4] sm:$0xf]
      %v1205 = vld [vmem:[%s1202 + $0x8] sm:$0xf]
      %v1206 = vld [vmem:[%s1202 + $0xc] sm:$0xf]
      %v1215 = vunpack.c.l.b16 %v1194
      %v1216 = vunpack.c.l.b16 %v1195
      %v1217 = vunpack.c.l.b16 %v1196
      %v1218 = vunpack.c.l.b16 %v1197
      %v1219 = vunpack.c.l.b16 %v1198
      %v1220 = vunpack.c.l.b16 %v1199
      %v1221 = vunpack.c.l.b16 %v1200
      %v1222 = vunpack.c.l.b16 %v1201
      %v1223 = vpack.c.b16 %v1216, %v1215
      %v1224 = vpack.c.b16 %v1218, %v1217
      %v1225 = vpack.c.b16 %v1220, %v1219
      %v1226 = vpack.c.b16 %v1222, %v1221
      %v1231 = vunpack.c.l.b16 %v1203
      %v1232 = vunpack.c.l.b16 %v1204
      %v1233 = vunpack.c.l.b16 %v1205
      %v1234 = vunpack.c.l.b16 %v1206
      %v1235 = vpack.c.b16 %v1232, %v1231
      %v1236 = vpack.c.b16 %v1234, %v1233
      %v1240 = vsel %vm257, %v1223, 0
      %v1243 = vsel %vm257, %v1224, 0
      %v1246 = vsel %vm257, %v1225, 0
      %v1249 = vsel %vm257, %v1226, 0
      %1251 = vmatprep.subr.bf16.mxu0 0
      %1252 = vmatpush1.bf16.msra.mxu0 0
      %1253 = vmatprep.subr.bf16.mxu0 0
      %1254 = vmatpush1.bf16.msra.mxu0 0
      %1255 = vmatprep.subr.bf16.mxu0 0
      %1256 = vmatpush1.bf16.msra.mxu0 0
      %1257 = vmatprep.subr.bf16.mxu0 0
      %1258 = vmatpush1.bf16.msra.mxu0 0
      %1259 = vmatprep.subr.bf16.mxu0 0
      %1260 = vmatpush1.bf16.msra.mxu0 0
      %1261 = vmatprep.subr.bf16.mxu0 0
      %1262 = vmatpush1.bf16.msra.mxu0 0
      %1263 = vmatprep.subr.bf16.mxu0 0
      %1264 = vmatpush1.bf16.msra.mxu0 %v1236
      %1265 = vmatprep.subr.bf16.mxu0 0
      %1266 = vmatpush1.bf16.msra.mxu0 %v1235
      %1267 = vmatprep.subr.bf16.mxu0 0
      %1268 = vmatpush2.bf16.msra.mxu0 0
      %1269 = vmatprep.subr.bf16.mxu0 0
      %1270 = vmatpush2.bf16.msra.mxu0 0
      %1271 = vmatprep.subr.bf16.mxu0 0
      %1272 = vmatpush2.bf16.msra.mxu0 0
      %1273 = vmatprep.subr.bf16.mxu0 0
      %1274 = vmatpush2.bf16.msra.mxu0 0
      %1275 = vmatprep.subr.bf16.mxu0 0
      %1276 = vmatpush2.bf16.msra.mxu0 0
      %1277 = vmatprep.subr.bf16.mxu0 0
      %1278 = vmatpush2.bf16.msra.mxu0 0
      %1279 = vmatprep.subr.bf16.mxu0 0
      %1280 = vmatpush2.bf16.msra.mxu0 0
      %1281 = vmatprep.subr.bf16.mxu0 0
      %1282 = vmatpush2.bf16.msra.mxu0 0
      %1283 = vmatprep.mubr.bf16.mxu0 0
      %1284 = vmatmul.mubr.bf16.gmra.mxu0 %v1240
      %v1285 = vpop.f32.mrf.mxu0
      %v1286 = vadd.f32 0.0, %v1285
      %v1287 = vpop.f32.mrf.mxu0
      %v1288 = vpop.f32.mrf.mxu0
      %v1289 = vadd.f32 0.0, %v1288
      %v1290 = vpop.f32.mrf.mxu0
      %1291 = vmatprep.mubr.bf16.mxu0 0
      %1292 = vmatmul.mubr.bf16.gmra.mxu0 %v1243
      %v1293 = vpop.f32.mrf.mxu0
      %v1294 = vadd.f32 0.0, %v1293
      %v1295 = vpop.f32.mrf.mxu0
      %v1296 = vpop.f32.mrf.mxu0
      %v1297 = vadd.f32 0.0, %v1296
      %v1298 = vpop.f32.mrf.mxu0
      %1299 = vmatprep.mubr.bf16.mxu0 0
      %1300 = vmatmul.mubr.bf16.gmra.mxu0 %v1246
      %v1301 = vpop.f32.mrf.mxu0
      %v1302 = vadd.f32 0.0, %v1301
      %v1303 = vpop.f32.mrf.mxu0
      %v1304 = vpop.f32.mrf.mxu0
      %v1305 = vadd.f32 0.0, %v1304
      %v1306 = vpop.f32.mrf.mxu0
      %1307 = vmatprep.mubr.bf16.mxu0 0
      %1308 = vmatmul.mubr.bf16.gmra.mxu0 %v1249
      %v1309 = vpop.f32.mrf.mxu0
      %v1310 = vadd.f32 0.0, %v1309
      %v1311 = vpop.f32.mrf.mxu0
      %v1312 = vpop.f32.mrf.mxu0
      %v1313 = vadd.f32 0.0, %v1312
      %v1314 = vpop.f32.mrf.mxu0
      %1315 = vdwg.mxu0
      %v1316 = vadd.f32 %v1185, %v1286
      %v1317 = vadd.f32 %v1186, %v1289
      %v1318 = vadd.f32 %v1187, %v1294
      %v1319 = vadd.f32 %v1188, %v1297
      %v1320 = vadd.f32 %v1189, %v1302
      %v1321 = vadd.f32 %v1190, %v1305
      %v1322 = vadd.f32 %v1191, %v1310
      %v1323 = vadd.f32 %v1192, %v1313
      %s1324 = scalar_lea.vmem %s192, 80
      %v1325 = vld [vmem:[%s1324] sm:$0xf]
      %v1326 = vld [vmem:[%s1324 + $0x8] sm:$0xf]
      %v1327 = vld [vmem:[%s1324 + $0x10] sm:$0xf]
      %v1328 = vld [vmem:[%s1324 + $0x18] sm:$0xf]
      %v1329 = vld [vmem:[%s1324 + $0x20] sm:$0xf]
      %v1330 = vld [vmem:[%s1324 + $0x28] sm:$0xf]
      %v1331 = vld [vmem:[%s1324 + $0x30] sm:$0xf]
      %v1332 = vld [vmem:[%s1324 + $0x38] sm:$0xf]
      %s1333 = scalar_lea.vmem %s1, 112
      %v1334 = vld [vmem:[%s1333] sm:$0xf]
      %v1335 = vld [vmem:[%s1333 + $0x4] sm:$0xf]
      %v1336 = vld [vmem:[%s1333 + $0x8] sm:$0xf]
      %v1337 = vld [vmem:[%s1333 + $0xc] sm:$0xf]
      %v1346 = vunpack.c.l.b16 %v1325
      %v1347 = vunpack.c.l.b16 %v1326
      %v1348 = vunpack.c.l.b16 %v1327
      %v1349 = vunpack.c.l.b16 %v1328
      %v1350 = vunpack.c.l.b16 %v1329
      %v1351 = vunpack.c.l.b16 %v1330
      %v1352 = vunpack.c.l.b16 %v1331
      %v1353 = vunpack.c.l.b16 %v1332
      %v1354 = vpack.c.b16 %v1347, %v1346
      %v1355 = vpack.c.b16 %v1349, %v1348
      %v1356 = vpack.c.b16 %v1351, %v1350
      %v1357 = vpack.c.b16 %v1353, %v1352
      %v1362 = vunpack.c.l.b16 %v1334
      %v1363 = vunpack.c.l.b16 %v1335
      %v1364 = vunpack.c.l.b16 %v1336
      %v1365 = vunpack.c.l.b16 %v1337
      %v1366 = vpack.c.b16 %v1363, %v1362
      %v1367 = vpack.c.b16 %v1365, %v1364
      %v1371 = vsel %vm257, %v1354, 0
      %v1374 = vsel %vm257, %v1355, 0
      %v1377 = vsel %vm257, %v1356, 0
      %v1380 = vsel %vm257, %v1357, 0
      %1382 = vmatprep.subr.bf16.mxu0 0
      %1383 = vmatpush1.bf16.msra.mxu0 0
      %1384 = vmatprep.subr.bf16.mxu0 0
      %1385 = vmatpush1.bf16.msra.mxu0 0
      %1386 = vmatprep.subr.bf16.mxu0 0
      %1387 = vmatpush1.bf16.msra.mxu0 0
      %1388 = vmatprep.subr.bf16.mxu0 0
      %1389 = vmatpush1.bf16.msra.mxu0 0
      %1390 = vmatprep.subr.bf16.mxu0 0
      %1391 = vmatpush1.bf16.msra.mxu0 0
      %1392 = vmatprep.subr.bf16.mxu0 0
      %1393 = vmatpush1.bf16.msra.mxu0 0
      %1394 = vmatprep.subr.bf16.mxu0 0
      %1395 = vmatpush1.bf16.msra.mxu0 %v1367
      %1396 = vmatprep.subr.bf16.mxu0 0
      %1397 = vmatpush1.bf16.msra.mxu0 %v1366
      %1398 = vmatprep.subr.bf16.mxu0 0
      %1399 = vmatpush2.bf16.msra.mxu0 0
      %1400 = vmatprep.subr.bf16.mxu0 0
      %1401 = vmatpush2.bf16.msra.mxu0 0
      %1402 = vmatprep.subr.bf16.mxu0 0
      %1403 = vmatpush2.bf16.msra.mxu0 0
      %1404 = vmatprep.subr.bf16.mxu0 0
      %1405 = vmatpush2.bf16.msra.mxu0 0
      %1406 = vmatprep.subr.bf16.mxu0 0
      %1407 = vmatpush2.bf16.msra.mxu0 0
      %1408 = vmatprep.subr.bf16.mxu0 0
      %1409 = vmatpush2.bf16.msra.mxu0 0
      %1410 = vmatprep.subr.bf16.mxu0 0
      %1411 = vmatpush2.bf16.msra.mxu0 0
      %1412 = vmatprep.subr.bf16.mxu0 0
      %1413 = vmatpush2.bf16.msra.mxu0 0
      %1414 = vmatprep.mubr.bf16.mxu0 0
      %1415 = vmatmul.mubr.bf16.gmra.mxu0 %v1371
      %v1416 = vpop.f32.mrf.mxu0
      %v1417 = vadd.f32 0.0, %v1416
      %v1418 = vpop.f32.mrf.mxu0
      %v1419 = vpop.f32.mrf.mxu0
      %v1420 = vadd.f32 0.0, %v1419
      %v1421 = vpop.f32.mrf.mxu0
      %1422 = vmatprep.mubr.bf16.mxu0 0
      %1423 = vmatmul.mubr.bf16.gmra.mxu0 %v1374
      %v1424 = vpop.f32.mrf.mxu0
      %v1425 = vadd.f32 0.0, %v1424
      %v1426 = vpop.f32.mrf.mxu0
      %v1427 = vpop.f32.mrf.mxu0
      %v1428 = vadd.f32 0.0, %v1427
      %v1429 = vpop.f32.mrf.mxu0
      %1430 = vmatprep.mubr.bf16.mxu0 0
      %1431 = vmatmul.mubr.bf16.gmra.mxu0 %v1377
      %v1432 = vpop.f32.mrf.mxu0
      %v1433 = vadd.f32 0.0, %v1432
      %v1434 = vpop.f32.mrf.mxu0
      %v1435 = vpop.f32.mrf.mxu0
      %v1436 = vadd.f32 0.0, %v1435
      %v1437 = vpop.f32.mrf.mxu0
      %1438 = vmatprep.mubr.bf16.mxu0 0
      %1439 = vmatmul.mubr.bf16.gmra.mxu0 %v1380
      %v1440 = vpop.f32.mrf.mxu0
      %v1441 = vadd.f32 0.0, %v1440
      %v1442 = vpop.f32.mrf.mxu0
      %v1443 = vpop.f32.mrf.mxu0
      %v1444 = vadd.f32 0.0, %v1443
      %v1445 = vpop.f32.mrf.mxu0
      %1446 = vdwg.mxu0
      %v1447 = vadd.f32 %v1316, %v1417
      %v1448 = vadd.f32 %v1317, %v1420
      %v1449 = vadd.f32 %v1318, %v1425
      %v1450 = vadd.f32 %v1319, %v1428
      %v1451 = vadd.f32 %v1320, %v1433
      %v1452 = vadd.f32 %v1321, %v1436
      %v1453 = vadd.f32 %v1322, %v1441
      %v1454 = vadd.f32 %v1323, %v1444
      %v1455 = vld [vmem:[%s1193] sm:$0xf]
      %v1456 = vld [vmem:[%s1193 + $0x4] sm:$0x1]
      %v1457 = vld [vmem:[%s1193 + $0x8] sm:$0xf]
      %v1458 = vld [vmem:[%s1193 + $0xc] sm:$0x1]
      %v1459 = vld [vmem:[%s1193 + $0x10] sm:$0xf]
      %v1460 = vld [vmem:[%s1193 + $0x14] sm:$0x1]
      %v1461 = vld [vmem:[%s1193 + $0x18] sm:$0xf]
      %v1462 = vld [vmem:[%s1193 + $0x1c] sm:$0x1]
      %v1463 = vld [vmem:[%s1193 + $0x20] sm:$0xf]
      %v1464 = vld [vmem:[%s1193 + $0x24] sm:$0x1]
      %v1465 = vld [vmem:[%s1193 + $0x28] sm:$0xf]
      %v1466 = vld [vmem:[%s1193 + $0x2c] sm:$0x1]
      %v1467 = vld [vmem:[%s1193 + $0x30] sm:$0xf]
      %v1468 = vld [vmem:[%s1193 + $0x34] sm:$0x1]
      %v1469 = vld [vmem:[%s1193 + $0x38] sm:$0xf]
      %v1470 = vld [vmem:[%s1193 + $0x3c] sm:$0x1]
      %v1472 = vshrl.u32 %v1455, 16
      %v1474 = vrot.slane %v1472, 4
      %v1475 = vshll.u32 %v1455, 16
      %v1477 = vrot.slane %v1475, 5
      %v1478 = vor.u32 %v1474, %v1477
      %v1479 = vrot.slane %v1478, 4
      %v1481 = vshll.u32 %v1456, 16
      %v1483 = vrot.slane %v1481, 5
      %v1484 = vsel %vm462, %v1479, %v1483
      %v1486 = vshrl.u32 %v1457, 16
      %v1488 = vrot.slane %v1486, 4
      %v1489 = vshll.u32 %v1457, 16
      %v1491 = vrot.slane %v1489, 5
      %v1492 = vor.u32 %v1488, %v1491
      %v1493 = vrot.slane %v1492, 4
      %v1495 = vshll.u32 %v1458, 16
      %v1497 = vrot.slane %v1495, 5
      %v1498 = vsel %vm462, %v1493, %v1497
      %v1500 = vshrl.u32 %v1459, 16
      %v1502 = vrot.slane %v1500, 4
      %v1503 = vshll.u32 %v1459, 16
      %v1505 = vrot.slane %v1503, 5
      %v1506 = vor.u32 %v1502, %v1505
      %v1507 = vrot.slane %v1506, 4
      %v1509 = vshll.u32 %v1460, 16
      %v1511 = vrot.slane %v1509, 5
      %v1512 = vsel %vm462, %v1507, %v1511
      %v1514 = vshrl.u32 %v1461, 16
      %v1516 = vrot.slane %v1514, 4
      %v1517 = vshll.u32 %v1461, 16
      %v1519 = vrot.slane %v1517, 5
      %v1520 = vor.u32 %v1516, %v1519
      %v1521 = vrot.slane %v1520, 4
      %v1523 = vshll.u32 %v1462, 16
      %v1525 = vrot.slane %v1523, 5
      %v1526 = vsel %vm462, %v1521, %v1525
      %v1528 = vshrl.u32 %v1463, 16
      %v1530 = vrot.slane %v1528, 4
      %v1531 = vshll.u32 %v1463, 16
      %v1533 = vrot.slane %v1531, 5
      %v1534 = vor.u32 %v1530, %v1533
      %v1535 = vrot.slane %v1534, 4
      %v1537 = vshll.u32 %v1464, 16
      %v1539 = vrot.slane %v1537, 5
      %v1540 = vsel %vm462, %v1535, %v1539
      %v1542 = vshrl.u32 %v1465, 16
      %v1544 = vrot.slane %v1542, 4
      %v1545 = vshll.u32 %v1465, 16
      %v1547 = vrot.slane %v1545, 5
      %v1548 = vor.u32 %v1544, %v1547
      %v1549 = vrot.slane %v1548, 4
      %v1551 = vshll.u32 %v1466, 16
      %v1553 = vrot.slane %v1551, 5
      %v1554 = vsel %vm462, %v1549, %v1553
      %v1556 = vshrl.u32 %v1467, 16
      %v1558 = vrot.slane %v1556, 4
      %v1559 = vshll.u32 %v1467, 16
      %v1561 = vrot.slane %v1559, 5
      %v1562 = vor.u32 %v1558, %v1561
      %v1563 = vrot.slane %v1562, 4
      %v1565 = vshll.u32 %v1468, 16
      %v1567 = vrot.slane %v1565, 5
      %v1568 = vsel %vm462, %v1563, %v1567
      %v1570 = vshrl.u32 %v1469, 16
      %v1572 = vrot.slane %v1570, 4
      %v1573 = vshll.u32 %v1469, 16
      %v1575 = vrot.slane %v1573, 5
      %v1576 = vor.u32 %v1572, %v1575
      %v1577 = vrot.slane %v1576, 4
      %v1579 = vshll.u32 %v1470, 16
      %v1581 = vrot.slane %v1579, 5
      %v1582 = vsel %vm462, %v1577, %v1581
      %s1583 = scalar_lea.vmem %s1, 128
      %v1584 = vld [vmem:[%s1583] sm:$0xf]
      %v1585 = vld [vmem:[%s1583 + $0x4] sm:$0xf]
      %v1586 = vld [vmem:[%s1583 + $0x8] sm:$0xf]
      %v1587 = vld [vmem:[%s1583 + $0xc] sm:$0xf]
      %v1588 = vunpack.c.l.b16 %v1484
      %v1589 = vunpack.c.l.b16 %v1498
      %v1590 = vunpack.c.l.b16 %v1512
      %v1591 = vunpack.c.l.b16 %v1526
      %v1592 = vunpack.c.l.b16 %v1540
      %v1593 = vunpack.c.l.b16 %v1554
      %v1594 = vunpack.c.l.b16 %v1568
      %v1595 = vunpack.c.l.b16 %v1582
      %v1596 = vpack.c.b16 %v1589, %v1588
      %v1597 = vpack.c.b16 %v1591, %v1590
      %v1598 = vpack.c.b16 %v1593, %v1592
      %v1599 = vpack.c.b16 %v1595, %v1594
      %v1604 = vunpack.c.l.b16 %v1584
      %v1605 = vunpack.c.l.b16 %v1585
      %v1606 = vunpack.c.l.b16 %v1586
      %v1607 = vunpack.c.l.b16 %v1587
      %v1608 = vpack.c.b16 %v1605, %v1604
      %v1609 = vpack.c.b16 %v1607, %v1606
      %v1613 = vsel %vm257, %v1596, 0
      %v1616 = vsel %vm257, %v1597, 0
      %v1619 = vsel %vm257, %v1598, 0
      %v1622 = vsel %vm257, %v1599, 0
      %1624 = vmatprep.subr.bf16.mxu0 0
      %1625 = vmatpush1.bf16.msra.mxu0 0
      %1626 = vmatprep.subr.bf16.mxu0 0
      %1627 = vmatpush1.bf16.msra.mxu0 0
      %1628 = vmatprep.subr.bf16.mxu0 0
      %1629 = vmatpush1.bf16.msra.mxu0 0
      %1630 = vmatprep.subr.bf16.mxu0 0
      %1631 = vmatpush1.bf16.msra.mxu0 0
      %1632 = vmatprep.subr.bf16.mxu0 0
      %1633 = vmatpush1.bf16.msra.mxu0 0
      %1634 = vmatprep.subr.bf16.mxu0 0
      %1635 = vmatpush1.bf16.msra.mxu0 0
      %1636 = vmatprep.subr.bf16.mxu0 0
      %1637 = vmatpush1.bf16.msra.mxu0 %v1609
      %1638 = vmatprep.subr.bf16.mxu0 0
      %1639 = vmatpush1.bf16.msra.mxu0 %v1608
      %1640 = vmatprep.subr.bf16.mxu0 0
      %1641 = vmatpush2.bf16.msra.mxu0 0
      %1642 = vmatprep.subr.bf16.mxu0 0
      %1643 = vmatpush2.bf16.msra.mxu0 0
      %1644 = vmatprep.subr.bf16.mxu0 0
      %1645 = vmatpush2.bf16.msra.mxu0 0
      %1646 = vmatprep.subr.bf16.mxu0 0
      %1647 = vmatpush2.bf16.msra.mxu0 0
      %1648 = vmatprep.subr.bf16.mxu0 0
      %1649 = vmatpush2.bf16.msra.mxu0 0
      %1650 = vmatprep.subr.bf16.mxu0 0
      %1651 = vmatpush2.bf16.msra.mxu0 0
      %1652 = vmatprep.subr.bf16.mxu0 0
      %1653 = vmatpush2.bf16.msra.mxu0 0
      %1654 = vmatprep.subr.bf16.mxu0 0
      %1655 = vmatpush2.bf16.msra.mxu0 0
      %1656 = vmatprep.mubr.bf16.mxu0 0
      %1657 = vmatmul.mubr.bf16.gmra.mxu0 %v1613
      %v1658 = vpop.f32.mrf.mxu0
      %v1659 = vadd.f32 0.0, %v1658
      %v1660 = vpop.f32.mrf.mxu0
      %v1661 = vpop.f32.mrf.mxu0
      %v1662 = vadd.f32 0.0, %v1661
      %v1663 = vpop.f32.mrf.mxu0
      %1664 = vmatprep.mubr.bf16.mxu0 0
      %1665 = vmatmul.mubr.bf16.gmra.mxu0 %v1616
      %v1666 = vpop.f32.mrf.mxu0
      %v1667 = vadd.f32 0.0, %v1666
      %v1668 = vpop.f32.mrf.mxu0
      %v1669 = vpop.f32.mrf.mxu0
      %v1670 = vadd.f32 0.0, %v1669
      %v1671 = vpop.f32.mrf.mxu0
      %1672 = vmatprep.mubr.bf16.mxu0 0
      %1673 = vmatmul.mubr.bf16.gmra.mxu0 %v1619
      %v1674 = vpop.f32.mrf.mxu0
      %v1675 = vadd.f32 0.0, %v1674
      %v1676 = vpop.f32.mrf.mxu0
      %v1677 = vpop.f32.mrf.mxu0
      %v1678 = vadd.f32 0.0, %v1677
      %v1679 = vpop.f32.mrf.mxu0
      %1680 = vmatprep.mubr.bf16.mxu0 0
      %1681 = vmatmul.mubr.bf16.gmra.mxu0 %v1622
      %v1682 = vpop.f32.mrf.mxu0
      %v1683 = vadd.f32 0.0, %v1682
      %v1684 = vpop.f32.mrf.mxu0
      %v1685 = vpop.f32.mrf.mxu0
      %v1686 = vadd.f32 0.0, %v1685
      %v1687 = vpop.f32.mrf.mxu0
      %1688 = vdwg.mxu0
      %v1689 = vadd.f32 %v1447, %v1659
      %v1690 = vadd.f32 %v1448, %v1662
      %v1691 = vadd.f32 %v1449, %v1667
      %v1692 = vadd.f32 %v1450, %v1670
      %v1693 = vadd.f32 %v1451, %v1675
      %v1694 = vadd.f32 %v1452, %v1678
      %v1695 = vadd.f32 %v1453, %v1683
      %v1696 = vadd.f32 %v1454, %v1686
      %v1697 = vld [vmem:[%s2] sm:$0x1]
      %v1698 = vld [vmem:[%s3] sm:$0x1]
      %v1700 = vlaneseq
      %v1701 = vshrl.u32 %v1700, 7
      %v1702 = vsub.s32 0, %v1701
      %v1703 = vrot.slane %v1697, %v1702
      %v1705 = vmul.f32 %v1689, %v1703
      %v1706 = vmul.f32 %v1690, %v1703
      %v1707 = vmul.f32 %v1691, %v1703
      %v1708 = vmul.f32 %v1692, %v1703
      %v1709 = vmul.f32 %v1693, %v1703
      %v1710 = vmul.f32 %v1694, %v1703
      %v1711 = vmul.f32 %v1695, %v1703
      %v1712 = vmul.f32 %v1696, %v1703
      %v1714 = vlaneseq
      %v1715 = vshrl.u32 %v1714, 7
      %v1716 = vsub.s32 0, %v1715
      %v1717 = vrot.slane %v1698, %v1716
      %v1719 = vadd.f32 %v1705, %v1717
      %v1720 = vadd.f32 %v1706, %v1717
      %v1721 = vadd.f32 %v1707, %v1717
      %v1722 = vadd.f32 %v1708, %v1717
      %v1723 = vadd.f32 %v1709, %v1717
      %v1724 = vadd.f32 %v1710, %v1717
      %v1725 = vadd.f32 %v1711, %v1717
      %v1726 = vadd.f32 %v1712, %v1717
      %v1727 = vmul.f32 %v1719, 0.01
      %v1728 = vmul.f32 %v1720, 0.01
      %v1729 = vmul.f32 %v1721, 0.01
      %v1730 = vmul.f32 %v1722, 0.01
      %v1731 = vmul.f32 %v1723, 0.01
      %v1732 = vmul.f32 %v1724, 0.01
      %v1733 = vmul.f32 %v1725, 0.01
      %v1734 = vmul.f32 %v1726, 0.01
      %v1735 = vmax.f32 %v1719, %v1727
      %v1736 = vmax.f32 %v1720, %v1728
      %v1737 = vmax.f32 %v1721, %v1729
      %v1738 = vmax.f32 %v1722, %v1730
      %v1739 = vmax.f32 %v1723, %v1731
      %v1740 = vmax.f32 %v1724, %v1732
      %v1741 = vmax.f32 %v1725, %v1733
      %v1742 = vmax.f32 %v1726, %v1734
      %v1743 = vpack.c.bf16 %v1735, %v1735
      %v1744 = vpack.c.bf16 %v1736, %v1736
      %v1745 = vpack.c.bf16 %v1737, %v1737
      %v1746 = vpack.c.bf16 %v1738, %v1738
      %v1747 = vpack.c.bf16 %v1739, %v1739
      %v1748 = vpack.c.bf16 %v1740, %v1740
      %v1749 = vpack.c.bf16 %v1741, %v1741
      %v1750 = vpack.c.bf16 %v1742, %v1742
      %vm1751 = vcmask 519168
      %1752 = vst.msk [vmem:[%s197] sm:$0xf] %vm1751, %v1743
      %1753 = vst.msk [vmem:[%s197 + $0x4] sm:$0xf] %vm1751, %v1744
      %1754 = vst.msk [vmem:[%s197 + $0x8] sm:$0xf] %vm1751, %v1745
      %1755 = vst.msk [vmem:[%s197 + $0xc] sm:$0xf] %vm1751, %v1746
      %1756 = vst.msk [vmem:[%s197 + $0x10] sm:$0xf] %vm1751, %v1747
      %1757 = vst.msk [vmem:[%s197 + $0x14] sm:$0xf] %vm1751, %v1748
      %1758 = vst.msk [vmem:[%s197 + $0x18] sm:$0xf] %vm1751, %v1749
      %1759 = vst.msk [vmem:[%s197 + $0x1c] sm:$0xf] %vm1751, %v1750
      %p1760 = scmp.lt.s32.totalorder %s15, 1
      %s1761 = scalar_select %p1760, %s15, 1
      %s1762 = smul.addr %s1761, 8
      %s1763 = smul.addr %s1762, 4
      %s1764 = scalar_lea.vmem %s4, %s1763
      // Predicated region
      $region37: #{font_classifier_forward.6} parent=35 // pred_check
        %p1765 = pneg %p122
      $region38: #{font_classifier_forward.6} parent=35 // pred_check_branch
        %1767 = sbr.rel (%p1765) target = $region40
      $region39: #{font_classifier_forward.6} parent=35 // pred_region
        _
      $region40: #{font_classifier_forward.6} parent=35 // pred_fallthru
        _
    $region36: #{font_classifier_forward.6} parent=5 // pred_fallthru
      _
    %p1768 = scmp.le.s32.totalorder 2, %s10
    // Predicated region
    $region41: #{font_classifier_forward.6} parent=5 // pred_check
      %p1769 = pneg %p1768
    $region42: #{font_classifier_forward.6} parent=5 // pred_check_branch
      %1771 = sbr.rel (%p1769) target = $region44
    $region43: #{font_classifier_forward.6} parent=5 // pred_region
      %s1772 = ssub.s32 %s10, 2
      // Predicated region
      $region45: #{font_classifier_forward.6} parent=43 // pred_check
        %p1773 = pneg %p128
      $region46: #{font_classifier_forward.6} parent=43 // pred_check_branch
        %1775 = sbr.rel (%p1773) target = $region48
      $region47: #{font_classifier_forward.6} parent=43 // pred_region
        %p1776 = scmp.lt.s32.totalorder %s16, 1
        %s1777 = scalar_select %p1776, %s16, 1
        %s1778 = smul.addr %s1777, 8
        %s1779 = smul.addr %s1778, 4
        %s1780 = scalar_lea.vmem %s4, %s1779
      $region48: #{font_classifier_forward.6} parent=43 // pred_fallthru
        _
    $region44: #{font_classifier_forward.6} parent=5 // pred_fallthru
      _
  $region6: #{font_classifier_forward.6} parent=0 // loop_footer
    %s14 = sadd.s32 1, %s10
  $region7: #{font_classifier_forward.6} parent=0 // loop_footer_branch
    %9 = sbr.rel target = $region3
  $region8: #{font_classifier_forward.6} parent=0 // loop_exit
    _

// kernel: font_classifier_forward.7
$region0: #{font_classifier_forward.7}
  #allocation0 [shape = 'u32[]', space=smem, size = 0x4, offset = 0x4, fixed_abs, tag = 'smem constant byte address 0x4 - core index']
  #allocation1 [shape = 'u32[144,128]{1,0:T(1,128)}', space=vmem, size = 0x12000, scoped, tag = 'internal scratch']
  %s0 = inlined_call_operand.vmem [shape: bf16[2,4,5,5,64], index: 0, kind: input, shape index: {}]
  %s1 = inlined_call_operand.vmem [shape: bf16[9,64,64], index: 1, kind: input, shape index: {}]
  %s2 = inlined_call_operand.vmem [shape: f32[1,64], index: 2, kind: input, shape index: {}]
  %s3 = inlined_call_operand.vmem [shape: f32[1,64], index: 3, kind: input, shape index: {}]
  %s4 = inlined_call_operand.vmem [shape: bf16[2,4,4,64], index: 4, kind: output, shape index: {}]
  %s5 = sld [smem:[#allocation0]]
  $region49: #{font_classifier_forward.7} parent=0
    _
  %s7 = ssub.s32 1, %s5
  %s8 = scalar_select 0, %s7, %s5
  loop: start=0, step=1, limit=4
  $region2: #{font_classifier_forward.7} parent=0 // loop_pre_header
    _
  $region3: #{font_classifier_forward.7} parent=0 // loop_header
    %s10 = sphi 0, %s14
    %p11 = scmp.ge.s32.totalorder %s10, 4
    %s20 = sphi 0, %s22
    %s23 = sphi 0, %s20
    %s24 = sphi 0, %s23
    %s40 = sphi 0, %s24
    %s44 = sphi 0, %s44
    %s46 = sphi 0, %s44
    %s47 = sphi 0, %s46
    %s61 = sphi 0, %s47
    %s65 = sphi 0, %s65
    %s67 = sphi 0, %s65
    %s68 = sphi 0, %s67
    %s82 = sphi 0, %s68
    %s86 = sphi 0, %s86
    %s88 = sphi 0, %s86
    %s89 = sphi 0, %s88
    %s103 = sphi 0, %s89
    %s109 = sphi 0, %s111
    %s112 = sphi 0, %s109
    %s113 = sphi 0, %s112
    %s129 = sphi 0, %s113
  $region4: #{font_classifier_forward.7} parent=0 // loop_header_branch
    %13 = sbr.rel (%p11) target = $region8
  $region5: #{font_classifier_forward.7} parent=0 // loop_body
    %s15 = ssub.s32 %s10, 1
    %s16 = ssub.s32 %s10, 2
    %s17 = sadd.s32 %s10, 1
    %s18 = ssub.s32 %s10, %s17
    %p19 = scmp.eq.s32.totalorder %s18, 0
    %s21 = sadd.s32 %s20, 1
    %s22 = scalar_select %p19, %s20, %s21
    %p25 = pneg %p19
    %p26 = scmp.eq.s32.totalorder %s10, 1
    %p27 = por %p25, %p26
    %p28 = scmp.ne.s32.totalorder %s20, %s23
    %p29 = scmp.eq.s32.totalorder %s10, 0
    %p30 = por %p28, %p29
    %p31 = scmp.ne.s32.totalorder %s20, %s23
    %p32 = scmp.eq.s32.totalorder %s15, 1
    %p33 = por %p31, %p32
    %p34 = scmp.ne.s32.totalorder %s23, %s24
    %p35 = scmp.eq.s32.totalorder %s15, 0
    %p36 = por %p34, %p35
    %p37 = scmp.ne.s32.totalorder %s23, %s24
    %p38 = scmp.eq.s32.totalorder %s16, 1
    %p39 = por %p37, %p38
    %p41 = scmp.ne.s32.totalorder %s24, %s40
    %p42 = scmp.eq.s32.totalorder %s16, 0
    %p43 = por %p41, %p42
    %s45 = sadd.s32 %s44, 1
    %p48 = scmp.eq.s32.totalorder %s10, 1
    %p49 = scmp.ne.s32.totalorder %s44, %s46
    %p50 = scmp.eq.s32.totalorder %s10, 0
    %p51 = por %p49, %p50
    %p52 = scmp.ne.s32.totalorder %s44, %s46
    %p53 = scmp.eq.s32.totalorder %s15, 1
    %p54 = por %p52, %p53
    %p55 = scmp.ne.s32.totalorder %s46, %s47
    %p56 = scmp.eq.s32.totalorder %s15, 0
    %p57 = por %p55, %p56
    %p58 = scmp.ne.s32.totalorder %s46, %s47
    %p59 = scmp.eq.s32.totalorder %s16, 1
    %p60 = por %p58, %p59
    %p62 = scmp.ne.s32.totalorder %s47, %s61
    %p63 = scmp.eq.s32.totalorder %s16, 0
    %p64 = por %p62, %p63
    %s66 = sadd.s32 %s65, 1
    %p69 = scmp.eq.s32.totalorder %s10, 1
    %p70 = scmp.ne.s32.totalorder %s65, %s67
    %p71 = scmp.eq.s32.totalorder %s10, 0
    %p72 = por %p70, %p71
    %p73 = scmp.ne.s32.totalorder %s65, %s67
    %p74 = scmp.eq.s32.totalorder %s15, 1
    %p75 = por %p73, %p74
    %p76 = scmp.ne.s32.totalorder %s67, %s68
    %p77 = scmp.eq.s32.totalorder %s15, 0
    %p78 = por %p76, %p77
    %p79 = scmp.ne.s32.totalorder %s67, %s68
    %p80 = scmp.eq.s32.totalorder %s16, 1
    %p81 = por %p79, %p80
    %p83 = scmp.ne.s32.totalorder %s68, %s82
    %p84 = scmp.eq.s32.totalorder %s16, 0
    %p85 = por %p83, %p84
    %s87 = sadd.s32 %s86, 1
    %p90 = scmp.eq.s32.totalorder %s10, 1
    %p91 = scmp.ne.s32.totalorder %s86, %s88
    %p92 = scmp.eq.s32.totalorder %s10, 0
    %p93 = por %p91, %p92
    %p94 = scmp.ne.s32.totalorder %s86, %s88
    %p95 = scmp.eq.s32.totalorder %s15, 1
    %p96 = por %p94, %p95
    %p97 = scmp.ne.s32.totalorder %s88, %s89
    %p98 = scmp.eq.s32.totalorder %s15, 0
    %p99 = por %p97, %p98
    %p100 = scmp.ne.s32.totalorder %s88, %s89
    %p101 = scmp.eq.s32.totalorder %s16, 1
    %p102 = por %p100, %p101
    %p104 = scmp.ne.s32.totalorder %s89, %s103
    %p105 = scmp.eq.s32.totalorder %s16, 0
    %p106 = por %p104, %p105
    %s107 = ssub.s32 %s10, %s17
    %p108 = scmp.eq.s32.totalorder %s107, 0
    %s110 = sadd.s32 %s109, 1
    %s111 = scalar_select %p108, %s109, %s110
    %p114 = pneg %p108
    %p115 = scmp.eq.s32.totalorder %s10, 1
    %p116 = por %p114, %p115
    %p117 = scmp.ne.s32.totalorder %s109, %s112
    %p118 = scmp.eq.s32.totalorder %s10, 0
    %p119 = por %p117, %p118
    %p120 = scmp.ne.s32.totalorder %s109, %s112
    %p121 = scmp.eq.s32.totalorder %s15, 1
    %p122 = por %p120, %p121
    %p123 = scmp.ne.s32.totalorder %s112, %s113
    %p124 = scmp.eq.s32.totalorder %s15, 0
    %p125 = por %p123, %p124
    %p126 = scmp.ne.s32.totalorder %s112, %s113
    %p127 = scmp.eq.s32.totalorder %s16, 1
    %p128 = por %p126, %p127
    %p130 = scmp.ne.s32.totalorder %s113, %s129
    %p131 = scmp.eq.s32.totalorder %s16, 0
    %p132 = por %p130, %p131
    %p133 = scmp.le.s32.totalorder 1, %s10
    %p134 = scmp.lt.s32.totalorder %s10, 3
    %p135 = pnand %p133, %p134
    %p136 = pneg %p135
    // Predicated region
    $region9: #{font_classifier_forward.7} parent=5 // pred_check
      _
    $region10: #{font_classifier_forward.7} parent=5 // pred_check_branch
      %138 = sbr.rel (%p135) target = $region12
    $region11: #{font_classifier_forward.7} parent=5 // pred_region
      %s139 = ssub.s32 %s10, 1
      // Predicated region
      $region13: #{font_classifier_forward.7} parent=11 // pred_check
        %p140 = pneg %p57
      $region14: #{font_classifier_forward.7} parent=11 // pred_check_branch
        %142 = sbr.rel (%p140) target = $region16
      $region15: #{font_classifier_forward.7} parent=11 // pred_region
        _
      $region16: #{font_classifier_forward.7} parent=11 // pred_fallthru
        _
      // Predicated region
      $region17: #{font_classifier_forward.7} parent=11 // pred_check
        %p143 = pneg %p78
      $region18: #{font_classifier_forward.7} parent=11 // pred_check_branch
        %145 = sbr.rel (%p143) target = $region20
      $region19: #{font_classifier_forward.7} parent=11 // pred_region
        _
      $region20: #{font_classifier_forward.7} parent=11 // pred_fallthru
        _
      // Predicated region
      $region21: #{font_classifier_forward.7} parent=11 // pred_check
        %p146 = pneg %p99
      $region22: #{font_classifier_forward.7} parent=11 // pred_check_branch
        %148 = sbr.rel (%p146) target = $region24
      $region23: #{font_classifier_forward.7} parent=11 // pred_region
        _
      $region24: #{font_classifier_forward.7} parent=11 // pred_fallthru
        _
    $region12: #{font_classifier_forward.7} parent=5 // pred_fallthru
      _
    %p149 = scmp.lt.s32.totalorder %s10, 2
    // Predicated region
    $region25: #{font_classifier_forward.7} parent=5 // pred_check
      %p150 = pneg %p149
    $region26: #{font_classifier_forward.7} parent=5 // pred_check_branch
      %152 = sbr.rel (%p150) target = $region28
    $region27: #{font_classifier_forward.7} parent=5 // pred_region
      // Predicated region
      $region29: #{font_classifier_forward.7} parent=27 // pred_check
        %p153 = pneg %p30
      $region30: #{font_classifier_forward.7} parent=27 // pred_check_branch
        %155 = sbr.rel (%p153) target = $region32
      $region31: #{font_classifier_forward.7} parent=27 // pred_region
        %p156 = scmp.lt.s32.totalorder %s10, 1
        %s157 = scalar_select %p156, %s10, 1
        %s158 = smul.addr %s157, 20
        %s159 = smul.addr %s158, 4
        %s160 = scalar_lea.vmem %s0, %s159
      $region32: #{font_classifier_forward.7} parent=27 // pred_fallthru
        _
    $region28: #{font_classifier_forward.7} parent=5 // pred_fallthru
      _
    %p161 = scmp.le.s32.totalorder 1, %s10
    %p162 = scmp.lt.s32.totalorder %s10, 3
    %p163 = pnand %p161, %p162
    %p164 = pneg %p163
    // Predicated region
    $region33: #{font_classifier_forward.7} parent=5 // pred_check
      _
    $region34: #{font_classifier_forward.7} parent=5 // pred_check_branch
      %166 = sbr.rel (%p163) target = $region36
    $region35: #{font_classifier_forward.7} parent=5 // pred_region
      %s167 = ssub.s32 %s10, 1
      %p168 = scmp.lt.s32.totalorder %s15, 1
      %s169 = scalar_select %p168, %s15, 1
      %s170 = smul.addr %s169, 20
      %s171 = smul.addr %s170, 4
      %s172 = scalar_lea.vmem %s0, %s171
      %p173 = pneg %p36
      %p174 = pneg %p33
      %p175 = pneg %p57
      %p176 = pneg %p54
      %p177 = pneg %p78
      %p178 = pneg %p75
      %p179 = pneg %p99
      %p180 = pneg %p96
      %p181 = pneg %p125
      %p182 = pneg %p122
      %p183 = scmp.lt.s32.totalorder %s15, 1
      %s184 = scalar_select %p183, %s15, 1
      %s185 = smul.addr %s184, 4
      %s186 = smul.addr %s185, 2
      %s187 = scalar_lea.vmem %s4, %s186
      %p188 = scmp.lt.s32.totalorder %s15, 1
      %s189 = scalar_select %p188, %s15, 1
      %s190 = smul.addr %s189, 20
      %s191 = smul.addr %s190, 4
      %s192 = scalar_lea.vmem %s0, %s191
      %p193 = scmp.lt.s32.totalorder %s15, 1
      %s194 = scalar_select %p193, %s15, 1
      %s195 = smul.addr %s194, 4
      %s196 = smul.addr %s195, 2
      %s197 = scalar_lea.vmem %s4, %s196
      %v199 = vld [vmem:[%s192] sm:$0x3]
      %v200 = vld [vmem:[%s192 + $0x4] sm:$0x3]
      %v201 = vld [vmem:[%s192 + $0x8] sm:$0x3]
      %v202 = vld [vmem:[%s192 + $0xc] sm:$0x3]
      %v203 = vld [vmem:[%s1] sm:$0xf]
      %v204 = vld [vmem:[%s1 + $0x4] sm:$0xf]
      %v205 = vld [vmem:[%s1 + $0x8] sm:$0xf]
      %v206 = vld [vmem:[%s1 + $0xc] sm:$0xf]
      %v207 = vld [vmem:[%s1 + $0x10] sm:$0xf]
      %v208 = vld [vmem:[%s1 + $0x14] sm:$0xf]
      %v209 = vld [vmem:[%s1 + $0x18] sm:$0xf]
      %v210 = vld [vmem:[%s1 + $0x1c] sm:$0xf]
      %s211 = scalar_lea.vmem %s192, 20
      %v212 = vld [vmem:[%s211] sm:$0x3]
      %v213 = vld [vmem:[%s211 + $0x4] sm:$0x3]
      %v214 = vld [vmem:[%s211 + $0x8] sm:$0x3]
      %v215 = vld [vmem:[%s211 + $0xc] sm:$0x3]
      %s216 = scalar_lea.vmem %s1, 32
      %v217 = vld [vmem:[%s216] sm:$0xf]
      %v218 = vld [vmem:[%s216 + $0x4] sm:$0xf]
      %v219 = vld [vmem:[%s216 + $0x8] sm:$0xf]
      %v220 = vld [vmem:[%s216 + $0xc] sm:$0xf]
      %v221 = vld [vmem:[%s216 + $0x10] sm:$0xf]
      %v222 = vld [vmem:[%s216 + $0x14] sm:$0xf]
      %v223 = vld [vmem:[%s216 + $0x18] sm:$0xf]
      %v224 = vld [vmem:[%s216 + $0x1c] sm:$0xf]
      %v229 = vcombine.low %v212, %v213
      %v230 = vcombine.low %v214, %v215
      %v232 = vunpack.c.l.s4 1983009808
      %v233 = vunpack.c.0.s8 %v232
      %v234 = vlaneseq
      %v235 = vshrl.u32 %v234, 7
      %v236 = vsub.s32 %v233, %v235
      %v237 = vrot.slane %v229, %v236
      %v239 = vunpack.c.l.s4 1983009808
      %v240 = vunpack.c.0.s8 %v239
      %v241 = vlaneseq
      %v242 = vshrl.u32 %v241, 7
      %v243 = vsub.s32 %v240, %v242
      %v244 = vrot.slane %v230, %v243
      %v245 = vcombine.low %v237, %v244
      %v254 = vunpack.c.l.b16 %v217
      %v255 = vunpack.c.l.b16 %v218
      %v256 = vunpack.c.l.b16 %v219
      %v257 = vunpack.c.l.b16 %v220
      %v258 = vunpack.c.l.b16 %v221
      %v259 = vunpack.c.l.b16 %v222
      %v260 = vunpack.c.l.b16 %v223
      %v261 = vunpack.c.l.b16 %v224
      %v262 = vpack.c.b16 %v255, %v254
      %v263 = vpack.c.b16 %v257, %v256
      %v264 = vpack.c.b16 %v259, %v258
      %v265 = vpack.c.b16 %v261, %v260
      %vm270 = vcmask 523264
      %v272 = vsel %vm270, %v245, 0
      %274 = vmatprep.subr.bf16.mxu0 0
      %275 = vmatpush1.bf16.msra.mxu0 0
      %276 = vmatprep.subr.bf16.mxu0 0
      %277 = vmatpush1.bf16.msra.mxu0 0
      %278 = vmatprep.subr.bf16.mxu0 0
      %279 = vmatpush1.bf16.msra.mxu0 0
      %280 = vmatprep.subr.bf16.mxu0 0
      %281 = vmatpush1.bf16.msra.mxu0 0
      %282 = vmatprep.subr.bf16.mxu0 0
      %283 = vmatpush1.bf16.msra.mxu0 %v265
      %284 = vmatprep.subr.bf16.mxu0 0
      %285 = vmatpush1.bf16.msra.mxu0 %v264
      %286 = vmatprep.subr.bf16.mxu0 0
      %287 = vmatpush1.bf16.msra.mxu0 %v263
      %288 = vmatprep.subr.bf16.mxu0 0
      %289 = vmatpush1.bf16.msra.mxu0 %v262
      %290 = vmatprep.subr.bf16.mxu0 0
      %291 = vmatpush2.bf16.msra.mxu0 0
      %292 = vmatprep.subr.bf16.mxu0 0
      %293 = vmatpush2.bf16.msra.mxu0 0
      %294 = vmatprep.subr.bf16.mxu0 0
      %295 = vmatpush2.bf16.msra.mxu0 0
      %296 = vmatprep.subr.bf16.mxu0 0
      %297 = vmatpush2.bf16.msra.mxu0 0
      %298 = vmatprep.subr.bf16.mxu0 0
      %299 = vmatpush2.bf16.msra.mxu0 0
      %300 = vmatprep.subr.bf16.mxu0 0
      %301 = vmatpush2.bf16.msra.mxu0 0
      %302 = vmatprep.subr.bf16.mxu0 0
      %303 = vmatpush2.bf16.msra.mxu0 0
      %304 = vmatprep.subr.bf16.mxu0 0
      %305 = vmatpush2.bf16.msra.mxu0 0
      %306 = vmatprep.mubr.bf16.mxu0 0
      %307 = vmatmul.mubr.bf16.gmra.mxu0 %v272
      %v308 = vpop.f32.mrf.mxu0
      %v309 = vadd.f32 0.0, %v308
      %v310 = vpop.f32.mrf.mxu0
      %v311 = vpop.f32.mrf.mxu0
      %v312 = vadd.f32 0.0, %v311
      %v313 = vpop.f32.mrf.mxu0
      %314 = vdwg.mxu0
      %v319 = vcombine.low %v199, %v200
      %v320 = vcombine.low %v201, %v202
      %v322 = vunpack.c.l.s4 1983009808
      %v323 = vunpack.c.0.s8 %v322
      %v324 = vlaneseq
      %v325 = vshrl.u32 %v324, 7
      %v326 = vsub.s32 %v323, %v325
      %v327 = vrot.slane %v319, %v326
      %v329 = vunpack.c.l.s4 1983009808
      %v330 = vunpack.c.0.s8 %v329
      %v331 = vlaneseq
      %v332 = vshrl.u32 %v331, 7
      %v333 = vsub.s32 %v330, %v332
      %v334 = vrot.slane %v320, %v333
      %v335 = vcombine.low %v327, %v334
      %v344 = vunpack.c.l.b16 %v203
      %v345 = vunpack.c.l.b16 %v204
      %v346 = vunpack.c.l.b16 %v205
      %v347 = vunpack.c.l.b16 %v206
      %v348 = vunpack.c.l.b16 %v207
      %v349 = vunpack.c.l.b16 %v208
      %v350 = vunpack.c.l.b16 %v209
      %v351 = vunpack.c.l.b16 %v210
      %v352 = vpack.c.b16 %v345, %v344
      %v353 = vpack.c.b16 %v347, %v346
      %v354 = vpack.c.b16 %v349, %v348
      %v355 = vpack.c.b16 %v351, %v350
      %v361 = vsel %vm270, %v335, 0
      %363 = vmatprep.subr.bf16.mxu0 0
      %364 = vmatpush1.bf16.msra.mxu0 0
      %365 = vmatprep.subr.bf16.mxu0 0
      %366 = vmatpush1.bf16.msra.mxu0 0
      %367 = vmatprep.subr.bf16.mxu0 0
      %368 = vmatpush1.bf16.msra.mxu0 0
      %369 = vmatprep.subr.bf16.mxu0 0
      %370 = vmatpush1.bf16.msra.mxu0 0
      %371 = vmatprep.subr.bf16.mxu0 0
      %372 = vmatpush1.bf16.msra.mxu0 %v355
      %373 = vmatprep.subr.bf16.mxu0 0
      %374 = vmatpush1.bf16.msra.mxu0 %v354
      %375 = vmatprep.subr.bf16.mxu0 0
      %376 = vmatpush1.bf16.msra.mxu0 %v353
      %377 = vmatprep.subr.bf16.mxu0 0
      %378 = vmatpush1.bf16.msra.mxu0 %v352
      %379 = vmatprep.subr.bf16.mxu0 0
      %380 = vmatpush2.bf16.msra.mxu0 0
      %381 = vmatprep.subr.bf16.mxu0 0
      %382 = vmatpush2.bf16.msra.mxu0 0
      %383 = vmatprep.subr.bf16.mxu0 0
      %384 = vmatpush2.bf16.msra.mxu0 0
      %385 = vmatprep.subr.bf16.mxu0 0
      %386 = vmatpush2.bf16.msra.mxu0 0
      %387 = vmatprep.subr.bf16.mxu0 0
      %388 = vmatpush2.bf16.msra.mxu0 0
      %389 = vmatprep.subr.bf16.mxu0 0
      %390 = vmatpush2.bf16.msra.mxu0 0
      %391 = vmatprep.subr.bf16.mxu0 0
      %392 = vmatpush2.bf16.msra.mxu0 0
      %393 = vmatprep.subr.bf16.mxu0 0
      %394 = vmatpush2.bf16.msra.mxu0 0
      %395 = vmatprep.mubr.bf16.mxu0 0
      %396 = vmatmul.mubr.bf16.gmra.mxu0 %v361
      %v397 = vpop.f32.mrf.mxu0
      %v398 = vadd.f32 %v309, %v397
      %v399 = vpop.f32.mrf.mxu0
      %v400 = vpop.f32.mrf.mxu0
      %v401 = vadd.f32 %v312, %v400
      %v402 = vpop.f32.mrf.mxu0
      %403 = vdwg.mxu0
      %v404 = vld [vmem:[%s192] sm:$0x7]
      %v405 = vld [vmem:[%s192 + $0x4] sm:$0x7]
      %v406 = vld [vmem:[%s192 + $0x8] sm:$0x7]
      %v407 = vld [vmem:[%s192 + $0xc] sm:$0x7]
      %v413 = vunpack.c.l.s4 1983009808
      %v414 = vunpack.c.0.s8 %v413
      %v415 = vlaneseq
      %v416 = vshrl.u32 %v415, 7
      %v417 = vsub.s32 %v414, %v416
      %v418 = vrot.slane %v404, %v417
      %v419 = vcombine.high %v418, %v418
      %v421 = vunpack.c.l.s4 1983009808
      %v422 = vunpack.c.0.s8 %v421
      %v423 = vlaneseq
      %v424 = vshrl.u32 %v423, 7
      %v425 = vsub.s32 %v422, %v424
      %v426 = vrot.slane %v405, %v425
      %v427 = vcombine.high %v426, %v426
      %v429 = vunpack.c.l.s4 1983009808
      %v430 = vunpack.c.0.s8 %v429
      %v431 = vlaneseq
      %v432 = vshrl.u32 %v431, 7
      %v433 = vsub.s32 %v430, %v432
      %v434 = vrot.slane %v406, %v433
      %v435 = vcombine.high %v434, %v434
      %v437 = vunpack.c.l.s4 1983009808
      %v438 = vunpack.c.0.s8 %v437
      %v439 = vlaneseq
      %v440 = vshrl.u32 %v439, 7
      %v441 = vsub.s32 %v438, %v440
      %v442 = vrot.slane %v407, %v441
      %v443 = vcombine.high %v442, %v442
      %vm444 = vsmask.f32 1280
      %vm445 = vsmask.f32 3336
      %vm446 = vmor %vm444, %vm445
      %vm447 = vsmask.f32 5392
      %vm448 = vmor %vm446, %vm447
      %vm449 = vsmask.f32 7448
      %vm450 = vmor %vm448, %vm449
      %v452 = vshrl.u32 %v418, 16
      %v454 = vrot.slane %v452, 6
      %v455 = vshll.u32 %v418, 16
      %v457 = vrot.slane %v455, 7
      %v458 = vor.u32 %v454, %v457
      %v459 = vrot.slane %v458, 2
      %v461 = vshll.u32 %v419, 16
      %v463 = vrot.slane %v461, 7
      %v464 = vsel %vm450, %v459, %v463
      %v466 = vshrl.u32 %v426, 16
      %v468 = vrot.slane %v466, 6
      %v469 = vshll.u32 %v426, 16
      %v471 = vrot.slane %v469, 7
      %v472 = vor.u32 %v468, %v471
      %v473 = vrot.slane %v472, 2
      %v475 = vshll.u32 %v427, 16
      %v477 = vrot.slane %v475, 7
      %v478 = vsel %vm450, %v473, %v477
      %v480 = vshrl.u32 %v434, 16
      %v482 = vrot.slane %v480, 6
      %v483 = vshll.u32 %v434, 16
      %v485 = vrot.slane %v483, 7
      %v486 = vor.u32 %v482, %v485
      %v487 = vrot.slane %v486, 2
      %v489 = vshll.u32 %v435, 16
      %v491 = vrot.slane %v489, 7
      %v492 = vsel %vm450, %v487, %v491
      %v494 = vshrl.u32 %v442, 16
      %v496 = vrot.slane %v494, 6
      %v497 = vshll.u32 %v442, 16
      %v499 = vrot.slane %v497, 7
      %v500 = vor.u32 %v496, %v499
      %v501 = vrot.slane %v500, 2
      %v503 = vshll.u32 %v443, 16
      %v505 = vrot.slane %v503, 7
      %v506 = vsel %vm450, %v501, %v505
      %s507 = scalar_lea.vmem %s1, 64
      %v508 = vld [vmem:[%s507] sm:$0xf]
      %v509 = vld [vmem:[%s507 + $0x4] sm:$0xf]
      %v510 = vld [vmem:[%s507 + $0x8] sm:$0xf]
      %v511 = vld [vmem:[%s507 + $0xc] sm:$0xf]
      %v512 = vld [vmem:[%s507 + $0x10] sm:$0xf]
      %v513 = vld [vmem:[%s507 + $0x14] sm:$0xf]
      %v514 = vld [vmem:[%s507 + $0x18] sm:$0xf]
      %v515 = vld [vmem:[%s507 + $0x1c] sm:$0xf]
      %v516 = vcombine.low %v464, %v478
      %v517 = vcombine.low %v492, %v506
      %v519 = vunpack.c.l.s4 1983009808
      %v520 = vunpack.c.0.s8 %v519
      %v521 = vlaneseq
      %v522 = vshrl.u32 %v521, 7
      %v523 = vsub.s32 %v520, %v522
      %v524 = vrot.slane %v516, %v523
      %v526 = vunpack.c.l.s4 1983009808
      %v527 = vunpack.c.0.s8 %v526
      %v528 = vlaneseq
      %v529 = vshrl.u32 %v528, 7
      %v530 = vsub.s32 %v527, %v529
      %v531 = vrot.slane %v517, %v530
      %v532 = vcombine.low %v524, %v531
      %v541 = vunpack.c.l.b16 %v508
      %v542 = vunpack.c.l.b16 %v509
      %v543 = vunpack.c.l.b16 %v510
      %v544 = vunpack.c.l.b16 %v511
      %v545 = vunpack.c.l.b16 %v512
      %v546 = vunpack.c.l.b16 %v513
      %v547 = vunpack.c.l.b16 %v514
      %v548 = vunpack.c.l.b16 %v515
      %v549 = vpack.c.b16 %v542, %v541
      %v550 = vpack.c.b16 %v544, %v543
      %v551 = vpack.c.b16 %v546, %v545
      %v552 = vpack.c.b16 %v548, %v547
      %v558 = vsel %vm270, %v532, 0
      %560 = vmatprep.subr.bf16.mxu0 0
      %561 = vmatpush1.bf16.msra.mxu0 0
      %562 = vmatprep.subr.bf16.mxu0 0
      %563 = vmatpush1.bf16.msra.mxu0 0
      %564 = vmatprep.subr.bf16.mxu0 0
      %565 = vmatpush1.bf16.msra.mxu0 0
      %566 = vmatprep.subr.bf16.mxu0 0
      %567 = vmatpush1.bf16.msra.mxu0 0
      %568 = vmatprep.subr.bf16.mxu0 0
      %569 = vmatpush1.bf16.msra.mxu0 %v552
      %570 = vmatprep.subr.bf16.mxu0 0
      %571 = vmatpush1.bf16.msra.mxu0 %v551
      %572 = vmatprep.subr.bf16.mxu0 0
      %573 = vmatpush1.bf16.msra.mxu0 %v550
      %574 = vmatprep.subr.bf16.mxu0 0
      %575 = vmatpush1.bf16.msra.mxu0 %v549
      %576 = vmatprep.subr.bf16.mxu0 0
      %577 = vmatpush2.bf16.msra.mxu0 0
      %578 = vmatprep.subr.bf16.mxu0 0
      %579 = vmatpush2.bf16.msra.mxu0 0
      %580 = vmatprep.subr.bf16.mxu0 0
      %581 = vmatpush2.bf16.msra.mxu0 0
      %582 = vmatprep.subr.bf16.mxu0 0
      %583 = vmatpush2.bf16.msra.mxu0 0
      %584 = vmatprep.subr.bf16.mxu0 0
      %585 = vmatpush2.bf16.msra.mxu0 0
      %586 = vmatprep.subr.bf16.mxu0 0
      %587 = vmatpush2.bf16.msra.mxu0 0
      %588 = vmatprep.subr.bf16.mxu0 0
      %589 = vmatpush2.bf16.msra.mxu0 0
      %590 = vmatprep.subr.bf16.mxu0 0
      %591 = vmatpush2.bf16.msra.mxu0 0
      %592 = vmatprep.mubr.bf16.mxu0 0
      %593 = vmatmul.mubr.bf16.gmra.mxu0 %v558
      %v594 = vpop.f32.mrf.mxu0
      %v595 = vadd.f32 0.0, %v594
      %v596 = vpop.f32.mrf.mxu0
      %v597 = vpop.f32.mrf.mxu0
      %v598 = vadd.f32 0.0, %v597
      %v599 = vpop.f32.mrf.mxu0
      %600 = vdwg.mxu0
      %v601 = vadd.f32 %v398, %v595
      %v602 = vadd.f32 %v401, %v598
      %s603 = scalar_lea.vmem %s192, 40
      %v604 = vld [vmem:[%s603] sm:$0x3]
      %v605 = vld [vmem:[%s603 + $0x4] sm:$0x3]
      %v606 = vld [vmem:[%s603 + $0x8] sm:$0x3]
      %v607 = vld [vmem:[%s603 + $0xc] sm:$0x3]
      %s608 = scalar_lea.vmem %s1, 96
      %v609 = vld [vmem:[%s608] sm:$0xf]
      %v610 = vld [vmem:[%s608 + $0x4] sm:$0xf]
      %v611 = vld [vmem:[%s608 + $0x8] sm:$0xf]
      %v612 = vld [vmem:[%s608 + $0xc] sm:$0xf]
      %v613 = vld [vmem:[%s608 + $0x10] sm:$0xf]
      %v614 = vld [vmem:[%s608 + $0x14] sm:$0xf]
      %v615 = vld [vmem:[%s608 + $0x18] sm:$0xf]
      %v616 = vld [vmem:[%s608 + $0x1c] sm:$0xf]
      %v621 = vcombine.low %v604, %v605
      %v622 = vcombine.low %v606, %v607
      %v624 = vunpack.c.l.s4 1983009808
      %v625 = vunpack.c.0.s8 %v624
      %v626 = vlaneseq
      %v627 = vshrl.u32 %v626, 7
      %v628 = vsub.s32 %v625, %v627
      %v629 = vrot.slane %v621, %v628
      %v631 = vunpack.c.l.s4 1983009808
      %v632 = vunpack.c.0.s8 %v631
      %v633 = vlaneseq
      %v634 = vshrl.u32 %v633, 7
      %v635 = vsub.s32 %v632, %v634
      %v636 = vrot.slane %v622, %v635
      %v637 = vcombine.low %v629, %v636
      %v646 = vunpack.c.l.b16 %v609
      %v647 = vunpack.c.l.b16 %v610
      %v648 = vunpack.c.l.b16 %v611
      %v649 = vunpack.c.l.b16 %v612
      %v650 = vunpack.c.l.b16 %v613
      %v651 = vunpack.c.l.b16 %v614
      %v652 = vunpack.c.l.b16 %v615
      %v653 = vunpack.c.l.b16 %v616
      %v654 = vpack.c.b16 %v647, %v646
      %v655 = vpack.c.b16 %v649, %v648
      %v656 = vpack.c.b16 %v651, %v650
      %v657 = vpack.c.b16 %v653, %v652
      %v663 = vsel %vm270, %v637, 0
      %665 = vmatprep.subr.bf16.mxu0 0
      %666 = vmatpush1.bf16.msra.mxu0 0
      %667 = vmatprep.subr.bf16.mxu0 0
      %668 = vmatpush1.bf16.msra.mxu0 0
      %669 = vmatprep.subr.bf16.mxu0 0
      %670 = vmatpush1.bf16.msra.mxu0 0
      %671 = vmatprep.subr.bf16.mxu0 0
      %672 = vmatpush1.bf16.msra.mxu0 0
      %673 = vmatprep.subr.bf16.mxu0 0
      %674 = vmatpush1.bf16.msra.mxu0 %v657
      %675 = vmatprep.subr.bf16.mxu0 0
      %676 = vmatpush1.bf16.msra.mxu0 %v656
      %677 = vmatprep.subr.bf16.mxu0 0
      %678 = vmatpush1.bf16.msra.mxu0 %v655
      %679 = vmatprep.subr.bf16.mxu0 0
      %680 = vmatpush1.bf16.msra.mxu0 %v654
      %681 = vmatprep.subr.bf16.mxu0 0
      %682 = vmatpush2.bf16.msra.mxu0 0
      %683 = vmatprep.subr.bf16.mxu0 0
      %684 = vmatpush2.bf16.msra.mxu0 0
      %685 = vmatprep.subr.bf16.mxu0 0
      %686 = vmatpush2.bf16.msra.mxu0 0
      %687 = vmatprep.subr.bf16.mxu0 0
      %688 = vmatpush2.bf16.msra.mxu0 0
      %689 = vmatprep.subr.bf16.mxu0 0
      %690 = vmatpush2.bf16.msra.mxu0 0
      %691 = vmatprep.subr.bf16.mxu0 0
      %692 = vmatpush2.bf16.msra.mxu0 0
      %693 = vmatprep.subr.bf16.mxu0 0
      %694 = vmatpush2.bf16.msra.mxu0 0
      %695 = vmatprep.subr.bf16.mxu0 0
      %696 = vmatpush2.bf16.msra.mxu0 0
      %697 = vmatprep.mubr.bf16.mxu0 0
      %698 = vmatmul.mubr.bf16.gmra.mxu0 %v663
      %v699 = vpop.f32.mrf.mxu0
      %v700 = vadd.f32 0.0, %v699
      %v701 = vpop.f32.mrf.mxu0
      %v702 = vpop.f32.mrf.mxu0
      %v703 = vadd.f32 0.0, %v702
      %v704 = vpop.f32.mrf.mxu0
      %705 = vdwg.mxu0
      %v706 = vadd.f32 %v601, %v700
      %v707 = vadd.f32 %v602, %v703
      %s708 = scalar_lea.vmem %s192, 60
      %v709 = vld [vmem:[%s708] sm:$0x3]
      %v710 = vld [vmem:[%s708 + $0x4] sm:$0x3]
      %v711 = vld [vmem:[%s708 + $0x8] sm:$0x3]
      %v712 = vld [vmem:[%s708 + $0xc] sm:$0x3]
      %s713 = scalar_lea.vmem %s1, 128
      %v714 = vld [vmem:[%s713] sm:$0xf]
      %v715 = vld [vmem:[%s713 + $0x4] sm:$0xf]
      %v716 = vld [vmem:[%s713 + $0x8] sm:$0xf]
      %v717 = vld [vmem:[%s713 + $0xc] sm:$0xf]
      %v718 = vld [vmem:[%s713 + $0x10] sm:$0xf]
      %v719 = vld [vmem:[%s713 + $0x14] sm:$0xf]
      %v720 = vld [vmem:[%s713 + $0x18] sm:$0xf]
      %v721 = vld [vmem:[%s713 + $0x1c] sm:$0xf]
      %v726 = vcombine.low %v709, %v710
      %v727 = vcombine.low %v711, %v712
      %v729 = vunpack.c.l.s4 1983009808
      %v730 = vunpack.c.0.s8 %v729
      %v731 = vlaneseq
      %v732 = vshrl.u32 %v731, 7
      %v733 = vsub.s32 %v730, %v732
      %v734 = vrot.slane %v726, %v733
      %v736 = vunpack.c.l.s4 1983009808
      %v737 = vunpack.c.0.s8 %v736
      %v738 = vlaneseq
      %v739 = vshrl.u32 %v738, 7
      %v740 = vsub.s32 %v737, %v739
      %v741 = vrot.slane %v727, %v740
      %v742 = vcombine.low %v734, %v741
      %v751 = vunpack.c.l.b16 %v714
      %v752 = vunpack.c.l.b16 %v715
      %v753 = vunpack.c.l.b16 %v716
      %v754 = vunpack.c.l.b16 %v717
      %v755 = vunpack.c.l.b16 %v718
      %v756 = vunpack.c.l.b16 %v719
      %v757 = vunpack.c.l.b16 %v720
      %v758 = vunpack.c.l.b16 %v721
      %v759 = vpack.c.b16 %v752, %v751
      %v760 = vpack.c.b16 %v754, %v753
      %v761 = vpack.c.b16 %v756, %v755
      %v762 = vpack.c.b16 %v758, %v757
      %v768 = vsel %vm270, %v742, 0
      %770 = vmatprep.subr.bf16.mxu0 0
      %771 = vmatpush1.bf16.msra.mxu0 0
      %772 = vmatprep.subr.bf16.mxu0 0
      %773 = vmatpush1.bf16.msra.mxu0 0
      %774 = vmatprep.subr.bf16.mxu0 0
      %775 = vmatpush1.bf16.msra.mxu0 0
      %776 = vmatprep.subr.bf16.mxu0 0
      %777 = vmatpush1.bf16.msra.mxu0 0
      %778 = vmatprep.subr.bf16.mxu0 0
      %779 = vmatpush1.bf16.msra.mxu0 %v762
      %780 = vmatprep.subr.bf16.mxu0 0
      %781 = vmatpush1.bf16.msra.mxu0 %v761
      %782 = vmatprep.subr.bf16.mxu0 0
      %783 = vmatpush1.bf16.msra.mxu0 %v760
      %784 = vmatprep.subr.bf16.mxu0 0
      %785 = vmatpush1.bf16.msra.mxu0 %v759
      %786 = vmatprep.subr.bf16.mxu0 0
      %787 = vmatpush2.bf16.msra.mxu0 0
      %788 = vmatprep.subr.bf16.mxu0 0
      %789 = vmatpush2.bf16.msra.mxu0 0
      %790 = vmatprep.subr.bf16.mxu0 0
      %791 = vmatpush2.bf16.msra.mxu0 0
      %792 = vmatprep.subr.bf16.mxu0 0
      %793 = vmatpush2.bf16.msra.mxu0 0
      %794 = vmatprep.subr.bf16.mxu0 0
      %795 = vmatpush2.bf16.msra.mxu0 0
      %796 = vmatprep.subr.bf16.mxu0 0
      %797 = vmatpush2.bf16.msra.mxu0 0
      %798 = vmatprep.subr.bf16.mxu0 0
      %799 = vmatpush2.bf16.msra.mxu0 0
      %800 = vmatprep.subr.bf16.mxu0 0
      %801 = vmatpush2.bf16.msra.mxu0 0
      %802 = vmatprep.mubr.bf16.mxu0 0
      %803 = vmatmul.mubr.bf16.gmra.mxu0 %v768
      %v804 = vpop.f32.mrf.mxu0
      %v805 = vadd.f32 0.0, %v804
      %v806 = vpop.f32.mrf.mxu0
      %v807 = vpop.f32.mrf.mxu0
      %v808 = vadd.f32 0.0, %v807
      %v809 = vpop.f32.mrf.mxu0
      %810 = vdwg.mxu0
      %v811 = vadd.f32 %v706, %v805
      %v812 = vadd.f32 %v707, %v808
      %v813 = vld [vmem:[%s603] sm:$0x7]
      %v814 = vld [vmem:[%s603 + $0x4] sm:$0x7]
      %v815 = vld [vmem:[%s603 + $0x8] sm:$0x7]
      %v816 = vld [vmem:[%s603 + $0xc] sm:$0x7]
      %v822 = vunpack.c.l.s4 1983009808
      %v823 = vunpack.c.0.s8 %v822
      %v824 = vlaneseq
      %v825 = vshrl.u32 %v824, 7
      %v826 = vsub.s32 %v823, %v825
      %v827 = vrot.slane %v813, %v826
      %v828 = vcombine.high %v827, %v827
      %v830 = vunpack.c.l.s4 1983009808
      %v831 = vunpack.c.0.s8 %v830
      %v832 = vlaneseq
      %v833 = vshrl.u32 %v832, 7
      %v834 = vsub.s32 %v831, %v833
      %v835 = vrot.slane %v814, %v834
      %v836 = vcombine.high %v835, %v835
      %v838 = vunpack.c.l.s4 1983009808
      %v839 = vunpack.c.0.s8 %v838
      %v840 = vlaneseq
      %v841 = vshrl.u32 %v840, 7
      %v842 = vsub.s32 %v839, %v841
      %v843 = vrot.slane %v815, %v842
      %v844 = vcombine.high %v843, %v843
      %v846 = vunpack.c.l.s4 1983009808
      %v847 = vunpack.c.0.s8 %v846
      %v848 = vlaneseq
      %v849 = vshrl.u32 %v848, 7
      %v850 = vsub.s32 %v847, %v849
      %v851 = vrot.slane %v816, %v850
      %v852 = vcombine.high %v851, %v851
      %v854 = vshrl.u32 %v827, 16
      %v856 = vrot.slane %v854, 6
      %v857 = vshll.u32 %v827, 16
      %v859 = vrot.slane %v857, 7
      %v860 = vor.u32 %v856, %v859
      %v861 = vrot.slane %v860, 2
      %v863 = vshll.u32 %v828, 16
      %v865 = vrot.slane %v863, 7
      %v866 = vsel %vm450, %v861, %v865
      %v868 = vshrl.u32 %v835, 16
      %v870 = vrot.slane %v868, 6
      %v871 = vshll.u32 %v835, 16
      %v873 = vrot.slane %v871, 7
      %v874 = vor.u32 %v870, %v873
      %v875 = vrot.slane %v874, 2
      %v877 = vshll.u32 %v836, 16
      %v879 = vrot.slane %v877, 7
      %v880 = vsel %vm450, %v875, %v879
      %v882 = vshrl.u32 %v843, 16
      %v884 = vrot.slane %v882, 6
      %v885 = vshll.u32 %v843, 16
      %v887 = vrot.slane %v885, 7
      %v888 = vor.u32 %v884, %v887
      %v889 = vrot.slane %v888, 2
      %v891 = vshll.u32 %v844, 16
      %v893 = vrot.slane %v891, 7
      %v894 = vsel %vm450, %v889, %v893
      %v896 = vshrl.u32 %v851, 16
      %v898 = vrot.slane %v896, 6
      %v899 = vshll.u32 %v851, 16
      %v901 = vrot.slane %v899, 7
      %v902 = vor.u32 %v898, %v901
      %v903 = vrot.slane %v902, 2
      %v905 = vshll.u32 %v852, 16
      %v907 = vrot.slane %v905, 7
      %v908 = vsel %vm450, %v903, %v907
      %s909 = scalar_lea.vmem %s1, 160
      %v910 = vld [vmem:[%s909] sm:$0xf]
      %v911 = vld [vmem:[%s909 + $0x4] sm:$0xf]
      %v912 = vld [vmem:[%s909 + $0x8] sm:$0xf]
      %v913 = vld [vmem:[%s909 + $0xc] sm:$0xf]
      %v914 = vld [vmem:[%s909 + $0x10] sm:$0xf]
      %v915 = vld [vmem:[%s909 + $0x14] sm:$0xf]
      %v916 = vld [vmem:[%s909 + $0x18] sm:$0xf]
      %v917 = vld [vmem:[%s909 + $0x1c] sm:$0xf]
      %v918 = vcombine.low %v866, %v880
      %v919 = vcombine.low %v894, %v908
      %v921 = vunpack.c.l.s4 1983009808
      %v922 = vunpack.c.0.s8 %v921
      %v923 = vlaneseq
      %v924 = vshrl.u32 %v923, 7
      %v925 = vsub.s32 %v922, %v924
      %v926 = vrot.slane %v918, %v925
      %v928 = vunpack.c.l.s4 1983009808
      %v929 = vunpack.c.0.s8 %v928
      %v930 = vlaneseq
      %v931 = vshrl.u32 %v930, 7
      %v932 = vsub.s32 %v929, %v931
      %v933 = vrot.slane %v919, %v932
      %v934 = vcombine.low %v926, %v933
      %v943 = vunpack.c.l.b16 %v910
      %v944 = vunpack.c.l.b16 %v911
      %v945 = vunpack.c.l.b16 %v912
      %v946 = vunpack.c.l.b16 %v913
      %v947 = vunpack.c.l.b16 %v914
      %v948 = vunpack.c.l.b16 %v915
      %v949 = vunpack.c.l.b16 %v916
      %v950 = vunpack.c.l.b16 %v917
      %v951 = vpack.c.b16 %v944, %v943
      %v952 = vpack.c.b16 %v946, %v945
      %v953 = vpack.c.b16 %v948, %v947
      %v954 = vpack.c.b16 %v950, %v949
      %v960 = vsel %vm270, %v934, 0
      %962 = vmatprep.subr.bf16.mxu0 0
      %963 = vmatpush1.bf16.msra.mxu0 0
      %964 = vmatprep.subr.bf16.mxu0 0
      %965 = vmatpush1.bf16.msra.mxu0 0
      %966 = vmatprep.subr.bf16.mxu0 0
      %967 = vmatpush1.bf16.msra.mxu0 0
      %968 = vmatprep.subr.bf16.mxu0 0
      %969 = vmatpush1.bf16.msra.mxu0 0
      %970 = vmatprep.subr.bf16.mxu0 0
      %971 = vmatpush1.bf16.msra.mxu0 %v954
      %972 = vmatprep.subr.bf16.mxu0 0
      %973 = vmatpush1.bf16.msra.mxu0 %v953
      %974 = vmatprep.subr.bf16.mxu0 0
      %975 = vmatpush1.bf16.msra.mxu0 %v952
      %976 = vmatprep.subr.bf16.mxu0 0
      %977 = vmatpush1.bf16.msra.mxu0 %v951
      %978 = vmatprep.subr.bf16.mxu0 0
      %979 = vmatpush2.bf16.msra.mxu0 0
      %980 = vmatprep.subr.bf16.mxu0 0
      %981 = vmatpush2.bf16.msra.mxu0 0
      %982 = vmatprep.subr.bf16.mxu0 0
      %983 = vmatpush2.bf16.msra.mxu0 0
      %984 = vmatprep.subr.bf16.mxu0 0
      %985 = vmatpush2.bf16.msra.mxu0 0
      %986 = vmatprep.subr.bf16.mxu0 0
      %987 = vmatpush2.bf16.msra.mxu0 0
      %988 = vmatprep.subr.bf16.mxu0 0
      %989 = vmatpush2.bf16.msra.mxu0 0
      %990 = vmatprep.subr.bf16.mxu0 0
      %991 = vmatpush2.bf16.msra.mxu0 0
      %992 = vmatprep.subr.bf16.mxu0 0
      %993 = vmatpush2.bf16.msra.mxu0 0
      %994 = vmatprep.mubr.bf16.mxu0 0
      %995 = vmatmul.mubr.bf16.gmra.mxu0 %v960
      %v996 = vpop.f32.mrf.mxu0
      %v997 = vadd.f32 0.0, %v996
      %v998 = vpop.f32.mrf.mxu0
      %v999 = vpop.f32.mrf.mxu0
      %v1000 = vadd.f32 0.0, %v999
      %v1001 = vpop.f32.mrf.mxu0
      %1002 = vdwg.mxu0
      %v1003 = vadd.f32 %v811, %v997
      %v1004 = vadd.f32 %v812, %v1000
      %s1005 = scalar_lea.vmem %s192, 4
      %v1006 = vld [vmem:[%s1005] sm:$0x3]
      %v1007 = vld [vmem:[%s1005 + $0x4] sm:$0x3]
      %v1008 = vld [vmem:[%s1005 + $0x8] sm:$0x3]
      %v1009 = vld [vmem:[%s1005 + $0xc] sm:$0x3]
      %s1010 = scalar_lea.vmem %s1, 192
      %v1011 = vld [vmem:[%s1010] sm:$0xf]
      %v1012 = vld [vmem:[%s1010 + $0x4] sm:$0xf]
      %v1013 = vld [vmem:[%s1010 + $0x8] sm:$0xf]
      %v1014 = vld [vmem:[%s1010 + $0xc] sm:$0xf]
      %v1015 = vld [vmem:[%s1010 + $0x10] sm:$0xf]
      %v1016 = vld [vmem:[%s1010 + $0x14] sm:$0xf]
      %v1017 = vld [vmem:[%s1010 + $0x18] sm:$0xf]
      %v1018 = vld [vmem:[%s1010 + $0x1c] sm:$0xf]
      %v1023 = vcombine.low %v1006, %v1007
      %v1024 = vcombine.low %v1008, %v1009
      %v1026 = vunpack.c.l.s4 1983009808
      %v1027 = vunpack.c.0.s8 %v1026
      %v1028 = vlaneseq
      %v1029 = vshrl.u32 %v1028, 7
      %v1030 = vsub.s32 %v1027, %v1029
      %v1031 = vrot.slane %v1023, %v1030
      %v1033 = vunpack.c.l.s4 1983009808
      %v1034 = vunpack.c.0.s8 %v1033
      %v1035 = vlaneseq
      %v1036 = vshrl.u32 %v1035, 7
      %v1037 = vsub.s32 %v1034, %v1036
      %v1038 = vrot.slane %v1024, %v1037
      %v1039 = vcombine.low %v1031, %v1038
      %v1048 = vunpack.c.l.b16 %v1011
      %v1049 = vunpack.c.l.b16 %v1012
      %v1050 = vunpack.c.l.b16 %v1013
      %v1051 = vunpack.c.l.b16 %v1014
      %v1052 = vunpack.c.l.b16 %v1015
      %v1053 = vunpack.c.l.b16 %v1016
      %v1054 = vunpack.c.l.b16 %v1017
      %v1055 = vunpack.c.l.b16 %v1018
      %v1056 = vpack.c.b16 %v1049, %v1048
      %v1057 = vpack.c.b16 %v1051, %v1050
      %v1058 = vpack.c.b16 %v1053, %v1052
      %v1059 = vpack.c.b16 %v1055, %v1054
      %v1065 = vsel %vm270, %v1039, 0
      %1067 = vmatprep.subr.bf16.mxu0 0
      %1068 = vmatpush1.bf16.msra.mxu0 0
      %1069 = vmatprep.subr.bf16.mxu0 0
      %1070 = vmatpush1.bf16.msra.mxu0 0
      %1071 = vmatprep.subr.bf16.mxu0 0
      %1072 = vmatpush1.bf16.msra.mxu0 0
      %1073 = vmatprep.subr.bf16.mxu0 0
      %1074 = vmatpush1.bf16.msra.mxu0 0
      %1075 = vmatprep.subr.bf16.mxu0 0
      %1076 = vmatpush1.bf16.msra.mxu0 %v1059
      %1077 = vmatprep.subr.bf16.mxu0 0
      %1078 = vmatpush1.bf16.msra.mxu0 %v1058
      %1079 = vmatprep.subr.bf16.mxu0 0
      %1080 = vmatpush1.bf16.msra.mxu0 %v1057
      %1081 = vmatprep.subr.bf16.mxu0 0
      %1082 = vmatpush1.bf16.msra.mxu0 %v1056
      %1083 = vmatprep.subr.bf16.mxu0 0
      %1084 = vmatpush2.bf16.msra.mxu0 0
      %1085 = vmatprep.subr.bf16.mxu0 0
      %1086 = vmatpush2.bf16.msra.mxu0 0
      %1087 = vmatprep.subr.bf16.mxu0 0
      %1088 = vmatpush2.bf16.msra.mxu0 0
      %1089 = vmatprep.subr.bf16.mxu0 0
      %1090 = vmatpush2.bf16.msra.mxu0 0
      %1091 = vmatprep.subr.bf16.mxu0 0
      %1092 = vmatpush2.bf16.msra.mxu0 0
      %1093 = vmatprep.subr.bf16.mxu0 0
      %1094 = vmatpush2.bf16.msra.mxu0 0
      %1095 = vmatprep.subr.bf16.mxu0 0
      %1096 = vmatpush2.bf16.msra.mxu0 0
      %1097 = vmatprep.subr.bf16.mxu0 0
      %1098 = vmatpush2.bf16.msra.mxu0 0
      %1099 = vmatprep.mubr.bf16.mxu0 0
      %1100 = vmatmul.mubr.bf16.gmra.mxu0 %v1065
      %v1101 = vpop.f32.mrf.mxu0
      %v1102 = vadd.f32 0.0, %v1101
      %v1103 = vpop.f32.mrf.mxu0
      %v1104 = vpop.f32.mrf.mxu0
      %v1105 = vadd.f32 0.0, %v1104
      %v1106 = vpop.f32.mrf.mxu0
      %1107 = vdwg.mxu0
      %v1108 = vadd.f32 %v1003, %v1102
      %v1109 = vadd.f32 %v1004, %v1105
      %s1110 = scalar_lea.vmem %s192, 24
      %v1111 = vld [vmem:[%s1110] sm:$0x3]
      %v1112 = vld [vmem:[%s1110 + $0x4] sm:$0x3]
      %v1113 = vld [vmem:[%s1110 + $0x8] sm:$0x3]
      %v1114 = vld [vmem:[%s1110 + $0xc] sm:$0x3]
      %s1115 = scalar_lea.vmem %s1, 224
      %v1116 = vld [vmem:[%s1115] sm:$0xf]
      %v1117 = vld [vmem:[%s1115 + $0x4] sm:$0xf]
      %v1118 = vld [vmem:[%s1115 + $0x8] sm:$0xf]
      %v1119 = vld [vmem:[%s1115 + $0xc] sm:$0xf]
      %v1120 = vld [vmem:[%s1115 + $0x10] sm:$0xf]
      %v1121 = vld [vmem:[%s1115 + $0x14] sm:$0xf]
      %v1122 = vld [vmem:[%s1115 + $0x18] sm:$0xf]
      %v1123 = vld [vmem:[%s1115 + $0x1c] sm:$0xf]
      %v1128 = vcombine.low %v1111, %v1112
      %v1129 = vcombine.low %v1113, %v1114
      %v1131 = vunpack.c.l.s4 1983009808
      %v1132 = vunpack.c.0.s8 %v1131
      %v1133 = vlaneseq
      %v1134 = vshrl.u32 %v1133, 7
      %v1135 = vsub.s32 %v1132, %v1134
      %v1136 = vrot.slane %v1128, %v1135
      %v1138 = vunpack.c.l.s4 1983009808
      %v1139 = vunpack.c.0.s8 %v1138
      %v1140 = vlaneseq
      %v1141 = vshrl.u32 %v1140, 7
      %v1142 = vsub.s32 %v1139, %v1141
      %v1143 = vrot.slane %v1129, %v1142
      %v1144 = vcombine.low %v1136, %v1143
      %v1153 = vunpack.c.l.b16 %v1116
      %v1154 = vunpack.c.l.b16 %v1117
      %v1155 = vunpack.c.l.b16 %v1118
      %v1156 = vunpack.c.l.b16 %v1119
      %v1157 = vunpack.c.l.b16 %v1120
      %v1158 = vunpack.c.l.b16 %v1121
      %v1159 = vunpack.c.l.b16 %v1122
      %v1160 = vunpack.c.l.b16 %v1123
      %v1161 = vpack.c.b16 %v1154, %v1153
      %v1162 = vpack.c.b16 %v1156, %v1155
      %v1163 = vpack.c.b16 %v1158, %v1157
      %v1164 = vpack.c.b16 %v1160, %v1159
      %v1170 = vsel %vm270, %v1144, 0
      %1172 = vmatprep.subr.bf16.mxu0 0
      %1173 = vmatpush1.bf16.msra.mxu0 0
      %1174 = vmatprep.subr.bf16.mxu0 0
      %1175 = vmatpush1.bf16.msra.mxu0 0
      %1176 = vmatprep.subr.bf16.mxu0 0
      %1177 = vmatpush1.bf16.msra.mxu0 0
      %1178 = vmatprep.subr.bf16.mxu0 0
      %1179 = vmatpush1.bf16.msra.mxu0 0
      %1180 = vmatprep.subr.bf16.mxu0 0
      %1181 = vmatpush1.bf16.msra.mxu0 %v1164
      %1182 = vmatprep.subr.bf16.mxu0 0
      %1183 = vmatpush1.bf16.msra.mxu0 %v1163
      %1184 = vmatprep.subr.bf16.mxu0 0
      %1185 = vmatpush1.bf16.msra.mxu0 %v1162
      %1186 = vmatprep.subr.bf16.mxu0 0
      %1187 = vmatpush1.bf16.msra.mxu0 %v1161
      %1188 = vmatprep.subr.bf16.mxu0 0
      %1189 = vmatpush2.bf16.msra.mxu0 0
      %1190 = vmatprep.subr.bf16.mxu0 0
      %1191 = vmatpush2.bf16.msra.mxu0 0
      %1192 = vmatprep.subr.bf16.mxu0 0
      %1193 = vmatpush2.bf16.msra.mxu0 0
      %1194 = vmatprep.subr.bf16.mxu0 0
      %1195 = vmatpush2.bf16.msra.mxu0 0
      %1196 = vmatprep.subr.bf16.mxu0 0
      %1197 = vmatpush2.bf16.msra.mxu0 0
      %1198 = vmatprep.subr.bf16.mxu0 0
      %1199 = vmatpush2.bf16.msra.mxu0 0
      %1200 = vmatprep.subr.bf16.mxu0 0
      %1201 = vmatpush2.bf16.msra.mxu0 0
      %1202 = vmatprep.subr.bf16.mxu0 0
      %1203 = vmatpush2.bf16.msra.mxu0 0
      %1204 = vmatprep.mubr.bf16.mxu0 0
      %1205 = vmatmul.mubr.bf16.gmra.mxu0 %v1170
      %v1206 = vpop.f32.mrf.mxu0
      %v1207 = vadd.f32 0.0, %v1206
      %v1208 = vpop.f32.mrf.mxu0
      %v1209 = vpop.f32.mrf.mxu0
      %v1210 = vadd.f32 0.0, %v1209
      %v1211 = vpop.f32.mrf.mxu0
      %1212 = vdwg.mxu0
      %v1213 = vadd.f32 %v1108, %v1207
      %v1214 = vadd.f32 %v1109, %v1210
      %v1215 = vld [vmem:[%s1005] sm:$0x7]
      %v1216 = vld [vmem:[%s1005 + $0x4] sm:$0x7]
      %v1217 = vld [vmem:[%s1005 + $0x8] sm:$0x7]
      %v1218 = vld [vmem:[%s1005 + $0xc] sm:$0x7]
      %v1224 = vunpack.c.l.s4 1983009808
      %v1225 = vunpack.c.0.s8 %v1224
      %v1226 = vlaneseq
      %v1227 = vshrl.u32 %v1226, 7
      %v1228 = vsub.s32 %v1225, %v1227
      %v1229 = vrot.slane %v1215, %v1228
      %v1230 = vcombine.high %v1229, %v1229
      %v1232 = vunpack.c.l.s4 1983009808
      %v1233 = vunpack.c.0.s8 %v1232
      %v1234 = vlaneseq
      %v1235 = vshrl.u32 %v1234, 7
      %v1236 = vsub.s32 %v1233, %v1235
      %v1237 = vrot.slane %v1216, %v1236
      %v1238 = vcombine.high %v1237, %v1237
      %v1240 = vunpack.c.l.s4 1983009808
      %v1241 = vunpack.c.0.s8 %v1240
      %v1242 = vlaneseq
      %v1243 = vshrl.u32 %v1242, 7
      %v1244 = vsub.s32 %v1241, %v1243
      %v1245 = vrot.slane %v1217, %v1244
      %v1246 = vcombine.high %v1245, %v1245
      %v1248 = vunpack.c.l.s4 1983009808
      %v1249 = vunpack.c.0.s8 %v1248
      %v1250 = vlaneseq
      %v1251 = vshrl.u32 %v1250, 7
      %v1252 = vsub.s32 %v1249, %v1251
      %v1253 = vrot.slane %v1218, %v1252
      %v1254 = vcombine.high %v1253, %v1253
      %v1256 = vshrl.u32 %v1229, 16
      %v1258 = vrot.slane %v1256, 6
      %v1259 = vshll.u32 %v1229, 16
      %v1261 = vrot.slane %v1259, 7
      %v1262 = vor.u32 %v1258, %v1261
      %v1263 = vrot.slane %v1262, 2
      %v1265 = vshll.u32 %v1230, 16
      %v1267 = vrot.slane %v1265, 7
      %v1268 = vsel %vm450, %v1263, %v1267
      %v1270 = vshrl.u32 %v1237, 16
      %v1272 = vrot.slane %v1270, 6
      %v1273 = vshll.u32 %v1237, 16
      %v1275 = vrot.slane %v1273, 7
      %v1276 = vor.u32 %v1272, %v1275
      %v1277 = vrot.slane %v1276, 2
      %v1279 = vshll.u32 %v1238, 16
      %v1281 = vrot.slane %v1279, 7
      %v1282 = vsel %vm450, %v1277, %v1281
      %v1284 = vshrl.u32 %v1245, 16
      %v1286 = vrot.slane %v1284, 6
      %v1287 = vshll.u32 %v1245, 16
      %v1289 = vrot.slane %v1287, 7
      %v1290 = vor.u32 %v1286, %v1289
      %v1291 = vrot.slane %v1290, 2
      %v1293 = vshll.u32 %v1246, 16
      %v1295 = vrot.slane %v1293, 7
      %v1296 = vsel %vm450, %v1291, %v1295
      %v1298 = vshrl.u32 %v1253, 16
      %v1300 = vrot.slane %v1298, 6
      %v1301 = vshll.u32 %v1253, 16
      %v1303 = vrot.slane %v1301, 7
      %v1304 = vor.u32 %v1300, %v1303
      %v1305 = vrot.slane %v1304, 2
      %v1307 = vshll.u32 %v1254, 16
      %v1309 = vrot.slane %v1307, 7
      %v1310 = vsel %vm450, %v1305, %v1309
      %s1311 = scalar_lea.vmem %s1, 256
      %v1312 = vld [vmem:[%s1311] sm:$0xf]
      %v1313 = vld [vmem:[%s1311 + $0x4] sm:$0xf]
      %v1314 = vld [vmem:[%s1311 + $0x8] sm:$0xf]
      %v1315 = vld [vmem:[%s1311 + $0xc] sm:$0xf]
      %v1316 = vld [vmem:[%s1311 + $0x10] sm:$0xf]
      %v1317 = vld [vmem:[%s1311 + $0x14] sm:$0xf]
      %v1318 = vld [vmem:[%s1311 + $0x18] sm:$0xf]
      %v1319 = vld [vmem:[%s1311 + $0x1c] sm:$0xf]
      %v1320 = vcombine.low %v1268, %v1282
      %v1321 = vcombine.low %v1296, %v1310
      %v1323 = vunpack.c.l.s4 1983009808
      %v1324 = vunpack.c.0.s8 %v1323
      %v1325 = vlaneseq
      %v1326 = vshrl.u32 %v1325, 7
      %v1327 = vsub.s32 %v1324, %v1326
      %v1328 = vrot.slane %v1320, %v1327
      %v1330 = vunpack.c.l.s4 1983009808
      %v1331 = vunpack.c.0.s8 %v1330
      %v1332 = vlaneseq
      %v1333 = vshrl.u32 %v1332, 7
      %v1334 = vsub.s32 %v1331, %v1333
      %v1335 = vrot.slane %v1321, %v1334
      %v1336 = vcombine.low %v1328, %v1335
      %v1345 = vunpack.c.l.b16 %v1312
      %v1346 = vunpack.c.l.b16 %v1313
      %v1347 = vunpack.c.l.b16 %v1314
      %v1348 = vunpack.c.l.b16 %v1315
      %v1349 = vunpack.c.l.b16 %v1316
      %v1350 = vunpack.c.l.b16 %v1317
      %v1351 = vunpack.c.l.b16 %v1318
      %v1352 = vunpack.c.l.b16 %v1319
      %v1353 = vpack.c.b16 %v1346, %v1345
      %v1354 = vpack.c.b16 %v1348, %v1347
      %v1355 = vpack.c.b16 %v1350, %v1349
      %v1356 = vpack.c.b16 %v1352, %v1351
      %v1362 = vsel %vm270, %v1336, 0
      %1364 = vmatprep.subr.bf16.mxu0 0
      %1365 = vmatpush1.bf16.msra.mxu0 0
      %1366 = vmatprep.subr.bf16.mxu0 0
      %1367 = vmatpush1.bf16.msra.mxu0 0
      %1368 = vmatprep.subr.bf16.mxu0 0
      %1369 = vmatpush1.bf16.msra.mxu0 0
      %1370 = vmatprep.subr.bf16.mxu0 0
      %1371 = vmatpush1.bf16.msra.mxu0 0
      %1372 = vmatprep.subr.bf16.mxu0 0
      %1373 = vmatpush1.bf16.msra.mxu0 %v1356
      %1374 = vmatprep.subr.bf16.mxu0 0
      %1375 = vmatpush1.bf16.msra.mxu0 %v1355
      %1376 = vmatprep.subr.bf16.mxu0 0
      %1377 = vmatpush1.bf16.msra.mxu0 %v1354
      %1378 = vmatprep.subr.bf16.mxu0 0
      %1379 = vmatpush1.bf16.msra.mxu0 %v1353
      %1380 = vmatprep.subr.bf16.mxu0 0
      %1381 = vmatpush2.bf16.msra.mxu0 0
      %1382 = vmatprep.subr.bf16.mxu0 0
      %1383 = vmatpush2.bf16.msra.mxu0 0
      %1384 = vmatprep.subr.bf16.mxu0 0
      %1385 = vmatpush2.bf16.msra.mxu0 0
      %1386 = vmatprep.subr.bf16.mxu0 0
      %1387 = vmatpush2.bf16.msra.mxu0 0
      %1388 = vmatprep.subr.bf16.mxu0 0
      %1389 = vmatpush2.bf16.msra.mxu0 0
      %1390 = vmatprep.subr.bf16.mxu0 0
      %1391 = vmatpush2.bf16.msra.mxu0 0
      %1392 = vmatprep.subr.bf16.mxu0 0
      %1393 = vmatpush2.bf16.msra.mxu0 0
      %1394 = vmatprep.subr.bf16.mxu0 0
      %1395 = vmatpush2.bf16.msra.mxu0 0
      %1396 = vmatprep.mubr.bf16.mxu0 0
      %1397 = vmatmul.mubr.bf16.gmra.mxu0 %v1362
      %v1398 = vpop.f32.mrf.mxu0
      %v1399 = vadd.f32 0.0, %v1398
      %v1400 = vpop.f32.mrf.mxu0
      %v1401 = vpop.f32.mrf.mxu0
      %v1402 = vadd.f32 0.0, %v1401
      %v1403 = vpop.f32.mrf.mxu0
      %1404 = vdwg.mxu0
      %v1405 = vadd.f32 %v1213, %v1399
      %v1406 = vadd.f32 %v1214, %v1402
      %v1407 = vld [vmem:[%s2] sm:$0x1]
      %v1408 = vld [vmem:[%s3] sm:$0x1]
      %v1410 = vlaneseq
      %v1411 = vshrl.u32 %v1410, 7
      %v1412 = vsub.s32 0, %v1411
      %v1413 = vrot.slane %v1407, %v1412
      %v1415 = vmul.f32 %v1405, %v1413
      %v1416 = vmul.f32 %v1406, %v1413
      %v1418 = vlaneseq
      %v1419 = vshrl.u32 %v1418, 7
      %v1420 = vsub.s32 0, %v1419
      %v1421 = vrot.slane %v1408, %v1420
      %v1423 = vadd.f32 %v1415, %v1421
      %v1424 = vadd.f32 %v1416, %v1421
      %v1425 = vmul.f32 %v1423, 0.01
      %v1426 = vmul.f32 %v1424, 0.01
      %v1427 = vmax.f32 %v1423, %v1425
      %v1428 = vmax.f32 %v1424, %v1426
      %v1431 = vcombine.high %v1427, %v1427
      %v1432 = vcombine.high %v1428, %v1428
      %v1435 = vpack.c.bf16 %v1427, %v1427
      %v1436 = vpack.c.bf16 %v1431, %v1431
      %v1437 = vpack.c.bf16 %v1428, %v1428
      %v1438 = vpack.c.bf16 %v1432, %v1432
      %vm1439 = vcmask 517120
      %1440 = vst.msk [vmem:[%s197] sm:$0x3] %vm1439, %v1435
      %1441 = vst.msk [vmem:[%s197 + $0x2] sm:$0x3] %vm1439, %v1436
      %1442 = vst.msk [vmem:[%s197 + $0x4] sm:$0x3] %vm1439, %v1437
      %1443 = vst.msk [vmem:[%s197 + $0x6] sm:$0x3] %vm1439, %v1438
      %p1444 = scmp.lt.s32.totalorder %s15, 1
      %s1445 = scalar_select %p1444, %s15, 1
      %s1446 = smul.addr %s1445, 4
      %s1447 = smul.addr %s1446, 2
      %s1448 = scalar_lea.vmem %s4, %s1447
      // Predicated region
      $region37: #{font_classifier_forward.7} parent=35 // pred_check
        %p1449 = pneg %p122
      $region38: #{font_classifier_forward.7} parent=35 // pred_check_branch
        %1451 = sbr.rel (%p1449) target = $region40
      $region39: #{font_classifier_forward.7} parent=35 // pred_region
        _
      $region40: #{font_classifier_forward.7} parent=35 // pred_fallthru
        _
    $region36: #{font_classifier_forward.7} parent=5 // pred_fallthru
      _
    %p1452 = scmp.le.s32.totalorder 2, %s10
    // Predicated region
    $region41: #{font_classifier_forward.7} parent=5 // pred_check
      %p1453 = pneg %p1452
    $region42: #{font_classifier_forward.7} parent=5 // pred_check_branch
      %1455 = sbr.rel (%p1453) target = $region44
    $region43: #{font_classifier_forward.7} parent=5 // pred_region
      %s1456 = ssub.s32 %s10, 2
      // Predicated region
      $region45: #{font_classifier_forward.7} parent=43 // pred_check
        %p1457 = pneg %p128
      $region46: #{font_classifier_forward.7} parent=43 // pred_check_branch
        %1459 = sbr.rel (%p1457) target = $region48
      $region47: #{font_classifier_forward.7} parent=43 // pred_region
        %p1460 = scmp.lt.s32.totalorder %s16, 1
        %s1461 = scalar_select %p1460, %s16, 1
        %s1462 = smul.addr %s1461, 4
        %s1463 = smul.addr %s1462, 2
        %s1464 = scalar_lea.vmem %s4, %s1463
      $region48: #{font_classifier_forward.7} parent=43 // pred_fallthru
        _
    $region44: #{font_classifier_forward.7} parent=5 // pred_fallthru
      _
  $region6: #{font_classifier_forward.7} parent=0 // loop_footer
    %s14 = sadd.s32 1, %s10
  $region7: #{font_classifier_forward.7} parent=0 // loop_footer_branch
    %9 = sbr.rel target = $region3
  $region8: #{font_classifier_forward.7} parent=0 // loop_exit
    _

// kernel: font_classifier_forward.5
$region0: #{font_classifier_forward.5}
  #allocation0 [shape = 'u32[]', space=smem, size = 0x4, offset = 0x4, fixed_abs, tag = 'smem constant byte address 0x4 - core index']
  #allocation1 [shape = 'u32[144,128]{1,0:T(1,128)}', space=vmem, size = 0x12000, scoped, tag = 'internal scratch']
  %s0 = inlined_call_operand.vmem [shape: bf16[2,18,18,4], index: 0, kind: input, shape index: {}]
  %s1 = inlined_call_operand.vmem [shape: bf16[9,4,32], index: 1, kind: input, shape index: {}]
  %s2 = inlined_call_operand.vmem [shape: f32[1,32], index: 2, kind: input, shape index: {}]
  %s3 = inlined_call_operand.hbm [shape: f32[1,32], index: 3, kind: input, shape index: {}]
  %s4 = inlined_call_operand.vmem [shape: bf16[2,16,16,32], index: 4, kind: output, shape index: {}]
  %s5 = sld [smem:[#allocation0]]
  $region53: #{font_classifier_forward.5} parent=0
    _
  %s7 = ssub.s32 1, %s5
  %s8 = scalar_select 0, %s7, %s5
  $region1: #{font_classifier_forward.5} parent=0
    #allocation2 [shape = 'u8[512]{0}', space=vmem, size = 0x400, scoped, tag = 'input window, operand 3, single buffered']
    #allocation3 [shape = 's32[2]{0}', space=sflag, size = 0x8, scoped, tag = 'scoped memory for font_classifier_forward.5']
    %9 = vsyncpa [#allocation3], 0
    loop: start=0, step=1, limit=4
    $region2: #{font_classifier_forward.5} parent=1 // loop_pre_header
      _
    $region3: #{font_classifier_forward.5} parent=1 // loop_header
      %s11 = sphi 0, %s15
      %p12 = scmp.ge.s32.totalorder %s11, 4
      %s21 = sphi 0, %s23
      %s24 = sphi 0, %s21
      %s25 = sphi 0, %s24
      %s41 = sphi 0, %s25
      %s45 = sphi 0, %s45
      %s47 = sphi 0, %s45
      %s48 = sphi 0, %s47
      %s62 = sphi 0, %s48
      %s66 = sphi 0, %s66
      %s68 = sphi 0, %s66
      %s69 = sphi 0, %s68
      %s83 = sphi 0, %s69
      %s87 = sphi 0, %s87
      %s89 = sphi 0, %s87
      %s90 = sphi 0, %s89
      %s104 = sphi 0, %s90
      %s110 = sphi 0, %s112
      %s113 = sphi 0, %s110
      %s114 = sphi 0, %s113
      %s130 = sphi 0, %s114
    $region4: #{font_classifier_forward.5} parent=1 // loop_header_branch
      %14 = sbr.rel (%p12) target = $region8
    $region5: #{font_classifier_forward.5} parent=1 // loop_body
      %s16 = ssub.s32 %s11, 1
      %s17 = ssub.s32 %s11, 2
      %s18 = sadd.s32 %s11, 1
      %s19 = ssub.s32 %s11, %s18
      %p20 = scmp.eq.s32.totalorder %s19, 0
      %s22 = sadd.s32 %s21, 1
      %s23 = scalar_select %p20, %s21, %s22
      %p26 = pneg %p20
      %p27 = scmp.eq.s32.totalorder %s11, 1
      %p28 = por %p26, %p27
      %p29 = scmp.ne.s32.totalorder %s21, %s24
      %p30 = scmp.eq.s32.totalorder %s11, 0
      %p31 = por %p29, %p30
      %p32 = scmp.ne.s32.totalorder %s21, %s24
      %p33 = scmp.eq.s32.totalorder %s16, 1
      %p34 = por %p32, %p33
      %p35 = scmp.ne.s32.totalorder %s24, %s25
      %p36 = scmp.eq.s32.totalorder %s16, 0
      %p37 = por %p35, %p36
      %p38 = scmp.ne.s32.totalorder %s24, %s25
      %p39 = scmp.eq.s32.totalorder %s17, 1
      %p40 = por %p38, %p39
      %p42 = scmp.ne.s32.totalorder %s25, %s41
      %p43 = scmp.eq.s32.totalorder %s17, 0
      %p44 = por %p42, %p43
      %s46 = sadd.s32 %s45, 1
      %p49 = scmp.eq.s32.totalorder %s11, 1
      %p50 = scmp.ne.s32.totalorder %s45, %s47
      %p51 = scmp.eq.s32.totalorder %s11, 0
      %p52 = por %p50, %p51
      %p53 = scmp.ne.s32.totalorder %s45, %s47
      %p54 = scmp.eq.s32.totalorder %s16, 1
      %p55 = por %p53, %p54
      %p56 = scmp.ne.s32.totalorder %s47, %s48
      %p57 = scmp.eq.s32.totalorder %s16, 0
      %p58 = por %p56, %p57
      %p59 = scmp.ne.s32.totalorder %s47, %s48
      %p60 = scmp.eq.s32.totalorder %s17, 1
      %p61 = por %p59, %p60
      %p63 = scmp.ne.s32.totalorder %s48, %s62
      %p64 = scmp.eq.s32.totalorder %s17, 0
      %p65 = por %p63, %p64
      %s67 = sadd.s32 %s66, 1
      %p70 = scmp.eq.s32.totalorder %s11, 1
      %p71 = scmp.ne.s32.totalorder %s66, %s68
      %p72 = scmp.eq.s32.totalorder %s11, 0
      %p73 = por %p71, %p72
      %p74 = scmp.ne.s32.totalorder %s66, %s68
      %p75 = scmp.eq.s32.totalorder %s16, 1
      %p76 = por %p74, %p75
      %p77 = scmp.ne.s32.totalorder %s68, %s69
      %p78 = scmp.eq.s32.totalorder %s16, 0
      %p79 = por %p77, %p78
      %p80 = scmp.ne.s32.totalorder %s68, %s69
      %p81 = scmp.eq.s32.totalorder %s17, 1
      %p82 = por %p80, %p81
      %p84 = scmp.ne.s32.totalorder %s69, %s83
      %p85 = scmp.eq.s32.totalorder %s17, 0
      %p86 = por %p84, %p85
      %s88 = sadd.s32 %s87, 1
      %p91 = scmp.eq.s32.totalorder %s11, 1
      %p92 = scmp.ne.s32.totalorder %s87, %s89
      %p93 = scmp.eq.s32.totalorder %s11, 0
      %p94 = por %p92, %p93
      %p95 = scmp.ne.s32.totalorder %s87, %s89
      %p96 = scmp.eq.s32.totalorder %s16, 1
      %p97 = por %p95, %p96
      %p98 = scmp.ne.s32.totalorder %s89, %s90
      %p99 = scmp.eq.s32.totalorder %s16, 0
      %p100 = por %p98, %p99
      %p101 = scmp.ne.s32.totalorder %s89, %s90
      %p102 = scmp.eq.s32.totalorder %s17, 1
      %p103 = por %p101, %p102
      %p105 = scmp.ne.s32.totalorder %s90, %s104
      %p106 = scmp.eq.s32.totalorder %s17, 0
      %p107 = por %p105, %p106
      %s108 = ssub.s32 %s11, %s18
      %p109 = scmp.eq.s32.totalorder %s108, 0
      %s111 = sadd.s32 %s110, 1
      %s112 = scalar_select %p109, %s110, %s111
      %p115 = pneg %p109
      %p116 = scmp.eq.s32.totalorder %s11, 1
      %p117 = por %p115, %p116
      %p118 = scmp.ne.s32.totalorder %s110, %s113
      %p119 = scmp.eq.s32.totalorder %s11, 0
      %p120 = por %p118, %p119
      %p121 = scmp.ne.s32.totalorder %s110, %s113
      %p122 = scmp.eq.s32.totalorder %s16, 1
      %p123 = por %p121, %p122
      %p124 = scmp.ne.s32.totalorder %s113, %s114
      %p125 = scmp.eq.s32.totalorder %s16, 0
      %p126 = por %p124, %p125
      %p127 = scmp.ne.s32.totalorder %s113, %s114
      %p128 = scmp.eq.s32.totalorder %s17, 1
      %p129 = por %p127, %p128
      %p131 = scmp.ne.s32.totalorder %s114, %s130
      %p132 = scmp.eq.s32.totalorder %s17, 0
      %p133 = por %p131, %p132
      %p134 = scmp.le.s32.totalorder 1, %s11
      %p135 = scmp.lt.s32.totalorder %s11, 3
      %p136 = pnand %p134, %p135
      %p137 = pneg %p136
      // Predicated region
      $region9: #{font_classifier_forward.5} parent=5 // pred_check
        _
      $region10: #{font_classifier_forward.5} parent=5 // pred_check_branch
        %139 = sbr.rel (%p136) target = $region12
      $region11: #{font_classifier_forward.5} parent=5 // pred_region
        %s140 = ssub.s32 %s11, 1
        // Predicated region
        $region13: #{font_classifier_forward.5} parent=11 // pred_check
          %p141 = pneg %p58
        $region14: #{font_classifier_forward.5} parent=11 // pred_check_branch
          %143 = sbr.rel (%p141) target = $region16
        $region15: #{font_classifier_forward.5} parent=11 // pred_region
          _
        $region16: #{font_classifier_forward.5} parent=11 // pred_fallthru
          _
        // Predicated region
        $region17: #{font_classifier_forward.5} parent=11 // pred_check
          %p144 = pneg %p79
        $region18: #{font_classifier_forward.5} parent=11 // pred_check_branch
          %146 = sbr.rel (%p144) target = $region20
        $region19: #{font_classifier_forward.5} parent=11 // pred_region
          _
        $region20: #{font_classifier_forward.5} parent=11 // pred_fallthru
          _
        // Predicated region
        $region21: #{font_classifier_forward.5} parent=11 // pred_check
          %p147 = pneg %p100
        $region22: #{font_classifier_forward.5} parent=11 // pred_check_branch
          %149 = sbr.rel (%p147) target = $region24
        $region23: #{font_classifier_forward.5} parent=11 // pred_region
          %s151 = ssub.s32 16, 16
          %152 = vsyncadd [#allocation3], %s151
          %s154 = sshll.u32 [#allocation2], 4
          %s155 = int_to_ptr.vmem [resolvable:$true] %s154
          %157 = dma.hbm_to_vmem [thread:$0]  %s3, 16, %s155, [#allocation3]
        $region24: #{font_classifier_forward.5} parent=11 // pred_fallthru
          _
      $region12: #{font_classifier_forward.5} parent=5 // pred_fallthru
        _
      %p158 = scmp.lt.s32.totalorder %s11, 2
      // Predicated region
      $region25: #{font_classifier_forward.5} parent=5 // pred_check
        %p159 = pneg %p158
      $region26: #{font_classifier_forward.5} parent=5 // pred_check_branch
        %161 = sbr.rel (%p159) target = $region28
      $region27: #{font_classifier_forward.5} parent=5 // pred_region
        // Predicated region
        $region29: #{font_classifier_forward.5} parent=27 // pred_check
          %p162 = pneg %p31
        $region30: #{font_classifier_forward.5} parent=27 // pred_check_branch
          %164 = sbr.rel (%p162) target = $region32
        $region31: #{font_classifier_forward.5} parent=27 // pred_region
          %p165 = scmp.lt.s32.totalorder %s11, 1
          %s166 = scalar_select %p165, %s11, 1
          %s167 = smul.addr %s166, 54
          %s168 = smul.addr %s167, 4
          %s169 = scalar_lea.vmem %s0, %s168
        $region32: #{font_classifier_forward.5} parent=27 // pred_fallthru
          _
      $region28: #{font_classifier_forward.5} parent=5 // pred_fallthru
        _
      %p170 = scmp.le.s32.totalorder 1, %s11
      %p171 = scmp.lt.s32.totalorder %s11, 3
      %p172 = pnand %p170, %p171
      %p173 = pneg %p172
      // Predicated region
      $region33: #{font_classifier_forward.5} parent=5 // pred_check
        _
      $region34: #{font_classifier_forward.5} parent=5 // pred_check_branch
        %175 = sbr.rel (%p172) target = $region36
      $region35: #{font_classifier_forward.5} parent=5 // pred_region
        %s176 = ssub.s32 %s11, 1
        // Predicated region
        $region37: #{font_classifier_forward.5} parent=35 // pred_check
          %p177 = pneg %p100
        $region38: #{font_classifier_forward.5} parent=35 // pred_check_branch
          %179 = sbr.rel (%p177) target = $region40
        $region39: #{font_classifier_forward.5} parent=35 // pred_region
          %180 = dma.done [#allocation3], 16
        $region40: #{font_classifier_forward.5} parent=35 // pred_fallthru
          _
        %p181 = scmp.lt.s32.totalorder %s16, 1
        %s182 = scalar_select %p181, %s16, 1
        %s183 = smul.addr %s182, 54
        %s184 = smul.addr %s183, 4
        %s185 = scalar_lea.vmem %s0, %s184
        %p186 = pneg %p37
        %p187 = pneg %p34
        %p188 = pneg %p58
        %p189 = pneg %p55
        %p190 = pneg %p79
        %p191 = pneg %p76
        %p192 = pneg %p100
        %p193 = pneg %p97
        %p194 = pneg %p126
        %p195 = pneg %p123
        %p196 = scmp.lt.s32.totalorder %s16, 1
        %s197 = scalar_select %p196, %s16, 1
        %s198 = smul.addr %s197, 32
        %s199 = smul.addr %s198, 4
        %s200 = scalar_lea.vmem %s4, %s199
        %p201 = scmp.lt.s32.totalorder %s16, 1
        %s202 = scalar_select %p201, %s16, 1
        %s203 = smul.addr %s202, 54
        %s204 = smul.addr %s203, 4
        %s205 = scalar_lea.vmem %s0, %s204
        %p206 = scmp.lt.s32.totalorder %s16, 1
        %s207 = scalar_select %p206, %s16, 1
        %s208 = smul.addr %s207, 32
        %s209 = smul.addr %s208, 4
        %s210 = scalar_lea.vmem %s4, %s209
        %v212 = vld [vmem:[%s205] sm:$0xf]
        %v213 = vld [vmem:[%s205 + $0x4] sm:$0xf]
        %v214 = vld [vmem:[%s205 + $0xc] sm:$0xf]
        %v215 = vld [vmem:[%s205 + $0x10] sm:$0xf]
        %v216 = vld [vmem:[%s205 + $0x18] sm:$0xf]
        %v217 = vld [vmem:[%s205 + $0x1c] sm:$0xf]
        %v218 = vld [vmem:[%s205 + $0x24] sm:$0xf]
        %v219 = vld [vmem:[%s205 + $0x28] sm:$0xf]
        %v220 = vld [vmem:[%s205 + $0x30] sm:$0xf]
        %v221 = vld [vmem:[%s205 + $0x34] sm:$0xf]
        %v222 = vld [vmem:[%s205 + $0x3c] sm:$0xf]
        %v223 = vld [vmem:[%s205 + $0x40] sm:$0xf]
        %v224 = vld [vmem:[%s205 + $0x48] sm:$0xf]
        %v225 = vld [vmem:[%s205 + $0x4c] sm:$0xf]
        %v226 = vld [vmem:[%s205 + $0x54] sm:$0xf]
        %v227 = vld [vmem:[%s205 + $0x58] sm:$0xf]
        %v228 = vld [vmem:[%s205 + $0x60] sm:$0xf]
        %v229 = vld [vmem:[%s205 + $0x64] sm:$0xf]
        %v230 = vld [vmem:[%s205 + $0x6c] sm:$0xf]
        %v231 = vld [vmem:[%s205 + $0x70] sm:$0xf]
        %v232 = vld [vmem:[%s205 + $0x78] sm:$0xf]
        %v233 = vld [vmem:[%s205 + $0x7c] sm:$0xf]
        %v234 = vld [vmem:[%s205 + $0x84] sm:$0xf]
        %v235 = vld [vmem:[%s205 + $0x88] sm:$0xf]
        %v236 = vld [vmem:[%s205 + $0x90] sm:$0xf]
        %v237 = vld [vmem:[%s205 + $0x94] sm:$0xf]
        %v238 = vld [vmem:[%s205 + $0x9c] sm:$0xf]
        %v239 = vld [vmem:[%s205 + $0xa0] sm:$0xf]
        %v240 = vld [vmem:[%s205 + $0xa8] sm:$0xf]
        %v241 = vld [vmem:[%s205 + $0xac] sm:$0xf]
        %v242 = vld [vmem:[%s205 + $0xb4] sm:$0xf]
        %v243 = vld [vmem:[%s205 + $0xb8] sm:$0xf]
        %v244 = vld [vmem:[%s1] sm:$0x3]
        %v245 = vld [vmem:[%s205 + $0x8] sm:$0x1]
        %v246 = vld [vmem:[%s205 + $0x14] sm:$0x1]
        %v247 = vld [vmem:[%s205 + $0x20] sm:$0x1]
        %v248 = vld [vmem:[%s205 + $0x2c] sm:$0x1]
        %v249 = vld [vmem:[%s205 + $0x38] sm:$0x1]
        %v250 = vld [vmem:[%s205 + $0x44] sm:$0x1]
        %v251 = vld [vmem:[%s205 + $0x50] sm:$0x1]
        %v252 = vld [vmem:[%s205 + $0x5c] sm:$0x1]
        %v253 = vld [vmem:[%s205 + $0x68] sm:$0x1]
        %v254 = vld [vmem:[%s205 + $0x74] sm:$0x1]
        %v255 = vld [vmem:[%s205 + $0x80] sm:$0x1]
        %v256 = vld [vmem:[%s205 + $0x8c] sm:$0x1]
        %v257 = vld [vmem:[%s205 + $0x98] sm:$0x1]
        %v258 = vld [vmem:[%s205 + $0xa4] sm:$0x1]
        %v259 = vld [vmem:[%s205 + $0xb0] sm:$0x1]
        %v260 = vld [vmem:[%s205 + $0xbc] sm:$0x1]
        %vm261 = vsmask.f32 3328
        %vm262 = vsmask.f32 7440
        %vm263 = vmor %vm261, %vm262
        %v265 = vshrl.u32 %v212, 16
        %v267 = vrot.slane %v265, 4
        %v268 = vshll.u32 %v212, 16
        %v270 = vrot.slane %v268, 5
        %v271 = vor.u32 %v267, %v270
        %v272 = vrot.slane %v271, 4
        %v274 = vshll.u32 %v213, 16
        %v276 = vrot.slane %v274, 5
        %v277 = vsel %vm263, %v272, %v276
        %v278 = vshrl.u32 %v213, 16
        %v280 = vrot.slane %v278, 4
        %v281 = vor.u32 %v280, %v276
        %v282 = vrot.slane %v281, 4
        %v284 = vshll.u32 %v245, 16
        %v286 = vrot.slane %v284, 5
        %v287 = vsel %vm263, %v282, %v286
        %v289 = vshrl.u32 %v214, 16
        %v291 = vrot.slane %v289, 4
        %v292 = vshll.u32 %v214, 16
        %v294 = vrot.slane %v292, 5
        %v295 = vor.u32 %v291, %v294
        %v296 = vrot.slane %v295, 4
        %v298 = vshll.u32 %v215, 16
        %v300 = vrot.slane %v298, 5
        %v301 = vsel %vm263, %v296, %v300
        %v302 = vshrl.u32 %v215, 16
        %v304 = vrot.slane %v302, 4
        %v305 = vor.u32 %v304, %v300
        %v306 = vrot.slane %v305, 4
        %v308 = vshll.u32 %v246, 16
        %v310 = vrot.slane %v308, 5
        %v311 = vsel %vm263, %v306, %v310
        %v313 = vshrl.u32 %v216, 16
        %v315 = vrot.slane %v313, 4
        %v316 = vshll.u32 %v216, 16
        %v318 = vrot.slane %v316, 5
        %v319 = vor.u32 %v315, %v318
        %v320 = vrot.slane %v319, 4
        %v322 = vshll.u32 %v217, 16
        %v324 = vrot.slane %v322, 5
        %v325 = vsel %vm263, %v320, %v324
        %v326 = vshrl.u32 %v217, 16
        %v328 = vrot.slane %v326, 4
        %v329 = vor.u32 %v328, %v324
        %v330 = vrot.slane %v329, 4
        %v332 = vshll.u32 %v247, 16
        %v334 = vrot.slane %v332, 5
        %v335 = vsel %vm263, %v330, %v334
        %v337 = vshrl.u32 %v218, 16
        %v339 = vrot.slane %v337, 4
        %v340 = vshll.u32 %v218, 16
        %v342 = vrot.slane %v340, 5
        %v343 = vor.u32 %v339, %v342
        %v344 = vrot.slane %v343, 4
        %v346 = vshll.u32 %v219, 16
        %v348 = vrot.slane %v346, 5
        %v349 = vsel %vm263, %v344, %v348
        %v350 = vshrl.u32 %v219, 16
        %v352 = vrot.slane %v350, 4
        %v353 = vor.u32 %v352, %v348
        %v354 = vrot.slane %v353, 4
        %v356 = vshll.u32 %v248, 16
        %v358 = vrot.slane %v356, 5
        %v359 = vsel %vm263, %v354, %v358
        %v361 = vshrl.u32 %v220, 16
        %v363 = vrot.slane %v361, 4
        %v364 = vshll.u32 %v220, 16
        %v366 = vrot.slane %v364, 5
        %v367 = vor.u32 %v363, %v366
        %v368 = vrot.slane %v367, 4
        %v370 = vshll.u32 %v221, 16
        %v372 = vrot.slane %v370, 5
        %v373 = vsel %vm263, %v368, %v372
        %v374 = vshrl.u32 %v221, 16
        %v376 = vrot.slane %v374, 4
        %v377 = vor.u32 %v376, %v372
        %v378 = vrot.slane %v377, 4
        %v380 = vshll.u32 %v249, 16
        %v382 = vrot.slane %v380, 5
        %v383 = vsel %vm263, %v378, %v382
        %v385 = vshrl.u32 %v222, 16
        %v387 = vrot.slane %v385, 4
        %v388 = vshll.u32 %v222, 16
        %v390 = vrot.slane %v388, 5
        %v391 = vor.u32 %v387, %v390
        %v392 = vrot.slane %v391, 4
        %v394 = vshll.u32 %v223, 16
        %v396 = vrot.slane %v394, 5
        %v397 = vsel %vm263, %v392, %v396
        %v398 = vshrl.u32 %v223, 16
        %v400 = vrot.slane %v398, 4
        %v401 = vor.u32 %v400, %v396
        %v402 = vrot.slane %v401, 4
        %v404 = vshll.u32 %v250, 16
        %v406 = vrot.slane %v404, 5
        %v407 = vsel %vm263, %v402, %v406
        %v409 = vshrl.u32 %v224, 16
        %v411 = vrot.slane %v409, 4
        %v412 = vshll.u32 %v224, 16
        %v414 = vrot.slane %v412, 5
        %v415 = vor.u32 %v411, %v414
        %v416 = vrot.slane %v415, 4
        %v418 = vshll.u32 %v225, 16
        %v420 = vrot.slane %v418, 5
        %v421 = vsel %vm263, %v416, %v420
        %v422 = vshrl.u32 %v225, 16
        %v424 = vrot.slane %v422, 4
        %v425 = vor.u32 %v424, %v420
        %v426 = vrot.slane %v425, 4
        %v428 = vshll.u32 %v251, 16
        %v430 = vrot.slane %v428, 5
        %v431 = vsel %vm263, %v426, %v430
        %v433 = vshrl.u32 %v226, 16
        %v435 = vrot.slane %v433, 4
        %v436 = vshll.u32 %v226, 16
        %v438 = vrot.slane %v436, 5
        %v439 = vor.u32 %v435, %v438
        %v440 = vrot.slane %v439, 4
        %v442 = vshll.u32 %v227, 16
        %v444 = vrot.slane %v442, 5
        %v445 = vsel %vm263, %v440, %v444
        %v446 = vshrl.u32 %v227, 16
        %v448 = vrot.slane %v446, 4
        %v449 = vor.u32 %v448, %v444
        %v450 = vrot.slane %v449, 4
        %v452 = vshll.u32 %v252, 16
        %v454 = vrot.slane %v452, 5
        %v455 = vsel %vm263, %v450, %v454
        %v457 = vshrl.u32 %v228, 16
        %v459 = vrot.slane %v457, 4
        %v460 = vshll.u32 %v228, 16
        %v462 = vrot.slane %v460, 5
        %v463 = vor.u32 %v459, %v462
        %v464 = vrot.slane %v463, 4
        %v466 = vshll.u32 %v229, 16
        %v468 = vrot.slane %v466, 5
        %v469 = vsel %vm263, %v464, %v468
        %v470 = vshrl.u32 %v229, 16
        %v472 = vrot.slane %v470, 4
        %v473 = vor.u32 %v472, %v468
        %v474 = vrot.slane %v473, 4
        %v476 = vshll.u32 %v253, 16
        %v478 = vrot.slane %v476, 5
        %v479 = vsel %vm263, %v474, %v478
        %v481 = vshrl.u32 %v230, 16
        %v483 = vrot.slane %v481, 4
        %v484 = vshll.u32 %v230, 16
        %v486 = vrot.slane %v484, 5
        %v487 = vor.u32 %v483, %v486
        %v488 = vrot.slane %v487, 4
        %v490 = vshll.u32 %v231, 16
        %v492 = vrot.slane %v490, 5
        %v493 = vsel %vm263, %v488, %v492
        %v494 = vshrl.u32 %v231, 16
        %v496 = vrot.slane %v494, 4
        %v497 = vor.u32 %v496, %v492
        %v498 = vrot.slane %v497, 4
        %v500 = vshll.u32 %v254, 16
        %v502 = vrot.slane %v500, 5
        %v503 = vsel %vm263, %v498, %v502
        %v505 = vshrl.u32 %v232, 16
        %v507 = vrot.slane %v505, 4
        %v508 = vshll.u32 %v232, 16
        %v510 = vrot.slane %v508, 5
        %v511 = vor.u32 %v507, %v510
        %v512 = vrot.slane %v511, 4
        %v514 = vshll.u32 %v233, 16
        %v516 = vrot.slane %v514, 5
        %v517 = vsel %vm263, %v512, %v516
        %v518 = vshrl.u32 %v233, 16
        %v520 = vrot.slane %v518, 4
        %v521 = vor.u32 %v520, %v516
        %v522 = vrot.slane %v521, 4
        %v524 = vshll.u32 %v255, 16
        %v526 = vrot.slane %v524, 5
        %v527 = vsel %vm263, %v522, %v526
        %v529 = vshrl.u32 %v234, 16
        %v531 = vrot.slane %v529, 4
        %v532 = vshll.u32 %v234, 16
        %v534 = vrot.slane %v532, 5
        %v535 = vor.u32 %v531, %v534
        %v536 = vrot.slane %v535, 4
        %v538 = vshll.u32 %v235, 16
        %v540 = vrot.slane %v538, 5
        %v541 = vsel %vm263, %v536, %v540
        %v542 = vshrl.u32 %v235, 16
        %v544 = vrot.slane %v542, 4
        %v545 = vor.u32 %v544, %v540
        %v546 = vrot.slane %v545, 4
        %v548 = vshll.u32 %v256, 16
        %v550 = vrot.slane %v548, 5
        %v551 = vsel %vm263, %v546, %v550
        %v553 = vshrl.u32 %v236, 16
        %v555 = vrot.slane %v553, 4
        %v556 = vshll.u32 %v236, 16
        %v558 = vrot.slane %v556, 5
        %v559 = vor.u32 %v555, %v558
        %v560 = vrot.slane %v559, 4
        %v562 = vshll.u32 %v237, 16
        %v564 = vrot.slane %v562, 5
        %v565 = vsel %vm263, %v560, %v564
        %v566 = vshrl.u32 %v237, 16
        %v568 = vrot.slane %v566, 4
        %v569 = vor.u32 %v568, %v564
        %v570 = vrot.slane %v569, 4
        %v572 = vshll.u32 %v257, 16
        %v574 = vrot.slane %v572, 5
        %v575 = vsel %vm263, %v570, %v574
        %v577 = vshrl.u32 %v238, 16
        %v579 = vrot.slane %v577, 4
        %v580 = vshll.u32 %v238, 16
        %v582 = vrot.slane %v580, 5
        %v583 = vor.u32 %v579, %v582
        %v584 = vrot.slane %v583, 4
        %v586 = vshll.u32 %v239, 16
        %v588 = vrot.slane %v586, 5
        %v589 = vsel %vm263, %v584, %v588
        %v590 = vshrl.u32 %v239, 16
        %v592 = vrot.slane %v590, 4
        %v593 = vor.u32 %v592, %v588
        %v594 = vrot.slane %v593, 4
        %v596 = vshll.u32 %v258, 16
        %v598 = vrot.slane %v596, 5
        %v599 = vsel %vm263, %v594, %v598
        %v601 = vshrl.u32 %v240, 16
        %v603 = vrot.slane %v601, 4
        %v604 = vshll.u32 %v240, 16
        %v606 = vrot.slane %v604, 5
        %v607 = vor.u32 %v603, %v606
        %v608 = vrot.slane %v607, 4
        %v610 = vshll.u32 %v241, 16
        %v612 = vrot.slane %v610, 5
        %v613 = vsel %vm263, %v608, %v612
        %v614 = vshrl.u32 %v241, 16
        %v616 = vrot.slane %v614, 4
        %v617 = vor.u32 %v616, %v612
        %v618 = vrot.slane %v617, 4
        %v620 = vshll.u32 %v259, 16
        %v622 = vrot.slane %v620, 5
        %v623 = vsel %vm263, %v618, %v622
        %v625 = vshrl.u32 %v242, 16
        %v627 = vrot.slane %v625, 4
        %v628 = vshll.u32 %v242, 16
        %v630 = vrot.slane %v628, 5
        %v631 = vor.u32 %v627, %v630
        %v632 = vrot.slane %v631, 4
        %v634 = vshll.u32 %v243, 16
        %v636 = vrot.slane %v634, 5
        %v637 = vsel %vm263, %v632, %v636
        %v638 = vshrl.u32 %v243, 16
        %v640 = vrot.slane %v638, 4
        %v641 = vor.u32 %v640, %v636
        %v642 = vrot.slane %v641, 4
        %v644 = vshll.u32 %v260, 16
        %v646 = vrot.slane %v644, 5
        %v647 = vsel %vm263, %v642, %v646
        %s648 = scalar_lea.vmem %s1, 2
        %v649 = vld [vmem:[%s648] sm:$0x3]
        %v650 = vunpack.c.l.b16 %v277
        %v651 = vunpack.c.l.b16 %v287
        %v652 = vunpack.c.l.b16 %v301
        %v653 = vunpack.c.l.b16 %v311
        %v654 = vunpack.c.l.b16 %v325
        %v655 = vunpack.c.l.b16 %v335
        %v656 = vunpack.c.l.b16 %v349
        %v657 = vunpack.c.l.b16 %v359
        %v658 = vunpack.c.l.b16 %v373
        %v659 = vunpack.c.l.b16 %v383
        %v660 = vunpack.c.l.b16 %v397
        %v661 = vunpack.c.l.b16 %v407
        %v662 = vunpack.c.l.b16 %v421
        %v663 = vunpack.c.l.b16 %v431
        %v664 = vunpack.c.l.b16 %v445
        %v665 = vunpack.c.l.b16 %v455
        %v666 = vunpack.c.l.b16 %v469
        %v667 = vunpack.c.l.b16 %v479
        %v668 = vunpack.c.l.b16 %v493
        %v669 = vunpack.c.l.b16 %v503
        %v670 = vunpack.c.l.b16 %v517
        %v671 = vunpack.c.l.b16 %v527
        %v672 = vunpack.c.l.b16 %v541
        %v673 = vunpack.c.l.b16 %v551
        %v674 = vunpack.c.l.b16 %v565
        %v675 = vunpack.c.l.b16 %v575
        %v676 = vunpack.c.l.b16 %v589
        %v677 = vunpack.c.l.b16 %v599
        %v678 = vunpack.c.l.b16 %v613
        %v679 = vunpack.c.l.b16 %v623
        %v680 = vunpack.c.l.b16 %v637
        %v681 = vunpack.c.l.b16 %v647
        %v682 = vpack.c.b16 %v651, %v650
        %v683 = vpack.c.b16 %v653, %v652
        %v684 = vpack.c.b16 %v655, %v654
        %v685 = vpack.c.b16 %v657, %v656
        %v686 = vpack.c.b16 %v659, %v658
        %v687 = vpack.c.b16 %v661, %v660
        %v688 = vpack.c.b16 %v663, %v662
        %v689 = vpack.c.b16 %v665, %v664
        %v690 = vpack.c.b16 %v667, %v666
        %v691 = vpack.c.b16 %v669, %v668
        %v692 = vpack.c.b16 %v671, %v670
        %v693 = vpack.c.b16 %v673, %v672
        %v694 = vpack.c.b16 %v675, %v674
        %v695 = vpack.c.b16 %v677, %v676
        %v696 = vpack.c.b16 %v679, %v678
        %v697 = vpack.c.b16 %v681, %v680
        %vm698 = vcmask 31744
        %v700 = vsel %vm698, %v682, 0
        %v703 = vsel %vm698, %v683, 0
        %v706 = vsel %vm698, %v684, 0
        %v709 = vsel %vm698, %v685, 0
        %v712 = vsel %vm698, %v686, 0
        %v715 = vsel %vm698, %v687, 0
        %v718 = vsel %vm698, %v688, 0
        %v721 = vsel %vm698, %v689, 0
        %v724 = vsel %vm698, %v690, 0
        %v727 = vsel %vm698, %v691, 0
        %v730 = vsel %vm698, %v692, 0
        %v733 = vsel %vm698, %v693, 0
        %v736 = vsel %vm698, %v694, 0
        %v739 = vsel %vm698, %v695, 0
        %v742 = vsel %vm698, %v696, 0
        %v745 = vsel %vm698, %v697, 0
        %vm747 = vcmask 1041408
        %v749 = vsel %vm747, %v649, 0
        %751 = vmatprep.subr.bf16.mxu0 0
        %752 = vmatpush1.bf16.msra.mxu0 0
        %753 = vmatprep.subr.bf16.mxu0 0
        %754 = vmatpush1.bf16.msra.mxu0 0
        %755 = vmatprep.subr.bf16.mxu0 0
        %756 = vmatpush1.bf16.msra.mxu0 0
        %757 = vmatprep.subr.bf16.mxu0 0
        %758 = vmatpush1.bf16.msra.mxu0 0
        %759 = vmatprep.subr.bf16.mxu0 0
        %760 = vmatpush1.bf16.msra.mxu0 0
        %761 = vmatprep.subr.bf16.mxu0 0
        %762 = vmatpush1.bf16.msra.mxu0 0
        %763 = vmatprep.subr.bf16.mxu0 0
        %764 = vmatpush1.bf16.msra.mxu0 0
        %765 = vmatprep.subr.bf16.mxu0 0
        %766 = vmatpush1.bf16.msra.mxu0 %v749
        %767 = vmatprep.subr.bf16.mxu0 0
        %768 = vmatpush2.bf16.msra.mxu0 0
        %769 = vmatprep.subr.bf16.mxu0 0
        %770 = vmatpush2.bf16.msra.mxu0 0
        %771 = vmatprep.subr.bf16.mxu0 0
        %772 = vmatpush2.bf16.msra.mxu0 0
        %773 = vmatprep.subr.bf16.mxu0 0
        %774 = vmatpush2.bf16.msra.mxu0 0
        %775 = vmatprep.subr.bf16.mxu0 0
        %776 = vmatpush2.bf16.msra.mxu0 0
        %777 = vmatprep.subr.bf16.mxu0 0
        %778 = vmatpush2.bf16.msra.mxu0 0
        %779 = vmatprep.subr.bf16.mxu0 0
        %780 = vmatpush2.bf16.msra.mxu0 0
        %781 = vmatprep.subr.bf16.mxu0 0
        %782 = vmatpush2.bf16.msra.mxu0 0
        %783 = vmatprep.mubr.bf16.mxu0 0
        %784 = vmatmul.mubr.bf16.gmra.mxu0 %v700
        %v785 = vpop.f32.mrf.mxu0
        %v786 = vadd.f32 0.0, %v785
        %v787 = vpop.f32.mrf.mxu0
        %v788 = vpop.f32.mrf.mxu0
        %v789 = vadd.f32 0.0, %v788
        %v790 = vpop.f32.mrf.mxu0
        %791 = vmatprep.mubr.bf16.mxu0 0
        %792 = vmatmul.mubr.bf16.gmra.mxu0 %v703
        %v793 = vpop.f32.mrf.mxu0
        %v794 = vadd.f32 0.0, %v793
        %v795 = vpop.f32.mrf.mxu0
        %v796 = vpop.f32.mrf.mxu0
        %v797 = vadd.f32 0.0, %v796
        %v798 = vpop.f32.mrf.mxu0
        %799 = vmatprep.mubr.bf16.mxu0 0
        %800 = vmatmul.mubr.bf16.gmra.mxu0 %v706
        %v801 = vpop.f32.mrf.mxu0
        %v802 = vadd.f32 0.0, %v801
        %v803 = vpop.f32.mrf.mxu0
        %v804 = vpop.f32.mrf.mxu0
        %v805 = vadd.f32 0.0, %v804
        %v806 = vpop.f32.mrf.mxu0
        %807 = vmatprep.mubr.bf16.mxu0 0
        %808 = vmatmul.mubr.bf16.gmra.mxu0 %v709
        %v809 = vpop.f32.mrf.mxu0
        %v810 = vadd.f32 0.0, %v809
        %v811 = vpop.f32.mrf.mxu0
        %v812 = vpop.f32.mrf.mxu0
        %v813 = vadd.f32 0.0, %v812
        %v814 = vpop.f32.mrf.mxu0
        %815 = vmatprep.mubr.bf16.mxu0 0
        %816 = vmatmul.mubr.bf16.gmra.mxu0 %v712
        %v817 = vpop.f32.mrf.mxu0
        %v818 = vadd.f32 0.0, %v817
        %v819 = vpop.f32.mrf.mxu0
        %v820 = vpop.f32.mrf.mxu0
        %v821 = vadd.f32 0.0, %v820
        %v822 = vpop.f32.mrf.mxu0
        %823 = vmatprep.mubr.bf16.mxu0 0
        %824 = vmatmul.mubr.bf16.gmra.mxu0 %v715
        %v825 = vpop.f32.mrf.mxu0
        %v826 = vadd.f32 0.0, %v825
        %v827 = vpop.f32.mrf.mxu0
        %v828 = vpop.f32.mrf.mxu0
        %v829 = vadd.f32 0.0, %v828
        %v830 = vpop.f32.mrf.mxu0
        %831 = vmatprep.mubr.bf16.mxu0 0
        %832 = vmatmul.mubr.bf16.gmra.mxu0 %v718
        %v833 = vpop.f32.mrf.mxu0
        %v834 = vadd.f32 0.0, %v833
        %v835 = vpop.f32.mrf.mxu0
        %v836 = vpop.f32.mrf.mxu0
        %v837 = vadd.f32 0.0, %v836
        %v838 = vpop.f32.mrf.mxu0
        %839 = vmatprep.mubr.bf16.mxu0 0
        %840 = vmatmul.mubr.bf16.gmra.mxu0 %v721
        %v841 = vpop.f32.mrf.mxu0
        %v842 = vadd.f32 0.0, %v841
        %v843 = vpop.f32.mrf.mxu0
        %v844 = vpop.f32.mrf.mxu0
        %v845 = vadd.f32 0.0, %v844
        %v846 = vpop.f32.mrf.mxu0
        %847 = vmatprep.mubr.bf16.mxu0 0
        %848 = vmatmul.mubr.bf16.gmra.mxu0 %v724
        %v849 = vpop.f32.mrf.mxu0
        %v850 = vadd.f32 0.0, %v849
        %v851 = vpop.f32.mrf.mxu0
        %v852 = vpop.f32.mrf.mxu0
        %v853 = vadd.f32 0.0, %v852
        %v854 = vpop.f32.mrf.mxu0
        %855 = vmatprep.mubr.bf16.mxu0 0
        %856 = vmatmul.mubr.bf16.gmra.mxu0 %v727
        %v857 = vpop.f32.mrf.mxu0
        %v858 = vadd.f32 0.0, %v857
        %v859 = vpop.f32.mrf.mxu0
        %v860 = vpop.f32.mrf.mxu0
        %v861 = vadd.f32 0.0, %v860
        %v862 = vpop.f32.mrf.mxu0
        %863 = vmatprep.mubr.bf16.mxu0 0
        %864 = vmatmul.mubr.bf16.gmra.mxu0 %v730
        %v865 = vpop.f32.mrf.mxu0
        %v866 = vadd.f32 0.0, %v865
        %v867 = vpop.f32.mrf.mxu0
        %v868 = vpop.f32.mrf.mxu0
        %v869 = vadd.f32 0.0, %v868
        %v870 = vpop.f32.mrf.mxu0
        %871 = vmatprep.mubr.bf16.mxu0 0
        %872 = vmatmul.mubr.bf16.gmra.mxu0 %v733
        %v873 = vpop.f32.mrf.mxu0
        %v874 = vadd.f32 0.0, %v873
        %v875 = vpop.f32.mrf.mxu0
        %v876 = vpop.f32.mrf.mxu0
        %v877 = vadd.f32 0.0, %v876
        %v878 = vpop.f32.mrf.mxu0
        %879 = vmatprep.mubr.bf16.mxu0 0
        %880 = vmatmul.mubr.bf16.gmra.mxu0 %v736
        %v881 = vpop.f32.mrf.mxu0
        %v882 = vadd.f32 0.0, %v881
        %v883 = vpop.f32.mrf.mxu0
        %v884 = vpop.f32.mrf.mxu0
        %v885 = vadd.f32 0.0, %v884
        %v886 = vpop.f32.mrf.mxu0
        %887 = vmatprep.mubr.bf16.mxu0 0
        %888 = vmatmul.mubr.bf16.gmra.mxu0 %v739
        %v889 = vpop.f32.mrf.mxu0
        %v890 = vadd.f32 0.0, %v889
        %v891 = vpop.f32.mrf.mxu0
        %v892 = vpop.f32.mrf.mxu0
        %v893 = vadd.f32 0.0, %v892
        %v894 = vpop.f32.mrf.mxu0
        %895 = vmatprep.mubr.bf16.mxu0 0
        %896 = vmatmul.mubr.bf16.gmra.mxu0 %v742
        %v897 = vpop.f32.mrf.mxu0
        %v898 = vadd.f32 0.0, %v897
        %v899 = vpop.f32.mrf.mxu0
        %v900 = vpop.f32.mrf.mxu0
        %v901 = vadd.f32 0.0, %v900
        %v902 = vpop.f32.mrf.mxu0
        %903 = vmatprep.mubr.bf16.mxu0 0
        %904 = vmatmul.mubr.bf16.gmra.mxu0 %v745
        %v905 = vpop.f32.mrf.mxu0
        %v906 = vadd.f32 0.0, %v905
        %v907 = vpop.f32.mrf.mxu0
        %v908 = vpop.f32.mrf.mxu0
        %v909 = vadd.f32 0.0, %v908
        %v910 = vpop.f32.mrf.mxu0
        %911 = vdwg.mxu0
        %v944 = vunpack.c.l.b16 %v212
        %v945 = vunpack.c.l.b16 %v213
        %v946 = vunpack.c.l.b16 %v214
        %v947 = vunpack.c.l.b16 %v215
        %v948 = vunpack.c.l.b16 %v216
        %v949 = vunpack.c.l.b16 %v217
        %v950 = vunpack.c.l.b16 %v218
        %v951 = vunpack.c.l.b16 %v219
        %v952 = vunpack.c.l.b16 %v220
        %v953 = vunpack.c.l.b16 %v221
        %v954 = vunpack.c.l.b16 %v222
        %v955 = vunpack.c.l.b16 %v223
        %v956 = vunpack.c.l.b16 %v224
        %v957 = vunpack.c.l.b16 %v225
        %v958 = vunpack.c.l.b16 %v226
        %v959 = vunpack.c.l.b16 %v227
        %v960 = vunpack.c.l.b16 %v228
        %v961 = vunpack.c.l.b16 %v229
        %v962 = vunpack.c.l.b16 %v230
        %v963 = vunpack.c.l.b16 %v231
        %v964 = vunpack.c.l.b16 %v232
        %v965 = vunpack.c.l.b16 %v233
        %v966 = vunpack.c.l.b16 %v234
        %v967 = vunpack.c.l.b16 %v235
        %v968 = vunpack.c.l.b16 %v236
        %v969 = vunpack.c.l.b16 %v237
        %v970 = vunpack.c.l.b16 %v238
        %v971 = vunpack.c.l.b16 %v239
        %v972 = vunpack.c.l.b16 %v240
        %v973 = vunpack.c.l.b16 %v241
        %v974 = vunpack.c.l.b16 %v242
        %v975 = vunpack.c.l.b16 %v243
        %v976 = vpack.c.b16 %v945, %v944
        %v977 = vpack.c.b16 %v947, %v946
        %v978 = vpack.c.b16 %v949, %v948
        %v979 = vpack.c.b16 %v951, %v950
        %v980 = vpack.c.b16 %v953, %v952
        %v981 = vpack.c.b16 %v955, %v954
        %v982 = vpack.c.b16 %v957, %v956
        %v983 = vpack.c.b16 %v959, %v958
        %v984 = vpack.c.b16 %v961, %v960
        %v985 = vpack.c.b16 %v963, %v962
        %v986 = vpack.c.b16 %v965, %v964
        %v987 = vpack.c.b16 %v967, %v966
        %v988 = vpack.c.b16 %v969, %v968
        %v989 = vpack.c.b16 %v971, %v970
        %v990 = vpack.c.b16 %v973, %v972
        %v991 = vpack.c.b16 %v975, %v974
        %v993 = vsel %vm698, %v976, 0
        %v996 = vsel %vm698, %v977, 0
        %v999 = vsel %vm698, %v978, 0
        %v1002 = vsel %vm698, %v979, 0
        %v1005 = vsel %vm698, %v980, 0
        %v1008 = vsel %vm698, %v981, 0
        %v1011 = vsel %vm698, %v982, 0
        %v1014 = vsel %vm698, %v983, 0
        %v1017 = vsel %vm698, %v984, 0
        %v1020 = vsel %vm698, %v985, 0
        %v1023 = vsel %vm698, %v986, 0
        %v1026 = vsel %vm698, %v987, 0
        %v1029 = vsel %vm698, %v988, 0
        %v1032 = vsel %vm698, %v989, 0
        %v1035 = vsel %vm698, %v990, 0
        %v1038 = vsel %vm698, %v991, 0
        %v1041 = vsel %vm747, %v244, 0
        %1043 = vmatprep.subr.bf16.mxu0 0
        %1044 = vmatpush1.bf16.msra.mxu0 0
        %1045 = vmatprep.subr.bf16.mxu0 0
        %1046 = vmatpush1.bf16.msra.mxu0 0
        %1047 = vmatprep.subr.bf16.mxu0 0
        %1048 = vmatpush1.bf16.msra.mxu0 0
        %1049 = vmatprep.subr.bf16.mxu0 0
        %1050 = vmatpush1.bf16.msra.mxu0 0
        %1051 = vmatprep.subr.bf16.mxu0 0
        %1052 = vmatpush1.bf16.msra.mxu0 0
        %1053 = vmatprep.subr.bf16.mxu0 0
        %1054 = vmatpush1.bf16.msra.mxu0 0
        %1055 = vmatprep.subr.bf16.mxu0 0
        %1056 = vmatpush1.bf16.msra.mxu0 0
        %1057 = vmatprep.subr.bf16.mxu0 0
        %1058 = vmatpush1.bf16.msra.mxu0 %v1041
        %1059 = vmatprep.subr.bf16.mxu0 0
        %1060 = vmatpush2.bf16.msra.mxu0 0
        %1061 = vmatprep.subr.bf16.mxu0 0
        %1062 = vmatpush2.bf16.msra.mxu0 0
        %1063 = vmatprep.subr.bf16.mxu0 0
        %1064 = vmatpush2.bf16.msra.mxu0 0
        %1065 = vmatprep.subr.bf16.mxu0 0
        %1066 = vmatpush2.bf16.msra.mxu0 0
        %1067 = vmatprep.subr.bf16.mxu0 0
        %1068 = vmatpush2.bf16.msra.mxu0 0
        %1069 = vmatprep.subr.bf16.mxu0 0
        %1070 = vmatpush2.bf16.msra.mxu0 0
        %1071 = vmatprep.subr.bf16.mxu0 0
        %1072 = vmatpush2.bf16.msra.mxu0 0
        %1073 = vmatprep.subr.bf16.mxu0 0
        %1074 = vmatpush2.bf16.msra.mxu0 0
        %1075 = vmatprep.mubr.bf16.mxu0 0
        %1076 = vmatmul.mubr.bf16.gmra.mxu0 %v993
        %v1077 = vpop.f32.mrf.mxu0
        %v1078 = vadd.f32 %v786, %v1077
        %v1079 = vpop.f32.mrf.mxu0
        %v1080 = vpop.f32.mrf.mxu0
        %v1081 = vadd.f32 %v789, %v1080
        %v1082 = vpop.f32.mrf.mxu0
        %1083 = vmatprep.mubr.bf16.mxu0 0
        %1084 = vmatmul.mubr.bf16.gmra.mxu0 %v996
        %v1085 = vpop.f32.mrf.mxu0
        %v1086 = vadd.f32 %v794, %v1085
        %v1087 = vpop.f32.mrf.mxu0
        %v1088 = vpop.f32.mrf.mxu0
        %v1089 = vadd.f32 %v797, %v1088
        %v1090 = vpop.f32.mrf.mxu0
        %1091 = vmatprep.mubr.bf16.mxu0 0
        %1092 = vmatmul.mubr.bf16.gmra.mxu0 %v999
        %v1093 = vpop.f32.mrf.mxu0
        %v1094 = vadd.f32 %v802, %v1093
        %v1095 = vpop.f32.mrf.mxu0
        %v1096 = vpop.f32.mrf.mxu0
        %v1097 = vadd.f32 %v805, %v1096
        %v1098 = vpop.f32.mrf.mxu0
        %1099 = vmatprep.mubr.bf16.mxu0 0
        %1100 = vmatmul.mubr.bf16.gmra.mxu0 %v1002
        %v1101 = vpop.f32.mrf.mxu0
        %v1102 = vadd.f32 %v810, %v1101
        %v1103 = vpop.f32.mrf.mxu0
        %v1104 = vpop.f32.mrf.mxu0
        %v1105 = vadd.f32 %v813, %v1104
        %v1106 = vpop.f32.mrf.mxu0
        %1107 = vmatprep.mubr.bf16.mxu0 0
        %1108 = vmatmul.mubr.bf16.gmra.mxu0 %v1005
        %v1109 = vpop.f32.mrf.mxu0
        %v1110 = vadd.f32 %v818, %v1109
        %v1111 = vpop.f32.mrf.mxu0
        %v1112 = vpop.f32.mrf.mxu0
        %v1113 = vadd.f32 %v821, %v1112
        %v1114 = vpop.f32.mrf.mxu0
        %1115 = vmatprep.mubr.bf16.mxu0 0
        %1116 = vmatmul.mubr.bf16.gmra.mxu0 %v1008
        %v1117 = vpop.f32.mrf.mxu0
        %v1118 = vadd.f32 %v826, %v1117
        %v1119 = vpop.f32.mrf.mxu0
        %v1120 = vpop.f32.mrf.mxu0
        %v1121 = vadd.f32 %v829, %v1120
        %v1122 = vpop.f32.mrf.mxu0
        %1123 = vmatprep.mubr.bf16.mxu0 0
        %1124 = vmatmul.mubr.bf16.gmra.mxu0 %v1011
        %v1125 = vpop.f32.mrf.mxu0
        %v1126 = vadd.f32 %v834, %v1125
        %v1127 = vpop.f32.mrf.mxu0
        %v1128 = vpop.f32.mrf.mxu0
        %v1129 = vadd.f32 %v837, %v1128
        %v1130 = vpop.f32.mrf.mxu0
        %1131 = vmatprep.mubr.bf16.mxu0 0
        %1132 = vmatmul.mubr.bf16.gmra.mxu0 %v1014
        %v1133 = vpop.f32.mrf.mxu0
        %v1134 = vadd.f32 %v842, %v1133
        %v1135 = vpop.f32.mrf.mxu0
        %v1136 = vpop.f32.mrf.mxu0
        %v1137 = vadd.f32 %v845, %v1136
        %v1138 = vpop.f32.mrf.mxu0
        %1139 = vmatprep.mubr.bf16.mxu0 0
        %1140 = vmatmul.mubr.bf16.gmra.mxu0 %v1017
        %v1141 = vpop.f32.mrf.mxu0
        %v1142 = vadd.f32 %v850, %v1141
        %v1143 = vpop.f32.mrf.mxu0
        %v1144 = vpop.f32.mrf.mxu0
        %v1145 = vadd.f32 %v853, %v1144
        %v1146 = vpop.f32.mrf.mxu0
        %1147 = vmatprep.mubr.bf16.mxu0 0
        %1148 = vmatmul.mubr.bf16.gmra.mxu0 %v1020
        %v1149 = vpop.f32.mrf.mxu0
        %v1150 = vadd.f32 %v858, %v1149
        %v1151 = vpop.f32.mrf.mxu0
        %v1152 = vpop.f32.mrf.mxu0
        %v1153 = vadd.f32 %v861, %v1152
        %v1154 = vpop.f32.mrf.mxu0
        %1155 = vmatprep.mubr.bf16.mxu0 0
        %1156 = vmatmul.mubr.bf16.gmra.mxu0 %v1023
        %v1157 = vpop.f32.mrf.mxu0
        %v1158 = vadd.f32 %v866, %v1157
        %v1159 = vpop.f32.mrf.mxu0
        %v1160 = vpop.f32.mrf.mxu0
        %v1161 = vadd.f32 %v869, %v1160
        %v1162 = vpop.f32.mrf.mxu0
        %1163 = vmatprep.mubr.bf16.mxu0 0
        %1164 = vmatmul.mubr.bf16.gmra.mxu0 %v1026
        %v1165 = vpop.f32.mrf.mxu0
        %v1166 = vadd.f32 %v874, %v1165
        %v1167 = vpop.f32.mrf.mxu0
        %v1168 = vpop.f32.mrf.mxu0
        %v1169 = vadd.f32 %v877, %v1168
        %v1170 = vpop.f32.mrf.mxu0
        %1171 = vmatprep.mubr.bf16.mxu0 0
        %1172 = vmatmul.mubr.bf16.gmra.mxu0 %v1029
        %v1173 = vpop.f32.mrf.mxu0
        %v1174 = vadd.f32 %v882, %v1173
        %v1175 = vpop.f32.mrf.mxu0
        %v1176 = vpop.f32.mrf.mxu0
        %v1177 = vadd.f32 %v885, %v1176
        %v1178 = vpop.f32.mrf.mxu0
        %1179 = vmatprep.mubr.bf16.mxu0 0
        %1180 = vmatmul.mubr.bf16.gmra.mxu0 %v1032
        %v1181 = vpop.f32.mrf.mxu0
        %v1182 = vadd.f32 %v890, %v1181
        %v1183 = vpop.f32.mrf.mxu0
        %v1184 = vpop.f32.mrf.mxu0
        %v1185 = vadd.f32 %v893, %v1184
        %v1186 = vpop.f32.mrf.mxu0
        %1187 = vmatprep.mubr.bf16.mxu0 0
        %1188 = vmatmul.mubr.bf16.gmra.mxu0 %v1035
        %v1189 = vpop.f32.mrf.mxu0
        %v1190 = vadd.f32 %v898, %v1189
        %v1191 = vpop.f32.mrf.mxu0
        %v1192 = vpop.f32.mrf.mxu0
        %v1193 = vadd.f32 %v901, %v1192
        %v1194 = vpop.f32.mrf.mxu0
        %1195 = vmatprep.mubr.bf16.mxu0 0
        %1196 = vmatmul.mubr.bf16.gmra.mxu0 %v1038
        %v1197 = vpop.f32.mrf.mxu0
        %v1198 = vadd.f32 %v906, %v1197
        %v1199 = vpop.f32.mrf.mxu0
        %v1200 = vpop.f32.mrf.mxu0
        %v1201 = vadd.f32 %v909, %v1200
        %v1202 = vpop.f32.mrf.mxu0
        %1203 = vdwg.mxu0
        %v1204 = vld [vmem:[%s205] sm:$0xe]
        %v1205 = vld [vmem:[%s205 + $0xc] sm:$0xe]
        %v1206 = vld [vmem:[%s205 + $0x18] sm:$0xe]
        %v1207 = vld [vmem:[%s205 + $0x24] sm:$0xe]
        %v1208 = vld [vmem:[%s205 + $0x30] sm:$0xe]
        %v1209 = vld [vmem:[%s205 + $0x3c] sm:$0xe]
        %v1210 = vld [vmem:[%s205 + $0x48] sm:$0xe]
        %v1211 = vld [vmem:[%s205 + $0x54] sm:$0xe]
        %v1212 = vld [vmem:[%s205 + $0x60] sm:$0xe]
        %v1213 = vld [vmem:[%s205 + $0x6c] sm:$0xe]
        %v1214 = vld [vmem:[%s205 + $0x78] sm:$0xe]
        %v1215 = vld [vmem:[%s205 + $0x84] sm:$0xe]
        %v1216 = vld [vmem:[%s205 + $0x90] sm:$0xe]
        %v1217 = vld [vmem:[%s205 + $0x9c] sm:$0xe]
        %v1218 = vld [vmem:[%s205 + $0xa8] sm:$0xe]
        %v1219 = vld [vmem:[%s205 + $0xb4] sm:$0xe]
        %vm1252 = vcmask 1042432
        %vm1253 = vcmask 1046532
        %vm1254 = vmor %vm1252, %vm1253
        %v1255 = vrot.slane %v1204, 5
        %v1256 = vrot.slane %v1255, 4
        %v1257 = vrot.slane %v213, 5
        %v1258 = vsel %vm1254, %v1256, %v1257
        %v1259 = vrot.slane %v1257, 4
        %v1260 = vrot.slane %v245, 5
        %v1261 = vsel %vm1254, %v1259, %v1260
        %v1262 = vrot.slane %v1205, 5
        %v1263 = vrot.slane %v1262, 4
        %v1264 = vrot.slane %v215, 5
        %v1265 = vsel %vm1254, %v1263, %v1264
        %v1266 = vrot.slane %v1264, 4
        %v1267 = vrot.slane %v246, 5
        %v1268 = vsel %vm1254, %v1266, %v1267
        %v1269 = vrot.slane %v1206, 5
        %v1270 = vrot.slane %v1269, 4
        %v1271 = vrot.slane %v217, 5
        %v1272 = vsel %vm1254, %v1270, %v1271
        %v1273 = vrot.slane %v1271, 4
        %v1274 = vrot.slane %v247, 5
        %v1275 = vsel %vm1254, %v1273, %v1274
        %v1276 = vrot.slane %v1207, 5
        %v1277 = vrot.slane %v1276, 4
        %v1278 = vrot.slane %v219, 5
        %v1279 = vsel %vm1254, %v1277, %v1278
        %v1280 = vrot.slane %v1278, 4
        %v1281 = vrot.slane %v248, 5
        %v1282 = vsel %vm1254, %v1280, %v1281
        %v1283 = vrot.slane %v1208, 5
        %v1284 = vrot.slane %v1283, 4
        %v1285 = vrot.slane %v221, 5
        %v1286 = vsel %vm1254, %v1284, %v1285
        %v1287 = vrot.slane %v1285, 4
        %v1288 = vrot.slane %v249, 5
        %v1289 = vsel %vm1254, %v1287, %v1288
        %v1290 = vrot.slane %v1209, 5
        %v1291 = vrot.slane %v1290, 4
        %v1292 = vrot.slane %v223, 5
        %v1293 = vsel %vm1254, %v1291, %v1292
        %v1294 = vrot.slane %v1292, 4
        %v1295 = vrot.slane %v250, 5
        %v1296 = vsel %vm1254, %v1294, %v1295
        %v1297 = vrot.slane %v1210, 5
        %v1298 = vrot.slane %v1297, 4
        %v1299 = vrot.slane %v225, 5
        %v1300 = vsel %vm1254, %v1298, %v1299
        %v1301 = vrot.slane %v1299, 4
        %v1302 = vrot.slane %v251, 5
        %v1303 = vsel %vm1254, %v1301, %v1302
        %v1304 = vrot.slane %v1211, 5
        %v1305 = vrot.slane %v1304, 4
        %v1306 = vrot.slane %v227, 5
        %v1307 = vsel %vm1254, %v1305, %v1306
        %v1308 = vrot.slane %v1306, 4
        %v1309 = vrot.slane %v252, 5
        %v1310 = vsel %vm1254, %v1308, %v1309
        %v1311 = vrot.slane %v1212, 5
        %v1312 = vrot.slane %v1311, 4
        %v1313 = vrot.slane %v229, 5
        %v1314 = vsel %vm1254, %v1312, %v1313
        %v1315 = vrot.slane %v1313, 4
        %v1316 = vrot.slane %v253, 5
        %v1317 = vsel %vm1254, %v1315, %v1316
        %v1318 = vrot.slane %v1213, 5
        %v1319 = vrot.slane %v1318, 4
        %v1320 = vrot.slane %v231, 5
        %v1321 = vsel %vm1254, %v1319, %v1320
        %v1322 = vrot.slane %v1320, 4
        %v1323 = vrot.slane %v254, 5
        %v1324 = vsel %vm1254, %v1322, %v1323
        %v1325 = vrot.slane %v1214, 5
        %v1326 = vrot.slane %v1325, 4
        %v1327 = vrot.slane %v233, 5
        %v1328 = vsel %vm1254, %v1326, %v1327
        %v1329 = vrot.slane %v1327, 4
        %v1330 = vrot.slane %v255, 5
        %v1331 = vsel %vm1254, %v1329, %v1330
        %v1332 = vrot.slane %v1215, 5
        %v1333 = vrot.slane %v1332, 4
        %v1334 = vrot.slane %v235, 5
        %v1335 = vsel %vm1254, %v1333, %v1334
        %v1336 = vrot.slane %v1334, 4
        %v1337 = vrot.slane %v256, 5
        %v1338 = vsel %vm1254, %v1336, %v1337
        %v1339 = vrot.slane %v1216, 5
        %v1340 = vrot.slane %v1339, 4
        %v1341 = vrot.slane %v237, 5
        %v1342 = vsel %vm1254, %v1340, %v1341
        %v1343 = vrot.slane %v1341, 4
        %v1344 = vrot.slane %v257, 5
        %v1345 = vsel %vm1254, %v1343, %v1344
        %v1346 = vrot.slane %v1217, 5
        %v1347 = vrot.slane %v1346, 4
        %v1348 = vrot.slane %v239, 5
        %v1349 = vsel %vm1254, %v1347, %v1348
        %v1350 = vrot.slane %v1348, 4
        %v1351 = vrot.slane %v258, 5
        %v1352 = vsel %vm1254, %v1350, %v1351
        %v1353 = vrot.slane %v1218, 5
        %v1354 = vrot.slane %v1353, 4
        %v1355 = vrot.slane %v241, 5
        %v1356 = vsel %vm1254, %v1354, %v1355
        %v1357 = vrot.slane %v1355, 4
        %v1358 = vrot.slane %v259, 5
        %v1359 = vsel %vm1254, %v1357, %v1358
        %v1360 = vrot.slane %v1219, 5
        %v1361 = vrot.slane %v1360, 4
        %v1362 = vrot.slane %v243, 5
        %v1363 = vsel %vm1254, %v1361, %v1362
        %v1364 = vrot.slane %v1362, 4
        %v1365 = vrot.slane %v260, 5
        %v1366 = vsel %vm1254, %v1364, %v1365
        %s1367 = scalar_lea.vmem %s1, 4
        %v1368 = vld [vmem:[%s1367] sm:$0x3]
        %v1369 = vunpack.c.l.b16 %v1258
        %v1370 = vunpack.c.l.b16 %v1261
        %v1371 = vunpack.c.l.b16 %v1265
        %v1372 = vunpack.c.l.b16 %v1268
        %v1373 = vunpack.c.l.b16 %v1272
        %v1374 = vunpack.c.l.b16 %v1275
        %v1375 = vunpack.c.l.b16 %v1279
        %v1376 = vunpack.c.l.b16 %v1282
        %v1377 = vunpack.c.l.b16 %v1286
        %v1378 = vunpack.c.l.b16 %v1289
        %v1379 = vunpack.c.l.b16 %v1293
        %v1380 = vunpack.c.l.b16 %v1296
        %v1381 = vunpack.c.l.b16 %v1300
        %v1382 = vunpack.c.l.b16 %v1303
        %v1383 = vunpack.c.l.b16 %v1307
        %v1384 = vunpack.c.l.b16 %v1310
        %v1385 = vunpack.c.l.b16 %v1314
        %v1386 = vunpack.c.l.b16 %v1317
        %v1387 = vunpack.c.l.b16 %v1321
        %v1388 = vunpack.c.l.b16 %v1324
        %v1389 = vunpack.c.l.b16 %v1328
        %v1390 = vunpack.c.l.b16 %v1331
        %v1391 = vunpack.c.l.b16 %v1335
        %v1392 = vunpack.c.l.b16 %v1338
        %v1393 = vunpack.c.l.b16 %v1342
        %v1394 = vunpack.c.l.b16 %v1345
        %v1395 = vunpack.c.l.b16 %v1349
        %v1396 = vunpack.c.l.b16 %v1352
        %v1397 = vunpack.c.l.b16 %v1356
        %v1398 = vunpack.c.l.b16 %v1359
        %v1399 = vunpack.c.l.b16 %v1363
        %v1400 = vunpack.c.l.b16 %v1366
        %v1401 = vpack.c.b16 %v1370, %v1369
        %v1402 = vpack.c.b16 %v1372, %v1371
        %v1403 = vpack.c.b16 %v1374, %v1373
        %v1404 = vpack.c.b16 %v1376, %v1375
        %v1405 = vpack.c.b16 %v1378, %v1377
        %v1406 = vpack.c.b16 %v1380, %v1379
        %v1407 = vpack.c.b16 %v1382, %v1381
        %v1408 = vpack.c.b16 %v1384, %v1383
        %v1409 = vpack.c.b16 %v1386, %v1385
        %v1410 = vpack.c.b16 %v1388, %v1387
        %v1411 = vpack.c.b16 %v1390, %v1389
        %v1412 = vpack.c.b16 %v1392, %v1391
        %v1413 = vpack.c.b16 %v1394, %v1393
        %v1414 = vpack.c.b16 %v1396, %v1395
        %v1415 = vpack.c.b16 %v1398, %v1397
        %v1416 = vpack.c.b16 %v1400, %v1399
        %v1418 = vsel %vm698, %v1401, 0
        %v1421 = vsel %vm698, %v1402, 0
        %v1424 = vsel %vm698, %v1403, 0
        %v1427 = vsel %vm698, %v1404, 0
        %v1430 = vsel %vm698, %v1405, 0
        %v1433 = vsel %vm698, %v1406, 0
        %v1436 = vsel %vm698, %v1407, 0
        %v1439 = vsel %vm698, %v1408, 0
        %v1442 = vsel %vm698, %v1409, 0
        %v1445 = vsel %vm698, %v1410, 0
        %v1448 = vsel %vm698, %v1411, 0
        %v1451 = vsel %vm698, %v1412, 0
        %v1454 = vsel %vm698, %v1413, 0
        %v1457 = vsel %vm698, %v1414, 0
        %v1460 = vsel %vm698, %v1415, 0
        %v1463 = vsel %vm698, %v1416, 0
        %v1466 = vsel %vm747, %v1368, 0
        %1468 = vmatprep.subr.bf16.mxu0 0
        %1469 = vmatpush1.bf16.msra.mxu0 0
        %1470 = vmatprep.subr.bf16.mxu0 0
        %1471 = vmatpush1.bf16.msra.mxu0 0
        %1472 = vmatprep.subr.bf16.mxu0 0
        %1473 = vmatpush1.bf16.msra.mxu0 0
        %1474 = vmatprep.subr.bf16.mxu0 0
        %1475 = vmatpush1.bf16.msra.mxu0 0
        %1476 = vmatprep.subr.bf16.mxu0 0
        %1477 = vmatpush1.bf16.msra.mxu0 0
        %1478 = vmatprep.subr.bf16.mxu0 0
        %1479 = vmatpush1.bf16.msra.mxu0 0
        %1480 = vmatprep.subr.bf16.mxu0 0
        %1481 = vmatpush1.bf16.msra.mxu0 0
        %1482 = vmatprep.subr.bf16.mxu0 0
        %1483 = vmatpush1.bf16.msra.mxu0 %v1466
        %1484 = vmatprep.subr.bf16.mxu0 0
        %1485 = vmatpush2.bf16.msra.mxu0 0
        %1486 = vmatprep.subr.bf16.mxu0 0
        %1487 = vmatpush2.bf16.msra.mxu0 0
        %1488 = vmatprep.subr.bf16.mxu0 0
        %1489 = vmatpush2.bf16.msra.mxu0 0
        %1490 = vmatprep.subr.bf16.mxu0 0
        %1491 = vmatpush2.bf16.msra.mxu0 0
        %1492 = vmatprep.subr.bf16.mxu0 0
        %1493 = vmatpush2.bf16.msra.mxu0 0
        %1494 = vmatprep.subr.bf16.mxu0 0
        %1495 = vmatpush2.bf16.msra.mxu0 0
        %1496 = vmatprep.subr.bf16.mxu0 0
        %1497 = vmatpush2.bf16.msra.mxu0 0
        %1498 = vmatprep.subr.bf16.mxu0 0
        %1499 = vmatpush2.bf16.msra.mxu0 0
        %1500 = vmatprep.mubr.bf16.mxu0 0
        %1501 = vmatmul.mubr.bf16.gmra.mxu0 %v1418
        %v1502 = vpop.f32.mrf.mxu0
        %v1503 = vadd.f32 0.0, %v1502
        %v1504 = vpop.f32.mrf.mxu0
        %v1505 = vpop.f32.mrf.mxu0
        %v1506 = vadd.f32 0.0, %v1505
        %v1507 = vpop.f32.mrf.mxu0
        %1508 = vmatprep.mubr.bf16.mxu0 0
        %1509 = vmatmul.mubr.bf16.gmra.mxu0 %v1421
        %v1510 = vpop.f32.mrf.mxu0
        %v1511 = vadd.f32 0.0, %v1510
        %v1512 = vpop.f32.mrf.mxu0
        %v1513 = vpop.f32.mrf.mxu0
        %v1514 = vadd.f32 0.0, %v1513
        %v1515 = vpop.f32.mrf.mxu0
        %1516 = vmatprep.mubr.bf16.mxu0 0
        %1517 = vmatmul.mubr.bf16.gmra.mxu0 %v1424
        %v1518 = vpop.f32.mrf.mxu0
        %v1519 = vadd.f32 0.0, %v1518
        %v1520 = vpop.f32.mrf.mxu0
        %v1521 = vpop.f32.mrf.mxu0
        %v1522 = vadd.f32 0.0, %v1521
        %v1523 = vpop.f32.mrf.mxu0
        %1524 = vmatprep.mubr.bf16.mxu0 0
        %1525 = vmatmul.mubr.bf16.gmra.mxu0 %v1427
        %v1526 = vpop.f32.mrf.mxu0
        %v1527 = vadd.f32 0.0, %v1526
        %v1528 = vpop.f32.mrf.mxu0
        %v1529 = vpop.f32.mrf.mxu0
        %v1530 = vadd.f32 0.0, %v1529
        %v1531 = vpop.f32.mrf.mxu0
        %1532 = vmatprep.mubr.bf16.mxu0 0
        %1533 = vmatmul.mubr.bf16.gmra.mxu0 %v1430
        %v1534 = vpop.f32.mrf.mxu0
        %v1535 = vadd.f32 0.0, %v1534
        %v1536 = vpop.f32.mrf.mxu0
        %v1537 = vpop.f32.mrf.mxu0
        %v1538 = vadd.f32 0.0, %v1537
        %v1539 = vpop.f32.mrf.mxu0
        %1540 = vmatprep.mubr.bf16.mxu0 0
        %1541 = vmatmul.mubr.bf16.gmra.mxu0 %v1433
        %v1542 = vpop.f32.mrf.mxu0
        %v1543 = vadd.f32 0.0, %v1542
        %v1544 = vpop.f32.mrf.mxu0
        %v1545 = vpop.f32.mrf.mxu0
        %v1546 = vadd.f32 0.0, %v1545
        %v1547 = vpop.f32.mrf.mxu0
        %1548 = vmatprep.mubr.bf16.mxu0 0
        %1549 = vmatmul.mubr.bf16.gmra.mxu0 %v1436
        %v1550 = vpop.f32.mrf.mxu0
        %v1551 = vadd.f32 0.0, %v1550
        %v1552 = vpop.f32.mrf.mxu0
        %v1553 = vpop.f32.mrf.mxu0
        %v1554 = vadd.f32 0.0, %v1553
        %v1555 = vpop.f32.mrf.mxu0
        %1556 = vmatprep.mubr.bf16.mxu0 0
        %1557 = vmatmul.mubr.bf16.gmra.mxu0 %v1439
        %v1558 = vpop.f32.mrf.mxu0
        %v1559 = vadd.f32 0.0, %v1558
        %v1560 = vpop.f32.mrf.mxu0
        %v1561 = vpop.f32.mrf.mxu0
        %v1562 = vadd.f32 0.0, %v1561
        %v1563 = vpop.f32.mrf.mxu0
        %1564 = vmatprep.mubr.bf16.mxu0 0
        %1565 = vmatmul.mubr.bf16.gmra.mxu0 %v1442
        %v1566 = vpop.f32.mrf.mxu0
        %v1567 = vadd.f32 0.0, %v1566
        %v1568 = vpop.f32.mrf.mxu0
        %v1569 = vpop.f32.mrf.mxu0
        %v1570 = vadd.f32 0.0, %v1569
        %v1571 = vpop.f32.mrf.mxu0
        %1572 = vmatprep.mubr.bf16.mxu0 0
        %1573 = vmatmul.mubr.bf16.gmra.mxu0 %v1445
        %v1574 = vpop.f32.mrf.mxu0
        %v1575 = vadd.f32 0.0, %v1574
        %v1576 = vpop.f32.mrf.mxu0
        %v1577 = vpop.f32.mrf.mxu0
        %v1578 = vadd.f32 0.0, %v1577
        %v1579 = vpop.f32.mrf.mxu0
        %1580 = vmatprep.mubr.bf16.mxu0 0
        %1581 = vmatmul.mubr.bf16.gmra.mxu0 %v1448
        %v1582 = vpop.f32.mrf.mxu0
        %v1583 = vadd.f32 0.0, %v1582
        %v1584 = vpop.f32.mrf.mxu0
        %v1585 = vpop.f32.mrf.mxu0
        %v1586 = vadd.f32 0.0, %v1585
        %v1587 = vpop.f32.mrf.mxu0
        %1588 = vmatprep.mubr.bf16.mxu0 0
        %1589 = vmatmul.mubr.bf16.gmra.mxu0 %v1451
        %v1590 = vpop.f32.mrf.mxu0
        %v1591 = vadd.f32 0.0, %v1590
        %v1592 = vpop.f32.mrf.mxu0
        %v1593 = vpop.f32.mrf.mxu0
        %v1594 = vadd.f32 0.0, %v1593
        %v1595 = vpop.f32.mrf.mxu0
        %1596 = vmatprep.mubr.bf16.mxu0 0
        %1597 = vmatmul.mubr.bf16.gmra.mxu0 %v1454
        %v1598 = vpop.f32.mrf.mxu0
        %v1599 = vadd.f32 0.0, %v1598
        %v1600 = vpop.f32.mrf.mxu0
        %v1601 = vpop.f32.mrf.mxu0
        %v1602 = vadd.f32 0.0, %v1601
        %v1603 = vpop.f32.mrf.mxu0
        %1604 = vmatprep.mubr.bf16.mxu0 0
        %1605 = vmatmul.mubr.bf16.gmra.mxu0 %v1457
        %v1606 = vpop.f32.mrf.mxu0
        %v1607 = vadd.f32 0.0, %v1606
        %v1608 = vpop.f32.mrf.mxu0
        %v1609 = vpop.f32.mrf.mxu0
        %v1610 = vadd.f32 0.0, %v1609
        %v1611 = vpop.f32.mrf.mxu0
        %1612 = vmatprep.mubr.bf16.mxu0 0
        %1613 = vmatmul.mubr.bf16.gmra.mxu0 %v1460
        %v1614 = vpop.f32.mrf.mxu0
        %v1615 = vadd.f32 0.0, %v1614
        %v1616 = vpop.f32.mrf.mxu0
        %v1617 = vpop.f32.mrf.mxu0
        %v1618 = vadd.f32 0.0, %v1617
        %v1619 = vpop.f32.mrf.mxu0
        %1620 = vmatprep.mubr.bf16.mxu0 0
        %1621 = vmatmul.mubr.bf16.gmra.mxu0 %v1463
        %v1622 = vpop.f32.mrf.mxu0
        %v1623 = vadd.f32 0.0, %v1622
        %v1624 = vpop.f32.mrf.mxu0
        %v1625 = vpop.f32.mrf.mxu0
        %v1626 = vadd.f32 0.0, %v1625
        %v1627 = vpop.f32.mrf.mxu0
        %1628 = vdwg.mxu0
        %v1629 = vadd.f32 %v1078, %v1503
        %v1630 = vadd.f32 %v1081, %v1506
        %v1631 = vadd.f32 %v1086, %v1511
        %v1632 = vadd.f32 %v1089, %v1514
        %v1633 = vadd.f32 %v1094, %v1519
        %v1634 = vadd.f32 %v1097, %v1522
        %v1635 = vadd.f32 %v1102, %v1527
        %v1636 = vadd.f32 %v1105, %v1530
        %v1637 = vadd.f32 %v1110, %v1535
        %v1638 = vadd.f32 %v1113, %v1538
        %v1639 = vadd.f32 %v1118, %v1543
        %v1640 = vadd.f32 %v1121, %v1546
        %v1641 = vadd.f32 %v1126, %v1551
        %v1642 = vadd.f32 %v1129, %v1554
        %v1643 = vadd.f32 %v1134, %v1559
        %v1644 = vadd.f32 %v1137, %v1562
        %v1645 = vadd.f32 %v1142, %v1567
        %v1646 = vadd.f32 %v1145, %v1570
        %v1647 = vadd.f32 %v1150, %v1575
        %v1648 = vadd.f32 %v1153, %v1578
        %v1649 = vadd.f32 %v1158, %v1583
        %v1650 = vadd.f32 %v1161, %v1586
        %v1651 = vadd.f32 %v1166, %v1591
        %v1652 = vadd.f32 %v1169, %v1594
        %v1653 = vadd.f32 %v1174, %v1599
        %v1654 = vadd.f32 %v1177, %v1602
        %v1655 = vadd.f32 %v1182, %v1607
        %v1656 = vadd.f32 %v1185, %v1610
        %v1657 = vadd.f32 %v1190, %v1615
        %v1658 = vadd.f32 %v1193, %v1618
        %v1659 = vadd.f32 %v1198, %v1623
        %v1660 = vadd.f32 %v1201, %v1626
        %s1661 = scalar_lea.vmem %s205, 12
        %v1662 = vld [vmem:[%s1661] sm:$0xf]
        %v1663 = vld [vmem:[%s1661 + $0x4] sm:$0xf]
        %v1664 = vld [vmem:[%s1661 + $0xc] sm:$0xf]
        %v1665 = vld [vmem:[%s1661 + $0x10] sm:$0xf]
        %v1666 = vld [vmem:[%s1661 + $0x18] sm:$0xf]
        %v1667 = vld [vmem:[%s1661 + $0x1c] sm:$0xf]
        %v1668 = vld [vmem:[%s1661 + $0x24] sm:$0xf]
        %v1669 = vld [vmem:[%s1661 + $0x28] sm:$0xf]
        %v1670 = vld [vmem:[%s1661 + $0x30] sm:$0xf]
        %v1671 = vld [vmem:[%s1661 + $0x34] sm:$0xf]
        %v1672 = vld [vmem:[%s1661 + $0x3c] sm:$0xf]
        %v1673 = vld [vmem:[%s1661 + $0x40] sm:$0xf]
        %v1674 = vld [vmem:[%s1661 + $0x48] sm:$0xf]
        %v1675 = vld [vmem:[%s1661 + $0x4c] sm:$0xf]
        %v1676 = vld [vmem:[%s1661 + $0x54] sm:$0xf]
        %v1677 = vld [vmem:[%s1661 + $0x58] sm:$0xf]
        %v1678 = vld [vmem:[%s1661 + $0x60] sm:$0xf]
        %v1679 = vld [vmem:[%s1661 + $0x64] sm:$0xf]
        %v1680 = vld [vmem:[%s1661 + $0x6c] sm:$0xf]
        %v1681 = vld [vmem:[%s1661 + $0x70] sm:$0xf]
        %v1682 = vld [vmem:[%s1661 + $0x78] sm:$0xf]
        %v1683 = vld [vmem:[%s1661 + $0x7c] sm:$0xf]
        %v1684 = vld [vmem:[%s1661 + $0x84] sm:$0xf]
        %v1685 = vld [vmem:[%s1661 + $0x88] sm:$0xf]
        %v1686 = vld [vmem:[%s1661 + $0x90] sm:$0xf]
        %v1687 = vld [vmem:[%s1661 + $0x94] sm:$0xf]
        %v1688 = vld [vmem:[%s1661 + $0x9c] sm:$0xf]
        %v1689 = vld [vmem:[%s1661 + $0xa0] sm:$0xf]
        %v1690 = vld [vmem:[%s1661 + $0xa8] sm:$0xf]
        %v1691 = vld [vmem:[%s1661 + $0xac] sm:$0xf]
        %v1692 = vld [vmem:[%s1661 + $0xb4] sm:$0xf]
        %v1693 = vld [vmem:[%s1661 + $0xb8] sm:$0xf]
        %s1694 = scalar_lea.vmem %s1, 6
        %v1695 = vld [vmem:[%s1694] sm:$0x3]
        %v1728 = vunpack.c.l.b16 %v1662
        %v1729 = vunpack.c.l.b16 %v1663
        %v1730 = vunpack.c.l.b16 %v1664
        %v1731 = vunpack.c.l.b16 %v1665
        %v1732 = vunpack.c.l.b16 %v1666
        %v1733 = vunpack.c.l.b16 %v1667
        %v1734 = vunpack.c.l.b16 %v1668
        %v1735 = vunpack.c.l.b16 %v1669
        %v1736 = vunpack.c.l.b16 %v1670
        %v1737 = vunpack.c.l.b16 %v1671
        %v1738 = vunpack.c.l.b16 %v1672
        %v1739 = vunpack.c.l.b16 %v1673
        %v1740 = vunpack.c.l.b16 %v1674
        %v1741 = vunpack.c.l.b16 %v1675
        %v1742 = vunpack.c.l.b16 %v1676
        %v1743 = vunpack.c.l.b16 %v1677
        %v1744 = vunpack.c.l.b16 %v1678
        %v1745 = vunpack.c.l.b16 %v1679
        %v1746 = vunpack.c.l.b16 %v1680
        %v1747 = vunpack.c.l.b16 %v1681
        %v1748 = vunpack.c.l.b16 %v1682
        %v1749 = vunpack.c.l.b16 %v1683
        %v1750 = vunpack.c.l.b16 %v1684
        %v1751 = vunpack.c.l.b16 %v1685
        %v1752 = vunpack.c.l.b16 %v1686
        %v1753 = vunpack.c.l.b16 %v1687
        %v1754 = vunpack.c.l.b16 %v1688
        %v1755 = vunpack.c.l.b16 %v1689
        %v1756 = vunpack.c.l.b16 %v1690
        %v1757 = vunpack.c.l.b16 %v1691
        %v1758 = vunpack.c.l.b16 %v1692
        %v1759 = vunpack.c.l.b16 %v1693
        %v1760 = vpack.c.b16 %v1729, %v1728
        %v1761 = vpack.c.b16 %v1731, %v1730
        %v1762 = vpack.c.b16 %v1733, %v1732
        %v1763 = vpack.c.b16 %v1735, %v1734
        %v1764 = vpack.c.b16 %v1737, %v1736
        %v1765 = vpack.c.b16 %v1739, %v1738
        %v1766 = vpack.c.b16 %v1741, %v1740
        %v1767 = vpack.c.b16 %v1743, %v1742
        %v1768 = vpack.c.b16 %v1745, %v1744
        %v1769 = vpack.c.b16 %v1747, %v1746
        %v1770 = vpack.c.b16 %v1749, %v1748
        %v1771 = vpack.c.b16 %v1751, %v1750
        %v1772 = vpack.c.b16 %v1753, %v1752
        %v1773 = vpack.c.b16 %v1755, %v1754
        %v1774 = vpack.c.b16 %v1757, %v1756
        %v1775 = vpack.c.b16 %v1759, %v1758
        %v1777 = vsel %vm698, %v1760, 0
        %v1780 = vsel %vm698, %v1761, 0
        %v1783 = vsel %vm698, %v1762, 0
        %v1786 = vsel %vm698, %v1763, 0
        %v1789 = vsel %vm698, %v1764, 0
        %v1792 = vsel %vm698, %v1765, 0
        %v1795 = vsel %vm698, %v1766, 0
        %v1798 = vsel %vm698, %v1767, 0
        %v1801 = vsel %vm698, %v1768, 0
        %v1804 = vsel %vm698, %v1769, 0
        %v1807 = vsel %vm698, %v1770, 0
        %v1810 = vsel %vm698, %v1771, 0
        %v1813 = vsel %vm698, %v1772, 0
        %v1816 = vsel %vm698, %v1773, 0
        %v1819 = vsel %vm698, %v1774, 0
        %v1822 = vsel %vm698, %v1775, 0
        %v1825 = vsel %vm747, %v1695, 0
        %1827 = vmatprep.subr.bf16.mxu0 0
        %1828 = vmatpush1.bf16.msra.mxu0 0
        %1829 = vmatprep.subr.bf16.mxu0 0
        %1830 = vmatpush1.bf16.msra.mxu0 0
        %1831 = vmatprep.subr.bf16.mxu0 0
        %1832 = vmatpush1.bf16.msra.mxu0 0
        %1833 = vmatprep.subr.bf16.mxu0 0
        %1834 = vmatpush1.bf16.msra.mxu0 0
        %1835 = vmatprep.subr.bf16.mxu0 0
        %1836 = vmatpush1.bf16.msra.mxu0 0
        %1837 = vmatprep.subr.bf16.mxu0 0
        %1838 = vmatpush1.bf16.msra.mxu0 0
        %1839 = vmatprep.subr.bf16.mxu0 0
        %1840 = vmatpush1.bf16.msra.mxu0 0
        %1841 = vmatprep.subr.bf16.mxu0 0
        %1842 = vmatpush1.bf16.msra.mxu0 %v1825
        %1843 = vmatprep.subr.bf16.mxu0 0
        %1844 = vmatpush2.bf16.msra.mxu0 0
        %1845 = vmatprep.subr.bf16.mxu0 0
        %1846 = vmatpush2.bf16.msra.mxu0 0
        %1847 = vmatprep.subr.bf16.mxu0 0
        %1848 = vmatpush2.bf16.msra.mxu0 0
        %1849 = vmatprep.subr.bf16.mxu0 0
        %1850 = vmatpush2.bf16.msra.mxu0 0
        %1851 = vmatprep.subr.bf16.mxu0 0
        %1852 = vmatpush2.bf16.msra.mxu0 0
        %1853 = vmatprep.subr.bf16.mxu0 0
        %1854 = vmatpush2.bf16.msra.mxu0 0
        %1855 = vmatprep.subr.bf16.mxu0 0
        %1856 = vmatpush2.bf16.msra.mxu0 0
        %1857 = vmatprep.subr.bf16.mxu0 0
        %1858 = vmatpush2.bf16.msra.mxu0 0
        %1859 = vmatprep.mubr.bf16.mxu0 0
        %1860 = vmatmul.mubr.bf16.gmra.mxu0 %v1777
        %v1861 = vpop.f32.mrf.mxu0
        %v1862 = vadd.f32 0.0, %v1861
        %v1863 = vpop.f32.mrf.mxu0
        %v1864 = vpop.f32.mrf.mxu0
        %v1865 = vadd.f32 0.0, %v1864
        %v1866 = vpop.f32.mrf.mxu0
        %1867 = vmatprep.mubr.bf16.mxu0 0
        %1868 = vmatmul.mubr.bf16.gmra.mxu0 %v1780
        %v1869 = vpop.f32.mrf.mxu0
        %v1870 = vadd.f32 0.0, %v1869
        %v1871 = vpop.f32.mrf.mxu0
        %v1872 = vpop.f32.mrf.mxu0
        %v1873 = vadd.f32 0.0, %v1872
        %v1874 = vpop.f32.mrf.mxu0
        %1875 = vmatprep.mubr.bf16.mxu0 0
        %1876 = vmatmul.mubr.bf16.gmra.mxu0 %v1783
        %v1877 = vpop.f32.mrf.mxu0
        %v1878 = vadd.f32 0.0, %v1877
        %v1879 = vpop.f32.mrf.mxu0
        %v1880 = vpop.f32.mrf.mxu0
        %v1881 = vadd.f32 0.0, %v1880
        %v1882 = vpop.f32.mrf.mxu0
        %1883 = vmatprep.mubr.bf16.mxu0 0
        %1884 = vmatmul.mubr.bf16.gmra.mxu0 %v1786
        %v1885 = vpop.f32.mrf.mxu0
        %v1886 = vadd.f32 0.0, %v1885
        %v1887 = vpop.f32.mrf.mxu0
        %v1888 = vpop.f32.mrf.mxu0
        %v1889 = vadd.f32 0.0, %v1888
        %v1890 = vpop.f32.mrf.mxu0
        %1891 = vmatprep.mubr.bf16.mxu0 0
        %1892 = vmatmul.mubr.bf16.gmra.mxu0 %v1789
        %v1893 = vpop.f32.mrf.mxu0
        %v1894 = vadd.f32 0.0, %v1893
        %v1895 = vpop.f32.mrf.mxu0
        %v1896 = vpop.f32.mrf.mxu0
        %v1897 = vadd.f32 0.0, %v1896
        %v1898 = vpop.f32.mrf.mxu0
        %1899 = vmatprep.mubr.bf16.mxu0 0
        %1900 = vmatmul.mubr.bf16.gmra.mxu0 %v1792
        %v1901 = vpop.f32.mrf.mxu0
        %v1902 = vadd.f32 0.0, %v1901
        %v1903 = vpop.f32.mrf.mxu0
        %v1904 = vpop.f32.mrf.mxu0
        %v1905 = vadd.f32 0.0, %v1904
        %v1906 = vpop.f32.mrf.mxu0
        %1907 = vmatprep.mubr.bf16.mxu0 0
        %1908 = vmatmul.mubr.bf16.gmra.mxu0 %v1795
        %v1909 = vpop.f32.mrf.mxu0
        %v1910 = vadd.f32 0.0, %v1909
        %v1911 = vpop.f32.mrf.mxu0
        %v1912 = vpop.f32.mrf.mxu0
        %v1913 = vadd.f32 0.0, %v1912
        %v1914 = vpop.f32.mrf.mxu0
        %1915 = vmatprep.mubr.bf16.mxu0 0
        %1916 = vmatmul.mubr.bf16.gmra.mxu0 %v1798
        %v1917 = vpop.f32.mrf.mxu0
        %v1918 = vadd.f32 0.0, %v1917
        %v1919 = vpop.f32.mrf.mxu0
        %v1920 = vpop.f32.mrf.mxu0
        %v1921 = vadd.f32 0.0, %v1920
        %v1922 = vpop.f32.mrf.mxu0
        %1923 = vmatprep.mubr.bf16.mxu0 0
        %1924 = vmatmul.mubr.bf16.gmra.mxu0 %v1801
        %v1925 = vpop.f32.mrf.mxu0
        %v1926 = vadd.f32 0.0, %v1925
        %v1927 = vpop.f32.mrf.mxu0
        %v1928 = vpop.f32.mrf.mxu0
        %v1929 = vadd.f32 0.0, %v1928
        %v1930 = vpop.f32.mrf.mxu0
        %1931 = vmatprep.mubr.bf16.mxu0 0
        %1932 = vmatmul.mubr.bf16.gmra.mxu0 %v1804
        %v1933 = vpop.f32.mrf.mxu0
        %v1934 = vadd.f32 0.0, %v1933
        %v1935 = vpop.f32.mrf.mxu0
        %v1936 = vpop.f32.mrf.mxu0
        %v1937 = vadd.f32 0.0, %v1936
        %v1938 = vpop.f32.mrf.mxu0
        %1939 = vmatprep.mubr.bf16.mxu0 0
        %1940 = vmatmul.mubr.bf16.gmra.mxu0 %v1807
        %v1941 = vpop.f32.mrf.mxu0
        %v1942 = vadd.f32 0.0, %v1941
        %v1943 = vpop.f32.mrf.mxu0
        %v1944 = vpop.f32.mrf.mxu0
        %v1945 = vadd.f32 0.0, %v1944
        %v1946 = vpop.f32.mrf.mxu0
        %1947 = vmatprep.mubr.bf16.mxu0 0
        %1948 = vmatmul.mubr.bf16.gmra.mxu0 %v1810
        %v1949 = vpop.f32.mrf.mxu0
        %v1950 = vadd.f32 0.0, %v1949
        %v1951 = vpop.f32.mrf.mxu0
        %v1952 = vpop.f32.mrf.mxu0
        %v1953 = vadd.f32 0.0, %v1952
        %v1954 = vpop.f32.mrf.mxu0
        %1955 = vmatprep.mubr.bf16.mxu0 0
        %1956 = vmatmul.mubr.bf16.gmra.mxu0 %v1813
        %v1957 = vpop.f32.mrf.mxu0
        %v1958 = vadd.f32 0.0, %v1957
        %v1959 = vpop.f32.mrf.mxu0
        %v1960 = vpop.f32.mrf.mxu0
        %v1961 = vadd.f32 0.0, %v1960
        %v1962 = vpop.f32.mrf.mxu0
        %1963 = vmatprep.mubr.bf16.mxu0 0
        %1964 = vmatmul.mubr.bf16.gmra.mxu0 %v1816
        %v1965 = vpop.f32.mrf.mxu0
        %v1966 = vadd.f32 0.0, %v1965
        %v1967 = vpop.f32.mrf.mxu0
        %v1968 = vpop.f32.mrf.mxu0
        %v1969 = vadd.f32 0.0, %v1968
        %v1970 = vpop.f32.mrf.mxu0
        %1971 = vmatprep.mubr.bf16.mxu0 0
        %1972 = vmatmul.mubr.bf16.gmra.mxu0 %v1819
        %v1973 = vpop.f32.mrf.mxu0
        %v1974 = vadd.f32 0.0, %v1973
        %v1975 = vpop.f32.mrf.mxu0
        %v1976 = vpop.f32.mrf.mxu0
        %v1977 = vadd.f32 0.0, %v1976
        %v1978 = vpop.f32.mrf.mxu0
        %1979 = vmatprep.mubr.bf16.mxu0 0
        %1980 = vmatmul.mubr.bf16.gmra.mxu0 %v1822
        %v1981 = vpop.f32.mrf.mxu0
        %v1982 = vadd.f32 0.0, %v1981
        %v1983 = vpop.f32.mrf.mxu0
        %v1984 = vpop.f32.mrf.mxu0
        %v1985 = vadd.f32 0.0, %v1984
        %v1986 = vpop.f32.mrf.mxu0
        %1987 = vdwg.mxu0
        %v1988 = vadd.f32 %v1629, %v1862
        %v1989 = vadd.f32 %v1630, %v1865
        %v1990 = vadd.f32 %v1631, %v1870
        %v1991 = vadd.f32 %v1632, %v1873
        %v1992 = vadd.f32 %v1633, %v1878
        %v1993 = vadd.f32 %v1634, %v1881
        %v1994 = vadd.f32 %v1635, %v1886
        %v1995 = vadd.f32 %v1636, %v1889
        %v1996 = vadd.f32 %v1637, %v1894
        %v1997 = vadd.f32 %v1638, %v1897
        %v1998 = vadd.f32 %v1639, %v1902
        %v1999 = vadd.f32 %v1640, %v1905
        %v2000 = vadd.f32 %v1641, %v1910
        %v2001 = vadd.f32 %v1642, %v1913
        %v2002 = vadd.f32 %v1643, %v1918
        %v2003 = vadd.f32 %v1644, %v1921
        %v2004 = vadd.f32 %v1645, %v1926
        %v2005 = vadd.f32 %v1646, %v1929
        %v2006 = vadd.f32 %v1647, %v1934
        %v2007 = vadd.f32 %v1648, %v1937
        %v2008 = vadd.f32 %v1649, %v1942
        %v2009 = vadd.f32 %v1650, %v1945
        %v2010 = vadd.f32 %v1651, %v1950
        %v2011 = vadd.f32 %v1652, %v1953
        %v2012 = vadd.f32 %v1653, %v1958
        %v2013 = vadd.f32 %v1654, %v1961
        %v2014 = vadd.f32 %v1655, %v1966
        %v2015 = vadd.f32 %v1656, %v1969
        %v2016 = vadd.f32 %v1657, %v1974
        %v2017 = vadd.f32 %v1658, %v1977
        %v2018 = vadd.f32 %v1659, %v1982
        %v2019 = vadd.f32 %v1660, %v1985
        %v2020 = vld [vmem:[%s1661] sm:$0xf]
        %v2021 = vld [vmem:[%s1661 + $0x4] sm:$0xf]
        %v2022 = vld [vmem:[%s1661 + $0x8] sm:$0x1]
        %v2023 = vld [vmem:[%s1661 + $0xc] sm:$0xf]
        %v2024 = vld [vmem:[%s1661 + $0x10] sm:$0xf]
        %v2025 = vld [vmem:[%s1661 + $0x14] sm:$0x1]
        %v2026 = vld [vmem:[%s1661 + $0x18] sm:$0xf]
        %v2027 = vld [vmem:[%s1661 + $0x1c] sm:$0xf]
        %v2028 = vld [vmem:[%s1661 + $0x20] sm:$0x1]
        %v2029 = vld [vmem:[%s1661 + $0x24] sm:$0xf]
        %v2030 = vld [vmem:[%s1661 + $0x28] sm:$0xf]
        %v2031 = vld [vmem:[%s1661 + $0x2c] sm:$0x1]
        %v2032 = vld [vmem:[%s1661 + $0x30] sm:$0xf]
        %v2033 = vld [vmem:[%s1661 + $0x34] sm:$0xf]
        %v2034 = vld [vmem:[%s1661 + $0x38] sm:$0x1]
        %v2035 = vld [vmem:[%s1661 + $0x3c] sm:$0xf]
        %v2036 = vld [vmem:[%s1661 + $0x40] sm:$0xf]
        %v2037 = vld [vmem:[%s1661 + $0x44] sm:$0x1]
        %v2038 = vld [vmem:[%s1661 + $0x48] sm:$0xf]
        %v2039 = vld [vmem:[%s1661 + $0x4c] sm:$0xf]
        %v2040 = vld [vmem:[%s1661 + $0x50] sm:$0x1]
        %v2041 = vld [vmem:[%s1661 + $0x54] sm:$0xf]
        %v2042 = vld [vmem:[%s1661 + $0x58] sm:$0xf]
        %v2043 = vld [vmem:[%s1661 + $0x5c] sm:$0x1]
        %v2044 = vld [vmem:[%s1661 + $0x60] sm:$0xf]
        %v2045 = vld [vmem:[%s1661 + $0x64] sm:$0xf]
        %v2046 = vld [vmem:[%s1661 + $0x68] sm:$0x1]
        %v2047 = vld [vmem:[%s1661 + $0x6c] sm:$0xf]
        %v2048 = vld [vmem:[%s1661 + $0x70] sm:$0xf]
        %v2049 = vld [vmem:[%s1661 + $0x74] sm:$0x1]
        %v2050 = vld [vmem:[%s1661 + $0x78] sm:$0xf]
        %v2051 = vld [vmem:[%s1661 + $0x7c] sm:$0xf]
        %v2052 = vld [vmem:[%s1661 + $0x80] sm:$0x1]
        %v2053 = vld [vmem:[%s1661 + $0x84] sm:$0xf]
        %v2054 = vld [vmem:[%s1661 + $0x88] sm:$0xf]
        %v2055 = vld [vmem:[%s1661 + $0x8c] sm:$0x1]
        %v2056 = vld [vmem:[%s1661 + $0x90] sm:$0xf]
        %v2057 = vld [vmem:[%s1661 + $0x94] sm:$0xf]
        %v2058 = vld [vmem:[%s1661 + $0x98] sm:$0x1]
        %v2059 = vld [vmem:[%s1661 + $0x9c] sm:$0xf]
        %v2060 = vld [vmem:[%s1661 + $0xa0] sm:$0xf]
        %v2061 = vld [vmem:[%s1661 + $0xa4] sm:$0x1]
        %v2062 = vld [vmem:[%s1661 + $0xa8] sm:$0xf]
        %v2063 = vld [vmem:[%s1661 + $0xac] sm:$0xf]
        %v2064 = vld [vmem:[%s1661 + $0xb0] sm:$0x1]
        %v2065 = vld [vmem:[%s1661 + $0xb4] sm:$0xf]
        %v2066 = vld [vmem:[%s1661 + $0xb8] sm:$0xf]
        %v2067 = vld [vmem:[%s1661 + $0xbc] sm:$0x1]
        %v2069 = vshrl.u32 %v2020, 16
        %v2071 = vrot.slane %v2069, 4
        %v2072 = vshll.u32 %v2020, 16
        %v2074 = vrot.slane %v2072, 5
        %v2075 = vor.u32 %v2071, %v2074
        %v2076 = vrot.slane %v2075, 4
        %v2078 = vshll.u32 %v2021, 16
        %v2080 = vrot.slane %v2078, 5
        %v2081 = vsel %vm263, %v2076, %v2080
        %v2082 = vshrl.u32 %v2021, 16
        %v2084 = vrot.slane %v2082, 4
        %v2085 = vor.u32 %v2084, %v2080
        %v2086 = vrot.slane %v2085, 4
        %v2088 = vshll.u32 %v2022, 16
        %v2090 = vrot.slane %v2088, 5
        %v2091 = vsel %vm263, %v2086, %v2090
        %v2093 = vshrl.u32 %v2023, 16
        %v2095 = vrot.slane %v2093, 4
        %v2096 = vshll.u32 %v2023, 16
        %v2098 = vrot.slane %v2096, 5
        %v2099 = vor.u32 %v2095, %v2098
        %v2100 = vrot.slane %v2099, 4
        %v2102 = vshll.u32 %v2024, 16
        %v2104 = vrot.slane %v2102, 5
        %v2105 = vsel %vm263, %v2100, %v2104
        %v2106 = vshrl.u32 %v2024, 16
        %v2108 = vrot.slane %v2106, 4
        %v2109 = vor.u32 %v2108, %v2104
        %v2110 = vrot.slane %v2109, 4
        %v2112 = vshll.u32 %v2025, 16
        %v2114 = vrot.slane %v2112, 5
        %v2115 = vsel %vm263, %v2110, %v2114
        %v2117 = vshrl.u32 %v2026, 16
        %v2119 = vrot.slane %v2117, 4
        %v2120 = vshll.u32 %v2026, 16
        %v2122 = vrot.slane %v2120, 5
        %v2123 = vor.u32 %v2119, %v2122
        %v2124 = vrot.slane %v2123, 4
        %v2126 = vshll.u32 %v2027, 16
        %v2128 = vrot.slane %v2126, 5
        %v2129 = vsel %vm263, %v2124, %v2128
        %v2130 = vshrl.u32 %v2027, 16
        %v2132 = vrot.slane %v2130, 4
        %v2133 = vor.u32 %v2132, %v2128
        %v2134 = vrot.slane %v2133, 4
        %v2136 = vshll.u32 %v2028, 16
        %v2138 = vrot.slane %v2136, 5
        %v2139 = vsel %vm263, %v2134, %v2138
        %v2141 = vshrl.u32 %v2029, 16
        %v2143 = vrot.slane %v2141, 4
        %v2144 = vshll.u32 %v2029, 16
        %v2146 = vrot.slane %v2144, 5
        %v2147 = vor.u32 %v2143, %v2146
        %v2148 = vrot.slane %v2147, 4
        %v2150 = vshll.u32 %v2030, 16
        %v2152 = vrot.slane %v2150, 5
        %v2153 = vsel %vm263, %v2148, %v2152
        %v2154 = vshrl.u32 %v2030, 16
        %v2156 = vrot.slane %v2154, 4
        %v2157 = vor.u32 %v2156, %v2152
        %v2158 = vrot.slane %v2157, 4
        %v2160 = vshll.u32 %v2031, 16
        %v2162 = vrot.slane %v2160, 5
        %v2163 = vsel %vm263, %v2158, %v2162
        %v2165 = vshrl.u32 %v2032, 16
        %v2167 = vrot.slane %v2165, 4
        %v2168 = vshll.u32 %v2032, 16
        %v2170 = vrot.slane %v2168, 5
        %v2171 = vor.u32 %v2167, %v2170
        %v2172 = vrot.slane %v2171, 4
        %v2174 = vshll.u32 %v2033, 16
        %v2176 = vrot.slane %v2174, 5
        %v2177 = vsel %vm263, %v2172, %v2176
        %v2178 = vshrl.u32 %v2033, 16
        %v2180 = vrot.slane %v2178, 4
        %v2181 = vor.u32 %v2180, %v2176
        %v2182 = vrot.slane %v2181, 4
        %v2184 = vshll.u32 %v2034, 16
        %v2186 = vrot.slane %v2184, 5
        %v2187 = vsel %vm263, %v2182, %v2186
        %v2189 = vshrl.u32 %v2035, 16
        %v2191 = vrot.slane %v2189, 4
        %v2192 = vshll.u32 %v2035, 16
        %v2194 = vrot.slane %v2192, 5
        %v2195 = vor.u32 %v2191, %v2194
        %v2196 = vrot.slane %v2195, 4
        %v2198 = vshll.u32 %v2036, 16
        %v2200 = vrot.slane %v2198, 5
        %v2201 = vsel %vm263, %v2196, %v2200
        %v2202 = vshrl.u32 %v2036, 16
        %v2204 = vrot.slane %v2202, 4
        %v2205 = vor.u32 %v2204, %v2200
        %v2206 = vrot.slane %v2205, 4
        %v2208 = vshll.u32 %v2037, 16
        %v2210 = vrot.slane %v2208, 5
        %v2211 = vsel %vm263, %v2206, %v2210
        %v2213 = vshrl.u32 %v2038, 16
        %v2215 = vrot.slane %v2213, 4
        %v2216 = vshll.u32 %v2038, 16
        %v2218 = vrot.slane %v2216, 5
        %v2219 = vor.u32 %v2215, %v2218
        %v2220 = vrot.slane %v2219, 4
        %v2222 = vshll.u32 %v2039, 16
        %v2224 = vrot.slane %v2222, 5
        %v2225 = vsel %vm263, %v2220, %v2224
        %v2226 = vshrl.u32 %v2039, 16
        %v2228 = vrot.slane %v2226, 4
        %v2229 = vor.u32 %v2228, %v2224
        %v2230 = vrot.slane %v2229, 4
        %v2232 = vshll.u32 %v2040, 16
        %v2234 = vrot.slane %v2232, 5
        %v2235 = vsel %vm263, %v2230, %v2234
        %v2237 = vshrl.u32 %v2041, 16
        %v2239 = vrot.slane %v2237, 4
        %v2240 = vshll.u32 %v2041, 16
        %v2242 = vrot.slane %v2240, 5
        %v2243 = vor.u32 %v2239, %v2242
        %v2244 = vrot.slane %v2243, 4
        %v2246 = vshll.u32 %v2042, 16
        %v2248 = vrot.slane %v2246, 5
        %v2249 = vsel %vm263, %v2244, %v2248
        %v2250 = vshrl.u32 %v2042, 16
        %v2252 = vrot.slane %v2250, 4
        %v2253 = vor.u32 %v2252, %v2248
        %v2254 = vrot.slane %v2253, 4
        %v2256 = vshll.u32 %v2043, 16
        %v2258 = vrot.slane %v2256, 5
        %v2259 = vsel %vm263, %v2254, %v2258
        %v2261 = vshrl.u32 %v2044, 16
        %v2263 = vrot.slane %v2261, 4
        %v2264 = vshll.u32 %v2044, 16
        %v2266 = vrot.slane %v2264, 5
        %v2267 = vor.u32 %v2263, %v2266
        %v2268 = vrot.slane %v2267, 4
        %v2270 = vshll.u32 %v2045, 16
        %v2272 = vrot.slane %v2270, 5
        %v2273 = vsel %vm263, %v2268, %v2272
        %v2274 = vshrl.u32 %v2045, 16
        %v2276 = vrot.slane %v2274, 4
        %v2277 = vor.u32 %v2276, %v2272
        %v2278 = vrot.slane %v2277, 4
        %v2280 = vshll.u32 %v2046, 16
        %v2282 = vrot.slane %v2280, 5
        %v2283 = vsel %vm263, %v2278, %v2282
        %v2285 = vshrl.u32 %v2047, 16
        %v2287 = vrot.slane %v2285, 4
        %v2288 = vshll.u32 %v2047, 16
        %v2290 = vrot.slane %v2288, 5
        %v2291 = vor.u32 %v2287, %v2290
        %v2292 = vrot.slane %v2291, 4
        %v2294 = vshll.u32 %v2048, 16
        %v2296 = vrot.slane %v2294, 5
        %v2297 = vsel %vm263, %v2292, %v2296
        %v2298 = vshrl.u32 %v2048, 16
        %v2300 = vrot.slane %v2298, 4
        %v2301 = vor.u32 %v2300, %v2296
        %v2302 = vrot.slane %v2301, 4
        %v2304 = vshll.u32 %v2049, 16
        %v2306 = vrot.slane %v2304, 5
        %v2307 = vsel %vm263, %v2302, %v2306
        %v2309 = vshrl.u32 %v2050, 16
        %v2311 = vrot.slane %v2309, 4
        %v2312 = vshll.u32 %v2050, 16
        %v2314 = vrot.slane %v2312, 5
        %v2315 = vor.u32 %v2311, %v2314
        %v2316 = vrot.slane %v2315, 4
        %v2318 = vshll.u32 %v2051, 16
        %v2320 = vrot.slane %v2318, 5
        %v2321 = vsel %vm263, %v2316, %v2320
        %v2322 = vshrl.u32 %v2051, 16
        %v2324 = vrot.slane %v2322, 4
        %v2325 = vor.u32 %v2324, %v2320
        %v2326 = vrot.slane %v2325, 4
        %v2328 = vshll.u32 %v2052, 16
        %v2330 = vrot.slane %v2328, 5
        %v2331 = vsel %vm263, %v2326, %v2330
        %v2333 = vshrl.u32 %v2053, 16
        %v2335 = vrot.slane %v2333, 4
        %v2336 = vshll.u32 %v2053, 16
        %v2338 = vrot.slane %v2336, 5
        %v2339 = vor.u32 %v2335, %v2338
        %v2340 = vrot.slane %v2339, 4
        %v2342 = vshll.u32 %v2054, 16
        %v2344 = vrot.slane %v2342, 5
        %v2345 = vsel %vm263, %v2340, %v2344
        %v2346 = vshrl.u32 %v2054, 16
        %v2348 = vrot.slane %v2346, 4
        %v2349 = vor.u32 %v2348, %v2344
        %v2350 = vrot.slane %v2349, 4
        %v2352 = vshll.u32 %v2055, 16
        %v2354 = vrot.slane %v2352, 5
        %v2355 = vsel %vm263, %v2350, %v2354
        %v2357 = vshrl.u32 %v2056, 16
        %v2359 = vrot.slane %v2357, 4
        %v2360 = vshll.u32 %v2056, 16
        %v2362 = vrot.slane %v2360, 5
        %v2363 = vor.u32 %v2359, %v2362
        %v2364 = vrot.slane %v2363, 4
        %v2366 = vshll.u32 %v2057, 16
        %v2368 = vrot.slane %v2366, 5
        %v2369 = vsel %vm263, %v2364, %v2368
        %v2370 = vshrl.u32 %v2057, 16
        %v2372 = vrot.slane %v2370, 4
        %v2373 = vor.u32 %v2372, %v2368
        %v2374 = vrot.slane %v2373, 4
        %v2376 = vshll.u32 %v2058, 16
        %v2378 = vrot.slane %v2376, 5
        %v2379 = vsel %vm263, %v2374, %v2378
        %v2381 = vshrl.u32 %v2059, 16
        %v2383 = vrot.slane %v2381, 4
        %v2384 = vshll.u32 %v2059, 16
        %v2386 = vrot.slane %v2384, 5
        %v2387 = vor.u32 %v2383, %v2386
        %v2388 = vrot.slane %v2387, 4
        %v2390 = vshll.u32 %v2060, 16
        %v2392 = vrot.slane %v2390, 5
        %v2393 = vsel %vm263, %v2388, %v2392
        %v2394 = vshrl.u32 %v2060, 16
        %v2396 = vrot.slane %v2394, 4
        %v2397 = vor.u32 %v2396, %v2392
        %v2398 = vrot.slane %v2397, 4
        %v2400 = vshll.u32 %v2061, 16
        %v2402 = vrot.slane %v2400, 5
        %v2403 = vsel %vm263, %v2398, %v2402
        %v2405 = vshrl.u32 %v2062, 16
        %v2407 = vrot.slane %v2405, 4
        %v2408 = vshll.u32 %v2062, 16
        %v2410 = vrot.slane %v2408, 5
        %v2411 = vor.u32 %v2407, %v2410
        %v2412 = vrot.slane %v2411, 4
        %v2414 = vshll.u32 %v2063, 16
        %v2416 = vrot.slane %v2414, 5
        %v2417 = vsel %vm263, %v2412, %v2416
        %v2418 = vshrl.u32 %v2063, 16
        %v2420 = vrot.slane %v2418, 4
        %v2421 = vor.u32 %v2420, %v2416
        %v2422 = vrot.slane %v2421, 4
        %v2424 = vshll.u32 %v2064, 16
        %v2426 = vrot.slane %v2424, 5
        %v2427 = vsel %vm263, %v2422, %v2426
        %v2429 = vshrl.u32 %v2065, 16
        %v2431 = vrot.slane %v2429, 4
        %v2432 = vshll.u32 %v2065, 16
        %v2434 = vrot.slane %v2432, 5
        %v2435 = vor.u32 %v2431, %v2434
        %v2436 = vrot.slane %v2435, 4
        %v2438 = vshll.u32 %v2066, 16
        %v2440 = vrot.slane %v2438, 5
        %v2441 = vsel %vm263, %v2436, %v2440
        %v2442 = vshrl.u32 %v2066, 16
        %v2444 = vrot.slane %v2442, 4
        %v2445 = vor.u32 %v2444, %v2440
        %v2446 = vrot.slane %v2445, 4
        %v2448 = vshll.u32 %v2067, 16
        %v2450 = vrot.slane %v2448, 5
        %v2451 = vsel %vm263, %v2446, %v2450
        %s2452 = scalar_lea.vmem %s1, 8
        %v2453 = vld [vmem:[%s2452] sm:$0x3]
        %v2454 = vunpack.c.l.b16 %v2081
        %v2455 = vunpack.c.l.b16 %v2091
        %v2456 = vunpack.c.l.b16 %v2105
        %v2457 = vunpack.c.l.b16 %v2115
        %v2458 = vunpack.c.l.b16 %v2129
        %v2459 = vunpack.c.l.b16 %v2139
        %v2460 = vunpack.c.l.b16 %v2153
        %v2461 = vunpack.c.l.b16 %v2163
        %v2462 = vunpack.c.l.b16 %v2177
        %v2463 = vunpack.c.l.b16 %v2187
        %v2464 = vunpack.c.l.b16 %v2201
        %v2465 = vunpack.c.l.b16 %v2211
        %v2466 = vunpack.c.l.b16 %v2225
        %v2467 = vunpack.c.l.b16 %v2235
        %v2468 = vunpack.c.l.b16 %v2249
        %v2469 = vunpack.c.l.b16 %v2259
        %v2470 = vunpack.c.l.b16 %v2273
        %v2471 = vunpack.c.l.b16 %v2283
        %v2472 = vunpack.c.l.b16 %v2297
        %v2473 = vunpack.c.l.b16 %v2307
        %v2474 = vunpack.c.l.b16 %v2321
        %v2475 = vunpack.c.l.b16 %v2331
        %v2476 = vunpack.c.l.b16 %v2345
        %v2477 = vunpack.c.l.b16 %v2355
        %v2478 = vunpack.c.l.b16 %v2369
        %v2479 = vunpack.c.l.b16 %v2379
        %v2480 = vunpack.c.l.b16 %v2393
        %v2481 = vunpack.c.l.b16 %v2403
        %v2482 = vunpack.c.l.b16 %v2417
        %v2483 = vunpack.c.l.b16 %v2427
        %v2484 = vunpack.c.l.b16 %v2441
        %v2485 = vunpack.c.l.b16 %v2451
        %v2486 = vpack.c.b16 %v2455, %v2454
        %v2487 = vpack.c.b16 %v2457, %v2456
        %v2488 = vpack.c.b16 %v2459, %v2458
        %v2489 = vpack.c.b16 %v2461, %v2460
        %v2490 = vpack.c.b16 %v2463, %v2462
        %v2491 = vpack.c.b16 %v2465, %v2464
        %v2492 = vpack.c.b16 %v2467, %v2466
        %v2493 = vpack.c.b16 %v2469, %v2468
        %v2494 = vpack.c.b16 %v2471, %v2470
        %v2495 = vpack.c.b16 %v2473, %v2472
        %v2496 = vpack.c.b16 %v2475, %v2474
        %v2497 = vpack.c.b16 %v2477, %v2476
        %v2498 = vpack.c.b16 %v2479, %v2478
        %v2499 = vpack.c.b16 %v2481, %v2480
        %v2500 = vpack.c.b16 %v2483, %v2482
        %v2501 = vpack.c.b16 %v2485, %v2484
        %v2503 = vsel %vm698, %v2486, 0
        %v2506 = vsel %vm698, %v2487, 0
        %v2509 = vsel %vm698, %v2488, 0
        %v2512 = vsel %vm698, %v2489, 0
        %v2515 = vsel %vm698, %v2490, 0
        %v2518 = vsel %vm698, %v2491, 0
        %v2521 = vsel %vm698, %v2492, 0
        %v2524 = vsel %vm698, %v2493, 0
        %v2527 = vsel %vm698, %v2494, 0
        %v2530 = vsel %vm698, %v2495, 0
        %v2533 = vsel %vm698, %v2496, 0
        %v2536 = vsel %vm698, %v2497, 0
        %v2539 = vsel %vm698, %v2498, 0
        %v2542 = vsel %vm698, %v2499, 0
        %v2545 = vsel %vm698, %v2500, 0
        %v2548 = vsel %vm698, %v2501, 0
        %v2551 = vsel %vm747, %v2453, 0
        %2553 = vmatprep.subr.bf16.mxu0 0
        %2554 = vmatpush1.bf16.msra.mxu0 0
        %2555 = vmatprep.subr.bf16.mxu0 0
        %2556 = vmatpush1.bf16.msra.mxu0 0
        %2557 = vmatprep.subr.bf16.mxu0 0
        %2558 = vmatpush1.bf16.msra.mxu0 0
        %2559 = vmatprep.subr.bf16.mxu0 0
        %2560 = vmatpush1.bf16.msra.mxu0 0
        %2561 = vmatprep.subr.bf16.mxu0 0
        %2562 = vmatpush1.bf16.msra.mxu0 0
        %2563 = vmatprep.subr.bf16.mxu0 0
        %2564 = vmatpush1.bf16.msra.mxu0 0
        %2565 = vmatprep.subr.bf16.mxu0 0
        %2566 = vmatpush1.bf16.msra.mxu0 0
        %2567 = vmatprep.subr.bf16.mxu0 0
        %2568 = vmatpush1.bf16.msra.mxu0 %v2551
        %2569 = vmatprep.subr.bf16.mxu0 0
        %2570 = vmatpush2.bf16.msra.mxu0 0
        %2571 = vmatprep.subr.bf16.mxu0 0
        %2572 = vmatpush2.bf16.msra.mxu0 0
        %2573 = vmatprep.subr.bf16.mxu0 0
        %2574 = vmatpush2.bf16.msra.mxu0 0
        %2575 = vmatprep.subr.bf16.mxu0 0
        %2576 = vmatpush2.bf16.msra.mxu0 0
        %2577 = vmatprep.subr.bf16.mxu0 0
        %2578 = vmatpush2.bf16.msra.mxu0 0
        %2579 = vmatprep.subr.bf16.mxu0 0
        %2580 = vmatpush2.bf16.msra.mxu0 0
        %2581 = vmatprep.subr.bf16.mxu0 0
        %2582 = vmatpush2.bf16.msra.mxu0 0
        %2583 = vmatprep.subr.bf16.mxu0 0
        %2584 = vmatpush2.bf16.msra.mxu0 0
        %2585 = vmatprep.mubr.bf16.mxu0 0
        %2586 = vmatmul.mubr.bf16.gmra.mxu0 %v2503
        %v2587 = vpop.f32.mrf.mxu0
        %v2588 = vadd.f32 0.0, %v2587
        %v2589 = vpop.f32.mrf.mxu0
        %v2590 = vpop.f32.mrf.mxu0
        %v2591 = vadd.f32 0.0, %v2590
        %v2592 = vpop.f32.mrf.mxu0
        %2593 = vmatprep.mubr.bf16.mxu0 0
        %2594 = vmatmul.mubr.bf16.gmra.mxu0 %v2506
        %v2595 = vpop.f32.mrf.mxu0
        %v2596 = vadd.f32 0.0, %v2595
        %v2597 = vpop.f32.mrf.mxu0
        %v2598 = vpop.f32.mrf.mxu0
        %v2599 = vadd.f32 0.0, %v2598
        %v2600 = vpop.f32.mrf.mxu0
        %2601 = vmatprep.mubr.bf16.mxu0 0
        %2602 = vmatmul.mubr.bf16.gmra.mxu0 %v2509
        %v2603 = vpop.f32.mrf.mxu0
        %v2604 = vadd.f32 0.0, %v2603
        %v2605 = vpop.f32.mrf.mxu0
        %v2606 = vpop.f32.mrf.mxu0
        %v2607 = vadd.f32 0.0, %v2606
        %v2608 = vpop.f32.mrf.mxu0
        %2609 = vmatprep.mubr.bf16.mxu0 0
        %2610 = vmatmul.mubr.bf16.gmra.mxu0 %v2512
        %v2611 = vpop.f32.mrf.mxu0
        %v2612 = vadd.f32 0.0, %v2611
        %v2613 = vpop.f32.mrf.mxu0
        %v2614 = vpop.f32.mrf.mxu0
        %v2615 = vadd.f32 0.0, %v2614
        %v2616 = vpop.f32.mrf.mxu0
        %2617 = vmatprep.mubr.bf16.mxu0 0
        %2618 = vmatmul.mubr.bf16.gmra.mxu0 %v2515
        %v2619 = vpop.f32.mrf.mxu0
        %v2620 = vadd.f32 0.0, %v2619
        %v2621 = vpop.f32.mrf.mxu0
        %v2622 = vpop.f32.mrf.mxu0
        %v2623 = vadd.f32 0.0, %v2622
        %v2624 = vpop.f32.mrf.mxu0
        %2625 = vmatprep.mubr.bf16.mxu0 0
        %2626 = vmatmul.mubr.bf16.gmra.mxu0 %v2518
        %v2627 = vpop.f32.mrf.mxu0
        %v2628 = vadd.f32 0.0, %v2627
        %v2629 = vpop.f32.mrf.mxu0
        %v2630 = vpop.f32.mrf.mxu0
        %v2631 = vadd.f32 0.0, %v2630
        %v2632 = vpop.f32.mrf.mxu0
        %2633 = vmatprep.mubr.bf16.mxu0 0
        %2634 = vmatmul.mubr.bf16.gmra.mxu0 %v2521
        %v2635 = vpop.f32.mrf.mxu0
        %v2636 = vadd.f32 0.0, %v2635
        %v2637 = vpop.f32.mrf.mxu0
        %v2638 = vpop.f32.mrf.mxu0
        %v2639 = vadd.f32 0.0, %v2638
        %v2640 = vpop.f32.mrf.mxu0
        %2641 = vmatprep.mubr.bf16.mxu0 0
        %2642 = vmatmul.mubr.bf16.gmra.mxu0 %v2524
        %v2643 = vpop.f32.mrf.mxu0
        %v2644 = vadd.f32 0.0, %v2643
        %v2645 = vpop.f32.mrf.mxu0
        %v2646 = vpop.f32.mrf.mxu0
        %v2647 = vadd.f32 0.0, %v2646
        %v2648 = vpop.f32.mrf.mxu0
        %2649 = vmatprep.mubr.bf16.mxu0 0
        %2650 = vmatmul.mubr.bf16.gmra.mxu0 %v2527
        %v2651 = vpop.f32.mrf.mxu0
        %v2652 = vadd.f32 0.0, %v2651
        %v2653 = vpop.f32.mrf.mxu0
        %v2654 = vpop.f32.mrf.mxu0
        %v2655 = vadd.f32 0.0, %v2654
        %v2656 = vpop.f32.mrf.mxu0
        %2657 = vmatprep.mubr.bf16.mxu0 0
        %2658 = vmatmul.mubr.bf16.gmra.mxu0 %v2530
        %v2659 = vpop.f32.mrf.mxu0
        %v2660 = vadd.f32 0.0, %v2659
        %v2661 = vpop.f32.mrf.mxu0
        %v2662 = vpop.f32.mrf.mxu0
        %v2663 = vadd.f32 0.0, %v2662
        %v2664 = vpop.f32.mrf.mxu0
        %2665 = vmatprep.mubr.bf16.mxu0 0
        %2666 = vmatmul.mubr.bf16.gmra.mxu0 %v2533
        %v2667 = vpop.f32.mrf.mxu0
        %v2668 = vadd.f32 0.0, %v2667
        %v2669 = vpop.f32.mrf.mxu0
        %v2670 = vpop.f32.mrf.mxu0
        %v2671 = vadd.f32 0.0, %v2670
        %v2672 = vpop.f32.mrf.mxu0
        %2673 = vmatprep.mubr.bf16.mxu0 0
        %2674 = vmatmul.mubr.bf16.gmra.mxu0 %v2536
        %v2675 = vpop.f32.mrf.mxu0
        %v2676 = vadd.f32 0.0, %v2675
        %v2677 = vpop.f32.mrf.mxu0
        %v2678 = vpop.f32.mrf.mxu0
        %v2679 = vadd.f32 0.0, %v2678
        %v2680 = vpop.f32.mrf.mxu0
        %2681 = vmatprep.mubr.bf16.mxu0 0
        %2682 = vmatmul.mubr.bf16.gmra.mxu0 %v2539
        %v2683 = vpop.f32.mrf.mxu0
        %v2684 = vadd.f32 0.0, %v2683
        %v2685 = vpop.f32.mrf.mxu0
        %v2686 = vpop.f32.mrf.mxu0
        %v2687 = vadd.f32 0.0, %v2686
        %v2688 = vpop.f32.mrf.mxu0
        %2689 = vmatprep.mubr.bf16.mxu0 0
        %2690 = vmatmul.mubr.bf16.gmra.mxu0 %v2542
        %v2691 = vpop.f32.mrf.mxu0
        %v2692 = vadd.f32 0.0, %v2691
        %v2693 = vpop.f32.mrf.mxu0
        %v2694 = vpop.f32.mrf.mxu0
        %v2695 = vadd.f32 0.0, %v2694
        %v2696 = vpop.f32.mrf.mxu0
        %2697 = vmatprep.mubr.bf16.mxu0 0
        %2698 = vmatmul.mubr.bf16.gmra.mxu0 %v2545
        %v2699 = vpop.f32.mrf.mxu0
        %v2700 = vadd.f32 0.0, %v2699
        %v2701 = vpop.f32.mrf.mxu0
        %v2702 = vpop.f32.mrf.mxu0
        %v2703 = vadd.f32 0.0, %v2702
        %v2704 = vpop.f32.mrf.mxu0
        %2705 = vmatprep.mubr.bf16.mxu0 0
        %2706 = vmatmul.mubr.bf16.gmra.mxu0 %v2548
        %v2707 = vpop.f32.mrf.mxu0
        %v2708 = vadd.f32 0.0, %v2707
        %v2709 = vpop.f32.mrf.mxu0
        %v2710 = vpop.f32.mrf.mxu0
        %v2711 = vadd.f32 0.0, %v2710
        %v2712 = vpop.f32.mrf.mxu0
        %2713 = vdwg.mxu0
        %v2714 = vadd.f32 %v1988, %v2588
        %v2715 = vadd.f32 %v1989, %v2591
        %v2716 = vadd.f32 %v1990, %v2596
        %v2717 = vadd.f32 %v1991, %v2599
        %v2718 = vadd.f32 %v1992, %v2604
        %v2719 = vadd.f32 %v1993, %v2607
        %v2720 = vadd.f32 %v1994, %v2612
        %v2721 = vadd.f32 %v1995, %v2615
        %v2722 = vadd.f32 %v1996, %v2620
        %v2723 = vadd.f32 %v1997, %v2623
        %v2724 = vadd.f32 %v1998, %v2628
        %v2725 = vadd.f32 %v1999, %v2631
        %v2726 = vadd.f32 %v2000, %v2636
        %v2727 = vadd.f32 %v2001, %v2639
        %v2728 = vadd.f32 %v2002, %v2644
        %v2729 = vadd.f32 %v2003, %v2647
        %v2730 = vadd.f32 %v2004, %v2652
        %v2731 = vadd.f32 %v2005, %v2655
        %v2732 = vadd.f32 %v2006, %v2660
        %v2733 = vadd.f32 %v2007, %v2663
        %v2734 = vadd.f32 %v2008, %v2668
        %v2735 = vadd.f32 %v2009, %v2671
        %v2736 = vadd.f32 %v2010, %v2676
        %v2737 = vadd.f32 %v2011, %v2679
        %v2738 = vadd.f32 %v2012, %v2684
        %v2739 = vadd.f32 %v2013, %v2687
        %v2740 = vadd.f32 %v2014, %v2692
        %v2741 = vadd.f32 %v2015, %v2695
        %v2742 = vadd.f32 %v2016, %v2700
        %v2743 = vadd.f32 %v2017, %v2703
        %v2744 = vadd.f32 %v2018, %v2708
        %v2745 = vadd.f32 %v2019, %v2711
        %v2746 = vld [vmem:[%s1661] sm:$0xe]
        %v2747 = vld [vmem:[%s1661 + $0xc] sm:$0xe]
        %v2748 = vld [vmem:[%s1661 + $0x18] sm:$0xe]
        %v2749 = vld [vmem:[%s1661 + $0x24] sm:$0xe]
        %v2750 = vld [vmem:[%s1661 + $0x30] sm:$0xe]
        %v2751 = vld [vmem:[%s1661 + $0x3c] sm:$0xe]
        %v2752 = vld [vmem:[%s1661 + $0x48] sm:$0xe]
        %v2753 = vld [vmem:[%s1661 + $0x54] sm:$0xe]
        %v2754 = vld [vmem:[%s1661 + $0x60] sm:$0xe]
        %v2755 = vld [vmem:[%s1661 + $0x6c] sm:$0xe]
        %v2756 = vld [vmem:[%s1661 + $0x78] sm:$0xe]
        %v2757 = vld [vmem:[%s1661 + $0x84] sm:$0xe]
        %v2758 = vld [vmem:[%s1661 + $0x90] sm:$0xe]
        %v2759 = vld [vmem:[%s1661 + $0x9c] sm:$0xe]
        %v2760 = vld [vmem:[%s1661 + $0xa8] sm:$0xe]
        %v2761 = vld [vmem:[%s1661 + $0xb4] sm:$0xe]
        %v2810 = vrot.slane %v2746, 5
        %v2811 = vrot.slane %v2810, 4
        %v2812 = vrot.slane %v2021, 5
        %v2813 = vsel %vm1254, %v2811, %v2812
        %v2814 = vrot.slane %v2812, 4
        %v2815 = vrot.slane %v2022, 5
        %v2816 = vsel %vm1254, %v2814, %v2815
        %v2817 = vrot.slane %v2747, 5
        %v2818 = vrot.slane %v2817, 4
        %v2819 = vrot.slane %v2024, 5
        %v2820 = vsel %vm1254, %v2818, %v2819
        %v2821 = vrot.slane %v2819, 4
        %v2822 = vrot.slane %v2025, 5
        %v2823 = vsel %vm1254, %v2821, %v2822
        %v2824 = vrot.slane %v2748, 5
        %v2825 = vrot.slane %v2824, 4
        %v2826 = vrot.slane %v2027, 5
        %v2827 = vsel %vm1254, %v2825, %v2826
        %v2828 = vrot.slane %v2826, 4
        %v2829 = vrot.slane %v2028, 5
        %v2830 = vsel %vm1254, %v2828, %v2829
        %v2831 = vrot.slane %v2749, 5
        %v2832 = vrot.slane %v2831, 4
        %v2833 = vrot.slane %v2030, 5
        %v2834 = vsel %vm1254, %v2832, %v2833
        %v2835 = vrot.slane %v2833, 4
        %v2836 = vrot.slane %v2031, 5
        %v2837 = vsel %vm1254, %v2835, %v2836
        %v2838 = vrot.slane %v2750, 5
        %v2839 = vrot.slane %v2838, 4
        %v2840 = vrot.slane %v2033, 5
        %v2841 = vsel %vm1254, %v2839, %v2840
        %v2842 = vrot.slane %v2840, 4
        %v2843 = vrot.slane %v2034, 5
        %v2844 = vsel %vm1254, %v2842, %v2843
        %v2845 = vrot.slane %v2751, 5
        %v2846 = vrot.slane %v2845, 4
        %v2847 = vrot.slane %v2036, 5
        %v2848 = vsel %vm1254, %v2846, %v2847
        %v2849 = vrot.slane %v2847, 4
        %v2850 = vrot.slane %v2037, 5
        %v2851 = vsel %vm1254, %v2849, %v2850
        %v2852 = vrot.slane %v2752, 5
        %v2853 = vrot.slane %v2852, 4
        %v2854 = vrot.slane %v2039, 5
        %v2855 = vsel %vm1254, %v2853, %v2854
        %v2856 = vrot.slane %v2854, 4
        %v2857 = vrot.slane %v2040, 5
        %v2858 = vsel %vm1254, %v2856, %v2857
        %v2859 = vrot.slane %v2753, 5
        %v2860 = vrot.slane %v2859, 4
        %v2861 = vrot.slane %v2042, 5
        %v2862 = vsel %vm1254, %v2860, %v2861
        %v2863 = vrot.slane %v2861, 4
        %v2864 = vrot.slane %v2043, 5
        %v2865 = vsel %vm1254, %v2863, %v2864
        %v2866 = vrot.slane %v2754, 5
        %v2867 = vrot.slane %v2866, 4
        %v2868 = vrot.slane %v2045, 5
        %v2869 = vsel %vm1254, %v2867, %v2868
        %v2870 = vrot.slane %v2868, 4
        %v2871 = vrot.slane %v2046, 5
        %v2872 = vsel %vm1254, %v2870, %v2871
        %v2873 = vrot.slane %v2755, 5
        %v2874 = vrot.slane %v2873, 4
        %v2875 = vrot.slane %v2048, 5
        %v2876 = vsel %vm1254, %v2874, %v2875
        %v2877 = vrot.slane %v2875, 4
        %v2878 = vrot.slane %v2049, 5
        %v2879 = vsel %vm1254, %v2877, %v2878
        %v2880 = vrot.slane %v2756, 5
        %v2881 = vrot.slane %v2880, 4
        %v2882 = vrot.slane %v2051, 5
        %v2883 = vsel %vm1254, %v2881, %v2882
        %v2884 = vrot.slane %v2882, 4
        %v2885 = vrot.slane %v2052, 5
        %v2886 = vsel %vm1254, %v2884, %v2885
        %v2887 = vrot.slane %v2757, 5
        %v2888 = vrot.slane %v2887, 4
        %v2889 = vrot.slane %v2054, 5
        %v2890 = vsel %vm1254, %v2888, %v2889
        %v2891 = vrot.slane %v2889, 4
        %v2892 = vrot.slane %v2055, 5
        %v2893 = vsel %vm1254, %v2891, %v2892
        %v2894 = vrot.slane %v2758, 5
        %v2895 = vrot.slane %v2894, 4
        %v2896 = vrot.slane %v2057, 5
        %v2897 = vsel %vm1254, %v2895, %v2896
        %v2898 = vrot.slane %v2896, 4
        %v2899 = vrot.slane %v2058, 5
        %v2900 = vsel %vm1254, %v2898, %v2899
        %v2901 = vrot.slane %v2759, 5
        %v2902 = vrot.slane %v2901, 4
        %v2903 = vrot.slane %v2060, 5
        %v2904 = vsel %vm1254, %v2902, %v2903
        %v2905 = vrot.slane %v2903, 4
        %v2906 = vrot.slane %v2061, 5
        %v2907 = vsel %vm1254, %v2905, %v2906
        %v2908 = vrot.slane %v2760, 5
        %v2909 = vrot.slane %v2908, 4
        %v2910 = vrot.slane %v2063, 5
        %v2911 = vsel %vm1254, %v2909, %v2910
        %v2912 = vrot.slane %v2910, 4
        %v2913 = vrot.slane %v2064, 5
        %v2914 = vsel %vm1254, %v2912, %v2913
        %v2915 = vrot.slane %v2761, 5
        %v2916 = vrot.slane %v2915, 4
        %v2917 = vrot.slane %v2066, 5
        %v2918 = vsel %vm1254, %v2916, %v2917
        %v2919 = vrot.slane %v2917, 4
        %v2920 = vrot.slane %v2067, 5
        %v2921 = vsel %vm1254, %v2919, %v2920
        %s2922 = scalar_lea.vmem %s1, 10
        %v2923 = vld [vmem:[%s2922] sm:$0x3]
        %v2924 = vunpack.c.l.b16 %v2813
        %v2925 = vunpack.c.l.b16 %v2816
        %v2926 = vunpack.c.l.b16 %v2820
        %v2927 = vunpack.c.l.b16 %v2823
        %v2928 = vunpack.c.l.b16 %v2827
        %v2929 = vunpack.c.l.b16 %v2830
        %v2930 = vunpack.c.l.b16 %v2834
        %v2931 = vunpack.c.l.b16 %v2837
        %v2932 = vunpack.c.l.b16 %v2841
        %v2933 = vunpack.c.l.b16 %v2844
        %v2934 = vunpack.c.l.b16 %v2848
        %v2935 = vunpack.c.l.b16 %v2851
        %v2936 = vunpack.c.l.b16 %v2855
        %v2937 = vunpack.c.l.b16 %v2858
        %v2938 = vunpack.c.l.b16 %v2862
        %v2939 = vunpack.c.l.b16 %v2865
        %v2940 = vunpack.c.l.b16 %v2869
        %v2941 = vunpack.c.l.b16 %v2872
        %v2942 = vunpack.c.l.b16 %v2876
        %v2943 = vunpack.c.l.b16 %v2879
        %v2944 = vunpack.c.l.b16 %v2883
        %v2945 = vunpack.c.l.b16 %v2886
        %v2946 = vunpack.c.l.b16 %v2890
        %v2947 = vunpack.c.l.b16 %v2893
        %v2948 = vunpack.c.l.b16 %v2897
        %v2949 = vunpack.c.l.b16 %v2900
        %v2950 = vunpack.c.l.b16 %v2904
        %v2951 = vunpack.c.l.b16 %v2907
        %v2952 = vunpack.c.l.b16 %v2911
        %v2953 = vunpack.c.l.b16 %v2914
        %v2954 = vunpack.c.l.b16 %v2918
        %v2955 = vunpack.c.l.b16 %v2921
        %v2956 = vpack.c.b16 %v2925, %v2924
        %v2957 = vpack.c.b16 %v2927, %v2926
        %v2958 = vpack.c.b16 %v2929, %v2928
        %v2959 = vpack.c.b16 %v2931, %v2930
        %v2960 = vpack.c.b16 %v2933, %v2932
        %v2961 = vpack.c.b16 %v2935, %v2934
        %v2962 = vpack.c.b16 %v2937, %v2936
        %v2963 = vpack.c.b16 %v2939, %v2938
        %v2964 = vpack.c.b16 %v2941, %v2940
        %v2965 = vpack.c.b16 %v2943, %v2942
        %v2966 = vpack.c.b16 %v2945, %v2944
        %v2967 = vpack.c.b16 %v2947, %v2946
        %v2968 = vpack.c.b16 %v2949, %v2948
        %v2969 = vpack.c.b16 %v2951, %v2950
        %v2970 = vpack.c.b16 %v2953, %v2952
        %v2971 = vpack.c.b16 %v2955, %v2954
        %v2973 = vsel %vm698, %v2956, 0
        %v2976 = vsel %vm698, %v2957, 0
        %v2979 = vsel %vm698, %v2958, 0
        %v2982 = vsel %vm698, %v2959, 0
        %v2985 = vsel %vm698, %v2960, 0
        %v2988 = vsel %vm698, %v2961, 0
        %v2991 = vsel %vm698, %v2962, 0
        %v2994 = vsel %vm698, %v2963, 0
        %v2997 = vsel %vm698, %v2964, 0
        %v3000 = vsel %vm698, %v2965, 0
        %v3003 = vsel %vm698, %v2966, 0
        %v3006 = vsel %vm698, %v2967, 0
        %v3009 = vsel %vm698, %v2968, 0
        %v3012 = vsel %vm698, %v2969, 0
        %v3015 = vsel %vm698, %v2970, 0
        %v3018 = vsel %vm698, %v2971, 0
        %v3021 = vsel %vm747, %v2923, 0
        %3023 = vmatprep.subr.bf16.mxu0 0
        %3024 = vmatpush1.bf16.msra.mxu0 0
        %3025 = vmatprep.subr.bf16.mxu0 0
        %3026 = vmatpush1.bf16.msra.mxu0 0
        %3027 = vmatprep.subr.bf16.mxu0 0
        %3028 = vmatpush1.bf16.msra.mxu0 0
        %3029 = vmatprep.subr.bf16.mxu0 0
        %3030 = vmatpush1.bf16.msra.mxu0 0
        %3031 = vmatprep.subr.bf16.mxu0 0
        %3032 = vmatpush1.bf16.msra.mxu0 0
        %3033 = vmatprep.subr.bf16.mxu0 0
        %3034 = vmatpush1.bf16.msra.mxu0 0
        %3035 = vmatprep.subr.bf16.mxu0 0
        %3036 = vmatpush1.bf16.msra.mxu0 0
        %3037 = vmatprep.subr.bf16.mxu0 0
        %3038 = vmatpush1.bf16.msra.mxu0 %v3021
        %3039 = vmatprep.subr.bf16.mxu0 0
        %3040 = vmatpush2.bf16.msra.mxu0 0
        %3041 = vmatprep.subr.bf16.mxu0 0
        %3042 = vmatpush2.bf16.msra.mxu0 0
        %3043 = vmatprep.subr.bf16.mxu0 0
        %3044 = vmatpush2.bf16.msra.mxu0 0
        %3045 = vmatprep.subr.bf16.mxu0 0
        %3046 = vmatpush2.bf16.msra.mxu0 0
        %3047 = vmatprep.subr.bf16.mxu0 0
        %3048 = vmatpush2.bf16.msra.mxu0 0
        %3049 = vmatprep.subr.bf16.mxu0 0
        %3050 = vmatpush2.bf16.msra.mxu0 0
        %3051 = vmatprep.subr.bf16.mxu0 0
        %3052 = vmatpush2.bf16.msra.mxu0 0
        %3053 = vmatprep.subr.bf16.mxu0 0
        %3054 = vmatpush2.bf16.msra.mxu0 0
        %3055 = vmatprep.mubr.bf16.mxu0 0
        %3056 = vmatmul.mubr.bf16.gmra.mxu0 %v2973
        %v3057 = vpop.f32.mrf.mxu0
        %v3058 = vadd.f32 0.0, %v3057
        %v3059 = vpop.f32.mrf.mxu0
        %v3060 = vpop.f32.mrf.mxu0
        %v3061 = vadd.f32 0.0, %v3060
        %v3062 = vpop.f32.mrf.mxu0
        %3063 = vmatprep.mubr.bf16.mxu0 0
        %3064 = vmatmul.mubr.bf16.gmra.mxu0 %v2976
        %v3065 = vpop.f32.mrf.mxu0
        %v3066 = vadd.f32 0.0, %v3065
        %v3067 = vpop.f32.mrf.mxu0
        %v3068 = vpop.f32.mrf.mxu0
        %v3069 = vadd.f32 0.0, %v3068
        %v3070 = vpop.f32.mrf.mxu0
        %3071 = vmatprep.mubr.bf16.mxu0 0
        %3072 = vmatmul.mubr.bf16.gmra.mxu0 %v2979
        %v3073 = vpop.f32.mrf.mxu0
        %v3074 = vadd.f32 0.0, %v3073
        %v3075 = vpop.f32.mrf.mxu0
        %v3076 = vpop.f32.mrf.mxu0
        %v3077 = vadd.f32 0.0, %v3076
        %v3078 = vpop.f32.mrf.mxu0
        %3079 = vmatprep.mubr.bf16.mxu0 0
        %3080 = vmatmul.mubr.bf16.gmra.mxu0 %v2982
        %v3081 = vpop.f32.mrf.mxu0
        %v3082 = vadd.f32 0.0, %v3081
        %v3083 = vpop.f32.mrf.mxu0
        %v3084 = vpop.f32.mrf.mxu0
        %v3085 = vadd.f32 0.0, %v3084
        %v3086 = vpop.f32.mrf.mxu0
        %3087 = vmatprep.mubr.bf16.mxu0 0
        %3088 = vmatmul.mubr.bf16.gmra.mxu0 %v2985
        %v3089 = vpop.f32.mrf.mxu0
        %v3090 = vadd.f32 0.0, %v3089
        %v3091 = vpop.f32.mrf.mxu0
        %v3092 = vpop.f32.mrf.mxu0
        %v3093 = vadd.f32 0.0, %v3092
        %v3094 = vpop.f32.mrf.mxu0
        %3095 = vmatprep.mubr.bf16.mxu0 0
        %3096 = vmatmul.mubr.bf16.gmra.mxu0 %v2988
        %v3097 = vpop.f32.mrf.mxu0
        %v3098 = vadd.f32 0.0, %v3097
        %v3099 = vpop.f32.mrf.mxu0
        %v3100 = vpop.f32.mrf.mxu0
        %v3101 = vadd.f32 0.0, %v3100
        %v3102 = vpop.f32.mrf.mxu0
        %3103 = vmatprep.mubr.bf16.mxu0 0
        %3104 = vmatmul.mubr.bf16.gmra.mxu0 %v2991
        %v3105 = vpop.f32.mrf.mxu0
        %v3106 = vadd.f32 0.0, %v3105
        %v3107 = vpop.f32.mrf.mxu0
        %v3108 = vpop.f32.mrf.mxu0
        %v3109 = vadd.f32 0.0, %v3108
        %v3110 = vpop.f32.mrf.mxu0
        %3111 = vmatprep.mubr.bf16.mxu0 0
        %3112 = vmatmul.mubr.bf16.gmra.mxu0 %v2994
        %v3113 = vpop.f32.mrf.mxu0
        %v3114 = vadd.f32 0.0, %v3113
        %v3115 = vpop.f32.mrf.mxu0
        %v3116 = vpop.f32.mrf.mxu0
        %v3117 = vadd.f32 0.0, %v3116
        %v3118 = vpop.f32.mrf.mxu0
        %3119 = vmatprep.mubr.bf16.mxu0 0
        %3120 = vmatmul.mubr.bf16.gmra.mxu0 %v2997
        %v3121 = vpop.f32.mrf.mxu0
        %v3122 = vadd.f32 0.0, %v3121
        %v3123 = vpop.f32.mrf.mxu0
        %v3124 = vpop.f32.mrf.mxu0
        %v3125 = vadd.f32 0.0, %v3124
        %v3126 = vpop.f32.mrf.mxu0
        %3127 = vmatprep.mubr.bf16.mxu0 0
        %3128 = vmatmul.mubr.bf16.gmra.mxu0 %v3000
        %v3129 = vpop.f32.mrf.mxu0
        %v3130 = vadd.f32 0.0, %v3129
        %v3131 = vpop.f32.mrf.mxu0
        %v3132 = vpop.f32.mrf.mxu0
        %v3133 = vadd.f32 0.0, %v3132
        %v3134 = vpop.f32.mrf.mxu0
        %3135 = vmatprep.mubr.bf16.mxu0 0
        %3136 = vmatmul.mubr.bf16.gmra.mxu0 %v3003
        %v3137 = vpop.f32.mrf.mxu0
        %v3138 = vadd.f32 0.0, %v3137
        %v3139 = vpop.f32.mrf.mxu0
        %v3140 = vpop.f32.mrf.mxu0
        %v3141 = vadd.f32 0.0, %v3140
        %v3142 = vpop.f32.mrf.mxu0
        %3143 = vmatprep.mubr.bf16.mxu0 0
        %3144 = vmatmul.mubr.bf16.gmra.mxu0 %v3006
        %v3145 = vpop.f32.mrf.mxu0
        %v3146 = vadd.f32 0.0, %v3145
        %v3147 = vpop.f32.mrf.mxu0
        %v3148 = vpop.f32.mrf.mxu0
        %v3149 = vadd.f32 0.0, %v3148
        %v3150 = vpop.f32.mrf.mxu0
        %3151 = vmatprep.mubr.bf16.mxu0 0
        %3152 = vmatmul.mubr.bf16.gmra.mxu0 %v3009
        %v3153 = vpop.f32.mrf.mxu0
        %v3154 = vadd.f32 0.0, %v3153
        %v3155 = vpop.f32.mrf.mxu0
        %v3156 = vpop.f32.mrf.mxu0
        %v3157 = vadd.f32 0.0, %v3156
        %v3158 = vpop.f32.mrf.mxu0
        %3159 = vmatprep.mubr.bf16.mxu0 0
        %3160 = vmatmul.mubr.bf16.gmra.mxu0 %v3012
        %v3161 = vpop.f32.mrf.mxu0
        %v3162 = vadd.f32 0.0, %v3161
        %v3163 = vpop.f32.mrf.mxu0
        %v3164 = vpop.f32.mrf.mxu0
        %v3165 = vadd.f32 0.0, %v3164
        %v3166 = vpop.f32.mrf.mxu0
        %3167 = vmatprep.mubr.bf16.mxu0 0
        %3168 = vmatmul.mubr.bf16.gmra.mxu0 %v3015
        %v3169 = vpop.f32.mrf.mxu0
        %v3170 = vadd.f32 0.0, %v3169
        %v3171 = vpop.f32.mrf.mxu0
        %v3172 = vpop.f32.mrf.mxu0
        %v3173 = vadd.f32 0.0, %v3172
        %v3174 = vpop.f32.mrf.mxu0
        %3175 = vmatprep.mubr.bf16.mxu0 0
        %3176 = vmatmul.mubr.bf16.gmra.mxu0 %v3018
        %v3177 = vpop.f32.mrf.mxu0
        %v3178 = vadd.f32 0.0, %v3177
        %v3179 = vpop.f32.mrf.mxu0
        %v3180 = vpop.f32.mrf.mxu0
        %v3181 = vadd.f32 0.0, %v3180
        %v3182 = vpop.f32.mrf.mxu0
        %3183 = vdwg.mxu0
        %v3184 = vadd.f32 %v2714, %v3058
        %v3185 = vadd.f32 %v2715, %v3061
        %v3186 = vadd.f32 %v2716, %v3066
        %v3187 = vadd.f32 %v2717, %v3069
        %v3188 = vadd.f32 %v2718, %v3074
        %v3189 = vadd.f32 %v2719, %v3077
        %v3190 = vadd.f32 %v2720, %v3082
        %v3191 = vadd.f32 %v2721, %v3085
        %v3192 = vadd.f32 %v2722, %v3090
        %v3193 = vadd.f32 %v2723, %v3093
        %v3194 = vadd.f32 %v2724, %v3098
        %v3195 = vadd.f32 %v2725, %v3101
        %v3196 = vadd.f32 %v2726, %v3106
        %v3197 = vadd.f32 %v2727, %v3109
        %v3198 = vadd.f32 %v2728, %v3114
        %v3199 = vadd.f32 %v2729, %v3117
        %v3200 = vadd.f32 %v2730, %v3122
        %v3201 = vadd.f32 %v2731, %v3125
        %v3202 = vadd.f32 %v2732, %v3130
        %v3203 = vadd.f32 %v2733, %v3133
        %v3204 = vadd.f32 %v2734, %v3138
        %v3205 = vadd.f32 %v2735, %v3141
        %v3206 = vadd.f32 %v2736, %v3146
        %v3207 = vadd.f32 %v2737, %v3149
        %v3208 = vadd.f32 %v2738, %v3154
        %v3209 = vadd.f32 %v2739, %v3157
        %v3210 = vadd.f32 %v2740, %v3162
        %v3211 = vadd.f32 %v2741, %v3165
        %v3212 = vadd.f32 %v2742, %v3170
        %v3213 = vadd.f32 %v2743, %v3173
        %v3214 = vadd.f32 %v2744, %v3178
        %v3215 = vadd.f32 %v2745, %v3181
        %s3216 = scalar_lea.vmem %s205, 24
        %v3217 = vld [vmem:[%s3216] sm:$0xf]
        %v3218 = vld [vmem:[%s3216 + $0x4] sm:$0xf]
        %v3219 = vld [vmem:[%s3216 + $0xc] sm:$0xf]
        %v3220 = vld [vmem:[%s3216 + $0x10] sm:$0xf]
        %v3221 = vld [vmem:[%s3216 + $0x18] sm:$0xf]
        %v3222 = vld [vmem:[%s3216 + $0x1c] sm:$0xf]
        %v3223 = vld [vmem:[%s3216 + $0x24] sm:$0xf]
        %v3224 = vld [vmem:[%s3216 + $0x28] sm:$0xf]
        %v3225 = vld [vmem:[%s3216 + $0x30] sm:$0xf]
        %v3226 = vld [vmem:[%s3216 + $0x34] sm:$0xf]
        %v3227 = vld [vmem:[%s3216 + $0x3c] sm:$0xf]
        %v3228 = vld [vmem:[%s3216 + $0x40] sm:$0xf]
        %v3229 = vld [vmem:[%s3216 + $0x48] sm:$0xf]
        %v3230 = vld [vmem:[%s3216 + $0x4c] sm:$0xf]
        %v3231 = vld [vmem:[%s3216 + $0x54] sm:$0xf]
        %v3232 = vld [vmem:[%s3216 + $0x58] sm:$0xf]
        %v3233 = vld [vmem:[%s3216 + $0x60] sm:$0xf]
        %v3234 = vld [vmem:[%s3216 + $0x64] sm:$0xf]
        %v3235 = vld [vmem:[%s3216 + $0x6c] sm:$0xf]
        %v3236 = vld [vmem:[%s3216 + $0x70] sm:$0xf]
        %v3237 = vld [vmem:[%s3216 + $0x78] sm:$0xf]
        %v3238 = vld [vmem:[%s3216 + $0x7c] sm:$0xf]
        %v3239 = vld [vmem:[%s3216 + $0x84] sm:$0xf]
        %v3240 = vld [vmem:[%s3216 + $0x88] sm:$0xf]
        %v3241 = vld [vmem:[%s3216 + $0x90] sm:$0xf]
        %v3242 = vld [vmem:[%s3216 + $0x94] sm:$0xf]
        %v3243 = vld [vmem:[%s3216 + $0x9c] sm:$0xf]
        %v3244 = vld [vmem:[%s3216 + $0xa0] sm:$0xf]
        %v3245 = vld [vmem:[%s3216 + $0xa8] sm:$0xf]
        %v3246 = vld [vmem:[%s3216 + $0xac] sm:$0xf]
        %v3247 = vld [vmem:[%s3216 + $0xb4] sm:$0xf]
        %v3248 = vld [vmem:[%s3216 + $0xb8] sm:$0xf]
        %s3249 = scalar_lea.vmem %s1, 12
        %v3250 = vld [vmem:[%s3249] sm:$0x3]
        %v3283 = vunpack.c.l.b16 %v3217
        %v3284 = vunpack.c.l.b16 %v3218
        %v3285 = vunpack.c.l.b16 %v3219
        %v3286 = vunpack.c.l.b16 %v3220
        %v3287 = vunpack.c.l.b16 %v3221
        %v3288 = vunpack.c.l.b16 %v3222
        %v3289 = vunpack.c.l.b16 %v3223
        %v3290 = vunpack.c.l.b16 %v3224
        %v3291 = vunpack.c.l.b16 %v3225
        %v3292 = vunpack.c.l.b16 %v3226
        %v3293 = vunpack.c.l.b16 %v3227
        %v3294 = vunpack.c.l.b16 %v3228
        %v3295 = vunpack.c.l.b16 %v3229
        %v3296 = vunpack.c.l.b16 %v3230
        %v3297 = vunpack.c.l.b16 %v3231
        %v3298 = vunpack.c.l.b16 %v3232
        %v3299 = vunpack.c.l.b16 %v3233
        %v3300 = vunpack.c.l.b16 %v3234
        %v3301 = vunpack.c.l.b16 %v3235
        %v3302 = vunpack.c.l.b16 %v3236
        %v3303 = vunpack.c.l.b16 %v3237
        %v3304 = vunpack.c.l.b16 %v3238
        %v3305 = vunpack.c.l.b16 %v3239
        %v3306 = vunpack.c.l.b16 %v3240
        %v3307 = vunpack.c.l.b16 %v3241
        %v3308 = vunpack.c.l.b16 %v3242
        %v3309 = vunpack.c.l.b16 %v3243
        %v3310 = vunpack.c.l.b16 %v3244
        %v3311 = vunpack.c.l.b16 %v3245
        %v3312 = vunpack.c.l.b16 %v3246
        %v3313 = vunpack.c.l.b16 %v3247
        %v3314 = vunpack.c.l.b16 %v3248
        %v3315 = vpack.c.b16 %v3284, %v3283
        %v3316 = vpack.c.b16 %v3286, %v3285
        %v3317 = vpack.c.b16 %v3288, %v3287
        %v3318 = vpack.c.b16 %v3290, %v3289
        %v3319 = vpack.c.b16 %v3292, %v3291
        %v3320 = vpack.c.b16 %v3294, %v3293
        %v3321 = vpack.c.b16 %v3296, %v3295
        %v3322 = vpack.c.b16 %v3298, %v3297
        %v3323 = vpack.c.b16 %v3300, %v3299
        %v3324 = vpack.c.b16 %v3302, %v3301
        %v3325 = vpack.c.b16 %v3304, %v3303
        %v3326 = vpack.c.b16 %v3306, %v3305
        %v3327 = vpack.c.b16 %v3308, %v3307
        %v3328 = vpack.c.b16 %v3310, %v3309
        %v3329 = vpack.c.b16 %v3312, %v3311
        %v3330 = vpack.c.b16 %v3314, %v3313
        %v3332 = vsel %vm698, %v3315, 0
        %v3335 = vsel %vm698, %v3316, 0
        %v3338 = vsel %vm698, %v3317, 0
        %v3341 = vsel %vm698, %v3318, 0
        %v3344 = vsel %vm698, %v3319, 0
        %v3347 = vsel %vm698, %v3320, 0
        %v3350 = vsel %vm698, %v3321, 0
        %v3353 = vsel %vm698, %v3322, 0
        %v3356 = vsel %vm698, %v3323, 0
        %v3359 = vsel %vm698, %v3324, 0
        %v3362 = vsel %vm698, %v3325, 0
        %v3365 = vsel %vm698, %v3326, 0
        %v3368 = vsel %vm698, %v3327, 0
        %v3371 = vsel %vm698, %v3328, 0
        %v3374 = vsel %vm698, %v3329, 0
        %v3377 = vsel %vm698, %v3330, 0
        %v3380 = vsel %vm747, %v3250, 0
        %3382 = vmatprep.subr.bf16.mxu0 0
        %3383 = vmatpush1.bf16.msra.mxu0 0
        %3384 = vmatprep.subr.bf16.mxu0 0
        %3385 = vmatpush1.bf16.msra.mxu0 0
        %3386 = vmatprep.subr.bf16.mxu0 0
        %3387 = vmatpush1.bf16.msra.mxu0 0
        %3388 = vmatprep.subr.bf16.mxu0 0
        %3389 = vmatpush1.bf16.msra.mxu0 0
        %3390 = vmatprep.subr.bf16.mxu0 0
        %3391 = vmatpush1.bf16.msra.mxu0 0
        %3392 = vmatprep.subr.bf16.mxu0 0
        %3393 = vmatpush1.bf16.msra.mxu0 0
        %3394 = vmatprep.subr.bf16.mxu0 0
        %3395 = vmatpush1.bf16.msra.mxu0 0
        %3396 = vmatprep.subr.bf16.mxu0 0
        %3397 = vmatpush1.bf16.msra.mxu0 %v3380
        %3398 = vmatprep.subr.bf16.mxu0 0
        %3399 = vmatpush2.bf16.msra.mxu0 0
        %3400 = vmatprep.subr.bf16.mxu0 0
        %3401 = vmatpush2.bf16.msra.mxu0 0
        %3402 = vmatprep.subr.bf16.mxu0 0
        %3403 = vmatpush2.bf16.msra.mxu0 0
        %3404 = vmatprep.subr.bf16.mxu0 0
        %3405 = vmatpush2.bf16.msra.mxu0 0
        %3406 = vmatprep.subr.bf16.mxu0 0
        %3407 = vmatpush2.bf16.msra.mxu0 0
        %3408 = vmatprep.subr.bf16.mxu0 0
        %3409 = vmatpush2.bf16.msra.mxu0 0
        %3410 = vmatprep.subr.bf16.mxu0 0
        %3411 = vmatpush2.bf16.msra.mxu0 0
        %3412 = vmatprep.subr.bf16.mxu0 0
        %3413 = vmatpush2.bf16.msra.mxu0 0
        %3414 = vmatprep.mubr.bf16.mxu0 0
        %3415 = vmatmul.mubr.bf16.gmra.mxu0 %v3332
        %v3416 = vpop.f32.mrf.mxu0
        %v3417 = vadd.f32 0.0, %v3416
        %v3418 = vpop.f32.mrf.mxu0
        %v3419 = vpop.f32.mrf.mxu0
        %v3420 = vadd.f32 0.0, %v3419
        %v3421 = vpop.f32.mrf.mxu0
        %3422 = vmatprep.mubr.bf16.mxu0 0
        %3423 = vmatmul.mubr.bf16.gmra.mxu0 %v3335
        %v3424 = vpop.f32.mrf.mxu0
        %v3425 = vadd.f32 0.0, %v3424
        %v3426 = vpop.f32.mrf.mxu0
        %v3427 = vpop.f32.mrf.mxu0
        %v3428 = vadd.f32 0.0, %v3427
        %v3429 = vpop.f32.mrf.mxu0
        %3430 = vmatprep.mubr.bf16.mxu0 0
        %3431 = vmatmul.mubr.bf16.gmra.mxu0 %v3338
        %v3432 = vpop.f32.mrf.mxu0
        %v3433 = vadd.f32 0.0, %v3432
        %v3434 = vpop.f32.mrf.mxu0
        %v3435 = vpop.f32.mrf.mxu0
        %v3436 = vadd.f32 0.0, %v3435
        %v3437 = vpop.f32.mrf.mxu0
        %3438 = vmatprep.mubr.bf16.mxu0 0
        %3439 = vmatmul.mubr.bf16.gmra.mxu0 %v3341
        %v3440 = vpop.f32.mrf.mxu0
        %v3441 = vadd.f32 0.0, %v3440
        %v3442 = vpop.f32.mrf.mxu0
        %v3443 = vpop.f32.mrf.mxu0
        %v3444 = vadd.f32 0.0, %v3443
        %v3445 = vpop.f32.mrf.mxu0
        %3446 = vmatprep.mubr.bf16.mxu0 0
        %3447 = vmatmul.mubr.bf16.gmra.mxu0 %v3344
        %v3448 = vpop.f32.mrf.mxu0
        %v3449 = vadd.f32 0.0, %v3448
        %v3450 = vpop.f32.mrf.mxu0
        %v3451 = vpop.f32.mrf.mxu0
        %v3452 = vadd.f32 0.0, %v3451
        %v3453 = vpop.f32.mrf.mxu0
        %3454 = vmatprep.mubr.bf16.mxu0 0
        %3455 = vmatmul.mubr.bf16.gmra.mxu0 %v3347
        %v3456 = vpop.f32.mrf.mxu0
        %v3457 = vadd.f32 0.0, %v3456
        %v3458 = vpop.f32.mrf.mxu0
        %v3459 = vpop.f32.mrf.mxu0
        %v3460 = vadd.f32 0.0, %v3459
        %v3461 = vpop.f32.mrf.mxu0
        %3462 = vmatprep.mubr.bf16.mxu0 0
        %3463 = vmatmul.mubr.bf16.gmra.mxu0 %v3350
        %v3464 = vpop.f32.mrf.mxu0
        %v3465 = vadd.f32 0.0, %v3464
        %v3466 = vpop.f32.mrf.mxu0
        %v3467 = vpop.f32.mrf.mxu0
        %v3468 = vadd.f32 0.0, %v3467
        %v3469 = vpop.f32.mrf.mxu0
        %3470 = vmatprep.mubr.bf16.mxu0 0
        %3471 = vmatmul.mubr.bf16.gmra.mxu0 %v3353
        %v3472 = vpop.f32.mrf.mxu0
        %v3473 = vadd.f32 0.0, %v3472
        %v3474 = vpop.f32.mrf.mxu0
        %v3475 = vpop.f32.mrf.mxu0
        %v3476 = vadd.f32 0.0, %v3475
        %v3477 = vpop.f32.mrf.mxu0
        %3478 = vmatprep.mubr.bf16.mxu0 0
        %3479 = vmatmul.mubr.bf16.gmra.mxu0 %v3356
        %v3480 = vpop.f32.mrf.mxu0
        %v3481 = vadd.f32 0.0, %v3480
        %v3482 = vpop.f32.mrf.mxu0
        %v3483 = vpop.f32.mrf.mxu0
        %v3484 = vadd.f32 0.0, %v3483
        %v3485 = vpop.f32.mrf.mxu0
        %3486 = vmatprep.mubr.bf16.mxu0 0
        %3487 = vmatmul.mubr.bf16.gmra.mxu0 %v3359
        %v3488 = vpop.f32.mrf.mxu0
        %v3489 = vadd.f32 0.0, %v3488
        %v3490 = vpop.f32.mrf.mxu0
        %v3491 = vpop.f32.mrf.mxu0
        %v3492 = vadd.f32 0.0, %v3491
        %v3493 = vpop.f32.mrf.mxu0
        %3494 = vmatprep.mubr.bf16.mxu0 0
        %3495 = vmatmul.mubr.bf16.gmra.mxu0 %v3362
        %v3496 = vpop.f32.mrf.mxu0
        %v3497 = vadd.f32 0.0, %v3496
        %v3498 = vpop.f32.mrf.mxu0
        %v3499 = vpop.f32.mrf.mxu0
        %v3500 = vadd.f32 0.0, %v3499
        %v3501 = vpop.f32.mrf.mxu0
        %3502 = vmatprep.mubr.bf16.mxu0 0
        %3503 = vmatmul.mubr.bf16.gmra.mxu0 %v3365
        %v3504 = vpop.f32.mrf.mxu0
        %v3505 = vadd.f32 0.0, %v3504
        %v3506 = vpop.f32.mrf.mxu0
        %v3507 = vpop.f32.mrf.mxu0
        %v3508 = vadd.f32 0.0, %v3507
        %v3509 = vpop.f32.mrf.mxu0
        %3510 = vmatprep.mubr.bf16.mxu0 0
        %3511 = vmatmul.mubr.bf16.gmra.mxu0 %v3368
        %v3512 = vpop.f32.mrf.mxu0
        %v3513 = vadd.f32 0.0, %v3512
        %v3514 = vpop.f32.mrf.mxu0
        %v3515 = vpop.f32.mrf.mxu0
        %v3516 = vadd.f32 0.0, %v3515
        %v3517 = vpop.f32.mrf.mxu0
        %3518 = vmatprep.mubr.bf16.mxu0 0
        %3519 = vmatmul.mubr.bf16.gmra.mxu0 %v3371
        %v3520 = vpop.f32.mrf.mxu0
        %v3521 = vadd.f32 0.0, %v3520
        %v3522 = vpop.f32.mrf.mxu0
        %v3523 = vpop.f32.mrf.mxu0
        %v3524 = vadd.f32 0.0, %v3523
        %v3525 = vpop.f32.mrf.mxu0
        %3526 = vmatprep.mubr.bf16.mxu0 0
        %3527 = vmatmul.mubr.bf16.gmra.mxu0 %v3374
        %v3528 = vpop.f32.mrf.mxu0
        %v3529 = vadd.f32 0.0, %v3528
        %v3530 = vpop.f32.mrf.mxu0
        %v3531 = vpop.f32.mrf.mxu0
        %v3532 = vadd.f32 0.0, %v3531
        %v3533 = vpop.f32.mrf.mxu0
        %3534 = vmatprep.mubr.bf16.mxu0 0
        %3535 = vmatmul.mubr.bf16.gmra.mxu0 %v3377
        %v3536 = vpop.f32.mrf.mxu0
        %v3537 = vadd.f32 0.0, %v3536
        %v3538 = vpop.f32.mrf.mxu0
        %v3539 = vpop.f32.mrf.mxu0
        %v3540 = vadd.f32 0.0, %v3539
        %v3541 = vpop.f32.mrf.mxu0
        %3542 = vdwg.mxu0
        %v3543 = vadd.f32 %v3184, %v3417
        %v3544 = vadd.f32 %v3185, %v3420
        %v3545 = vadd.f32 %v3186, %v3425
        %v3546 = vadd.f32 %v3187, %v3428
        %v3547 = vadd.f32 %v3188, %v3433
        %v3548 = vadd.f32 %v3189, %v3436
        %v3549 = vadd.f32 %v3190, %v3441
        %v3550 = vadd.f32 %v3191, %v3444
        %v3551 = vadd.f32 %v3192, %v3449
        %v3552 = vadd.f32 %v3193, %v3452
        %v3553 = vadd.f32 %v3194, %v3457
        %v3554 = vadd.f32 %v3195, %v3460
        %v3555 = vadd.f32 %v3196, %v3465
        %v3556 = vadd.f32 %v3197, %v3468
        %v3557 = vadd.f32 %v3198, %v3473
        %v3558 = vadd.f32 %v3199, %v3476
        %v3559 = vadd.f32 %v3200, %v3481
        %v3560 = vadd.f32 %v3201, %v3484
        %v3561 = vadd.f32 %v3202, %v3489
        %v3562 = vadd.f32 %v3203, %v3492
        %v3563 = vadd.f32 %v3204, %v3497
        %v3564 = vadd.f32 %v3205, %v3500
        %v3565 = vadd.f32 %v3206, %v3505
        %v3566 = vadd.f32 %v3207, %v3508
        %v3567 = vadd.f32 %v3208, %v3513
        %v3568 = vadd.f32 %v3209, %v3516
        %v3569 = vadd.f32 %v3210, %v3521
        %v3570 = vadd.f32 %v3211, %v3524
        %v3571 = vadd.f32 %v3212, %v3529
        %v3572 = vadd.f32 %v3213, %v3532
        %v3573 = vadd.f32 %v3214, %v3537
        %v3574 = vadd.f32 %v3215, %v3540
        %v3575 = vld [vmem:[%s3216] sm:$0xf]
        %v3576 = vld [vmem:[%s3216 + $0x4] sm:$0xf]
        %v3577 = vld [vmem:[%s3216 + $0x8] sm:$0x1]
        %v3578 = vld [vmem:[%s3216 + $0xc] sm:$0xf]
        %v3579 = vld [vmem:[%s3216 + $0x10] sm:$0xf]
        %v3580 = vld [vmem:[%s3216 + $0x14] sm:$0x1]
        %v3581 = vld [vmem:[%s3216 + $0x18] sm:$0xf]
        %v3582 = vld [vmem:[%s3216 + $0x1c] sm:$0xf]
        %v3583 = vld [vmem:[%s3216 + $0x20] sm:$0x1]
        %v3584 = vld [vmem:[%s3216 + $0x24] sm:$0xf]
        %v3585 = vld [vmem:[%s3216 + $0x28] sm:$0xf]
        %v3586 = vld [vmem:[%s3216 + $0x2c] sm:$0x1]
        %v3587 = vld [vmem:[%s3216 + $0x30] sm:$0xf]
        %v3588 = vld [vmem:[%s3216 + $0x34] sm:$0xf]
        %v3589 = vld [vmem:[%s3216 + $0x38] sm:$0x1]
        %v3590 = vld [vmem:[%s3216 + $0x3c] sm:$0xf]
        %v3591 = vld [vmem:[%s3216 + $0x40] sm:$0xf]
        %v3592 = vld [vmem:[%s3216 + $0x44] sm:$0x1]
        %v3593 = vld [vmem:[%s3216 + $0x48] sm:$0xf]
        %v3594 = vld [vmem:[%s3216 + $0x4c] sm:$0xf]
        %v3595 = vld [vmem:[%s3216 + $0x50] sm:$0x1]
        %v3596 = vld [vmem:[%s3216 + $0x54] sm:$0xf]
        %v3597 = vld [vmem:[%s3216 + $0x58] sm:$0xf]
        %v3598 = vld [vmem:[%s3216 + $0x5c] sm:$0x1]
        %v3599 = vld [vmem:[%s3216 + $0x60] sm:$0xf]
        %v3600 = vld [vmem:[%s3216 + $0x64] sm:$0xf]
        %v3601 = vld [vmem:[%s3216 + $0x68] sm:$0x1]
        %v3602 = vld [vmem:[%s3216 + $0x6c] sm:$0xf]
        %v3603 = vld [vmem:[%s3216 + $0x70] sm:$0xf]
        %v3604 = vld [vmem:[%s3216 + $0x74] sm:$0x1]
        %v3605 = vld [vmem:[%s3216 + $0x78] sm:$0xf]
        %v3606 = vld [vmem:[%s3216 + $0x7c] sm:$0xf]
        %v3607 = vld [vmem:[%s3216 + $0x80] sm:$0x1]
        %v3608 = vld [vmem:[%s3216 + $0x84] sm:$0xf]
        %v3609 = vld [vmem:[%s3216 + $0x88] sm:$0xf]
        %v3610 = vld [vmem:[%s3216 + $0x8c] sm:$0x1]
        %v3611 = vld [vmem:[%s3216 + $0x90] sm:$0xf]
        %v3612 = vld [vmem:[%s3216 + $0x94] sm:$0xf]
        %v3613 = vld [vmem:[%s3216 + $0x98] sm:$0x1]
        %v3614 = vld [vmem:[%s3216 + $0x9c] sm:$0xf]
        %v3615 = vld [vmem:[%s3216 + $0xa0] sm:$0xf]
        %v3616 = vld [vmem:[%s3216 + $0xa4] sm:$0x1]
        %v3617 = vld [vmem:[%s3216 + $0xa8] sm:$0xf]
        %v3618 = vld [vmem:[%s3216 + $0xac] sm:$0xf]
        %v3619 = vld [vmem:[%s3216 + $0xb0] sm:$0x1]
        %v3620 = vld [vmem:[%s3216 + $0xb4] sm:$0xf]
        %v3621 = vld [vmem:[%s3216 + $0xb8] sm:$0xf]
        %v3622 = vld [vmem:[%s3216 + $0xbc] sm:$0x1]
        %v3624 = vshrl.u32 %v3575, 16
        %v3626 = vrot.slane %v3624, 4
        %v3627 = vshll.u32 %v3575, 16
        %v3629 = vrot.slane %v3627, 5
        %v3630 = vor.u32 %v3626, %v3629
        %v3631 = vrot.slane %v3630, 4
        %v3633 = vshll.u32 %v3576, 16
        %v3635 = vrot.slane %v3633, 5
        %v3636 = vsel %vm263, %v3631, %v3635
        %v3637 = vshrl.u32 %v3576, 16
        %v3639 = vrot.slane %v3637, 4
        %v3640 = vor.u32 %v3639, %v3635
        %v3641 = vrot.slane %v3640, 4
        %v3643 = vshll.u32 %v3577, 16
        %v3645 = vrot.slane %v3643, 5
        %v3646 = vsel %vm263, %v3641, %v3645
        %v3648 = vshrl.u32 %v3578, 16
        %v3650 = vrot.slane %v3648, 4
        %v3651 = vshll.u32 %v3578, 16
        %v3653 = vrot.slane %v3651, 5
        %v3654 = vor.u32 %v3650, %v3653
        %v3655 = vrot.slane %v3654, 4
        %v3657 = vshll.u32 %v3579, 16
        %v3659 = vrot.slane %v3657, 5
        %v3660 = vsel %vm263, %v3655, %v3659
        %v3661 = vshrl.u32 %v3579, 16
        %v3663 = vrot.slane %v3661, 4
        %v3664 = vor.u32 %v3663, %v3659
        %v3665 = vrot.slane %v3664, 4
        %v3667 = vshll.u32 %v3580, 16
        %v3669 = vrot.slane %v3667, 5
        %v3670 = vsel %vm263, %v3665, %v3669
        %v3672 = vshrl.u32 %v3581, 16
        %v3674 = vrot.slane %v3672, 4
        %v3675 = vshll.u32 %v3581, 16
        %v3677 = vrot.slane %v3675, 5
        %v3678 = vor.u32 %v3674, %v3677
        %v3679 = vrot.slane %v3678, 4
        %v3681 = vshll.u32 %v3582, 16
        %v3683 = vrot.slane %v3681, 5
        %v3684 = vsel %vm263, %v3679, %v3683
        %v3685 = vshrl.u32 %v3582, 16
        %v3687 = vrot.slane %v3685, 4
        %v3688 = vor.u32 %v3687, %v3683
        %v3689 = vrot.slane %v3688, 4
        %v3691 = vshll.u32 %v3583, 16
        %v3693 = vrot.slane %v3691, 5
        %v3694 = vsel %vm263, %v3689, %v3693
        %v3696 = vshrl.u32 %v3584, 16
        %v3698 = vrot.slane %v3696, 4
        %v3699 = vshll.u32 %v3584, 16
        %v3701 = vrot.slane %v3699, 5
        %v3702 = vor.u32 %v3698, %v3701
        %v3703 = vrot.slane %v3702, 4
        %v3705 = vshll.u32 %v3585, 16
        %v3707 = vrot.slane %v3705, 5
        %v3708 = vsel %vm263, %v3703, %v3707
        %v3709 = vshrl.u32 %v3585, 16
        %v3711 = vrot.slane %v3709, 4
        %v3712 = vor.u32 %v3711, %v3707
        %v3713 = vrot.slane %v3712, 4
        %v3715 = vshll.u32 %v3586, 16
        %v3717 = vrot.slane %v3715, 5
        %v3718 = vsel %vm263, %v3713, %v3717
        %v3720 = vshrl.u32 %v3587, 16
        %v3722 = vrot.slane %v3720, 4
        %v3723 = vshll.u32 %v3587, 16
        %v3725 = vrot.slane %v3723, 5
        %v3726 = vor.u32 %v3722, %v3725
        %v3727 = vrot.slane %v3726, 4
        %v3729 = vshll.u32 %v3588, 16
        %v3731 = vrot.slane %v3729, 5
        %v3732 = vsel %vm263, %v3727, %v3731
        %v3733 = vshrl.u32 %v3588, 16
        %v3735 = vrot.slane %v3733, 4
        %v3736 = vor.u32 %v3735, %v3731
        %v3737 = vrot.slane %v3736, 4
        %v3739 = vshll.u32 %v3589, 16
        %v3741 = vrot.slane %v3739, 5
        %v3742 = vsel %vm263, %v3737, %v3741
        %v3744 = vshrl.u32 %v3590, 16
        %v3746 = vrot.slane %v3744, 4
        %v3747 = vshll.u32 %v3590, 16
        %v3749 = vrot.slane %v3747, 5
        %v3750 = vor.u32 %v3746, %v3749
        %v3751 = vrot.slane %v3750, 4
        %v3753 = vshll.u32 %v3591, 16
        %v3755 = vrot.slane %v3753, 5
        %v3756 = vsel %vm263, %v3751, %v3755
        %v3757 = vshrl.u32 %v3591, 16
        %v3759 = vrot.slane %v3757, 4
        %v3760 = vor.u32 %v3759, %v3755
        %v3761 = vrot.slane %v3760, 4
        %v3763 = vshll.u32 %v3592, 16
        %v3765 = vrot.slane %v3763, 5
        %v3766 = vsel %vm263, %v3761, %v3765
        %v3768 = vshrl.u32 %v3593, 16
        %v3770 = vrot.slane %v3768, 4
        %v3771 = vshll.u32 %v3593, 16
        %v3773 = vrot.slane %v3771, 5
        %v3774 = vor.u32 %v3770, %v3773
        %v3775 = vrot.slane %v3774, 4
        %v3777 = vshll.u32 %v3594, 16
        %v3779 = vrot.slane %v3777, 5
        %v3780 = vsel %vm263, %v3775, %v3779
        %v3781 = vshrl.u32 %v3594, 16
        %v3783 = vrot.slane %v3781, 4
        %v3784 = vor.u32 %v3783, %v3779
        %v3785 = vrot.slane %v3784, 4
        %v3787 = vshll.u32 %v3595, 16
        %v3789 = vrot.slane %v3787, 5
        %v3790 = vsel %vm263, %v3785, %v3789
        %v3792 = vshrl.u32 %v3596, 16
        %v3794 = vrot.slane %v3792, 4
        %v3795 = vshll.u32 %v3596, 16
        %v3797 = vrot.slane %v3795, 5
        %v3798 = vor.u32 %v3794, %v3797
        %v3799 = vrot.slane %v3798, 4
        %v3801 = vshll.u32 %v3597, 16
        %v3803 = vrot.slane %v3801, 5
        %v3804 = vsel %vm263, %v3799, %v3803
        %v3805 = vshrl.u32 %v3597, 16
        %v3807 = vrot.slane %v3805, 4
        %v3808 = vor.u32 %v3807, %v3803
        %v3809 = vrot.slane %v3808, 4
        %v3811 = vshll.u32 %v3598, 16
        %v3813 = vrot.slane %v3811, 5
        %v3814 = vsel %vm263, %v3809, %v3813
        %v3816 = vshrl.u32 %v3599, 16
        %v3818 = vrot.slane %v3816, 4
        %v3819 = vshll.u32 %v3599, 16
        %v3821 = vrot.slane %v3819, 5
        %v3822 = vor.u32 %v3818, %v3821
        %v3823 = vrot.slane %v3822, 4
        %v3825 = vshll.u32 %v3600, 16
        %v3827 = vrot.slane %v3825, 5
        %v3828 = vsel %vm263, %v3823, %v3827
        %v3829 = vshrl.u32 %v3600, 16
        %v3831 = vrot.slane %v3829, 4
        %v3832 = vor.u32 %v3831, %v3827
        %v3833 = vrot.slane %v3832, 4
        %v3835 = vshll.u32 %v3601, 16
        %v3837 = vrot.slane %v3835, 5
        %v3838 = vsel %vm263, %v3833, %v3837
        %v3840 = vshrl.u32 %v3602, 16
        %v3842 = vrot.slane %v3840, 4
        %v3843 = vshll.u32 %v3602, 16
        %v3845 = vrot.slane %v3843, 5
        %v3846 = vor.u32 %v3842, %v3845
        %v3847 = vrot.slane %v3846, 4
        %v3849 = vshll.u32 %v3603, 16
        %v3851 = vrot.slane %v3849, 5
        %v3852 = vsel %vm263, %v3847, %v3851
        %v3853 = vshrl.u32 %v3603, 16
        %v3855 = vrot.slane %v3853, 4
        %v3856 = vor.u32 %v3855, %v3851
        %v3857 = vrot.slane %v3856, 4
        %v3859 = vshll.u32 %v3604, 16
        %v3861 = vrot.slane %v3859, 5
        %v3862 = vsel %vm263, %v3857, %v3861
        %v3864 = vshrl.u32 %v3605, 16
        %v3866 = vrot.slane %v3864, 4
        %v3867 = vshll.u32 %v3605, 16
        %v3869 = vrot.slane %v3867, 5
        %v3870 = vor.u32 %v3866, %v3869
        %v3871 = vrot.slane %v3870, 4
        %v3873 = vshll.u32 %v3606, 16
        %v3875 = vrot.slane %v3873, 5
        %v3876 = vsel %vm263, %v3871, %v3875
        %v3877 = vshrl.u32 %v3606, 16
        %v3879 = vrot.slane %v3877, 4
        %v3880 = vor.u32 %v3879, %v3875
        %v3881 = vrot.slane %v3880, 4
        %v3883 = vshll.u32 %v3607, 16
        %v3885 = vrot.slane %v3883, 5
        %v3886 = vsel %vm263, %v3881, %v3885
        %v3888 = vshrl.u32 %v3608, 16
        %v3890 = vrot.slane %v3888, 4
        %v3891 = vshll.u32 %v3608, 16
        %v3893 = vrot.slane %v3891, 5
        %v3894 = vor.u32 %v3890, %v3893
        %v3895 = vrot.slane %v3894, 4
        %v3897 = vshll.u32 %v3609, 16
        %v3899 = vrot.slane %v3897, 5
        %v3900 = vsel %vm263, %v3895, %v3899
        %v3901 = vshrl.u32 %v3609, 16
        %v3903 = vrot.slane %v3901, 4
        %v3904 = vor.u32 %v3903, %v3899
        %v3905 = vrot.slane %v3904, 4
        %v3907 = vshll.u32 %v3610, 16
        %v3909 = vrot.slane %v3907, 5
        %v3910 = vsel %vm263, %v3905, %v3909
        %v3912 = vshrl.u32 %v3611, 16
        %v3914 = vrot.slane %v3912, 4
        %v3915 = vshll.u32 %v3611, 16
        %v3917 = vrot.slane %v3915, 5
        %v3918 = vor.u32 %v3914, %v3917
        %v3919 = vrot.slane %v3918, 4
        %v3921 = vshll.u32 %v3612, 16
        %v3923 = vrot.slane %v3921, 5
        %v3924 = vsel %vm263, %v3919, %v3923
        %v3925 = vshrl.u32 %v3612, 16
        %v3927 = vrot.slane %v3925, 4
        %v3928 = vor.u32 %v3927, %v3923
        %v3929 = vrot.slane %v3928, 4
        %v3931 = vshll.u32 %v3613, 16
        %v3933 = vrot.slane %v3931, 5
        %v3934 = vsel %vm263, %v3929, %v3933
        %v3936 = vshrl.u32 %v3614, 16
        %v3938 = vrot.slane %v3936, 4
        %v3939 = vshll.u32 %v3614, 16
        %v3941 = vrot.slane %v3939, 5
        %v3942 = vor.u32 %v3938, %v3941
        %v3943 = vrot.slane %v3942, 4
        %v3945 = vshll.u32 %v3615, 16
        %v3947 = vrot.slane %v3945, 5
        %v3948 = vsel %vm263, %v3943, %v3947
        %v3949 = vshrl.u32 %v3615, 16
        %v3951 = vrot.slane %v3949, 4
        %v3952 = vor.u32 %v3951, %v3947
        %v3953 = vrot.slane %v3952, 4
        %v3955 = vshll.u32 %v3616, 16
        %v3957 = vrot.slane %v3955, 5
        %v3958 = vsel %vm263, %v3953, %v3957
        %v3960 = vshrl.u32 %v3617, 16
        %v3962 = vrot.slane %v3960, 4
        %v3963 = vshll.u32 %v3617, 16
        %v3965 = vrot.slane %v3963, 5
        %v3966 = vor.u32 %v3962, %v3965
        %v3967 = vrot.slane %v3966, 4
        %v3969 = vshll.u32 %v3618, 16
        %v3971 = vrot.slane %v3969, 5
        %v3972 = vsel %vm263, %v3967, %v3971
        %v3973 = vshrl.u32 %v3618, 16
        %v3975 = vrot.slane %v3973, 4
        %v3976 = vor.u32 %v3975, %v3971
        %v3977 = vrot.slane %v3976, 4
        %v3979 = vshll.u32 %v3619, 16
        %v3981 = vrot.slane %v3979, 5
        %v3982 = vsel %vm263, %v3977, %v3981
        %v3984 = vshrl.u32 %v3620, 16
        %v3986 = vrot.slane %v3984, 4
        %v3987 = vshll.u32 %v3620, 16
        %v3989 = vrot.slane %v3987, 5
        %v3990 = vor.u32 %v3986, %v3989
        %v3991 = vrot.slane %v3990, 4
        %v3993 = vshll.u32 %v3621, 16
        %v3995 = vrot.slane %v3993, 5
        %v3996 = vsel %vm263, %v3991, %v3995
        %v3997 = vshrl.u32 %v3621, 16
        %v3999 = vrot.slane %v3997, 4
        %v4000 = vor.u32 %v3999, %v3995
        %v4001 = vrot.slane %v4000, 4
        %v4003 = vshll.u32 %v3622, 16
        %v4005 = vrot.slane %v4003, 5
        %v4006 = vsel %vm263, %v4001, %v4005
        %s4007 = scalar_lea.vmem %s1, 14
        %v4008 = vld [vmem:[%s4007] sm:$0x3]
        %v4009 = vunpack.c.l.b16 %v3636
        %v4010 = vunpack.c.l.b16 %v3646
        %v4011 = vunpack.c.l.b16 %v3660
        %v4012 = vunpack.c.l.b16 %v3670
        %v4013 = vunpack.c.l.b16 %v3684
        %v4014 = vunpack.c.l.b16 %v3694
        %v4015 = vunpack.c.l.b16 %v3708
        %v4016 = vunpack.c.l.b16 %v3718
        %v4017 = vunpack.c.l.b16 %v3732
        %v4018 = vunpack.c.l.b16 %v3742
        %v4019 = vunpack.c.l.b16 %v3756
        %v4020 = vunpack.c.l.b16 %v3766
        %v4021 = vunpack.c.l.b16 %v3780
        %v4022 = vunpack.c.l.b16 %v3790
        %v4023 = vunpack.c.l.b16 %v3804
        %v4024 = vunpack.c.l.b16 %v3814
        %v4025 = vunpack.c.l.b16 %v3828
        %v4026 = vunpack.c.l.b16 %v3838
        %v4027 = vunpack.c.l.b16 %v3852
        %v4028 = vunpack.c.l.b16 %v3862
        %v4029 = vunpack.c.l.b16 %v3876
        %v4030 = vunpack.c.l.b16 %v3886
        %v4031 = vunpack.c.l.b16 %v3900
        %v4032 = vunpack.c.l.b16 %v3910
        %v4033 = vunpack.c.l.b16 %v3924
        %v4034 = vunpack.c.l.b16 %v3934
        %v4035 = vunpack.c.l.b16 %v3948
        %v4036 = vunpack.c.l.b16 %v3958
        %v4037 = vunpack.c.l.b16 %v3972
        %v4038 = vunpack.c.l.b16 %v3982
        %v4039 = vunpack.c.l.b16 %v3996
        %v4040 = vunpack.c.l.b16 %v4006
        %v4041 = vpack.c.b16 %v4010, %v4009
        %v4042 = vpack.c.b16 %v4012, %v4011
        %v4043 = vpack.c.b16 %v4014, %v4013
        %v4044 = vpack.c.b16 %v4016, %v4015
        %v4045 = vpack.c.b16 %v4018, %v4017
        %v4046 = vpack.c.b16 %v4020, %v4019
        %v4047 = vpack.c.b16 %v4022, %v4021
        %v4048 = vpack.c.b16 %v4024, %v4023
        %v4049 = vpack.c.b16 %v4026, %v4025
        %v4050 = vpack.c.b16 %v4028, %v4027
        %v4051 = vpack.c.b16 %v4030, %v4029
        %v4052 = vpack.c.b16 %v4032, %v4031
        %v4053 = vpack.c.b16 %v4034, %v4033
        %v4054 = vpack.c.b16 %v4036, %v4035
        %v4055 = vpack.c.b16 %v4038, %v4037
        %v4056 = vpack.c.b16 %v4040, %v4039
        %v4058 = vsel %vm698, %v4041, 0
        %v4061 = vsel %vm698, %v4042, 0
        %v4064 = vsel %vm698, %v4043, 0
        %v4067 = vsel %vm698, %v4044, 0
        %v4070 = vsel %vm698, %v4045, 0
        %v4073 = vsel %vm698, %v4046, 0
        %v4076 = vsel %vm698, %v4047, 0
        %v4079 = vsel %vm698, %v4048, 0
        %v4082 = vsel %vm698, %v4049, 0
        %v4085 = vsel %vm698, %v4050, 0
        %v4088 = vsel %vm698, %v4051, 0
        %v4091 = vsel %vm698, %v4052, 0
        %v4094 = vsel %vm698, %v4053, 0
        %v4097 = vsel %vm698, %v4054, 0
        %v4100 = vsel %vm698, %v4055, 0
        %v4103 = vsel %vm698, %v4056, 0
        %v4106 = vsel %vm747, %v4008, 0
        %4108 = vmatprep.subr.bf16.mxu0 0
        %4109 = vmatpush1.bf16.msra.mxu0 0
        %4110 = vmatprep.subr.bf16.mxu0 0
        %4111 = vmatpush1.bf16.msra.mxu0 0
        %4112 = vmatprep.subr.bf16.mxu0 0
        %4113 = vmatpush1.bf16.msra.mxu0 0
        %4114 = vmatprep.subr.bf16.mxu0 0
        %4115 = vmatpush1.bf16.msra.mxu0 0
        %4116 = vmatprep.subr.bf16.mxu0 0
        %4117 = vmatpush1.bf16.msra.mxu0 0
        %4118 = vmatprep.subr.bf16.mxu0 0
        %4119 = vmatpush1.bf16.msra.mxu0 0
        %4120 = vmatprep.subr.bf16.mxu0 0
        %4121 = vmatpush1.bf16.msra.mxu0 0
        %4122 = vmatprep.subr.bf16.mxu0 0
        %4123 = vmatpush1.bf16.msra.mxu0 %v4106
        %4124 = vmatprep.subr.bf16.mxu0 0
        %4125 = vmatpush2.bf16.msra.mxu0 0
        %4126 = vmatprep.subr.bf16.mxu0 0
        %4127 = vmatpush2.bf16.msra.mxu0 0
        %4128 = vmatprep.subr.bf16.mxu0 0
        %4129 = vmatpush2.bf16.msra.mxu0 0
        %4130 = vmatprep.subr.bf16.mxu0 0
        %4131 = vmatpush2.bf16.msra.mxu0 0
        %4132 = vmatprep.subr.bf16.mxu0 0
        %4133 = vmatpush2.bf16.msra.mxu0 0
        %4134 = vmatprep.subr.bf16.mxu0 0
        %4135 = vmatpush2.bf16.msra.mxu0 0
        %4136 = vmatprep.subr.bf16.mxu0 0
        %4137 = vmatpush2.bf16.msra.mxu0 0
        %4138 = vmatprep.subr.bf16.mxu0 0
        %4139 = vmatpush2.bf16.msra.mxu0 0
        %4140 = vmatprep.mubr.bf16.mxu0 0
        %4141 = vmatmul.mubr.bf16.gmra.mxu0 %v4058
        %v4142 = vpop.f32.mrf.mxu0
        %v4143 = vadd.f32 0.0, %v4142
        %v4144 = vpop.f32.mrf.mxu0
        %v4145 = vpop.f32.mrf.mxu0
        %v4146 = vadd.f32 0.0, %v4145
        %v4147 = vpop.f32.mrf.mxu0
        %4148 = vmatprep.mubr.bf16.mxu0 0
        %4149 = vmatmul.mubr.bf16.gmra.mxu0 %v4061
        %v4150 = vpop.f32.mrf.mxu0
        %v4151 = vadd.f32 0.0, %v4150
        %v4152 = vpop.f32.mrf.mxu0
        %v4153 = vpop.f32.mrf.mxu0
        %v4154 = vadd.f32 0.0, %v4153
        %v4155 = vpop.f32.mrf.mxu0
        %4156 = vmatprep.mubr.bf16.mxu0 0
        %4157 = vmatmul.mubr.bf16.gmra.mxu0 %v4064
        %v4158 = vpop.f32.mrf.mxu0
        %v4159 = vadd.f32 0.0, %v4158
        %v4160 = vpop.f32.mrf.mxu0
        %v4161 = vpop.f32.mrf.mxu0
        %v4162 = vadd.f32 0.0, %v4161
        %v4163 = vpop.f32.mrf.mxu0
        %4164 = vmatprep.mubr.bf16.mxu0 0
        %4165 = vmatmul.mubr.bf16.gmra.mxu0 %v4067
        %v4166 = vpop.f32.mrf.mxu0
        %v4167 = vadd.f32 0.0, %v4166
        %v4168 = vpop.f32.mrf.mxu0
        %v4169 = vpop.f32.mrf.mxu0
        %v4170 = vadd.f32 0.0, %v4169
        %v4171 = vpop.f32.mrf.mxu0
        %4172 = vmatprep.mubr.bf16.mxu0 0
        %4173 = vmatmul.mubr.bf16.gmra.mxu0 %v4070
        %v4174 = vpop.f32.mrf.mxu0
        %v4175 = vadd.f32 0.0, %v4174
        %v4176 = vpop.f32.mrf.mxu0
        %v4177 = vpop.f32.mrf.mxu0
        %v4178 = vadd.f32 0.0, %v4177
        %v4179 = vpop.f32.mrf.mxu0
        %4180 = vmatprep.mubr.bf16.mxu0 0
        %4181 = vmatmul.mubr.bf16.gmra.mxu0 %v4073
        %v4182 = vpop.f32.mrf.mxu0
        %v4183 = vadd.f32 0.0, %v4182
        %v4184 = vpop.f32.mrf.mxu0
        %v4185 = vpop.f32.mrf.mxu0
        %v4186 = vadd.f32 0.0, %v4185
        %v4187 = vpop.f32.mrf.mxu0
        %4188 = vmatprep.mubr.bf16.mxu0 0
        %4189 = vmatmul.mubr.bf16.gmra.mxu0 %v4076
        %v4190 = vpop.f32.mrf.mxu0
        %v4191 = vadd.f32 0.0, %v4190
        %v4192 = vpop.f32.mrf.mxu0
        %v4193 = vpop.f32.mrf.mxu0
        %v4194 = vadd.f32 0.0, %v4193
        %v4195 = vpop.f32.mrf.mxu0
        %4196 = vmatprep.mubr.bf16.mxu0 0
        %4197 = vmatmul.mubr.bf16.gmra.mxu0 %v4079
        %v4198 = vpop.f32.mrf.mxu0
        %v4199 = vadd.f32 0.0, %v4198
        %v4200 = vpop.f32.mrf.mxu0
        %v4201 = vpop.f32.mrf.mxu0
        %v4202 = vadd.f32 0.0, %v4201
        %v4203 = vpop.f32.mrf.mxu0
        %4204 = vmatprep.mubr.bf16.mxu0 0
        %4205 = vmatmul.mubr.bf16.gmra.mxu0 %v4082
        %v4206 = vpop.f32.mrf.mxu0
        %v4207 = vadd.f32 0.0, %v4206
        %v4208 = vpop.f32.mrf.mxu0
        %v4209 = vpop.f32.mrf.mxu0
        %v4210 = vadd.f32 0.0, %v4209
        %v4211 = vpop.f32.mrf.mxu0
        %4212 = vmatprep.mubr.bf16.mxu0 0
        %4213 = vmatmul.mubr.bf16.gmra.mxu0 %v4085
        %v4214 = vpop.f32.mrf.mxu0
        %v4215 = vadd.f32 0.0, %v4214
        %v4216 = vpop.f32.mrf.mxu0
        %v4217 = vpop.f32.mrf.mxu0
        %v4218 = vadd.f32 0.0, %v4217
        %v4219 = vpop.f32.mrf.mxu0
        %4220 = vmatprep.mubr.bf16.mxu0 0
        %4221 = vmatmul.mubr.bf16.gmra.mxu0 %v4088
        %v4222 = vpop.f32.mrf.mxu0
        %v4223 = vadd.f32 0.0, %v4222
        %v4224 = vpop.f32.mrf.mxu0
        %v4225 = vpop.f32.mrf.mxu0
        %v4226 = vadd.f32 0.0, %v4225
        %v4227 = vpop.f32.mrf.mxu0
        %4228 = vmatprep.mubr.bf16.mxu0 0
        %4229 = vmatmul.mubr.bf16.gmra.mxu0 %v4091
        %v4230 = vpop.f32.mrf.mxu0
        %v4231 = vadd.f32 0.0, %v4230
        %v4232 = vpop.f32.mrf.mxu0
        %v4233 = vpop.f32.mrf.mxu0
        %v4234 = vadd.f32 0.0, %v4233
        %v4235 = vpop.f32.mrf.mxu0
        %4236 = vmatprep.mubr.bf16.mxu0 0
        %4237 = vmatmul.mubr.bf16.gmra.mxu0 %v4094
        %v4238 = vpop.f32.mrf.mxu0
        %v4239 = vadd.f32 0.0, %v4238
        %v4240 = vpop.f32.mrf.mxu0
        %v4241 = vpop.f32.mrf.mxu0
        %v4242 = vadd.f32 0.0, %v4241
        %v4243 = vpop.f32.mrf.mxu0
        %4244 = vmatprep.mubr.bf16.mxu0 0
        %4245 = vmatmul.mubr.bf16.gmra.mxu0 %v4097
        %v4246 = vpop.f32.mrf.mxu0
        %v4247 = vadd.f32 0.0, %v4246
        %v4248 = vpop.f32.mrf.mxu0
        %v4249 = vpop.f32.mrf.mxu0
        %v4250 = vadd.f32 0.0, %v4249
        %v4251 = vpop.f32.mrf.mxu0
        %4252 = vmatprep.mubr.bf16.mxu0 0
        %4253 = vmatmul.mubr.bf16.gmra.mxu0 %v4100
        %v4254 = vpop.f32.mrf.mxu0
        %v4255 = vadd.f32 0.0, %v4254
        %v4256 = vpop.f32.mrf.mxu0
        %v4257 = vpop.f32.mrf.mxu0
        %v4258 = vadd.f32 0.0, %v4257
        %v4259 = vpop.f32.mrf.mxu0
        %4260 = vmatprep.mubr.bf16.mxu0 0
        %4261 = vmatmul.mubr.bf16.gmra.mxu0 %v4103
        %v4262 = vpop.f32.mrf.mxu0
        %v4263 = vadd.f32 0.0, %v4262
        %v4264 = vpop.f32.mrf.mxu0
        %v4265 = vpop.f32.mrf.mxu0
        %v4266 = vadd.f32 0.0, %v4265
        %v4267 = vpop.f32.mrf.mxu0
        %4268 = vdwg.mxu0
        %v4269 = vadd.f32 %v3543, %v4143
        %v4270 = vadd.f32 %v3544, %v4146
        %v4271 = vadd.f32 %v3545, %v4151
        %v4272 = vadd.f32 %v3546, %v4154
        %v4273 = vadd.f32 %v3547, %v4159
        %v4274 = vadd.f32 %v3548, %v4162
        %v4275 = vadd.f32 %v3549, %v4167
        %v4276 = vadd.f32 %v3550, %v4170
        %v4277 = vadd.f32 %v3551, %v4175
        %v4278 = vadd.f32 %v3552, %v4178
        %v4279 = vadd.f32 %v3553, %v4183
        %v4280 = vadd.f32 %v3554, %v4186
        %v4281 = vadd.f32 %v3555, %v4191
        %v4282 = vadd.f32 %v3556, %v4194
        %v4283 = vadd.f32 %v3557, %v4199
        %v4284 = vadd.f32 %v3558, %v4202
        %v4285 = vadd.f32 %v3559, %v4207
        %v4286 = vadd.f32 %v3560, %v4210
        %v4287 = vadd.f32 %v3561, %v4215
        %v4288 = vadd.f32 %v3562, %v4218
        %v4289 = vadd.f32 %v3563, %v4223
        %v4290 = vadd.f32 %v3564, %v4226
        %v4291 = vadd.f32 %v3565, %v4231
        %v4292 = vadd.f32 %v3566, %v4234
        %v4293 = vadd.f32 %v3567, %v4239
        %v4294 = vadd.f32 %v3568, %v4242
        %v4295 = vadd.f32 %v3569, %v4247
        %v4296 = vadd.f32 %v3570, %v4250
        %v4297 = vadd.f32 %v3571, %v4255
        %v4298 = vadd.f32 %v3572, %v4258
        %v4299 = vadd.f32 %v3573, %v4263
        %v4300 = vadd.f32 %v3574, %v4266
        %v4301 = vld [vmem:[%s3216] sm:$0xe]
        %v4302 = vld [vmem:[%s3216 + $0xc] sm:$0xe]
        %v4303 = vld [vmem:[%s3216 + $0x18] sm:$0xe]
        %v4304 = vld [vmem:[%s3216 + $0x24] sm:$0xe]
        %v4305 = vld [vmem:[%s3216 + $0x30] sm:$0xe]
        %v4306 = vld [vmem:[%s3216 + $0x3c] sm:$0xe]
        %v4307 = vld [vmem:[%s3216 + $0x48] sm:$0xe]
        %v4308 = vld [vmem:[%s3216 + $0x54] sm:$0xe]
        %v4309 = vld [vmem:[%s3216 + $0x60] sm:$0xe]
        %v4310 = vld [vmem:[%s3216 + $0x6c] sm:$0xe]
        %v4311 = vld [vmem:[%s3216 + $0x78] sm:$0xe]
        %v4312 = vld [vmem:[%s3216 + $0x84] sm:$0xe]
        %v4313 = vld [vmem:[%s3216 + $0x90] sm:$0xe]
        %v4314 = vld [vmem:[%s3216 + $0x9c] sm:$0xe]
        %v4315 = vld [vmem:[%s3216 + $0xa8] sm:$0xe]
        %v4316 = vld [vmem:[%s3216 + $0xb4] sm:$0xe]
        %v4365 = vrot.slane %v4301, 5
        %v4366 = vrot.slane %v4365, 4
        %v4367 = vrot.slane %v3576, 5
        %v4368 = vsel %vm1254, %v4366, %v4367
        %v4369 = vrot.slane %v4367, 4
        %v4370 = vrot.slane %v3577, 5
        %v4371 = vsel %vm1254, %v4369, %v4370
        %v4372 = vrot.slane %v4302, 5
        %v4373 = vrot.slane %v4372, 4
        %v4374 = vrot.slane %v3579, 5
        %v4375 = vsel %vm1254, %v4373, %v4374
        %v4376 = vrot.slane %v4374, 4
        %v4377 = vrot.slane %v3580, 5
        %v4378 = vsel %vm1254, %v4376, %v4377
        %v4379 = vrot.slane %v4303, 5
        %v4380 = vrot.slane %v4379, 4
        %v4381 = vrot.slane %v3582, 5
        %v4382 = vsel %vm1254, %v4380, %v4381
        %v4383 = vrot.slane %v4381, 4
        %v4384 = vrot.slane %v3583, 5
        %v4385 = vsel %vm1254, %v4383, %v4384
        %v4386 = vrot.slane %v4304, 5
        %v4387 = vrot.slane %v4386, 4
        %v4388 = vrot.slane %v3585, 5
        %v4389 = vsel %vm1254, %v4387, %v4388
        %v4390 = vrot.slane %v4388, 4
        %v4391 = vrot.slane %v3586, 5
        %v4392 = vsel %vm1254, %v4390, %v4391
        %v4393 = vrot.slane %v4305, 5
        %v4394 = vrot.slane %v4393, 4
        %v4395 = vrot.slane %v3588, 5
        %v4396 = vsel %vm1254, %v4394, %v4395
        %v4397 = vrot.slane %v4395, 4
        %v4398 = vrot.slane %v3589, 5
        %v4399 = vsel %vm1254, %v4397, %v4398
        %v4400 = vrot.slane %v4306, 5
        %v4401 = vrot.slane %v4400, 4
        %v4402 = vrot.slane %v3591, 5
        %v4403 = vsel %vm1254, %v4401, %v4402
        %v4404 = vrot.slane %v4402, 4
        %v4405 = vrot.slane %v3592, 5
        %v4406 = vsel %vm1254, %v4404, %v4405
        %v4407 = vrot.slane %v4307, 5
        %v4408 = vrot.slane %v4407, 4
        %v4409 = vrot.slane %v3594, 5
        %v4410 = vsel %vm1254, %v4408, %v4409
        %v4411 = vrot.slane %v4409, 4
        %v4412 = vrot.slane %v3595, 5
        %v4413 = vsel %vm1254, %v4411, %v4412
        %v4414 = vrot.slane %v4308, 5
        %v4415 = vrot.slane %v4414, 4
        %v4416 = vrot.slane %v3597, 5
        %v4417 = vsel %vm1254, %v4415, %v4416
        %v4418 = vrot.slane %v4416, 4
        %v4419 = vrot.slane %v3598, 5
        %v4420 = vsel %vm1254, %v4418, %v4419
        %v4421 = vrot.slane %v4309, 5
        %v4422 = vrot.slane %v4421, 4
        %v4423 = vrot.slane %v3600, 5
        %v4424 = vsel %vm1254, %v4422, %v4423
        %v4425 = vrot.slane %v4423, 4
        %v4426 = vrot.slane %v3601, 5
        %v4427 = vsel %vm1254, %v4425, %v4426
        %v4428 = vrot.slane %v4310, 5
        %v4429 = vrot.slane %v4428, 4
        %v4430 = vrot.slane %v3603, 5
        %v4431 = vsel %vm1254, %v4429, %v4430
        %v4432 = vrot.slane %v4430, 4
        %v4433 = vrot.slane %v3604, 5
        %v4434 = vsel %vm1254, %v4432, %v4433
        %v4435 = vrot.slane %v4311, 5
        %v4436 = vrot.slane %v4435, 4
        %v4437 = vrot.slane %v3606, 5
        %v4438 = vsel %vm1254, %v4436, %v4437
        %v4439 = vrot.slane %v4437, 4
        %v4440 = vrot.slane %v3607, 5
        %v4441 = vsel %vm1254, %v4439, %v4440
        %v4442 = vrot.slane %v4312, 5
        %v4443 = vrot.slane %v4442, 4
        %v4444 = vrot.slane %v3609, 5
        %v4445 = vsel %vm1254, %v4443, %v4444
        %v4446 = vrot.slane %v4444, 4
        %v4447 = vrot.slane %v3610, 5
        %v4448 = vsel %vm1254, %v4446, %v4447
        %v4449 = vrot.slane %v4313, 5
        %v4450 = vrot.slane %v4449, 4
        %v4451 = vrot.slane %v3612, 5
        %v4452 = vsel %vm1254, %v4450, %v4451
        %v4453 = vrot.slane %v4451, 4
        %v4454 = vrot.slane %v3613, 5
        %v4455 = vsel %vm1254, %v4453, %v4454
        %v4456 = vrot.slane %v4314, 5
        %v4457 = vrot.slane %v4456, 4
        %v4458 = vrot.slane %v3615, 5
        %v4459 = vsel %vm1254, %v4457, %v4458
        %v4460 = vrot.slane %v4458, 4
        %v4461 = vrot.slane %v3616, 5
        %v4462 = vsel %vm1254, %v4460, %v4461
        %v4463 = vrot.slane %v4315, 5
        %v4464 = vrot.slane %v4463, 4
        %v4465 = vrot.slane %v3618, 5
        %v4466 = vsel %vm1254, %v4464, %v4465
        %v4467 = vrot.slane %v4465, 4
        %v4468 = vrot.slane %v3619, 5
        %v4469 = vsel %vm1254, %v4467, %v4468
        %v4470 = vrot.slane %v4316, 5
        %v4471 = vrot.slane %v4470, 4
        %v4472 = vrot.slane %v3621, 5
        %v4473 = vsel %vm1254, %v4471, %v4472
        %v4474 = vrot.slane %v4472, 4
        %v4475 = vrot.slane %v3622, 5
        %v4476 = vsel %vm1254, %v4474, %v4475
        %s4477 = scalar_lea.vmem %s1, 16
        %v4478 = vld [vmem:[%s4477] sm:$0x3]
        %v4479 = vunpack.c.l.b16 %v4368
        %v4480 = vunpack.c.l.b16 %v4371
        %v4481 = vunpack.c.l.b16 %v4375
        %v4482 = vunpack.c.l.b16 %v4378
        %v4483 = vunpack.c.l.b16 %v4382
        %v4484 = vunpack.c.l.b16 %v4385
        %v4485 = vunpack.c.l.b16 %v4389
        %v4486 = vunpack.c.l.b16 %v4392
        %v4487 = vunpack.c.l.b16 %v4396
        %v4488 = vunpack.c.l.b16 %v4399
        %v4489 = vunpack.c.l.b16 %v4403
        %v4490 = vunpack.c.l.b16 %v4406
        %v4491 = vunpack.c.l.b16 %v4410
        %v4492 = vunpack.c.l.b16 %v4413
        %v4493 = vunpack.c.l.b16 %v4417
        %v4494 = vunpack.c.l.b16 %v4420
        %v4495 = vunpack.c.l.b16 %v4424
        %v4496 = vunpack.c.l.b16 %v4427
        %v4497 = vunpack.c.l.b16 %v4431
        %v4498 = vunpack.c.l.b16 %v4434
        %v4499 = vunpack.c.l.b16 %v4438
        %v4500 = vunpack.c.l.b16 %v4441
        %v4501 = vunpack.c.l.b16 %v4445
        %v4502 = vunpack.c.l.b16 %v4448
        %v4503 = vunpack.c.l.b16 %v4452
        %v4504 = vunpack.c.l.b16 %v4455
        %v4505 = vunpack.c.l.b16 %v4459
        %v4506 = vunpack.c.l.b16 %v4462
        %v4507 = vunpack.c.l.b16 %v4466
        %v4508 = vunpack.c.l.b16 %v4469
        %v4509 = vunpack.c.l.b16 %v4473
        %v4510 = vunpack.c.l.b16 %v4476
        %v4511 = vpack.c.b16 %v4480, %v4479
        %v4512 = vpack.c.b16 %v4482, %v4481
        %v4513 = vpack.c.b16 %v4484, %v4483
        %v4514 = vpack.c.b16 %v4486, %v4485
        %v4515 = vpack.c.b16 %v4488, %v4487
        %v4516 = vpack.c.b16 %v4490, %v4489
        %v4517 = vpack.c.b16 %v4492, %v4491
        %v4518 = vpack.c.b16 %v4494, %v4493
        %v4519 = vpack.c.b16 %v4496, %v4495
        %v4520 = vpack.c.b16 %v4498, %v4497
        %v4521 = vpack.c.b16 %v4500, %v4499
        %v4522 = vpack.c.b16 %v4502, %v4501
        %v4523 = vpack.c.b16 %v4504, %v4503
        %v4524 = vpack.c.b16 %v4506, %v4505
        %v4525 = vpack.c.b16 %v4508, %v4507
        %v4526 = vpack.c.b16 %v4510, %v4509
        %v4528 = vsel %vm698, %v4511, 0
        %v4531 = vsel %vm698, %v4512, 0
        %v4534 = vsel %vm698, %v4513, 0
        %v4537 = vsel %vm698, %v4514, 0
        %v4540 = vsel %vm698, %v4515, 0
        %v4543 = vsel %vm698, %v4516, 0
        %v4546 = vsel %vm698, %v4517, 0
        %v4549 = vsel %vm698, %v4518, 0
        %v4552 = vsel %vm698, %v4519, 0
        %v4555 = vsel %vm698, %v4520, 0
        %v4558 = vsel %vm698, %v4521, 0
        %v4561 = vsel %vm698, %v4522, 0
        %v4564 = vsel %vm698, %v4523, 0
        %v4567 = vsel %vm698, %v4524, 0
        %v4570 = vsel %vm698, %v4525, 0
        %v4573 = vsel %vm698, %v4526, 0
        %v4576 = vsel %vm747, %v4478, 0
        %4578 = vmatprep.subr.bf16.mxu0 0
        %4579 = vmatpush1.bf16.msra.mxu0 0
        %4580 = vmatprep.subr.bf16.mxu0 0
        %4581 = vmatpush1.bf16.msra.mxu0 0
        %4582 = vmatprep.subr.bf16.mxu0 0
        %4583 = vmatpush1.bf16.msra.mxu0 0
        %4584 = vmatprep.subr.bf16.mxu0 0
        %4585 = vmatpush1.bf16.msra.mxu0 0
        %4586 = vmatprep.subr.bf16.mxu0 0
        %4587 = vmatpush1.bf16.msra.mxu0 0
        %4588 = vmatprep.subr.bf16.mxu0 0
        %4589 = vmatpush1.bf16.msra.mxu0 0
        %4590 = vmatprep.subr.bf16.mxu0 0
        %4591 = vmatpush1.bf16.msra.mxu0 0
        %4592 = vmatprep.subr.bf16.mxu0 0
        %4593 = vmatpush1.bf16.msra.mxu0 %v4576
        %4594 = vmatprep.subr.bf16.mxu0 0
        %4595 = vmatpush2.bf16.msra.mxu0 0
        %4596 = vmatprep.subr.bf16.mxu0 0
        %4597 = vmatpush2.bf16.msra.mxu0 0
        %4598 = vmatprep.subr.bf16.mxu0 0
        %4599 = vmatpush2.bf16.msra.mxu0 0
        %4600 = vmatprep.subr.bf16.mxu0 0
        %4601 = vmatpush2.bf16.msra.mxu0 0
        %4602 = vmatprep.subr.bf16.mxu0 0
        %4603 = vmatpush2.bf16.msra.mxu0 0
        %4604 = vmatprep.subr.bf16.mxu0 0
        %4605 = vmatpush2.bf16.msra.mxu0 0
        %4606 = vmatprep.subr.bf16.mxu0 0
        %4607 = vmatpush2.bf16.msra.mxu0 0
        %4608 = vmatprep.subr.bf16.mxu0 0
        %4609 = vmatpush2.bf16.msra.mxu0 0
        %4610 = vmatprep.mubr.bf16.mxu0 0
        %4611 = vmatmul.mubr.bf16.gmra.mxu0 %v4528
        %v4612 = vpop.f32.mrf.mxu0
        %v4613 = vadd.f32 0.0, %v4612
        %v4614 = vpop.f32.mrf.mxu0
        %v4615 = vpop.f32.mrf.mxu0
        %v4616 = vadd.f32 0.0, %v4615
        %v4617 = vpop.f32.mrf.mxu0
        %4618 = vmatprep.mubr.bf16.mxu0 0
        %4619 = vmatmul.mubr.bf16.gmra.mxu0 %v4531
        %v4620 = vpop.f32.mrf.mxu0
        %v4621 = vadd.f32 0.0, %v4620
        %v4622 = vpop.f32.mrf.mxu0
        %v4623 = vpop.f32.mrf.mxu0
        %v4624 = vadd.f32 0.0, %v4623
        %v4625 = vpop.f32.mrf.mxu0
        %4626 = vmatprep.mubr.bf16.mxu0 0
        %4627 = vmatmul.mubr.bf16.gmra.mxu0 %v4534
        %v4628 = vpop.f32.mrf.mxu0
        %v4629 = vadd.f32 0.0, %v4628
        %v4630 = vpop.f32.mrf.mxu0
        %v4631 = vpop.f32.mrf.mxu0
        %v4632 = vadd.f32 0.0, %v4631
        %v4633 = vpop.f32.mrf.mxu0
        %4634 = vmatprep.mubr.bf16.mxu0 0
        %4635 = vmatmul.mubr.bf16.gmra.mxu0 %v4537
        %v4636 = vpop.f32.mrf.mxu0
        %v4637 = vadd.f32 0.0, %v4636
        %v4638 = vpop.f32.mrf.mxu0
        %v4639 = vpop.f32.mrf.mxu0
        %v4640 = vadd.f32 0.0, %v4639
        %v4641 = vpop.f32.mrf.mxu0
        %4642 = vmatprep.mubr.bf16.mxu0 0
        %4643 = vmatmul.mubr.bf16.gmra.mxu0 %v4540
        %v4644 = vpop.f32.mrf.mxu0
        %v4645 = vadd.f32 0.0, %v4644
        %v4646 = vpop.f32.mrf.mxu0
        %v4647 = vpop.f32.mrf.mxu0
        %v4648 = vadd.f32 0.0, %v4647
        %v4649 = vpop.f32.mrf.mxu0
        %4650 = vmatprep.mubr.bf16.mxu0 0
        %4651 = vmatmul.mubr.bf16.gmra.mxu0 %v4543
        %v4652 = vpop.f32.mrf.mxu0
        %v4653 = vadd.f32 0.0, %v4652
        %v4654 = vpop.f32.mrf.mxu0
        %v4655 = vpop.f32.mrf.mxu0
        %v4656 = vadd.f32 0.0, %v4655
        %v4657 = vpop.f32.mrf.mxu0
        %4658 = vmatprep.mubr.bf16.mxu0 0
        %4659 = vmatmul.mubr.bf16.gmra.mxu0 %v4546
        %v4660 = vpop.f32.mrf.mxu0
        %v4661 = vadd.f32 0.0, %v4660
        %v4662 = vpop.f32.mrf.mxu0
        %v4663 = vpop.f32.mrf.mxu0
        %v4664 = vadd.f32 0.0, %v4663
        %v4665 = vpop.f32.mrf.mxu0
        %4666 = vmatprep.mubr.bf16.mxu0 0
        %4667 = vmatmul.mubr.bf16.gmra.mxu0 %v4549
        %v4668 = vpop.f32.mrf.mxu0
        %v4669 = vadd.f32 0.0, %v4668
        %v4670 = vpop.f32.mrf.mxu0
        %v4671 = vpop.f32.mrf.mxu0
        %v4672 = vadd.f32 0.0, %v4671
        %v4673 = vpop.f32.mrf.mxu0
        %4674 = vmatprep.mubr.bf16.mxu0 0
        %4675 = vmatmul.mubr.bf16.gmra.mxu0 %v4552
        %v4676 = vpop.f32.mrf.mxu0
        %v4677 = vadd.f32 0.0, %v4676
        %v4678 = vpop.f32.mrf.mxu0
        %v4679 = vpop.f32.mrf.mxu0
        %v4680 = vadd.f32 0.0, %v4679
        %v4681 = vpop.f32.mrf.mxu0
        %4682 = vmatprep.mubr.bf16.mxu0 0
        %4683 = vmatmul.mubr.bf16.gmra.mxu0 %v4555
        %v4684 = vpop.f32.mrf.mxu0
        %v4685 = vadd.f32 0.0, %v4684
        %v4686 = vpop.f32.mrf.mxu0
        %v4687 = vpop.f32.mrf.mxu0
        %v4688 = vadd.f32 0.0, %v4687
        %v4689 = vpop.f32.mrf.mxu0
        %4690 = vmatprep.mubr.bf16.mxu0 0
        %4691 = vmatmul.mubr.bf16.gmra.mxu0 %v4558
        %v4692 = vpop.f32.mrf.mxu0
        %v4693 = vadd.f32 0.0, %v4692
        %v4694 = vpop.f32.mrf.mxu0
        %v4695 = vpop.f32.mrf.mxu0
        %v4696 = vadd.f32 0.0, %v4695
        %v4697 = vpop.f32.mrf.mxu0
        %4698 = vmatprep.mubr.bf16.mxu0 0
        %4699 = vmatmul.mubr.bf16.gmra.mxu0 %v4561
        %v4700 = vpop.f32.mrf.mxu0
        %v4701 = vadd.f32 0.0, %v4700
        %v4702 = vpop.f32.mrf.mxu0
        %v4703 = vpop.f32.mrf.mxu0
        %v4704 = vadd.f32 0.0, %v4703
        %v4705 = vpop.f32.mrf.mxu0
        %4706 = vmatprep.mubr.bf16.mxu0 0
        %4707 = vmatmul.mubr.bf16.gmra.mxu0 %v4564
        %v4708 = vpop.f32.mrf.mxu0
        %v4709 = vadd.f32 0.0, %v4708
        %v4710 = vpop.f32.mrf.mxu0
        %v4711 = vpop.f32.mrf.mxu0
        %v4712 = vadd.f32 0.0, %v4711
        %v4713 = vpop.f32.mrf.mxu0
        %4714 = vmatprep.mubr.bf16.mxu0 0
        %4715 = vmatmul.mubr.bf16.gmra.mxu0 %v4567
        %v4716 = vpop.f32.mrf.mxu0
        %v4717 = vadd.f32 0.0, %v4716
        %v4718 = vpop.f32.mrf.mxu0
        %v4719 = vpop.f32.mrf.mxu0
        %v4720 = vadd.f32 0.0, %v4719
        %v4721 = vpop.f32.mrf.mxu0
        %4722 = vmatprep.mubr.bf16.mxu0 0
        %4723 = vmatmul.mubr.bf16.gmra.mxu0 %v4570
        %v4724 = vpop.f32.mrf.mxu0
        %v4725 = vadd.f32 0.0, %v4724
        %v4726 = vpop.f32.mrf.mxu0
        %v4727 = vpop.f32.mrf.mxu0
        %v4728 = vadd.f32 0.0, %v4727
        %v4729 = vpop.f32.mrf.mxu0
        %4730 = vmatprep.mubr.bf16.mxu0 0
        %4731 = vmatmul.mubr.bf16.gmra.mxu0 %v4573
        %v4732 = vpop.f32.mrf.mxu0
        %v4733 = vadd.f32 0.0, %v4732
        %v4734 = vpop.f32.mrf.mxu0
        %v4735 = vpop.f32.mrf.mxu0
        %v4736 = vadd.f32 0.0, %v4735
        %v4737 = vpop.f32.mrf.mxu0
        %4738 = vdwg.mxu0
        %v4739 = vadd.f32 %v4269, %v4613
        %v4740 = vadd.f32 %v4270, %v4616
        %v4741 = vadd.f32 %v4271, %v4621
        %v4742 = vadd.f32 %v4272, %v4624
        %v4743 = vadd.f32 %v4273, %v4629
        %v4744 = vadd.f32 %v4274, %v4632
        %v4745 = vadd.f32 %v4275, %v4637
        %v4746 = vadd.f32 %v4276, %v4640
        %v4747 = vadd.f32 %v4277, %v4645
        %v4748 = vadd.f32 %v4278, %v4648
        %v4749 = vadd.f32 %v4279, %v4653
        %v4750 = vadd.f32 %v4280, %v4656
        %v4751 = vadd.f32 %v4281, %v4661
        %v4752 = vadd.f32 %v4282, %v4664
        %v4753 = vadd.f32 %v4283, %v4669
        %v4754 = vadd.f32 %v4284, %v4672
        %v4755 = vadd.f32 %v4285, %v4677
        %v4756 = vadd.f32 %v4286, %v4680
        %v4757 = vadd.f32 %v4287, %v4685
        %v4758 = vadd.f32 %v4288, %v4688
        %v4759 = vadd.f32 %v4289, %v4693
        %v4760 = vadd.f32 %v4290, %v4696
        %v4761 = vadd.f32 %v4291, %v4701
        %v4762 = vadd.f32 %v4292, %v4704
        %v4763 = vadd.f32 %v4293, %v4709
        %v4764 = vadd.f32 %v4294, %v4712
        %v4765 = vadd.f32 %v4295, %v4717
        %v4766 = vadd.f32 %v4296, %v4720
        %v4767 = vadd.f32 %v4297, %v4725
        %v4768 = vadd.f32 %v4298, %v4728
        %v4769 = vadd.f32 %v4299, %v4733
        %v4770 = vadd.f32 %v4300, %v4736
        %v4771 = vld [vmem:[%s2] sm:$0x1]
        %v4772 = vld [vmem:[#allocation2] sm:$0x1]
        %v4774 = vlaneseq
        %v4775 = vshrl.u32 %v4774, 7
        %v4776 = vsub.s32 0, %v4775
        %v4777 = vrot.slane %v4771, %v4776
        %v4779 = vmul.f32 %v4739, %v4777
        %v4780 = vmul.f32 %v4740, %v4777
        %v4781 = vmul.f32 %v4741, %v4777
        %v4782 = vmul.f32 %v4742, %v4777
        %v4783 = vmul.f32 %v4743, %v4777
        %v4784 = vmul.f32 %v4744, %v4777
        %v4785 = vmul.f32 %v4745, %v4777
        %v4786 = vmul.f32 %v4746, %v4777
        %v4787 = vmul.f32 %v4747, %v4777
        %v4788 = vmul.f32 %v4748, %v4777
        %v4789 = vmul.f32 %v4749, %v4777
        %v4790 = vmul.f32 %v4750, %v4777
        %v4791 = vmul.f32 %v4751, %v4777
        %v4792 = vmul.f32 %v4752, %v4777
        %v4793 = vmul.f32 %v4753, %v4777
        %v4794 = vmul.f32 %v4754, %v4777
        %v4795 = vmul.f32 %v4755, %v4777
        %v4796 = vmul.f32 %v4756, %v4777
        %v4797 = vmul.f32 %v4757, %v4777
        %v4798 = vmul.f32 %v4758, %v4777
        %v4799 = vmul.f32 %v4759, %v4777
        %v4800 = vmul.f32 %v4760, %v4777
        %v4801 = vmul.f32 %v4761, %v4777
        %v4802 = vmul.f32 %v4762, %v4777
        %v4803 = vmul.f32 %v4763, %v4777
        %v4804 = vmul.f32 %v4764, %v4777
        %v4805 = vmul.f32 %v4765, %v4777
        %v4806 = vmul.f32 %v4766, %v4777
        %v4807 = vmul.f32 %v4767, %v4777
        %v4808 = vmul.f32 %v4768, %v4777
        %v4809 = vmul.f32 %v4769, %v4777
        %v4810 = vmul.f32 %v4770, %v4777
        %v4812 = vlaneseq
        %v4813 = vshrl.u32 %v4812, 7
        %v4814 = vsub.s32 0, %v4813
        %v4815 = vrot.slane %v4772, %v4814
        %v4817 = vadd.f32 %v4779, %v4815
        %v4818 = vadd.f32 %v4780, %v4815
        %v4819 = vadd.f32 %v4781, %v4815
        %v4820 = vadd.f32 %v4782, %v4815
        %v4821 = vadd.f32 %v4783, %v4815
        %v4822 = vadd.f32 %v4784, %v4815
        %v4823 = vadd.f32 %v4785, %v4815
        %v4824 = vadd.f32 %v4786, %v4815
        %v4825 = vadd.f32 %v4787, %v4815
        %v4826 = vadd.f32 %v4788, %v4815
        %v4827 = vadd.f32 %v4789, %v4815
        %v4828 = vadd.f32 %v4790, %v4815
        %v4829 = vadd.f32 %v4791, %v4815
        %v4830 = vadd.f32 %v4792, %v4815
        %v4831 = vadd.f32 %v4793, %v4815
        %v4832 = vadd.f32 %v4794, %v4815
        %v4833 = vadd.f32 %v4795, %v4815
        %v4834 = vadd.f32 %v4796, %v4815
        %v4835 = vadd.f32 %v4797, %v4815
        %v4836 = vadd.f32 %v4798, %v4815
        %v4837 = vadd.f32 %v4799, %v4815
        %v4838 = vadd.f32 %v4800, %v4815
        %v4839 = vadd.f32 %v4801, %v4815
        %v4840 = vadd.f32 %v4802, %v4815
        %v4841 = vadd.f32 %v4803, %v4815
        %v4842 = vadd.f32 %v4804, %v4815
        %v4843 = vadd.f32 %v4805, %v4815
        %v4844 = vadd.f32 %v4806, %v4815
        %v4845 = vadd.f32 %v4807, %v4815
        %v4846 = vadd.f32 %v4808, %v4815
        %v4847 = vadd.f32 %v4809, %v4815
        %v4848 = vadd.f32 %v4810, %v4815
        %v4849 = vmul.f32 %v4817, 0.01
        %v4850 = vmul.f32 %v4818, 0.01
        %v4851 = vmul.f32 %v4819, 0.01
        %v4852 = vmul.f32 %v4820, 0.01
        %v4853 = vmul.f32 %v4821, 0.01
        %v4854 = vmul.f32 %v4822, 0.01
        %v4855 = vmul.f32 %v4823, 0.01
        %v4856 = vmul.f32 %v4824, 0.01
        %v4857 = vmul.f32 %v4825, 0.01
        %v4858 = vmul.f32 %v4826, 0.01
        %v4859 = vmul.f32 %v4827, 0.01
        %v4860 = vmul.f32 %v4828, 0.01
        %v4861 = vmul.f32 %v4829, 0.01
        %v4862 = vmul.f32 %v4830, 0.01
        %v4863 = vmul.f32 %v4831, 0.01
        %v4864 = vmul.f32 %v4832, 0.01
        %v4865 = vmul.f32 %v4833, 0.01
        %v4866 = vmul.f32 %v4834, 0.01
        %v4867 = vmul.f32 %v4835, 0.01
        %v4868 = vmul.f32 %v4836, 0.01
        %v4869 = vmul.f32 %v4837, 0.01
        %v4870 = vmul.f32 %v4838, 0.01
        %v4871 = vmul.f32 %v4839, 0.01
        %v4872 = vmul.f32 %v4840, 0.01
        %v4873 = vmul.f32 %v4841, 0.01
        %v4874 = vmul.f32 %v4842, 0.01
        %v4875 = vmul.f32 %v4843, 0.01
        %v4876 = vmul.f32 %v4844, 0.01
        %v4877 = vmul.f32 %v4845, 0.01
        %v4878 = vmul.f32 %v4846, 0.01
        %v4879 = vmul.f32 %v4847, 0.01
        %v4880 = vmul.f32 %v4848, 0.01
        %v4881 = vmax.f32 %v4817, %v4849
        %v4882 = vmax.f32 %v4818, %v4850
        %v4883 = vmax.f32 %v4819, %v4851
        %v4884 = vmax.f32 %v4820, %v4852
        %v4885 = vmax.f32 %v4821, %v4853
        %v4886 = vmax.f32 %v4822, %v4854
        %v4887 = vmax.f32 %v4823, %v4855
        %v4888 = vmax.f32 %v4824, %v4856
        %v4889 = vmax.f32 %v4825, %v4857
        %v4890 = vmax.f32 %v4826, %v4858
        %v4891 = vmax.f32 %v4827, %v4859
        %v4892 = vmax.f32 %v4828, %v4860
        %v4893 = vmax.f32 %v4829, %v4861
        %v4894 = vmax.f32 %v4830, %v4862
        %v4895 = vmax.f32 %v4831, %v4863
        %v4896 = vmax.f32 %v4832, %v4864
        %v4897 = vmax.f32 %v4833, %v4865
        %v4898 = vmax.f32 %v4834, %v4866
        %v4899 = vmax.f32 %v4835, %v4867
        %v4900 = vmax.f32 %v4836, %v4868
        %v4901 = vmax.f32 %v4837, %v4869
        %v4902 = vmax.f32 %v4838, %v4870
        %v4903 = vmax.f32 %v4839, %v4871
        %v4904 = vmax.f32 %v4840, %v4872
        %v4905 = vmax.f32 %v4841, %v4873
        %v4906 = vmax.f32 %v4842, %v4874
        %v4907 = vmax.f32 %v4843, %v4875
        %v4908 = vmax.f32 %v4844, %v4876
        %v4909 = vmax.f32 %v4845, %v4877
        %v4910 = vmax.f32 %v4846, %v4878
        %v4911 = vmax.f32 %v4847, %v4879
        %v4912 = vmax.f32 %v4848, %v4880
        %v4913 = vpack.c.bf16 %v4882, %v4881
        %v4914 = vpack.c.bf16 %v4884, %v4883
        %v4915 = vpack.c.bf16 %v4886, %v4885
        %v4916 = vpack.c.bf16 %v4888, %v4887
        %v4917 = vpack.c.bf16 %v4890, %v4889
        %v4918 = vpack.c.bf16 %v4892, %v4891
        %v4919 = vpack.c.bf16 %v4894, %v4893
        %v4920 = vpack.c.bf16 %v4896, %v4895
        %v4921 = vpack.c.bf16 %v4898, %v4897
        %v4922 = vpack.c.bf16 %v4900, %v4899
        %v4923 = vpack.c.bf16 %v4902, %v4901
        %v4924 = vpack.c.bf16 %v4904, %v4903
        %v4925 = vpack.c.bf16 %v4906, %v4905
        %v4926 = vpack.c.bf16 %v4908, %v4907
        %v4927 = vpack.c.bf16 %v4910, %v4909
        %v4928 = vpack.c.bf16 %v4912, %v4911
        %v4945 = vunpack.c.l.b16 %v4913
        %v4946 = vunpack.c.h.b16 %v4913
        %v4947 = vunpack.c.l.b16 %v4914
        %v4948 = vunpack.c.h.b16 %v4914
        %v4949 = vunpack.c.l.b16 %v4915
        %v4950 = vunpack.c.h.b16 %v4915
        %v4951 = vunpack.c.l.b16 %v4916
        %v4952 = vunpack.c.h.b16 %v4916
        %v4953 = vunpack.c.l.b16 %v4917
        %v4954 = vunpack.c.h.b16 %v4917
        %v4955 = vunpack.c.l.b16 %v4918
        %v4956 = vunpack.c.h.b16 %v4918
        %v4957 = vunpack.c.l.b16 %v4919
        %v4958 = vunpack.c.h.b16 %v4919
        %v4959 = vunpack.c.l.b16 %v4920
        %v4960 = vunpack.c.h.b16 %v4920
        %v4961 = vunpack.c.l.b16 %v4921
        %v4962 = vunpack.c.h.b16 %v4921
        %v4963 = vunpack.c.l.b16 %v4922
        %v4964 = vunpack.c.h.b16 %v4922
        %v4965 = vunpack.c.l.b16 %v4923
        %v4966 = vunpack.c.h.b16 %v4923
        %v4967 = vunpack.c.l.b16 %v4924
        %v4968 = vunpack.c.h.b16 %v4924
        %v4969 = vunpack.c.l.b16 %v4925
        %v4970 = vunpack.c.h.b16 %v4925
        %v4971 = vunpack.c.l.b16 %v4926
        %v4972 = vunpack.c.h.b16 %v4926
        %v4973 = vunpack.c.l.b16 %v4927
        %v4974 = vunpack.c.h.b16 %v4927
        %v4975 = vunpack.c.l.b16 %v4928
        %v4976 = vunpack.c.h.b16 %v4928
        %v4977 = vpack.c.b16 %v4945, %v4945
        %v4978 = vpack.c.b16 %v4946, %v4946
        %v4979 = vpack.c.b16 %v4947, %v4947
        %v4980 = vpack.c.b16 %v4948, %v4948
        %v4981 = vpack.c.b16 %v4949, %v4949
        %v4982 = vpack.c.b16 %v4950, %v4950
        %v4983 = vpack.c.b16 %v4951, %v4951
        %v4984 = vpack.c.b16 %v4952, %v4952
        %v4985 = vpack.c.b16 %v4953, %v4953
        %v4986 = vpack.c.b16 %v4954, %v4954
        %v4987 = vpack.c.b16 %v4955, %v4955
        %v4988 = vpack.c.b16 %v4956, %v4956
        %v4989 = vpack.c.b16 %v4957, %v4957
        %v4990 = vpack.c.b16 %v4958, %v4958
        %v4991 = vpack.c.b16 %v4959, %v4959
        %v4992 = vpack.c.b16 %v4960, %v4960
        %v4993 = vpack.c.b16 %v4961, %v4961
        %v4994 = vpack.c.b16 %v4962, %v4962
        %v4995 = vpack.c.b16 %v4963, %v4963
        %v4996 = vpack.c.b16 %v4964, %v4964
        %v4997 = vpack.c.b16 %v4965, %v4965
        %v4998 = vpack.c.b16 %v4966, %v4966
        %v4999 = vpack.c.b16 %v4967, %v4967
        %v5000 = vpack.c.b16 %v4968, %v4968
        %v5001 = vpack.c.b16 %v4969, %v4969
        %v5002 = vpack.c.b16 %v4970, %v4970
        %v5003 = vpack.c.b16 %v4971, %v4971
        %v5004 = vpack.c.b16 %v4972, %v4972
        %v5005 = vpack.c.b16 %v4973, %v4973
        %v5006 = vpack.c.b16 %v4974, %v4974
        %v5007 = vpack.c.b16 %v4975, %v4975
        %v5008 = vpack.c.b16 %v4976, %v4976
        %vm5041 = vcmask 257024
        %5042 = vst.msk [vmem:[%s210] sm:$0xf] %vm5041, %v4977
        %5043 = vst.msk [vmem:[%s210 + $0x4] sm:$0xf] %vm5041, %v4978
        %5044 = vst.msk [vmem:[%s210 + $0x8] sm:$0xf] %vm5041, %v4979
        %5045 = vst.msk [vmem:[%s210 + $0xc] sm:$0xf] %vm5041, %v4980
        %5046 = vst.msk [vmem:[%s210 + $0x10] sm:$0xf] %vm5041, %v4981
        %5047 = vst.msk [vmem:[%s210 + $0x14] sm:$0xf] %vm5041, %v4982
        %5048 = vst.msk [vmem:[%s210 + $0x18] sm:$0xf] %vm5041, %v4983
        %5049 = vst.msk [vmem:[%s210 + $0x1c] sm:$0xf] %vm5041, %v4984
        %5050 = vst.msk [vmem:[%s210 + $0x20] sm:$0xf] %vm5041, %v4985
        %5051 = vst.msk [vmem:[%s210 + $0x24] sm:$0xf] %vm5041, %v4986
        %5052 = vst.msk [vmem:[%s210 + $0x28] sm:$0xf] %vm5041, %v4987
        %5053 = vst.msk [vmem:[%s210 + $0x2c] sm:$0xf] %vm5041, %v4988
        %5054 = vst.msk [vmem:[%s210 + $0x30] sm:$0xf] %vm5041, %v4989
        %5055 = vst.msk [vmem:[%s210 + $0x34] sm:$0xf] %vm5041, %v4990
        %5056 = vst.msk [vmem:[%s210 + $0x38] sm:$0xf] %vm5041, %v4991
        %5057 = vst.msk [vmem:[%s210 + $0x3c] sm:$0xf] %vm5041, %v4992
        %5058 = vst.msk [vmem:[%s210 + $0x40] sm:$0xf] %vm5041, %v4993
        %5059 = vst.msk [vmem:[%s210 + $0x44] sm:$0xf] %vm5041, %v4994
        %5060 = vst.msk [vmem:[%s210 + $0x48] sm:$0xf] %vm5041, %v4995
        %5061 = vst.msk [vmem:[%s210 + $0x4c] sm:$0xf] %vm5041, %v4996
        %5062 = vst.msk [vmem:[%s210 + $0x50] sm:$0xf] %vm5041, %v4997
        %5063 = vst.msk [vmem:[%s210 + $0x54] sm:$0xf] %vm5041, %v4998
        %5064 = vst.msk [vmem:[%s210 + $0x58] sm:$0xf] %vm5041, %v4999
        %5065 = vst.msk [vmem:[%s210 + $0x5c] sm:$0xf] %vm5041, %v5000
        %5066 = vst.msk [vmem:[%s210 + $0x60] sm:$0xf] %vm5041, %v5001
        %5067 = vst.msk [vmem:[%s210 + $0x64] sm:$0xf] %vm5041, %v5002
        %5068 = vst.msk [vmem:[%s210 + $0x68] sm:$0xf] %vm5041, %v5003
        %5069 = vst.msk [vmem:[%s210 + $0x6c] sm:$0xf] %vm5041, %v5004
        %5070 = vst.msk [vmem:[%s210 + $0x70] sm:$0xf] %vm5041, %v5005
        %5071 = vst.msk [vmem:[%s210 + $0x74] sm:$0xf] %vm5041, %v5006
        %5072 = vst.msk [vmem:[%s210 + $0x78] sm:$0xf] %vm5041, %v5007
        %5073 = vst.msk [vmem:[%s210 + $0x7c] sm:$0xf] %vm5041, %v5008
        %p5074 = scmp.lt.s32.totalorder %s16, 1
        %s5075 = scalar_select %p5074, %s16, 1
        %s5076 = smul.addr %s5075, 32
        %s5077 = smul.addr %s5076, 4
        %s5078 = scalar_lea.vmem %s4, %s5077
        // Predicated region
        $region41: #{font_classifier_forward.5} parent=35 // pred_check
          %p5079 = pneg %p123
        $region42: #{font_classifier_forward.5} parent=35 // pred_check_branch
          %5081 = sbr.rel (%p5079) target = $region44
        $region43: #{font_classifier_forward.5} parent=35 // pred_region
          _
        $region44: #{font_classifier_forward.5} parent=35 // pred_fallthru
          _
      $region36: #{font_classifier_forward.5} parent=5 // pred_fallthru
        _
      %p5082 = scmp.le.s32.totalorder 2, %s11
      // Predicated region
      $region45: #{font_classifier_forward.5} parent=5 // pred_check
        %p5083 = pneg %p5082
      $region46: #{font_classifier_forward.5} parent=5 // pred_check_branch
        %5085 = sbr.rel (%p5083) target = $region48
      $region47: #{font_classifier_forward.5} parent=5 // pred_region
        %s5086 = ssub.s32 %s11, 2
        // Predicated region
        $region49: #{font_classifier_forward.5} parent=47 // pred_check
          %p5087 = pneg %p129
        $region50: #{font_classifier_forward.5} parent=47 // pred_check_branch
          %5089 = sbr.rel (%p5087) target = $region52
        $region51: #{font_classifier_forward.5} parent=47 // pred_region
          %p5090 = scmp.lt.s32.totalorder %s17, 1
          %s5091 = scalar_select %p5090, %s17, 1
          %s5092 = smul.addr %s5091, 32
          %s5093 = smul.addr %s5092, 4
          %s5094 = scalar_lea.vmem %s4, %s5093
        $region52: #{font_classifier_forward.5} parent=47 // pred_fallthru
          _
      $region48: #{font_classifier_forward.5} parent=5 // pred_fallthru
        _
    $region6: #{font_classifier_forward.5} parent=1 // loop_footer
      %s15 = sadd.s32 1, %s11
    $region7: #{font_classifier_forward.5} parent=1 // loop_footer_branch
      %10 = sbr.rel target = $region3
    $region8: #{font_classifier_forward.5} parent=1 // loop_exit
      _
    %5095 = vsyncpa [#allocation3], 1
    %s5096 = scalar_lea.sflag [#allocation3], 1
    %5097 = vsyncpa %s5096, 1

// kernel: font_classifier_forward.8
$region0: #{font_classifier_forward.8}
  #allocation0 [shape = 'u32[]', space=smem, size = 0x4, offset = 0x4, fixed_abs, tag = 'smem constant byte address 0x4 - core index']
  #allocation1 [shape = 'u32[144,128]{1,0:T(1,128)}', space=vmem, size = 0x12000, scoped, tag = 'internal scratch']
  %s0 = inlined_call_operand.vmem [shape: bf16[2,4,3,3,64], index: 0, kind: input, shape index: {}]
  %s1 = inlined_call_operand.vmem [shape: bf16[9,64,128], index: 1, kind: input, shape index: {}]
  %s2 = inlined_call_operand.vmem [shape: f32[1,128], index: 2, kind: input, shape index: {}]
  %s3 = inlined_call_operand.vmem [shape: f32[1,128], index: 3, kind: input, shape index: {}]
  %s4 = inlined_call_operand.vmem [shape: bf16[2,2,2,128], index: 4, kind: output, shape index: {}]
  %s5 = sld [smem:[#allocation0]]
  $region49: #{font_classifier_forward.8} parent=0
    _
  %s7 = ssub.s32 1, %s5
  %s8 = scalar_select 0, %s7, %s5
  loop: start=0, step=1, limit=4
  $region2: #{font_classifier_forward.8} parent=0 // loop_pre_header
    _
  $region3: #{font_classifier_forward.8} parent=0 // loop_header
    %s10 = sphi 0, %s14
    %p11 = scmp.ge.s32.totalorder %s10, 4
    %s20 = sphi 0, %s22
    %s23 = sphi 0, %s20
    %s24 = sphi 0, %s23
    %s40 = sphi 0, %s24
    %s44 = sphi 0, %s44
    %s46 = sphi 0, %s44
    %s47 = sphi 0, %s46
    %s61 = sphi 0, %s47
    %s65 = sphi 0, %s65
    %s67 = sphi 0, %s65
    %s68 = sphi 0, %s67
    %s82 = sphi 0, %s68
    %s86 = sphi 0, %s86
    %s88 = sphi 0, %s86
    %s89 = sphi 0, %s88
    %s103 = sphi 0, %s89
    %s109 = sphi 0, %s111
    %s112 = sphi 0, %s109
    %s113 = sphi 0, %s112
    %s129 = sphi 0, %s113
  $region4: #{font_classifier_forward.8} parent=0 // loop_header_branch
    %13 = sbr.rel (%p11) target = $region8
  $region5: #{font_classifier_forward.8} parent=0 // loop_body
    %s15 = ssub.s32 %s10, 1
    %s16 = ssub.s32 %s10, 2
    %s17 = sadd.s32 %s10, 1
    %s18 = ssub.s32 %s10, %s17
    %p19 = scmp.eq.s32.totalorder %s18, 0
    %s21 = sadd.s32 %s20, 1
    %s22 = scalar_select %p19, %s20, %s21
    %p25 = pneg %p19
    %p26 = scmp.eq.s32.totalorder %s10, 1
    %p27 = por %p25, %p26
    %p28 = scmp.ne.s32.totalorder %s20, %s23
    %p29 = scmp.eq.s32.totalorder %s10, 0
    %p30 = por %p28, %p29
    %p31 = scmp.ne.s32.totalorder %s20, %s23
    %p32 = scmp.eq.s32.totalorder %s15, 1
    %p33 = por %p31, %p32
    %p34 = scmp.ne.s32.totalorder %s23, %s24
    %p35 = scmp.eq.s32.totalorder %s15, 0
    %p36 = por %p34, %p35
    %p37 = scmp.ne.s32.totalorder %s23, %s24
    %p38 = scmp.eq.s32.totalorder %s16, 1
    %p39 = por %p37, %p38
    %p41 = scmp.ne.s32.totalorder %s24, %s40
    %p42 = scmp.eq.s32.totalorder %s16, 0
    %p43 = por %p41, %p42
    %s45 = sadd.s32 %s44, 1
    %p48 = scmp.eq.s32.totalorder %s10, 1
    %p49 = scmp.ne.s32.totalorder %s44, %s46
    %p50 = scmp.eq.s32.totalorder %s10, 0
    %p51 = por %p49, %p50
    %p52 = scmp.ne.s32.totalorder %s44, %s46
    %p53 = scmp.eq.s32.totalorder %s15, 1
    %p54 = por %p52, %p53
    %p55 = scmp.ne.s32.totalorder %s46, %s47
    %p56 = scmp.eq.s32.totalorder %s15, 0
    %p57 = por %p55, %p56
    %p58 = scmp.ne.s32.totalorder %s46, %s47
    %p59 = scmp.eq.s32.totalorder %s16, 1
    %p60 = por %p58, %p59
    %p62 = scmp.ne.s32.totalorder %s47, %s61
    %p63 = scmp.eq.s32.totalorder %s16, 0
    %p64 = por %p62, %p63
    %s66 = sadd.s32 %s65, 1
    %p69 = scmp.eq.s32.totalorder %s10, 1
    %p70 = scmp.ne.s32.totalorder %s65, %s67
    %p71 = scmp.eq.s32.totalorder %s10, 0
    %p72 = por %p70, %p71
    %p73 = scmp.ne.s32.totalorder %s65, %s67
    %p74 = scmp.eq.s32.totalorder %s15, 1
    %p75 = por %p73, %p74
    %p76 = scmp.ne.s32.totalorder %s67, %s68
    %p77 = scmp.eq.s32.totalorder %s15, 0
    %p78 = por %p76, %p77
    %p79 = scmp.ne.s32.totalorder %s67, %s68
    %p80 = scmp.eq.s32.totalorder %s16, 1
    %p81 = por %p79, %p80
    %p83 = scmp.ne.s32.totalorder %s68, %s82
    %p84 = scmp.eq.s32.totalorder %s16, 0
    %p85 = por %p83, %p84
    %s87 = sadd.s32 %s86, 1
    %p90 = scmp.eq.s32.totalorder %s10, 1
    %p91 = scmp.ne.s32.totalorder %s86, %s88
    %p92 = scmp.eq.s32.totalorder %s10, 0
    %p93 = por %p91, %p92
    %p94 = scmp.ne.s32.totalorder %s86, %s88
    %p95 = scmp.eq.s32.totalorder %s15, 1
    %p96 = por %p94, %p95
    %p97 = scmp.ne.s32.totalorder %s88, %s89
    %p98 = scmp.eq.s32.totalorder %s15, 0
    %p99 = por %p97, %p98
    %p100 = scmp.ne.s32.totalorder %s88, %s89
    %p101 = scmp.eq.s32.totalorder %s16, 1
    %p102 = por %p100, %p101
    %p104 = scmp.ne.s32.totalorder %s89, %s103
    %p105 = scmp.eq.s32.totalorder %s16, 0
    %p106 = por %p104, %p105
    %s107 = ssub.s32 %s10, %s17
    %p108 = scmp.eq.s32.totalorder %s107, 0
    %s110 = sadd.s32 %s109, 1
    %s111 = scalar_select %p108, %s109, %s110
    %p114 = pneg %p108
    %p115 = scmp.eq.s32.totalorder %s10, 1
    %p116 = por %p114, %p115
    %p117 = scmp.ne.s32.totalorder %s109, %s112
    %p118 = scmp.eq.s32.totalorder %s10, 0
    %p119 = por %p117, %p118
    %p120 = scmp.ne.s32.totalorder %s109, %s112
    %p121 = scmp.eq.s32.totalorder %s15, 1
    %p122 = por %p120, %p121
    %p123 = scmp.ne.s32.totalorder %s112, %s113
    %p124 = scmp.eq.s32.totalorder %s15, 0
    %p125 = por %p123, %p124
    %p126 = scmp.ne.s32.totalorder %s112, %s113
    %p127 = scmp.eq.s32.totalorder %s16, 1
    %p128 = por %p126, %p127
    %p130 = scmp.ne.s32.totalorder %s113, %s129
    %p131 = scmp.eq.s32.totalorder %s16, 0
    %p132 = por %p130, %p131
    %p133 = scmp.le.s32.totalorder 1, %s10
    %p134 = scmp.lt.s32.totalorder %s10, 3
    %p135 = pnand %p133, %p134
    %p136 = pneg %p135
    // Predicated region
    $region9: #{font_classifier_forward.8} parent=5 // pred_check
      _
    $region10: #{font_classifier_forward.8} parent=5 // pred_check_branch
      %138 = sbr.rel (%p135) target = $region12
    $region11: #{font_classifier_forward.8} parent=5 // pred_region
      %s139 = ssub.s32 %s10, 1
      // Predicated region
      $region13: #{font_classifier_forward.8} parent=11 // pred_check
        %p140 = pneg %p57
      $region14: #{font_classifier_forward.8} parent=11 // pred_check_branch
        %142 = sbr.rel (%p140) target = $region16
      $region15: #{font_classifier_forward.8} parent=11 // pred_region
        _
      $region16: #{font_classifier_forward.8} parent=11 // pred_fallthru
        _
      // Predicated region
      $region17: #{font_classifier_forward.8} parent=11 // pred_check
        %p143 = pneg %p78
      $region18: #{font_classifier_forward.8} parent=11 // pred_check_branch
        %145 = sbr.rel (%p143) target = $region20
      $region19: #{font_classifier_forward.8} parent=11 // pred_region
        _
      $region20: #{font_classifier_forward.8} parent=11 // pred_fallthru
        _
      // Predicated region
      $region21: #{font_classifier_forward.8} parent=11 // pred_check
        %p146 = pneg %p99
      $region22: #{font_classifier_forward.8} parent=11 // pred_check_branch
        %148 = sbr.rel (%p146) target = $region24
      $region23: #{font_classifier_forward.8} parent=11 // pred_region
        _
      $region24: #{font_classifier_forward.8} parent=11 // pred_fallthru
        _
    $region12: #{font_classifier_forward.8} parent=5 // pred_fallthru
      _
    %p149 = scmp.lt.s32.totalorder %s10, 2
    // Predicated region
    $region25: #{font_classifier_forward.8} parent=5 // pred_check
      %p150 = pneg %p149
    $region26: #{font_classifier_forward.8} parent=5 // pred_check_branch
      %152 = sbr.rel (%p150) target = $region28
    $region27: #{font_classifier_forward.8} parent=5 // pred_region
      // Predicated region
      $region29: #{font_classifier_forward.8} parent=27 // pred_check
        %p153 = pneg %p30
      $region30: #{font_classifier_forward.8} parent=27 // pred_check_branch
        %155 = sbr.rel (%p153) target = $region32
      $region31: #{font_classifier_forward.8} parent=27 // pred_region
        %p156 = scmp.lt.s32.totalorder %s10, 1
        %s157 = scalar_select %p156, %s10, 1
        %s158 = smul.addr %s157, 12
        %s159 = smul.addr %s158, 2
        %s160 = scalar_lea.vmem %s0, %s159
      $region32: #{font_classifier_forward.8} parent=27 // pred_fallthru
        _
    $region28: #{font_classifier_forward.8} parent=5 // pred_fallthru
      _
    %p161 = scmp.le.s32.totalorder 1, %s10
    %p162 = scmp.lt.s32.totalorder %s10, 3
    %p163 = pnand %p161, %p162
    %p164 = pneg %p163
    // Predicated region
    $region33: #{font_classifier_forward.8} parent=5 // pred_check
      _
    $region34: #{font_classifier_forward.8} parent=5 // pred_check_branch
      %166 = sbr.rel (%p163) target = $region36
    $region35: #{font_classifier_forward.8} parent=5 // pred_region
      %s167 = ssub.s32 %s10, 1
      %p168 = scmp.lt.s32.totalorder %s15, 1
      %s169 = scalar_select %p168, %s15, 1
      %s170 = smul.addr %s169, 12
      %s171 = smul.addr %s170, 2
      %s172 = scalar_lea.vmem %s0, %s171
      %p173 = pneg %p36
      %p174 = pneg %p33
      %p175 = pneg %p57
      %p176 = pneg %p54
      %p177 = pneg %p78
      %p178 = pneg %p75
      %p179 = pneg %p99
      %p180 = pneg %p96
      %p181 = pneg %p125
      %p182 = pneg %p122
      %p183 = scmp.lt.s32.totalorder %s15, 1
      %s184 = scalar_select %p183, %s15, 1
      %s185 = smul.addr %s184, 2
      %s186 = scalar_lea.vmem %s4, %s185
      %p187 = scmp.lt.s32.totalorder %s15, 1
      %s188 = scalar_select %p187, %s15, 1
      %s189 = smul.addr %s188, 12
      %s190 = smul.addr %s189, 2
      %s191 = scalar_lea.vmem %s0, %s190
      %p192 = scmp.lt.s32.totalorder %s15, 1
      %s193 = scalar_select %p192, %s15, 1
      %s194 = smul.addr %s193, 2
      %s195 = scalar_lea.vmem %s4, %s194
      %v197 = vld [vmem:[%s191] sm:$0x1]
      %v198 = vld [vmem:[%s191 + $0x2] sm:$0x1]
      %v199 = vld [vmem:[%s1] sm:$0xf]
      %v200 = vld [vmem:[%s1 + $0x4] sm:$0xf]
      %v201 = vld [vmem:[%s1 + $0x8] sm:$0xf]
      %v202 = vld [vmem:[%s1 + $0xc] sm:$0xf]
      %v203 = vld [vmem:[%s1 + $0x10] sm:$0xf]
      %v204 = vld [vmem:[%s1 + $0x14] sm:$0xf]
      %v205 = vld [vmem:[%s1 + $0x18] sm:$0xf]
      %v206 = vld [vmem:[%s1 + $0x1c] sm:$0xf]
      %s207 = scalar_lea.vmem %s191, 6
      %v208 = vld [vmem:[%s207] sm:$0x1]
      %v209 = vld [vmem:[%s207 + $0x2] sm:$0x1]
      %s210 = scalar_lea.vmem %s1, 32
      %v211 = vld [vmem:[%s210] sm:$0xf]
      %v212 = vld [vmem:[%s210 + $0x4] sm:$0xf]
      %v213 = vld [vmem:[%s210 + $0x8] sm:$0xf]
      %v214 = vld [vmem:[%s210 + $0xc] sm:$0xf]
      %v215 = vld [vmem:[%s210 + $0x10] sm:$0xf]
      %v216 = vld [vmem:[%s210 + $0x14] sm:$0xf]
      %v217 = vld [vmem:[%s210 + $0x18] sm:$0xf]
      %v218 = vld [vmem:[%s210 + $0x1c] sm:$0xf]
      %v221 = vcombine.low %v208, %v209
      %v223 = vunpack.c.l.s4 1966171168
      %v224 = vunpack.c.0.s8 %v223
      %v225 = vlaneseq
      %v226 = vshrl.u32 %v225, 7
      %v227 = vsub.s32 %v224, %v226
      %v228 = vrot.slane %v221, %v227
      %v230 = vunpack.c.l.s4 1966171168
      %v231 = vunpack.c.0.s8 %v230
      %v232 = vlaneseq
      %v233 = vshrl.u32 %v232, 7
      %v234 = vsub.s32 %v231, %v233
      %v235 = vrot.slane %v228, %v234
      %v244 = vunpack.c.l.b16 %v211
      %v245 = vunpack.c.l.b16 %v212
      %v246 = vunpack.c.l.b16 %v213
      %v247 = vunpack.c.l.b16 %v214
      %v248 = vunpack.c.l.b16 %v215
      %v249 = vunpack.c.l.b16 %v216
      %v250 = vunpack.c.l.b16 %v217
      %v251 = vunpack.c.l.b16 %v218
      %v252 = vpack.c.b16 %v245, %v244
      %v253 = vpack.c.b16 %v247, %v246
      %v254 = vpack.c.b16 %v249, %v248
      %v255 = vpack.c.b16 %v251, %v250
      %vm260 = vcmask 523264
      %v262 = vsel %vm260, %v235, 0
      %264 = vmatprep.subr.bf16.mxu0 0
      %265 = vmatpush1.bf16.msra.mxu0 0
      %266 = vmatprep.subr.bf16.mxu0 0
      %267 = vmatpush1.bf16.msra.mxu0 0
      %268 = vmatprep.subr.bf16.mxu0 0
      %269 = vmatpush1.bf16.msra.mxu0 0
      %270 = vmatprep.subr.bf16.mxu0 0
      %271 = vmatpush1.bf16.msra.mxu0 0
      %272 = vmatprep.subr.bf16.mxu0 0
      %273 = vmatpush1.bf16.msra.mxu0 %v255
      %274 = vmatprep.subr.bf16.mxu0 0
      %275 = vmatpush1.bf16.msra.mxu0 %v254
      %276 = vmatprep.subr.bf16.mxu0 0
      %277 = vmatpush1.bf16.msra.mxu0 %v253
      %278 = vmatprep.subr.bf16.mxu0 0
      %279 = vmatpush1.bf16.msra.mxu0 %v252
      %280 = vmatprep.subr.bf16.mxu0 0
      %281 = vmatpush2.bf16.msra.mxu0 0
      %282 = vmatprep.subr.bf16.mxu0 0
      %283 = vmatpush2.bf16.msra.mxu0 0
      %284 = vmatprep.subr.bf16.mxu0 0
      %285 = vmatpush2.bf16.msra.mxu0 0
      %286 = vmatprep.subr.bf16.mxu0 0
      %287 = vmatpush2.bf16.msra.mxu0 0
      %288 = vmatprep.subr.bf16.mxu0 0
      %289 = vmatpush2.bf16.msra.mxu0 0
      %290 = vmatprep.subr.bf16.mxu0 0
      %291 = vmatpush2.bf16.msra.mxu0 0
      %292 = vmatprep.subr.bf16.mxu0 0
      %293 = vmatpush2.bf16.msra.mxu0 0
      %294 = vmatprep.subr.bf16.mxu0 0
      %295 = vmatpush2.bf16.msra.mxu0 0
      %296 = vmatprep.mubr.bf16.mxu0 0
      %297 = vmatmul.mubr.bf16.gmra.mxu0 %v262
      %v298 = vpop.f32.mrf.mxu0
      %v299 = vadd.f32 0.0, %v298
      %v300 = vpop.f32.mrf.mxu0
      %v301 = vpop.f32.mrf.mxu0
      %v302 = vpop.f32.mrf.mxu0
      %303 = vdwg.mxu0
      %v306 = vcombine.low %v197, %v198
      %v308 = vunpack.c.l.s4 1966171168
      %v309 = vunpack.c.0.s8 %v308
      %v310 = vlaneseq
      %v311 = vshrl.u32 %v310, 7
      %v312 = vsub.s32 %v309, %v311
      %v313 = vrot.slane %v306, %v312
      %v315 = vunpack.c.l.s4 1966171168
      %v316 = vunpack.c.0.s8 %v315
      %v317 = vlaneseq
      %v318 = vshrl.u32 %v317, 7
      %v319 = vsub.s32 %v316, %v318
      %v320 = vrot.slane %v313, %v319
      %v329 = vunpack.c.l.b16 %v199
      %v330 = vunpack.c.l.b16 %v200
      %v331 = vunpack.c.l.b16 %v201
      %v332 = vunpack.c.l.b16 %v202
      %v333 = vunpack.c.l.b16 %v203
      %v334 = vunpack.c.l.b16 %v204
      %v335 = vunpack.c.l.b16 %v205
      %v336 = vunpack.c.l.b16 %v206
      %v337 = vpack.c.b16 %v330, %v329
      %v338 = vpack.c.b16 %v332, %v331
      %v339 = vpack.c.b16 %v334, %v333
      %v340 = vpack.c.b16 %v336, %v335
      %v346 = vsel %vm260, %v320, 0
      %348 = vmatprep.subr.bf16.mxu0 0
      %349 = vmatpush1.bf16.msra.mxu0 0
      %350 = vmatprep.subr.bf16.mxu0 0
      %351 = vmatpush1.bf16.msra.mxu0 0
      %352 = vmatprep.subr.bf16.mxu0 0
      %353 = vmatpush1.bf16.msra.mxu0 0
      %354 = vmatprep.subr.bf16.mxu0 0
      %355 = vmatpush1.bf16.msra.mxu0 0
      %356 = vmatprep.subr.bf16.mxu0 0
      %357 = vmatpush1.bf16.msra.mxu0 %v340
      %358 = vmatprep.subr.bf16.mxu0 0
      %359 = vmatpush1.bf16.msra.mxu0 %v339
      %360 = vmatprep.subr.bf16.mxu0 0
      %361 = vmatpush1.bf16.msra.mxu0 %v338
      %362 = vmatprep.subr.bf16.mxu0 0
      %363 = vmatpush1.bf16.msra.mxu0 %v337
      %364 = vmatprep.subr.bf16.mxu0 0
      %365 = vmatpush2.bf16.msra.mxu0 0
      %366 = vmatprep.subr.bf16.mxu0 0
      %367 = vmatpush2.bf16.msra.mxu0 0
      %368 = vmatprep.subr.bf16.mxu0 0
      %369 = vmatpush2.bf16.msra.mxu0 0
      %370 = vmatprep.subr.bf16.mxu0 0
      %371 = vmatpush2.bf16.msra.mxu0 0
      %372 = vmatprep.subr.bf16.mxu0 0
      %373 = vmatpush2.bf16.msra.mxu0 0
      %374 = vmatprep.subr.bf16.mxu0 0
      %375 = vmatpush2.bf16.msra.mxu0 0
      %376 = vmatprep.subr.bf16.mxu0 0
      %377 = vmatpush2.bf16.msra.mxu0 0
      %378 = vmatprep.subr.bf16.mxu0 0
      %379 = vmatpush2.bf16.msra.mxu0 0
      %380 = vmatprep.mubr.bf16.mxu0 0
      %381 = vmatmul.mubr.bf16.gmra.mxu0 %v346
      %v382 = vpop.f32.mrf.mxu0
      %v383 = vadd.f32 %v299, %v382
      %v384 = vpop.f32.mrf.mxu0
      %v385 = vpop.f32.mrf.mxu0
      %v386 = vpop.f32.mrf.mxu0
      %387 = vdwg.mxu0
      %v388 = vld [vmem:[%s191] sm:$0x3]
      %v389 = vld [vmem:[%s191 + $0x2] sm:$0x3]
      %v393 = vunpack.c.l.s4 1966171168
      %v394 = vunpack.c.0.s8 %v393
      %v395 = vlaneseq
      %v396 = vshrl.u32 %v395, 7
      %v397 = vsub.s32 %v394, %v396
      %v398 = vrot.slane %v388, %v397
      %v399 = vcombine.high %v398, %v398
      %v401 = vunpack.c.l.s4 1966171168
      %v402 = vunpack.c.0.s8 %v401
      %v403 = vlaneseq
      %v404 = vshrl.u32 %v403, 7
      %v405 = vsub.s32 %v402, %v404
      %v406 = vrot.slane %v389, %v405
      %v407 = vcombine.high %v406, %v406
      %vm408 = vsmask.f32 256
      %vm409 = vsmask.f32 1284
      %vm410 = vmor %vm408, %vm409
      %vm411 = vsmask.f32 2312
      %vm412 = vmor %vm410, %vm411
      %vm413 = vsmask.f32 3340
      %vm414 = vmor %vm412, %vm413
      %vm415 = vsmask.f32 4368
      %vm416 = vmor %vm414, %vm415
      %vm417 = vsmask.f32 5396
      %vm418 = vmor %vm416, %vm417
      %vm419 = vsmask.f32 6424
      %vm420 = vmor %vm418, %vm419
      %vm421 = vsmask.f32 7452
      %vm422 = vmor %vm420, %vm421
      %v424 = vshrl.u32 %v398, 16
      %v426 = vrot.slane %v424, 7
      %v427 = vrot.slane %v426, 1
      %v429 = vshll.u32 %v399, 16
      %v431 = vsel %vm422, %v427, %v429
      %v433 = vshrl.u32 %v406, 16
      %v435 = vrot.slane %v433, 7
      %v436 = vrot.slane %v435, 1
      %v438 = vshll.u32 %v407, 16
      %v440 = vsel %vm422, %v436, %v438
      %s441 = scalar_lea.vmem %s1, 64
      %v442 = vld [vmem:[%s441] sm:$0xf]
      %v443 = vld [vmem:[%s441 + $0x4] sm:$0xf]
      %v444 = vld [vmem:[%s441 + $0x8] sm:$0xf]
      %v445 = vld [vmem:[%s441 + $0xc] sm:$0xf]
      %v446 = vld [vmem:[%s441 + $0x10] sm:$0xf]
      %v447 = vld [vmem:[%s441 + $0x14] sm:$0xf]
      %v448 = vld [vmem:[%s441 + $0x18] sm:$0xf]
      %v449 = vld [vmem:[%s441 + $0x1c] sm:$0xf]
      %v450 = vcombine.low %v431, %v440
      %v452 = vunpack.c.l.s4 1966171168
      %v453 = vunpack.c.0.s8 %v452
      %v454 = vlaneseq
      %v455 = vshrl.u32 %v454, 7
      %v456 = vsub.s32 %v453, %v455
      %v457 = vrot.slane %v450, %v456
      %v459 = vunpack.c.l.s4 1966171168
      %v460 = vunpack.c.0.s8 %v459
      %v461 = vlaneseq
      %v462 = vshrl.u32 %v461, 7
      %v463 = vsub.s32 %v460, %v462
      %v464 = vrot.slane %v457, %v463
      %v473 = vunpack.c.l.b16 %v442
      %v474 = vunpack.c.l.b16 %v443
      %v475 = vunpack.c.l.b16 %v444
      %v476 = vunpack.c.l.b16 %v445
      %v477 = vunpack.c.l.b16 %v446
      %v478 = vunpack.c.l.b16 %v447
      %v479 = vunpack.c.l.b16 %v448
      %v480 = vunpack.c.l.b16 %v449
      %v481 = vpack.c.b16 %v474, %v473
      %v482 = vpack.c.b16 %v476, %v475
      %v483 = vpack.c.b16 %v478, %v477
      %v484 = vpack.c.b16 %v480, %v479
      %v490 = vsel %vm260, %v464, 0
      %492 = vmatprep.subr.bf16.mxu0 0
      %493 = vmatpush1.bf16.msra.mxu0 0
      %494 = vmatprep.subr.bf16.mxu0 0
      %495 = vmatpush1.bf16.msra.mxu0 0
      %496 = vmatprep.subr.bf16.mxu0 0
      %497 = vmatpush1.bf16.msra.mxu0 0
      %498 = vmatprep.subr.bf16.mxu0 0
      %499 = vmatpush1.bf16.msra.mxu0 0
      %500 = vmatprep.subr.bf16.mxu0 0
      %501 = vmatpush1.bf16.msra.mxu0 %v484
      %502 = vmatprep.subr.bf16.mxu0 0
      %503 = vmatpush1.bf16.msra.mxu0 %v483
      %504 = vmatprep.subr.bf16.mxu0 0
      %505 = vmatpush1.bf16.msra.mxu0 %v482
      %506 = vmatprep.subr.bf16.mxu0 0
      %507 = vmatpush1.bf16.msra.mxu0 %v481
      %508 = vmatprep.subr.bf16.mxu0 0
      %509 = vmatpush2.bf16.msra.mxu0 0
      %510 = vmatprep.subr.bf16.mxu0 0
      %511 = vmatpush2.bf16.msra.mxu0 0
      %512 = vmatprep.subr.bf16.mxu0 0
      %513 = vmatpush2.bf16.msra.mxu0 0
      %514 = vmatprep.subr.bf16.mxu0 0
      %515 = vmatpush2.bf16.msra.mxu0 0
      %516 = vmatprep.subr.bf16.mxu0 0
      %517 = vmatpush2.bf16.msra.mxu0 0
      %518 = vmatprep.subr.bf16.mxu0 0
      %519 = vmatpush2.bf16.msra.mxu0 0
      %520 = vmatprep.subr.bf16.mxu0 0
      %521 = vmatpush2.bf16.msra.mxu0 0
      %522 = vmatprep.subr.bf16.mxu0 0
      %523 = vmatpush2.bf16.msra.mxu0 0
      %524 = vmatprep.mubr.bf16.mxu0 0
      %525 = vmatmul.mubr.bf16.gmra.mxu0 %v490
      %v526 = vpop.f32.mrf.mxu0
      %v527 = vadd.f32 0.0, %v526
      %v528 = vpop.f32.mrf.mxu0
      %v529 = vpop.f32.mrf.mxu0
      %v530 = vpop.f32.mrf.mxu0
      %531 = vdwg.mxu0
      %v532 = vadd.f32 %v383, %v527
      %s533 = scalar_lea.vmem %s191, 12
      %v534 = vld [vmem:[%s533] sm:$0x1]
      %v535 = vld [vmem:[%s533 + $0x2] sm:$0x1]
      %s536 = scalar_lea.vmem %s1, 96
      %v537 = vld [vmem:[%s536] sm:$0xf]
      %v538 = vld [vmem:[%s536 + $0x4] sm:$0xf]
      %v539 = vld [vmem:[%s536 + $0x8] sm:$0xf]
      %v540 = vld [vmem:[%s536 + $0xc] sm:$0xf]
      %v541 = vld [vmem:[%s536 + $0x10] sm:$0xf]
      %v542 = vld [vmem:[%s536 + $0x14] sm:$0xf]
      %v543 = vld [vmem:[%s536 + $0x18] sm:$0xf]
      %v544 = vld [vmem:[%s536 + $0x1c] sm:$0xf]
      %v547 = vcombine.low %v534, %v535
      %v549 = vunpack.c.l.s4 1966171168
      %v550 = vunpack.c.0.s8 %v549
      %v551 = vlaneseq
      %v552 = vshrl.u32 %v551, 7
      %v553 = vsub.s32 %v550, %v552
      %v554 = vrot.slane %v547, %v553
      %v556 = vunpack.c.l.s4 1966171168
      %v557 = vunpack.c.0.s8 %v556
      %v558 = vlaneseq
      %v559 = vshrl.u32 %v558, 7
      %v560 = vsub.s32 %v557, %v559
      %v561 = vrot.slane %v554, %v560
      %v570 = vunpack.c.l.b16 %v537
      %v571 = vunpack.c.l.b16 %v538
      %v572 = vunpack.c.l.b16 %v539
      %v573 = vunpack.c.l.b16 %v540
      %v574 = vunpack.c.l.b16 %v541
      %v575 = vunpack.c.l.b16 %v542
      %v576 = vunpack.c.l.b16 %v543
      %v577 = vunpack.c.l.b16 %v544
      %v578 = vpack.c.b16 %v571, %v570
      %v579 = vpack.c.b16 %v573, %v572
      %v580 = vpack.c.b16 %v575, %v574
      %v581 = vpack.c.b16 %v577, %v576
      %v587 = vsel %vm260, %v561, 0
      %589 = vmatprep.subr.bf16.mxu0 0
      %590 = vmatpush1.bf16.msra.mxu0 0
      %591 = vmatprep.subr.bf16.mxu0 0
      %592 = vmatpush1.bf16.msra.mxu0 0
      %593 = vmatprep.subr.bf16.mxu0 0
      %594 = vmatpush1.bf16.msra.mxu0 0
      %595 = vmatprep.subr.bf16.mxu0 0
      %596 = vmatpush1.bf16.msra.mxu0 0
      %597 = vmatprep.subr.bf16.mxu0 0
      %598 = vmatpush1.bf16.msra.mxu0 %v581
      %599 = vmatprep.subr.bf16.mxu0 0
      %600 = vmatpush1.bf16.msra.mxu0 %v580
      %601 = vmatprep.subr.bf16.mxu0 0
      %602 = vmatpush1.bf16.msra.mxu0 %v579
      %603 = vmatprep.subr.bf16.mxu0 0
      %604 = vmatpush1.bf16.msra.mxu0 %v578
      %605 = vmatprep.subr.bf16.mxu0 0
      %606 = vmatpush2.bf16.msra.mxu0 0
      %607 = vmatprep.subr.bf16.mxu0 0
      %608 = vmatpush2.bf16.msra.mxu0 0
      %609 = vmatprep.subr.bf16.mxu0 0
      %610 = vmatpush2.bf16.msra.mxu0 0
      %611 = vmatprep.subr.bf16.mxu0 0
      %612 = vmatpush2.bf16.msra.mxu0 0
      %613 = vmatprep.subr.bf16.mxu0 0
      %614 = vmatpush2.bf16.msra.mxu0 0
      %615 = vmatprep.subr.bf16.mxu0 0
      %616 = vmatpush2.bf16.msra.mxu0 0
      %617 = vmatprep.subr.bf16.mxu0 0
      %618 = vmatpush2.bf16.msra.mxu0 0
      %619 = vmatprep.subr.bf16.mxu0 0
      %620 = vmatpush2.bf16.msra.mxu0 0
      %621 = vmatprep.mubr.bf16.mxu0 0
      %622 = vmatmul.mubr.bf16.gmra.mxu0 %v587
      %v623 = vpop.f32.mrf.mxu0
      %v624 = vadd.f32 0.0, %v623
      %v625 = vpop.f32.mrf.mxu0
      %v626 = vpop.f32.mrf.mxu0
      %v627 = vpop.f32.mrf.mxu0
      %628 = vdwg.mxu0
      %v629 = vadd.f32 %v532, %v624
      %s630 = scalar_lea.vmem %s191, 18
      %v631 = vld [vmem:[%s630] sm:$0x1]
      %v632 = vld [vmem:[%s630 + $0x2] sm:$0x1]
      %s633 = scalar_lea.vmem %s1, 128
      %v634 = vld [vmem:[%s633] sm:$0xf]
      %v635 = vld [vmem:[%s633 + $0x4] sm:$0xf]
      %v636 = vld [vmem:[%s633 + $0x8] sm:$0xf]
      %v637 = vld [vmem:[%s633 + $0xc] sm:$0xf]
      %v638 = vld [vmem:[%s633 + $0x10] sm:$0xf]
      %v639 = vld [vmem:[%s633 + $0x14] sm:$0xf]
      %v640 = vld [vmem:[%s633 + $0x18] sm:$0xf]
      %v641 = vld [vmem:[%s633 + $0x1c] sm:$0xf]
      %v644 = vcombine.low %v631, %v632
      %v646 = vunpack.c.l.s4 1966171168
      %v647 = vunpack.c.0.s8 %v646
      %v648 = vlaneseq
      %v649 = vshrl.u32 %v648, 7
      %v650 = vsub.s32 %v647, %v649
      %v651 = vrot.slane %v644, %v650
      %v653 = vunpack.c.l.s4 1966171168
      %v654 = vunpack.c.0.s8 %v653
      %v655 = vlaneseq
      %v656 = vshrl.u32 %v655, 7
      %v657 = vsub.s32 %v654, %v656
      %v658 = vrot.slane %v651, %v657
      %v667 = vunpack.c.l.b16 %v634
      %v668 = vunpack.c.l.b16 %v635
      %v669 = vunpack.c.l.b16 %v636
      %v670 = vunpack.c.l.b16 %v637
      %v671 = vunpack.c.l.b16 %v638
      %v672 = vunpack.c.l.b16 %v639
      %v673 = vunpack.c.l.b16 %v640
      %v674 = vunpack.c.l.b16 %v641
      %v675 = vpack.c.b16 %v668, %v667
      %v676 = vpack.c.b16 %v670, %v669
      %v677 = vpack.c.b16 %v672, %v671
      %v678 = vpack.c.b16 %v674, %v673
      %v684 = vsel %vm260, %v658, 0
      %686 = vmatprep.subr.bf16.mxu0 0
      %687 = vmatpush1.bf16.msra.mxu0 0
      %688 = vmatprep.subr.bf16.mxu0 0
      %689 = vmatpush1.bf16.msra.mxu0 0
      %690 = vmatprep.subr.bf16.mxu0 0
      %691 = vmatpush1.bf16.msra.mxu0 0
      %692 = vmatprep.subr.bf16.mxu0 0
      %693 = vmatpush1.bf16.msra.mxu0 0
      %694 = vmatprep.subr.bf16.mxu0 0
      %695 = vmatpush1.bf16.msra.mxu0 %v678
      %696 = vmatprep.subr.bf16.mxu0 0
      %697 = vmatpush1.bf16.msra.mxu0 %v677
      %698 = vmatprep.subr.bf16.mxu0 0
      %699 = vmatpush1.bf16.msra.mxu0 %v676
      %700 = vmatprep.subr.bf16.mxu0 0
      %701 = vmatpush1.bf16.msra.mxu0 %v675
      %702 = vmatprep.subr.bf16.mxu0 0
      %703 = vmatpush2.bf16.msra.mxu0 0
      %704 = vmatprep.subr.bf16.mxu0 0
      %705 = vmatpush2.bf16.msra.mxu0 0
      %706 = vmatprep.subr.bf16.mxu0 0
      %707 = vmatpush2.bf16.msra.mxu0 0
      %708 = vmatprep.subr.bf16.mxu0 0
      %709 = vmatpush2.bf16.msra.mxu0 0
      %710 = vmatprep.subr.bf16.mxu0 0
      %711 = vmatpush2.bf16.msra.mxu0 0
      %712 = vmatprep.subr.bf16.mxu0 0
      %713 = vmatpush2.bf16.msra.mxu0 0
      %714 = vmatprep.subr.bf16.mxu0 0
      %715 = vmatpush2.bf16.msra.mxu0 0
      %716 = vmatprep.subr.bf16.mxu0 0
      %717 = vmatpush2.bf16.msra.mxu0 0
      %718 = vmatprep.mubr.bf16.mxu0 0
      %719 = vmatmul.mubr.bf16.gmra.mxu0 %v684
      %v720 = vpop.f32.mrf.mxu0
      %v721 = vadd.f32 0.0, %v720
      %v722 = vpop.f32.mrf.mxu0
      %v723 = vpop.f32.mrf.mxu0
      %v724 = vpop.f32.mrf.mxu0
      %725 = vdwg.mxu0
      %v726 = vadd.f32 %v629, %v721
      %v727 = vld [vmem:[%s533] sm:$0x3]
      %v728 = vld [vmem:[%s533 + $0x2] sm:$0x3]
      %v732 = vunpack.c.l.s4 1966171168
      %v733 = vunpack.c.0.s8 %v732
      %v734 = vlaneseq
      %v735 = vshrl.u32 %v734, 7
      %v736 = vsub.s32 %v733, %v735
      %v737 = vrot.slane %v727, %v736
      %v738 = vcombine.high %v737, %v737
      %v740 = vunpack.c.l.s4 1966171168
      %v741 = vunpack.c.0.s8 %v740
      %v742 = vlaneseq
      %v743 = vshrl.u32 %v742, 7
      %v744 = vsub.s32 %v741, %v743
      %v745 = vrot.slane %v728, %v744
      %v746 = vcombine.high %v745, %v745
      %v748 = vshrl.u32 %v737, 16
      %v750 = vrot.slane %v748, 7
      %v751 = vrot.slane %v750, 1
      %v753 = vshll.u32 %v738, 16
      %v755 = vsel %vm422, %v751, %v753
      %v757 = vshrl.u32 %v745, 16
      %v759 = vrot.slane %v757, 7
      %v760 = vrot.slane %v759, 1
      %v762 = vshll.u32 %v746, 16
      %v764 = vsel %vm422, %v760, %v762
      %s765 = scalar_lea.vmem %s1, 160
      %v766 = vld [vmem:[%s765] sm:$0xf]
      %v767 = vld [vmem:[%s765 + $0x4] sm:$0xf]
      %v768 = vld [vmem:[%s765 + $0x8] sm:$0xf]
      %v769 = vld [vmem:[%s765 + $0xc] sm:$0xf]
      %v770 = vld [vmem:[%s765 + $0x10] sm:$0xf]
      %v771 = vld [vmem:[%s765 + $0x14] sm:$0xf]
      %v772 = vld [vmem:[%s765 + $0x18] sm:$0xf]
      %v773 = vld [vmem:[%s765 + $0x1c] sm:$0xf]
      %v774 = vcombine.low %v755, %v764
      %v776 = vunpack.c.l.s4 1966171168
      %v777 = vunpack.c.0.s8 %v776
      %v778 = vlaneseq
      %v779 = vshrl.u32 %v778, 7
      %v780 = vsub.s32 %v777, %v779
      %v781 = vrot.slane %v774, %v780
      %v783 = vunpack.c.l.s4 1966171168
      %v784 = vunpack.c.0.s8 %v783
      %v785 = vlaneseq
      %v786 = vshrl.u32 %v785, 7
      %v787 = vsub.s32 %v784, %v786
      %v788 = vrot.slane %v781, %v787
      %v797 = vunpack.c.l.b16 %v766
      %v798 = vunpack.c.l.b16 %v767
      %v799 = vunpack.c.l.b16 %v768
      %v800 = vunpack.c.l.b16 %v769
      %v801 = vunpack.c.l.b16 %v770
      %v802 = vunpack.c.l.b16 %v771
      %v803 = vunpack.c.l.b16 %v772
      %v804 = vunpack.c.l.b16 %v773
      %v805 = vpack.c.b16 %v798, %v797
      %v806 = vpack.c.b16 %v800, %v799
      %v807 = vpack.c.b16 %v802, %v801
      %v808 = vpack.c.b16 %v804, %v803
      %v814 = vsel %vm260, %v788, 0
      %816 = vmatprep.subr.bf16.mxu0 0
      %817 = vmatpush1.bf16.msra.mxu0 0
      %818 = vmatprep.subr.bf16.mxu0 0
      %819 = vmatpush1.bf16.msra.mxu0 0
      %820 = vmatprep.subr.bf16.mxu0 0
      %821 = vmatpush1.bf16.msra.mxu0 0
      %822 = vmatprep.subr.bf16.mxu0 0
      %823 = vmatpush1.bf16.msra.mxu0 0
      %824 = vmatprep.subr.bf16.mxu0 0
      %825 = vmatpush1.bf16.msra.mxu0 %v808
      %826 = vmatprep.subr.bf16.mxu0 0
      %827 = vmatpush1.bf16.msra.mxu0 %v807
      %828 = vmatprep.subr.bf16.mxu0 0
      %829 = vmatpush1.bf16.msra.mxu0 %v806
      %830 = vmatprep.subr.bf16.mxu0 0
      %831 = vmatpush1.bf16.msra.mxu0 %v805
      %832 = vmatprep.subr.bf16.mxu0 0
      %833 = vmatpush2.bf16.msra.mxu0 0
      %834 = vmatprep.subr.bf16.mxu0 0
      %835 = vmatpush2.bf16.msra.mxu0 0
      %836 = vmatprep.subr.bf16.mxu0 0
      %837 = vmatpush2.bf16.msra.mxu0 0
      %838 = vmatprep.subr.bf16.mxu0 0
      %839 = vmatpush2.bf16.msra.mxu0 0
      %840 = vmatprep.subr.bf16.mxu0 0
      %841 = vmatpush2.bf16.msra.mxu0 0
      %842 = vmatprep.subr.bf16.mxu0 0
      %843 = vmatpush2.bf16.msra.mxu0 0
      %844 = vmatprep.subr.bf16.mxu0 0
      %845 = vmatpush2.bf16.msra.mxu0 0
      %846 = vmatprep.subr.bf16.mxu0 0
      %847 = vmatpush2.bf16.msra.mxu0 0
      %848 = vmatprep.mubr.bf16.mxu0 0
      %849 = vmatmul.mubr.bf16.gmra.mxu0 %v814
      %v850 = vpop.f32.mrf.mxu0
      %v851 = vadd.f32 0.0, %v850
      %v852 = vpop.f32.mrf.mxu0
      %v853 = vpop.f32.mrf.mxu0
      %v854 = vpop.f32.mrf.mxu0
      %855 = vdwg.mxu0
      %v856 = vadd.f32 %v726, %v851
      %s857 = scalar_lea.vmem %s191, 2
      %v858 = vld [vmem:[%s857] sm:$0x1]
      %v859 = vld [vmem:[%s857 + $0x2] sm:$0x1]
      %s860 = scalar_lea.vmem %s1, 192
      %v861 = vld [vmem:[%s860] sm:$0xf]
      %v862 = vld [vmem:[%s860 + $0x4] sm:$0xf]
      %v863 = vld [vmem:[%s860 + $0x8] sm:$0xf]
      %v864 = vld [vmem:[%s860 + $0xc] sm:$0xf]
      %v865 = vld [vmem:[%s860 + $0x10] sm:$0xf]
      %v866 = vld [vmem:[%s860 + $0x14] sm:$0xf]
      %v867 = vld [vmem:[%s860 + $0x18] sm:$0xf]
      %v868 = vld [vmem:[%s860 + $0x1c] sm:$0xf]
      %v871 = vcombine.low %v858, %v859
      %v873 = vunpack.c.l.s4 1966171168
      %v874 = vunpack.c.0.s8 %v873
      %v875 = vlaneseq
      %v876 = vshrl.u32 %v875, 7
      %v877 = vsub.s32 %v874, %v876
      %v878 = vrot.slane %v871, %v877
      %v880 = vunpack.c.l.s4 1966171168
      %v881 = vunpack.c.0.s8 %v880
      %v882 = vlaneseq
      %v883 = vshrl.u32 %v882, 7
      %v884 = vsub.s32 %v881, %v883
      %v885 = vrot.slane %v878, %v884
      %v894 = vunpack.c.l.b16 %v861
      %v895 = vunpack.c.l.b16 %v862
      %v896 = vunpack.c.l.b16 %v863
      %v897 = vunpack.c.l.b16 %v864
      %v898 = vunpack.c.l.b16 %v865
      %v899 = vunpack.c.l.b16 %v866
      %v900 = vunpack.c.l.b16 %v867
      %v901 = vunpack.c.l.b16 %v868
      %v902 = vpack.c.b16 %v895, %v894
      %v903 = vpack.c.b16 %v897, %v896
      %v904 = vpack.c.b16 %v899, %v898
      %v905 = vpack.c.b16 %v901, %v900
      %v911 = vsel %vm260, %v885, 0
      %913 = vmatprep.subr.bf16.mxu0 0
      %914 = vmatpush1.bf16.msra.mxu0 0
      %915 = vmatprep.subr.bf16.mxu0 0
      %916 = vmatpush1.bf16.msra.mxu0 0
      %917 = vmatprep.subr.bf16.mxu0 0
      %918 = vmatpush1.bf16.msra.mxu0 0
      %919 = vmatprep.subr.bf16.mxu0 0
      %920 = vmatpush1.bf16.msra.mxu0 0
      %921 = vmatprep.subr.bf16.mxu0 0
      %922 = vmatpush1.bf16.msra.mxu0 %v905
      %923 = vmatprep.subr.bf16.mxu0 0
      %924 = vmatpush1.bf16.msra.mxu0 %v904
      %925 = vmatprep.subr.bf16.mxu0 0
      %926 = vmatpush1.bf16.msra.mxu0 %v903
      %927 = vmatprep.subr.bf16.mxu0 0
      %928 = vmatpush1.bf16.msra.mxu0 %v902
      %929 = vmatprep.subr.bf16.mxu0 0
      %930 = vmatpush2.bf16.msra.mxu0 0
      %931 = vmatprep.subr.bf16.mxu0 0
      %932 = vmatpush2.bf16.msra.mxu0 0
      %933 = vmatprep.subr.bf16.mxu0 0
      %934 = vmatpush2.bf16.msra.mxu0 0
      %935 = vmatprep.subr.bf16.mxu0 0
      %936 = vmatpush2.bf16.msra.mxu0 0
      %937 = vmatprep.subr.bf16.mxu0 0
      %938 = vmatpush2.bf16.msra.mxu0 0
      %939 = vmatprep.subr.bf16.mxu0 0
      %940 = vmatpush2.bf16.msra.mxu0 0
      %941 = vmatprep.subr.bf16.mxu0 0
      %942 = vmatpush2.bf16.msra.mxu0 0
      %943 = vmatprep.subr.bf16.mxu0 0
      %944 = vmatpush2.bf16.msra.mxu0 0
      %945 = vmatprep.mubr.bf16.mxu0 0
      %946 = vmatmul.mubr.bf16.gmra.mxu0 %v911
      %v947 = vpop.f32.mrf.mxu0
      %v948 = vadd.f32 0.0, %v947
      %v949 = vpop.f32.mrf.mxu0
      %v950 = vpop.f32.mrf.mxu0
      %v951 = vpop.f32.mrf.mxu0
      %952 = vdwg.mxu0
      %v953 = vadd.f32 %v856, %v948
      %s954 = scalar_lea.vmem %s191, 8
      %v955 = vld [vmem:[%s954] sm:$0x1]
      %v956 = vld [vmem:[%s954 + $0x2] sm:$0x1]
      %s957 = scalar_lea.vmem %s1, 224
      %v958 = vld [vmem:[%s957] sm:$0xf]
      %v959 = vld [vmem:[%s957 + $0x4] sm:$0xf]
      %v960 = vld [vmem:[%s957 + $0x8] sm:$0xf]
      %v961 = vld [vmem:[%s957 + $0xc] sm:$0xf]
      %v962 = vld [vmem:[%s957 + $0x10] sm:$0xf]
      %v963 = vld [vmem:[%s957 + $0x14] sm:$0xf]
      %v964 = vld [vmem:[%s957 + $0x18] sm:$0xf]
      %v965 = vld [vmem:[%s957 + $0x1c] sm:$0xf]
      %v968 = vcombine.low %v955, %v956
      %v970 = vunpack.c.l.s4 1966171168
      %v971 = vunpack.c.0.s8 %v970
      %v972 = vlaneseq
      %v973 = vshrl.u32 %v972, 7
      %v974 = vsub.s32 %v971, %v973
      %v975 = vrot.slane %v968, %v974
      %v977 = vunpack.c.l.s4 1966171168
      %v978 = vunpack.c.0.s8 %v977
      %v979 = vlaneseq
      %v980 = vshrl.u32 %v979, 7
      %v981 = vsub.s32 %v978, %v980
      %v982 = vrot.slane %v975, %v981
      %v991 = vunpack.c.l.b16 %v958
      %v992 = vunpack.c.l.b16 %v959
      %v993 = vunpack.c.l.b16 %v960
      %v994 = vunpack.c.l.b16 %v961
      %v995 = vunpack.c.l.b16 %v962
      %v996 = vunpack.c.l.b16 %v963
      %v997 = vunpack.c.l.b16 %v964
      %v998 = vunpack.c.l.b16 %v965
      %v999 = vpack.c.b16 %v992, %v991
      %v1000 = vpack.c.b16 %v994, %v993
      %v1001 = vpack.c.b16 %v996, %v995
      %v1002 = vpack.c.b16 %v998, %v997
      %v1008 = vsel %vm260, %v982, 0
      %1010 = vmatprep.subr.bf16.mxu0 0
      %1011 = vmatpush1.bf16.msra.mxu0 0
      %1012 = vmatprep.subr.bf16.mxu0 0
      %1013 = vmatpush1.bf16.msra.mxu0 0
      %1014 = vmatprep.subr.bf16.mxu0 0
      %1015 = vmatpush1.bf16.msra.mxu0 0
      %1016 = vmatprep.subr.bf16.mxu0 0
      %1017 = vmatpush1.bf16.msra.mxu0 0
      %1018 = vmatprep.subr.bf16.mxu0 0
      %1019 = vmatpush1.bf16.msra.mxu0 %v1002
      %1020 = vmatprep.subr.bf16.mxu0 0
      %1021 = vmatpush1.bf16.msra.mxu0 %v1001
      %1022 = vmatprep.subr.bf16.mxu0 0
      %1023 = vmatpush1.bf16.msra.mxu0 %v1000
      %1024 = vmatprep.subr.bf16.mxu0 0
      %1025 = vmatpush1.bf16.msra.mxu0 %v999
      %1026 = vmatprep.subr.bf16.mxu0 0
      %1027 = vmatpush2.bf16.msra.mxu0 0
      %1028 = vmatprep.subr.bf16.mxu0 0
      %1029 = vmatpush2.bf16.msra.mxu0 0
      %1030 = vmatprep.subr.bf16.mxu0 0
      %1031 = vmatpush2.bf16.msra.mxu0 0
      %1032 = vmatprep.subr.bf16.mxu0 0
      %1033 = vmatpush2.bf16.msra.mxu0 0
      %1034 = vmatprep.subr.bf16.mxu0 0
      %1035 = vmatpush2.bf16.msra.mxu0 0
      %1036 = vmatprep.subr.bf16.mxu0 0
      %1037 = vmatpush2.bf16.msra.mxu0 0
      %1038 = vmatprep.subr.bf16.mxu0 0
      %1039 = vmatpush2.bf16.msra.mxu0 0
      %1040 = vmatprep.subr.bf16.mxu0 0
      %1041 = vmatpush2.bf16.msra.mxu0 0
      %1042 = vmatprep.mubr.bf16.mxu0 0
      %1043 = vmatmul.mubr.bf16.gmra.mxu0 %v1008
      %v1044 = vpop.f32.mrf.mxu0
      %v1045 = vadd.f32 0.0, %v1044
      %v1046 = vpop.f32.mrf.mxu0
      %v1047 = vpop.f32.mrf.mxu0
      %v1048 = vpop.f32.mrf.mxu0
      %1049 = vdwg.mxu0
      %v1050 = vadd.f32 %v953, %v1045
      %v1051 = vld [vmem:[%s857] sm:$0x3]
      %v1052 = vld [vmem:[%s857 + $0x2] sm:$0x3]
      %v1056 = vunpack.c.l.s4 1966171168
      %v1057 = vunpack.c.0.s8 %v1056
      %v1058 = vlaneseq
      %v1059 = vshrl.u32 %v1058, 7
      %v1060 = vsub.s32 %v1057, %v1059
      %v1061 = vrot.slane %v1051, %v1060
      %v1062 = vcombine.high %v1061, %v1061
      %v1064 = vunpack.c.l.s4 1966171168
      %v1065 = vunpack.c.0.s8 %v1064
      %v1066 = vlaneseq
      %v1067 = vshrl.u32 %v1066, 7
      %v1068 = vsub.s32 %v1065, %v1067
      %v1069 = vrot.slane %v1052, %v1068
      %v1070 = vcombine.high %v1069, %v1069
      %v1072 = vshrl.u32 %v1061, 16
      %v1074 = vrot.slane %v1072, 7
      %v1075 = vrot.slane %v1074, 1
      %v1077 = vshll.u32 %v1062, 16
      %v1079 = vsel %vm422, %v1075, %v1077
      %v1081 = vshrl.u32 %v1069, 16
      %v1083 = vrot.slane %v1081, 7
      %v1084 = vrot.slane %v1083, 1
      %v1086 = vshll.u32 %v1070, 16
      %v1088 = vsel %vm422, %v1084, %v1086
      %s1089 = scalar_lea.vmem %s1, 256
      %v1090 = vld [vmem:[%s1089] sm:$0xf]
      %v1091 = vld [vmem:[%s1089 + $0x4] sm:$0xf]
      %v1092 = vld [vmem:[%s1089 + $0x8] sm:$0xf]
      %v1093 = vld [vmem:[%s1089 + $0xc] sm:$0xf]
      %v1094 = vld [vmem:[%s1089 + $0x10] sm:$0xf]
      %v1095 = vld [vmem:[%s1089 + $0x14] sm:$0xf]
      %v1096 = vld [vmem:[%s1089 + $0x18] sm:$0xf]
      %v1097 = vld [vmem:[%s1089 + $0x1c] sm:$0xf]
      %v1098 = vcombine.low %v1079, %v1088
      %v1100 = vunpack.c.l.s4 1966171168
      %v1101 = vunpack.c.0.s8 %v1100
      %v1102 = vlaneseq
      %v1103 = vshrl.u32 %v1102, 7
      %v1104 = vsub.s32 %v1101, %v1103
      %v1105 = vrot.slane %v1098, %v1104
      %v1107 = vunpack.c.l.s4 1966171168
      %v1108 = vunpack.c.0.s8 %v1107
      %v1109 = vlaneseq
      %v1110 = vshrl.u32 %v1109, 7
      %v1111 = vsub.s32 %v1108, %v1110
      %v1112 = vrot.slane %v1105, %v1111
      %v1121 = vunpack.c.l.b16 %v1090
      %v1122 = vunpack.c.l.b16 %v1091
      %v1123 = vunpack.c.l.b16 %v1092
      %v1124 = vunpack.c.l.b16 %v1093
      %v1125 = vunpack.c.l.b16 %v1094
      %v1126 = vunpack.c.l.b16 %v1095
      %v1127 = vunpack.c.l.b16 %v1096
      %v1128 = vunpack.c.l.b16 %v1097
      %v1129 = vpack.c.b16 %v1122, %v1121
      %v1130 = vpack.c.b16 %v1124, %v1123
      %v1131 = vpack.c.b16 %v1126, %v1125
      %v1132 = vpack.c.b16 %v1128, %v1127
      %v1138 = vsel %vm260, %v1112, 0
      %1140 = vmatprep.subr.bf16.mxu0 0
      %1141 = vmatpush1.bf16.msra.mxu0 0
      %1142 = vmatprep.subr.bf16.mxu0 0
      %1143 = vmatpush1.bf16.msra.mxu0 0
      %1144 = vmatprep.subr.bf16.mxu0 0
      %1145 = vmatpush1.bf16.msra.mxu0 0
      %1146 = vmatprep.subr.bf16.mxu0 0
      %1147 = vmatpush1.bf16.msra.mxu0 0
      %1148 = vmatprep.subr.bf16.mxu0 0
      %1149 = vmatpush1.bf16.msra.mxu0 %v1132
      %1150 = vmatprep.subr.bf16.mxu0 0
      %1151 = vmatpush1.bf16.msra.mxu0 %v1131
      %1152 = vmatprep.subr.bf16.mxu0 0
      %1153 = vmatpush1.bf16.msra.mxu0 %v1130
      %1154 = vmatprep.subr.bf16.mxu0 0
      %1155 = vmatpush1.bf16.msra.mxu0 %v1129
      %1156 = vmatprep.subr.bf16.mxu0 0
      %1157 = vmatpush2.bf16.msra.mxu0 0
      %1158 = vmatprep.subr.bf16.mxu0 0
      %1159 = vmatpush2.bf16.msra.mxu0 0
      %1160 = vmatprep.subr.bf16.mxu0 0
      %1161 = vmatpush2.bf16.msra.mxu0 0
      %1162 = vmatprep.subr.bf16.mxu0 0
      %1163 = vmatpush2.bf16.msra.mxu0 0
      %1164 = vmatprep.subr.bf16.mxu0 0
      %1165 = vmatpush2.bf16.msra.mxu0 0
      %1166 = vmatprep.subr.bf16.mxu0 0
      %1167 = vmatpush2.bf16.msra.mxu0 0
      %1168 = vmatprep.subr.bf16.mxu0 0
      %1169 = vmatpush2.bf16.msra.mxu0 0
      %1170 = vmatprep.subr.bf16.mxu0 0
      %1171 = vmatpush2.bf16.msra.mxu0 0
      %1172 = vmatprep.mubr.bf16.mxu0 0
      %1173 = vmatmul.mubr.bf16.gmra.mxu0 %v1138
      %v1174 = vpop.f32.mrf.mxu0
      %v1175 = vadd.f32 0.0, %v1174
      %v1176 = vpop.f32.mrf.mxu0
      %v1177 = vpop.f32.mrf.mxu0
      %v1178 = vpop.f32.mrf.mxu0
      %1179 = vdwg.mxu0
      %v1180 = vadd.f32 %v1050, %v1175
      %v1181 = vld [vmem:[%s2] sm:$0x1]
      %v1182 = vld [vmem:[%s3] sm:$0x1]
      %v1184 = vlaneseq
      %v1185 = vshrl.u32 %v1184, 7
      %v1186 = vsub.s32 0, %v1185
      %v1187 = vrot.slane %v1181, %v1186
      %v1189 = vmul.f32 %v1180, %v1187
      %v1191 = vlaneseq
      %v1192 = vshrl.u32 %v1191, 7
      %v1193 = vsub.s32 0, %v1192
      %v1194 = vrot.slane %v1182, %v1193
      %v1196 = vadd.f32 %v1189, %v1194
      %v1197 = vmul.f32 %v1196, 0.01
      %v1198 = vmax.f32 %v1196, %v1197
      %v1201 = vunpack.c.l.s4 1983009808
      %v1202 = vunpack.c.0.s8 %v1201
      %v1203 = vlaneseq
      %v1204 = vshrl.u32 %v1203, 7
      %v1205 = vsub.s32 %v1202, %v1204
      %v1206 = vrot.slane %v1198, %v1205
      %v1207 = vcombine.high %v1206, %v1206
      %v1210 = vpack.c.bf16 %v1206, %v1206
      %v1211 = vpack.c.bf16 %v1207, %v1207
      %1212 = vst [vmem:[%s195] sm:$0x1] %v1210
      %1213 = vst [vmem:[%s195 + $0x1] sm:$0x1] %v1211
      %p1214 = scmp.lt.s32.totalorder %s15, 1
      %s1215 = scalar_select %p1214, %s15, 1
      %s1216 = smul.addr %s1215, 2
      %s1217 = scalar_lea.vmem %s4, %s1216
      // Predicated region
      $region37: #{font_classifier_forward.8} parent=35 // pred_check
        %p1218 = pneg %p122
      $region38: #{font_classifier_forward.8} parent=35 // pred_check_branch
        %1220 = sbr.rel (%p1218) target = $region40
      $region39: #{font_classifier_forward.8} parent=35 // pred_region
        _
      $region40: #{font_classifier_forward.8} parent=35 // pred_fallthru
        _
    $region36: #{font_classifier_forward.8} parent=5 // pred_fallthru
      _
    %p1221 = scmp.le.s32.totalorder 2, %s10
    // Predicated region
    $region41: #{font_classifier_forward.8} parent=5 // pred_check
      %p1222 = pneg %p1221
    $region42: #{font_classifier_forward.8} parent=5 // pred_check_branch
      %1224 = sbr.rel (%p1222) target = $region44
    $region43: #{font_classifier_forward.8} parent=5 // pred_region
      %s1225 = ssub.s32 %s10, 2
      // Predicated region
      $region45: #{font_classifier_forward.8} parent=43 // pred_check
        %p1226 = pneg %p128
      $region46: #{font_classifier_forward.8} parent=43 // pred_check_branch
        %1228 = sbr.rel (%p1226) target = $region48
      $region47: #{font_classifier_forward.8} parent=43 // pred_region
        %p1229 = scmp.lt.s32.totalorder %s16, 1
        %s1230 = scalar_select %p1229, %s16, 1
        %s1231 = smul.addr %s1230, 2
        %s1232 = scalar_lea.vmem %s4, %s1231
      $region48: #{font_classifier_forward.8} parent=43 // pred_fallthru
        _
    $region44: #{font_classifier_forward.8} parent=5 // pred_fallthru
      _
  $region6: #{font_classifier_forward.8} parent=0 // loop_footer
    %s14 = sadd.s32 1, %s10
  $region7: #{font_classifier_forward.8} parent=0 // loop_footer_branch
    %9 = sbr.rel target = $region3
  $region8: #{font_classifier_forward.8} parent=0 // loop_exit
    _

// kernel: font_classifier_forward.9
$region0: #{font_classifier_forward.9}
  #allocation0 [shape = 'u32[]', space=smem, size = 0x4, offset = 0x4, fixed_abs, tag = 'smem constant byte address 0x4 - core index']
  #allocation1 [shape = 'u32[144,128]{1,0:T(1,128)}', space=vmem, size = 0x12000, scoped, tag = 'internal scratch']
  %s0 = inlined_call_operand.vmem [shape: bf16[2,4,2,2,128], index: 0, kind: input, shape index: {}]
  %s1 = inlined_call_operand.vmem [shape: bf16[9,128,256], index: 1, kind: input, shape index: {}]
  %s2 = inlined_call_operand.vmem [shape: f32[1,256], index: 2, kind: input, shape index: {}]
  %s3 = inlined_call_operand.vmem [shape: f32[1,256], index: 3, kind: input, shape index: {}]
  %s4 = inlined_call_operand.vmem [shape: bf16[256,512], index: 4, kind: input, shape index: {}]
  %s5 = inlined_call_operand.vmem [shape: f32[1,512], index: 5, kind: input, shape index: {}]
  %s6 = inlined_call_operand.vmem [shape: f32[2,1,512], index: 6, kind: output, shape index: {}]
  %s7 = sld [smem:[#allocation0]]
  $region57: #{font_classifier_forward.9} parent=0
    _
  %s9 = ssub.s32 1, %s7
  %s10 = scalar_select 0, %s9, %s7
  loop: start=0, step=1, limit=4
  $region2: #{font_classifier_forward.9} parent=0 // loop_pre_header
    _
  $region3: #{font_classifier_forward.9} parent=0 // loop_header
    %s12 = sphi 0, %s16
    %p13 = scmp.ge.s32.totalorder %s12, 4
    %s22 = sphi 0, %s24
    %s25 = sphi 0, %s22
    %s26 = sphi 0, %s25
    %s42 = sphi 0, %s26
    %s46 = sphi 0, %s46
    %s48 = sphi 0, %s46
    %s49 = sphi 0, %s48
    %s63 = sphi 0, %s49
    %s67 = sphi 0, %s67
    %s69 = sphi 0, %s67
    %s70 = sphi 0, %s69
    %s84 = sphi 0, %s70
    %s88 = sphi 0, %s88
    %s90 = sphi 0, %s88
    %s91 = sphi 0, %s90
    %s105 = sphi 0, %s91
    %s109 = sphi 0, %s109
    %s111 = sphi 0, %s109
    %s112 = sphi 0, %s111
    %s126 = sphi 0, %s112
    %s130 = sphi 0, %s130
    %s132 = sphi 0, %s130
    %s133 = sphi 0, %s132
    %s147 = sphi 0, %s133
    %s153 = sphi 0, %s155
    %s156 = sphi 0, %s153
    %s157 = sphi 0, %s156
    %s173 = sphi 0, %s157
  $region4: #{font_classifier_forward.9} parent=0 // loop_header_branch
    %15 = sbr.rel (%p13) target = $region8
  $region5: #{font_classifier_forward.9} parent=0 // loop_body
    %s17 = ssub.s32 %s12, 1
    %s18 = ssub.s32 %s12, 2
    %s19 = sadd.s32 %s12, 1
    %s20 = ssub.s32 %s12, %s19
    %p21 = scmp.eq.s32.totalorder %s20, 0
    %s23 = sadd.s32 %s22, 1
    %s24 = scalar_select %p21, %s22, %s23
    %p27 = pneg %p21
    %p28 = scmp.eq.s32.totalorder %s12, 1
    %p29 = por %p27, %p28
    %p30 = scmp.ne.s32.totalorder %s22, %s25
    %p31 = scmp.eq.s32.totalorder %s12, 0
    %p32 = por %p30, %p31
    %p33 = scmp.ne.s32.totalorder %s22, %s25
    %p34 = scmp.eq.s32.totalorder %s17, 1
    %p35 = por %p33, %p34
    %p36 = scmp.ne.s32.totalorder %s25, %s26
    %p37 = scmp.eq.s32.totalorder %s17, 0
    %p38 = por %p36, %p37
    %p39 = scmp.ne.s32.totalorder %s25, %s26
    %p40 = scmp.eq.s32.totalorder %s18, 1
    %p41 = por %p39, %p40
    %p43 = scmp.ne.s32.totalorder %s26, %s42
    %p44 = scmp.eq.s32.totalorder %s18, 0
    %p45 = por %p43, %p44
    %s47 = sadd.s32 %s46, 1
    %p50 = scmp.eq.s32.totalorder %s12, 1
    %p51 = scmp.ne.s32.totalorder %s46, %s48
    %p52 = scmp.eq.s32.totalorder %s12, 0
    %p53 = por %p51, %p52
    %p54 = scmp.ne.s32.totalorder %s46, %s48
    %p55 = scmp.eq.s32.totalorder %s17, 1
    %p56 = por %p54, %p55
    %p57 = scmp.ne.s32.totalorder %s48, %s49
    %p58 = scmp.eq.s32.totalorder %s17, 0
    %p59 = por %p57, %p58
    %p60 = scmp.ne.s32.totalorder %s48, %s49
    %p61 = scmp.eq.s32.totalorder %s18, 1
    %p62 = por %p60, %p61
    %p64 = scmp.ne.s32.totalorder %s49, %s63
    %p65 = scmp.eq.s32.totalorder %s18, 0
    %p66 = por %p64, %p65
    %s68 = sadd.s32 %s67, 1
    %p71 = scmp.eq.s32.totalorder %s12, 1
    %p72 = scmp.ne.s32.totalorder %s67, %s69
    %p73 = scmp.eq.s32.totalorder %s12, 0
    %p74 = por %p72, %p73
    %p75 = scmp.ne.s32.totalorder %s67, %s69
    %p76 = scmp.eq.s32.totalorder %s17, 1
    %p77 = por %p75, %p76
    %p78 = scmp.ne.s32.totalorder %s69, %s70
    %p79 = scmp.eq.s32.totalorder %s17, 0
    %p80 = por %p78, %p79
    %p81 = scmp.ne.s32.totalorder %s69, %s70
    %p82 = scmp.eq.s32.totalorder %s18, 1
    %p83 = por %p81, %p82
    %p85 = scmp.ne.s32.totalorder %s70, %s84
    %p86 = scmp.eq.s32.totalorder %s18, 0
    %p87 = por %p85, %p86
    %s89 = sadd.s32 %s88, 1
    %p92 = scmp.eq.s32.totalorder %s12, 1
    %p93 = scmp.ne.s32.totalorder %s88, %s90
    %p94 = scmp.eq.s32.totalorder %s12, 0
    %p95 = por %p93, %p94
    %p96 = scmp.ne.s32.totalorder %s88, %s90
    %p97 = scmp.eq.s32.totalorder %s17, 1
    %p98 = por %p96, %p97
    %p99 = scmp.ne.s32.totalorder %s90, %s91
    %p100 = scmp.eq.s32.totalorder %s17, 0
    %p101 = por %p99, %p100
    %p102 = scmp.ne.s32.totalorder %s90, %s91
    %p103 = scmp.eq.s32.totalorder %s18, 1
    %p104 = por %p102, %p103
    %p106 = scmp.ne.s32.totalorder %s91, %s105
    %p107 = scmp.eq.s32.totalorder %s18, 0
    %p108 = por %p106, %p107
    %s110 = sadd.s32 %s109, 1
    %p113 = scmp.eq.s32.totalorder %s12, 1
    %p114 = scmp.ne.s32.totalorder %s109, %s111
    %p115 = scmp.eq.s32.totalorder %s12, 0
    %p116 = por %p114, %p115
    %p117 = scmp.ne.s32.totalorder %s109, %s111
    %p118 = scmp.eq.s32.totalorder %s17, 1
    %p119 = por %p117, %p118
    %p120 = scmp.ne.s32.totalorder %s111, %s112
    %p121 = scmp.eq.s32.totalorder %s17, 0
    %p122 = por %p120, %p121
    %p123 = scmp.ne.s32.totalorder %s111, %s112
    %p124 = scmp.eq.s32.totalorder %s18, 1
    %p125 = por %p123, %p124
    %p127 = scmp.ne.s32.totalorder %s112, %s126
    %p128 = scmp.eq.s32.totalorder %s18, 0
    %p129 = por %p127, %p128
    %s131 = sadd.s32 %s130, 1
    %p134 = scmp.eq.s32.totalorder %s12, 1
    %p135 = scmp.ne.s32.totalorder %s130, %s132
    %p136 = scmp.eq.s32.totalorder %s12, 0
    %p137 = por %p135, %p136
    %p138 = scmp.ne.s32.totalorder %s130, %s132
    %p139 = scmp.eq.s32.totalorder %s17, 1
    %p140 = por %p138, %p139
    %p141 = scmp.ne.s32.totalorder %s132, %s133
    %p142 = scmp.eq.s32.totalorder %s17, 0
    %p143 = por %p141, %p142
    %p144 = scmp.ne.s32.totalorder %s132, %s133
    %p145 = scmp.eq.s32.totalorder %s18, 1
    %p146 = por %p144, %p145
    %p148 = scmp.ne.s32.totalorder %s133, %s147
    %p149 = scmp.eq.s32.totalorder %s18, 0
    %p150 = por %p148, %p149
    %s151 = ssub.s32 %s12, %s19
    %p152 = scmp.eq.s32.totalorder %s151, 0
    %s154 = sadd.s32 %s153, 1
    %s155 = scalar_select %p152, %s153, %s154
    %p158 = pneg %p152
    %p159 = scmp.eq.s32.totalorder %s12, 1
    %p160 = por %p158, %p159
    %p161 = scmp.ne.s32.totalorder %s153, %s156
    %p162 = scmp.eq.s32.totalorder %s12, 0
    %p163 = por %p161, %p162
    %p164 = scmp.ne.s32.totalorder %s153, %s156
    %p165 = scmp.eq.s32.totalorder %s17, 1
    %p166 = por %p164, %p165
    %p167 = scmp.ne.s32.totalorder %s156, %s157
    %p168 = scmp.eq.s32.totalorder %s17, 0
    %p169 = por %p167, %p168
    %p170 = scmp.ne.s32.totalorder %s156, %s157
    %p171 = scmp.eq.s32.totalorder %s18, 1
    %p172 = por %p170, %p171
    %p174 = scmp.ne.s32.totalorder %s157, %s173
    %p175 = scmp.eq.s32.totalorder %s18, 0
    %p176 = por %p174, %p175
    %p177 = scmp.le.s32.totalorder 1, %s12
    %p178 = scmp.lt.s32.totalorder %s12, 3
    %p179 = pnand %p177, %p178
    %p180 = pneg %p179
    // Predicated region
    $region9: #{font_classifier_forward.9} parent=5 // pred_check
      _
    $region10: #{font_classifier_forward.9} parent=5 // pred_check_branch
      %182 = sbr.rel (%p179) target = $region12
    $region11: #{font_classifier_forward.9} parent=5 // pred_region
      %s183 = ssub.s32 %s12, 1
      // Predicated region
      $region13: #{font_classifier_forward.9} parent=11 // pred_check
        %p184 = pneg %p59
      $region14: #{font_classifier_forward.9} parent=11 // pred_check_branch
        %186 = sbr.rel (%p184) target = $region16
      $region15: #{font_classifier_forward.9} parent=11 // pred_region
        _
      $region16: #{font_classifier_forward.9} parent=11 // pred_fallthru
        _
      // Predicated region
      $region17: #{font_classifier_forward.9} parent=11 // pred_check
        %p187 = pneg %p80
      $region18: #{font_classifier_forward.9} parent=11 // pred_check_branch
        %189 = sbr.rel (%p187) target = $region20
      $region19: #{font_classifier_forward.9} parent=11 // pred_region
        _
      $region20: #{font_classifier_forward.9} parent=11 // pred_fallthru
        _
      // Predicated region
      $region21: #{font_classifier_forward.9} parent=11 // pred_check
        %p190 = pneg %p101
      $region22: #{font_classifier_forward.9} parent=11 // pred_check_branch
        %192 = sbr.rel (%p190) target = $region24
      $region23: #{font_classifier_forward.9} parent=11 // pred_region
        _
      $region24: #{font_classifier_forward.9} parent=11 // pred_fallthru
        _
      // Predicated region
      $region25: #{font_classifier_forward.9} parent=11 // pred_check
        %p193 = pneg %p122
      $region26: #{font_classifier_forward.9} parent=11 // pred_check_branch
        %195 = sbr.rel (%p193) target = $region28
      $region27: #{font_classifier_forward.9} parent=11 // pred_region
        _
      $region28: #{font_classifier_forward.9} parent=11 // pred_fallthru
        _
      // Predicated region
      $region29: #{font_classifier_forward.9} parent=11 // pred_check
        %p196 = pneg %p143
      $region30: #{font_classifier_forward.9} parent=11 // pred_check_branch
        %198 = sbr.rel (%p196) target = $region32
      $region31: #{font_classifier_forward.9} parent=11 // pred_region
        _
      $region32: #{font_classifier_forward.9} parent=11 // pred_fallthru
        _
    $region12: #{font_classifier_forward.9} parent=5 // pred_fallthru
      _
    %p199 = scmp.lt.s32.totalorder %s12, 2
    // Predicated region
    $region33: #{font_classifier_forward.9} parent=5 // pred_check
      %p200 = pneg %p199
    $region34: #{font_classifier_forward.9} parent=5 // pred_check_branch
      %202 = sbr.rel (%p200) target = $region36
    $region35: #{font_classifier_forward.9} parent=5 // pred_region
      // Predicated region
      $region37: #{font_classifier_forward.9} parent=35 // pred_check
        %p203 = pneg %p32
      $region38: #{font_classifier_forward.9} parent=35 // pred_check_branch
        %205 = sbr.rel (%p203) target = $region40
      $region39: #{font_classifier_forward.9} parent=35 // pred_region
        %p206 = scmp.lt.s32.totalorder %s12, 1
        %s207 = scalar_select %p206, %s12, 1
        %s208 = smul.addr %s207, 8
        %s209 = scalar_lea.vmem %s0, %s208
      $region40: #{font_classifier_forward.9} parent=35 // pred_fallthru
        _
    $region36: #{font_classifier_forward.9} parent=5 // pred_fallthru
      _
    %p210 = scmp.le.s32.totalorder 1, %s12
    %p211 = scmp.lt.s32.totalorder %s12, 3
    %p212 = pnand %p210, %p211
    %p213 = pneg %p212
    // Predicated region
    $region41: #{font_classifier_forward.9} parent=5 // pred_check
      _
    $region42: #{font_classifier_forward.9} parent=5 // pred_check_branch
      %215 = sbr.rel (%p212) target = $region44
    $region43: #{font_classifier_forward.9} parent=5 // pred_region
      %s216 = ssub.s32 %s12, 1
      %p217 = scmp.lt.s32.totalorder %s17, 1
      %s218 = scalar_select %p217, %s17, 1
      %s219 = smul.addr %s218, 8
      %s220 = scalar_lea.vmem %s0, %s219
      %p221 = pneg %p38
      %p222 = pneg %p35
      %p223 = pneg %p59
      %p224 = pneg %p56
      %p225 = pneg %p80
      %p226 = pneg %p77
      %p227 = pneg %p101
      %p228 = pneg %p98
      %p229 = pneg %p122
      %p230 = pneg %p119
      %p231 = pneg %p143
      %p232 = pneg %p140
      %p233 = pneg %p169
      %p234 = pneg %p166
      %p235 = scmp.lt.s32.totalorder %s17, 1
      %s236 = scalar_select %p235, %s17, 1
      %s237 = smul.addr %s236, 4
      %s238 = scalar_lea.vmem %s6, %s237
      %p239 = scmp.lt.s32.totalorder %s17, 1
      %s240 = scalar_select %p239, %s17, 1
      %s241 = smul.addr %s240, 8
      %s242 = scalar_lea.vmem %s0, %s241
      %p243 = scmp.lt.s32.totalorder %s17, 1
      %s244 = scalar_select %p243, %s17, 1
      %s245 = smul.addr %s244, 4
      %s246 = scalar_lea.vmem %s6, %s245
      %v248 = vld [vmem:[%s242] sm:$0x1]
      %v249 = vld [vmem:[%s1] sm:$0xff]
      %v250 = vld [vmem:[%s1 + $0x8] sm:$0xff]
      %v251 = vld [vmem:[%s1 + $0x10] sm:$0xff]
      %v252 = vld [vmem:[%s1 + $0x18] sm:$0xff]
      %v253 = vld [vmem:[%s1 + $0x20] sm:$0xff]
      %v254 = vld [vmem:[%s1 + $0x28] sm:$0xff]
      %v255 = vld [vmem:[%s1 + $0x30] sm:$0xff]
      %v256 = vld [vmem:[%s1 + $0x38] sm:$0xff]
      %v257 = vld [vmem:[%s1 + $0x40] sm:$0xff]
      %v258 = vld [vmem:[%s1 + $0x48] sm:$0xff]
      %v259 = vld [vmem:[%s1 + $0x50] sm:$0xff]
      %v260 = vld [vmem:[%s1 + $0x58] sm:$0xff]
      %v261 = vld [vmem:[%s1 + $0x60] sm:$0xff]
      %v262 = vld [vmem:[%s1 + $0x68] sm:$0xff]
      %v263 = vld [vmem:[%s1 + $0x70] sm:$0xff]
      %v264 = vld [vmem:[%s1 + $0x78] sm:$0xff]
      %s265 = scalar_lea.vmem %s242, 2
      %v266 = vld [vmem:[%s265] sm:$0x1]
      %s267 = scalar_lea.vmem %s1, 128
      %v268 = vld [vmem:[%s267] sm:$0xff]
      %v269 = vld [vmem:[%s267 + $0x8] sm:$0xff]
      %v270 = vld [vmem:[%s267 + $0x10] sm:$0xff]
      %v271 = vld [vmem:[%s267 + $0x18] sm:$0xff]
      %v272 = vld [vmem:[%s267 + $0x20] sm:$0xff]
      %v273 = vld [vmem:[%s267 + $0x28] sm:$0xff]
      %v274 = vld [vmem:[%s267 + $0x30] sm:$0xff]
      %v275 = vld [vmem:[%s267 + $0x38] sm:$0xff]
      %v276 = vld [vmem:[%s267 + $0x40] sm:$0xff]
      %v277 = vld [vmem:[%s267 + $0x48] sm:$0xff]
      %v278 = vld [vmem:[%s267 + $0x50] sm:$0xff]
      %v279 = vld [vmem:[%s267 + $0x58] sm:$0xff]
      %v280 = vld [vmem:[%s267 + $0x60] sm:$0xff]
      %v281 = vld [vmem:[%s267 + $0x68] sm:$0xff]
      %v282 = vld [vmem:[%s267 + $0x70] sm:$0xff]
      %v283 = vld [vmem:[%s267 + $0x78] sm:$0xff]
      %v300 = vunpack.c.l.b16 %v268
      %v301 = vunpack.c.h.b16 %v268
      %v302 = vunpack.c.l.b16 %v269
      %v303 = vunpack.c.h.b16 %v269
      %v304 = vunpack.c.l.b16 %v270
      %v305 = vunpack.c.h.b16 %v270
      %v306 = vunpack.c.l.b16 %v271
      %v307 = vunpack.c.h.b16 %v271
      %v308 = vunpack.c.l.b16 %v272
      %v309 = vunpack.c.h.b16 %v272
      %v310 = vunpack.c.l.b16 %v273
      %v311 = vunpack.c.h.b16 %v273
      %v312 = vunpack.c.l.b16 %v274
      %v313 = vunpack.c.h.b16 %v274
      %v314 = vunpack.c.l.b16 %v275
      %v315 = vunpack.c.h.b16 %v275
      %v316 = vunpack.c.l.b16 %v276
      %v317 = vunpack.c.h.b16 %v276
      %v318 = vunpack.c.l.b16 %v277
      %v319 = vunpack.c.h.b16 %v277
      %v320 = vunpack.c.l.b16 %v278
      %v321 = vunpack.c.h.b16 %v278
      %v322 = vunpack.c.l.b16 %v279
      %v323 = vunpack.c.h.b16 %v279
      %v324 = vunpack.c.l.b16 %v280
      %v325 = vunpack.c.h.b16 %v280
      %v326 = vunpack.c.l.b16 %v281
      %v327 = vunpack.c.h.b16 %v281
      %v328 = vunpack.c.l.b16 %v282
      %v329 = vunpack.c.h.b16 %v282
      %v330 = vunpack.c.l.b16 %v283
      %v331 = vunpack.c.h.b16 %v283
      %v332 = vpack.c.b16 %v302, %v300
      %v333 = vpack.c.b16 %v303, %v301
      %v334 = vpack.c.b16 %v306, %v304
      %v335 = vpack.c.b16 %v307, %v305
      %v336 = vpack.c.b16 %v310, %v308
      %v337 = vpack.c.b16 %v311, %v309
      %v338 = vpack.c.b16 %v314, %v312
      %v339 = vpack.c.b16 %v315, %v313
      %v340 = vpack.c.b16 %v318, %v316
      %v341 = vpack.c.b16 %v319, %v317
      %v342 = vpack.c.b16 %v322, %v320
      %v343 = vpack.c.b16 %v323, %v321
      %v344 = vpack.c.b16 %v326, %v324
      %v345 = vpack.c.b16 %v327, %v325
      %v346 = vpack.c.b16 %v330, %v328
      %v347 = vpack.c.b16 %v331, %v329
      %364 = vmatprep.subr.bf16.mxu0 %v347
      %365 = vmatpush1.bf16.msra.mxu0 %v346
      %366 = vmatprep.subr.bf16.mxu0 %v345
      %367 = vmatpush1.bf16.msra.mxu0 %v344
      %368 = vmatprep.subr.bf16.mxu0 %v343
      %369 = vmatpush1.bf16.msra.mxu0 %v342
      %370 = vmatprep.subr.bf16.mxu0 %v341
      %371 = vmatpush1.bf16.msra.mxu0 %v340
      %372 = vmatprep.subr.bf16.mxu0 %v339
      %373 = vmatpush1.bf16.msra.mxu0 %v338
      %374 = vmatprep.subr.bf16.mxu0 %v337
      %375 = vmatpush1.bf16.msra.mxu0 %v336
      %376 = vmatprep.subr.bf16.mxu0 %v335
      %377 = vmatpush1.bf16.msra.mxu0 %v334
      %378 = vmatprep.subr.bf16.mxu0 %v333
      %379 = vmatpush1.bf16.msra.mxu0 %v332
      %380 = vmatprep.subr.bf16.mxu0 0
      %381 = vmatpush2.bf16.msra.mxu0 0
      %382 = vmatprep.subr.bf16.mxu0 0
      %383 = vmatpush2.bf16.msra.mxu0 0
      %384 = vmatprep.subr.bf16.mxu0 0
      %385 = vmatpush2.bf16.msra.mxu0 0
      %386 = vmatprep.subr.bf16.mxu0 0
      %387 = vmatpush2.bf16.msra.mxu0 0
      %388 = vmatprep.subr.bf16.mxu0 0
      %389 = vmatpush2.bf16.msra.mxu0 0
      %390 = vmatprep.subr.bf16.mxu0 0
      %391 = vmatpush2.bf16.msra.mxu0 0
      %392 = vmatprep.subr.bf16.mxu0 0
      %393 = vmatpush2.bf16.msra.mxu0 0
      %394 = vmatprep.subr.bf16.mxu0 0
      %395 = vmatpush2.bf16.msra.mxu0 0
      %396 = vmatprep.mubr.bf16.mxu0 0
      %397 = vmatmul.mubr.bf16.gmra.mxu0 %v266
      %v398 = vpop.f32.mrf.mxu0
      %v399 = vadd.f32 0.0, %v398
      %v400 = vpop.f32.mrf.mxu0
      %v401 = vadd.f32 0.0, %v400
      %v402 = vpop.f32.mrf.mxu0
      %v403 = vpop.f32.mrf.mxu0
      %404 = vdwg.mxu0
      %v421 = vunpack.c.l.b16 %v249
      %v422 = vunpack.c.h.b16 %v249
      %v423 = vunpack.c.l.b16 %v250
      %v424 = vunpack.c.h.b16 %v250
      %v425 = vunpack.c.l.b16 %v251
      %v426 = vunpack.c.h.b16 %v251
      %v427 = vunpack.c.l.b16 %v252
      %v428 = vunpack.c.h.b16 %v252
      %v429 = vunpack.c.l.b16 %v253
      %v430 = vunpack.c.h.b16 %v253
      %v431 = vunpack.c.l.b16 %v254
      %v432 = vunpack.c.h.b16 %v254
      %v433 = vunpack.c.l.b16 %v255
      %v434 = vunpack.c.h.b16 %v255
      %v435 = vunpack.c.l.b16 %v256
      %v436 = vunpack.c.h.b16 %v256
      %v437 = vunpack.c.l.b16 %v257
      %v438 = vunpack.c.h.b16 %v257
      %v439 = vunpack.c.l.b16 %v258
      %v440 = vunpack.c.h.b16 %v258
      %v441 = vunpack.c.l.b16 %v259
      %v442 = vunpack.c.h.b16 %v259
      %v443 = vunpack.c.l.b16 %v260
      %v444 = vunpack.c.h.b16 %v260
      %v445 = vunpack.c.l.b16 %v261
      %v446 = vunpack.c.h.b16 %v261
      %v447 = vunpack.c.l.b16 %v262
      %v448 = vunpack.c.h.b16 %v262
      %v449 = vunpack.c.l.b16 %v263
      %v450 = vunpack.c.h.b16 %v263
      %v451 = vunpack.c.l.b16 %v264
      %v452 = vunpack.c.h.b16 %v264
      %v453 = vpack.c.b16 %v423, %v421
      %v454 = vpack.c.b16 %v424, %v422
      %v455 = vpack.c.b16 %v427, %v425
      %v456 = vpack.c.b16 %v428, %v426
      %v457 = vpack.c.b16 %v431, %v429
      %v458 = vpack.c.b16 %v432, %v430
      %v459 = vpack.c.b16 %v435, %v433
      %v460 = vpack.c.b16 %v436, %v434
      %v461 = vpack.c.b16 %v439, %v437
      %v462 = vpack.c.b16 %v440, %v438
      %v463 = vpack.c.b16 %v443, %v441
      %v464 = vpack.c.b16 %v444, %v442
      %v465 = vpack.c.b16 %v447, %v445
      %v466 = vpack.c.b16 %v448, %v446
      %v467 = vpack.c.b16 %v451, %v449
      %v468 = vpack.c.b16 %v452, %v450
      %485 = vmatprep.subr.bf16.mxu0 %v468
      %486 = vmatpush1.bf16.msra.mxu0 %v467
      %487 = vmatprep.subr.bf16.mxu0 %v466
      %488 = vmatpush1.bf16.msra.mxu0 %v465
      %489 = vmatprep.subr.bf16.mxu0 %v464
      %490 = vmatpush1.bf16.msra.mxu0 %v463
      %491 = vmatprep.subr.bf16.mxu0 %v462
      %492 = vmatpush1.bf16.msra.mxu0 %v461
      %493 = vmatprep.subr.bf16.mxu0 %v460
      %494 = vmatpush1.bf16.msra.mxu0 %v459
      %495 = vmatprep.subr.bf16.mxu0 %v458
      %496 = vmatpush1.bf16.msra.mxu0 %v457
      %497 = vmatprep.subr.bf16.mxu0 %v456
      %498 = vmatpush1.bf16.msra.mxu0 %v455
      %499 = vmatprep.subr.bf16.mxu0 %v454
      %500 = vmatpush1.bf16.msra.mxu0 %v453
      %501 = vmatprep.subr.bf16.mxu0 0
      %502 = vmatpush2.bf16.msra.mxu0 0
      %503 = vmatprep.subr.bf16.mxu0 0
      %504 = vmatpush2.bf16.msra.mxu0 0
      %505 = vmatprep.subr.bf16.mxu0 0
      %506 = vmatpush2.bf16.msra.mxu0 0
      %507 = vmatprep.subr.bf16.mxu0 0
      %508 = vmatpush2.bf16.msra.mxu0 0
      %509 = vmatprep.subr.bf16.mxu0 0
      %510 = vmatpush2.bf16.msra.mxu0 0
      %511 = vmatprep.subr.bf16.mxu0 0
      %512 = vmatpush2.bf16.msra.mxu0 0
      %513 = vmatprep.subr.bf16.mxu0 0
      %514 = vmatpush2.bf16.msra.mxu0 0
      %515 = vmatprep.subr.bf16.mxu0 0
      %516 = vmatpush2.bf16.msra.mxu0 0
      %517 = vmatprep.mubr.bf16.mxu0 0
      %518 = vmatmul.mubr.bf16.gmra.mxu0 %v248
      %v519 = vpop.f32.mrf.mxu0
      %v520 = vadd.f32 %v399, %v519
      %v521 = vpop.f32.mrf.mxu0
      %v522 = vadd.f32 %v401, %v521
      %v523 = vpop.f32.mrf.mxu0
      %v524 = vpop.f32.mrf.mxu0
      %525 = vdwg.mxu0
      %s526 = scalar_lea.vmem %s1, 256
      %v527 = vld [vmem:[%s526] sm:$0xff]
      %v528 = vld [vmem:[%s526 + $0x8] sm:$0xff]
      %v529 = vld [vmem:[%s526 + $0x10] sm:$0xff]
      %v530 = vld [vmem:[%s526 + $0x18] sm:$0xff]
      %v531 = vld [vmem:[%s526 + $0x20] sm:$0xff]
      %v532 = vld [vmem:[%s526 + $0x28] sm:$0xff]
      %v533 = vld [vmem:[%s526 + $0x30] sm:$0xff]
      %v534 = vld [vmem:[%s526 + $0x38] sm:$0xff]
      %v535 = vld [vmem:[%s526 + $0x40] sm:$0xff]
      %v536 = vld [vmem:[%s526 + $0x48] sm:$0xff]
      %v537 = vld [vmem:[%s526 + $0x50] sm:$0xff]
      %v538 = vld [vmem:[%s526 + $0x58] sm:$0xff]
      %v539 = vld [vmem:[%s526 + $0x60] sm:$0xff]
      %v540 = vld [vmem:[%s526 + $0x68] sm:$0xff]
      %v541 = vld [vmem:[%s526 + $0x70] sm:$0xff]
      %v542 = vld [vmem:[%s526 + $0x78] sm:$0xff]
      %v545 = vunpack.c.l.s4 1966171168
      %v546 = vunpack.c.0.s8 %v545
      %v547 = vlaneseq
      %v548 = vshrl.u32 %v547, 7
      %v549 = vsub.s32 %v546, %v548
      %v550 = vrot.slane %v248, %v549
      %v552 = vunpack.c.l.s4 1966171168
      %v553 = vunpack.c.0.s8 %v552
      %v554 = vlaneseq
      %v555 = vshrl.u32 %v554, 7
      %v556 = vsub.s32 %v553, %v555
      %v557 = vrot.slane %v550, %v556
      %v559 = vshrl.u32 %v557, 16
      %v578 = vunpack.c.l.b16 %v527
      %v579 = vunpack.c.h.b16 %v527
      %v580 = vunpack.c.l.b16 %v528
      %v581 = vunpack.c.h.b16 %v528
      %v582 = vunpack.c.l.b16 %v529
      %v583 = vunpack.c.h.b16 %v529
      %v584 = vunpack.c.l.b16 %v530
      %v585 = vunpack.c.h.b16 %v530
      %v586 = vunpack.c.l.b16 %v531
      %v587 = vunpack.c.h.b16 %v531
      %v588 = vunpack.c.l.b16 %v532
      %v589 = vunpack.c.h.b16 %v532
      %v590 = vunpack.c.l.b16 %v533
      %v591 = vunpack.c.h.b16 %v533
      %v592 = vunpack.c.l.b16 %v534
      %v593 = vunpack.c.h.b16 %v534
      %v594 = vunpack.c.l.b16 %v535
      %v595 = vunpack.c.h.b16 %v535
      %v596 = vunpack.c.l.b16 %v536
      %v597 = vunpack.c.h.b16 %v536
      %v598 = vunpack.c.l.b16 %v537
      %v599 = vunpack.c.h.b16 %v537
      %v600 = vunpack.c.l.b16 %v538
      %v601 = vunpack.c.h.b16 %v538
      %v602 = vunpack.c.l.b16 %v539
      %v603 = vunpack.c.h.b16 %v539
      %v604 = vunpack.c.l.b16 %v540
      %v605 = vunpack.c.h.b16 %v540
      %v606 = vunpack.c.l.b16 %v541
      %v607 = vunpack.c.h.b16 %v541
      %v608 = vunpack.c.l.b16 %v542
      %v609 = vunpack.c.h.b16 %v542
      %v610 = vpack.c.b16 %v580, %v578
      %v611 = vpack.c.b16 %v581, %v579
      %v612 = vpack.c.b16 %v584, %v582
      %v613 = vpack.c.b16 %v585, %v583
      %v614 = vpack.c.b16 %v588, %v586
      %v615 = vpack.c.b16 %v589, %v587
      %v616 = vpack.c.b16 %v592, %v590
      %v617 = vpack.c.b16 %v593, %v591
      %v618 = vpack.c.b16 %v596, %v594
      %v619 = vpack.c.b16 %v597, %v595
      %v620 = vpack.c.b16 %v600, %v598
      %v621 = vpack.c.b16 %v601, %v599
      %v622 = vpack.c.b16 %v604, %v602
      %v623 = vpack.c.b16 %v605, %v603
      %v624 = vpack.c.b16 %v608, %v606
      %v625 = vpack.c.b16 %v609, %v607
      %642 = vmatprep.subr.bf16.mxu0 %v625
      %643 = vmatpush1.bf16.msra.mxu0 %v624
      %644 = vmatprep.subr.bf16.mxu0 %v623
      %645 = vmatpush1.bf16.msra.mxu0 %v622
      %646 = vmatprep.subr.bf16.mxu0 %v621
      %647 = vmatpush1.bf16.msra.mxu0 %v620
      %648 = vmatprep.subr.bf16.mxu0 %v619
      %649 = vmatpush1.bf16.msra.mxu0 %v618
      %650 = vmatprep.subr.bf16.mxu0 %v617
      %651 = vmatpush1.bf16.msra.mxu0 %v616
      %652 = vmatprep.subr.bf16.mxu0 %v615
      %653 = vmatpush1.bf16.msra.mxu0 %v614
      %654 = vmatprep.subr.bf16.mxu0 %v613
      %655 = vmatpush1.bf16.msra.mxu0 %v612
      %656 = vmatprep.subr.bf16.mxu0 %v611
      %657 = vmatpush1.bf16.msra.mxu0 %v610
      %658 = vmatprep.subr.bf16.mxu0 0
      %659 = vmatpush2.bf16.msra.mxu0 0
      %660 = vmatprep.subr.bf16.mxu0 0
      %661 = vmatpush2.bf16.msra.mxu0 0
      %662 = vmatprep.subr.bf16.mxu0 0
      %663 = vmatpush2.bf16.msra.mxu0 0
      %664 = vmatprep.subr.bf16.mxu0 0
      %665 = vmatpush2.bf16.msra.mxu0 0
      %666 = vmatprep.subr.bf16.mxu0 0
      %667 = vmatpush2.bf16.msra.mxu0 0
      %668 = vmatprep.subr.bf16.mxu0 0
      %669 = vmatpush2.bf16.msra.mxu0 0
      %670 = vmatprep.subr.bf16.mxu0 0
      %671 = vmatpush2.bf16.msra.mxu0 0
      %672 = vmatprep.subr.bf16.mxu0 0
      %673 = vmatpush2.bf16.msra.mxu0 0
      %674 = vmatprep.mubr.bf16.mxu0 0
      %675 = vmatmul.mubr.bf16.gmra.mxu0 %v559
      %v676 = vpop.f32.mrf.mxu0
      %v677 = vadd.f32 0.0, %v676
      %v678 = vpop.f32.mrf.mxu0
      %v679 = vadd.f32 0.0, %v678
      %v680 = vpop.f32.mrf.mxu0
      %v681 = vpop.f32.mrf.mxu0
      %682 = vdwg.mxu0
      %v683 = vadd.f32 %v520, %v677
      %v684 = vadd.f32 %v522, %v679
      %s685 = scalar_lea.vmem %s242, 4
      %v686 = vld [vmem:[%s685] sm:$0x1]
      %s687 = scalar_lea.vmem %s1, 384
      %v688 = vld [vmem:[%s687] sm:$0xff]
      %v689 = vld [vmem:[%s687 + $0x8] sm:$0xff]
      %v690 = vld [vmem:[%s687 + $0x10] sm:$0xff]
      %v691 = vld [vmem:[%s687 + $0x18] sm:$0xff]
      %v692 = vld [vmem:[%s687 + $0x20] sm:$0xff]
      %v693 = vld [vmem:[%s687 + $0x28] sm:$0xff]
      %v694 = vld [vmem:[%s687 + $0x30] sm:$0xff]
      %v695 = vld [vmem:[%s687 + $0x38] sm:$0xff]
      %v696 = vld [vmem:[%s687 + $0x40] sm:$0xff]
      %v697 = vld [vmem:[%s687 + $0x48] sm:$0xff]
      %v698 = vld [vmem:[%s687 + $0x50] sm:$0xff]
      %v699 = vld [vmem:[%s687 + $0x58] sm:$0xff]
      %v700 = vld [vmem:[%s687 + $0x60] sm:$0xff]
      %v701 = vld [vmem:[%s687 + $0x68] sm:$0xff]
      %v702 = vld [vmem:[%s687 + $0x70] sm:$0xff]
      %v703 = vld [vmem:[%s687 + $0x78] sm:$0xff]
      %v720 = vunpack.c.l.b16 %v688
      %v721 = vunpack.c.h.b16 %v688
      %v722 = vunpack.c.l.b16 %v689
      %v723 = vunpack.c.h.b16 %v689
      %v724 = vunpack.c.l.b16 %v690
      %v725 = vunpack.c.h.b16 %v690
      %v726 = vunpack.c.l.b16 %v691
      %v727 = vunpack.c.h.b16 %v691
      %v728 = vunpack.c.l.b16 %v692
      %v729 = vunpack.c.h.b16 %v692
      %v730 = vunpack.c.l.b16 %v693
      %v731 = vunpack.c.h.b16 %v693
      %v732 = vunpack.c.l.b16 %v694
      %v733 = vunpack.c.h.b16 %v694
      %v734 = vunpack.c.l.b16 %v695
      %v735 = vunpack.c.h.b16 %v695
      %v736 = vunpack.c.l.b16 %v696
      %v737 = vunpack.c.h.b16 %v696
      %v738 = vunpack.c.l.b16 %v697
      %v739 = vunpack.c.h.b16 %v697
      %v740 = vunpack.c.l.b16 %v698
      %v741 = vunpack.c.h.b16 %v698
      %v742 = vunpack.c.l.b16 %v699
      %v743 = vunpack.c.h.b16 %v699
      %v744 = vunpack.c.l.b16 %v700
      %v745 = vunpack.c.h.b16 %v700
      %v746 = vunpack.c.l.b16 %v701
      %v747 = vunpack.c.h.b16 %v701
      %v748 = vunpack.c.l.b16 %v702
      %v749 = vunpack.c.h.b16 %v702
      %v750 = vunpack.c.l.b16 %v703
      %v751 = vunpack.c.h.b16 %v703
      %v752 = vpack.c.b16 %v722, %v720
      %v753 = vpack.c.b16 %v723, %v721
      %v754 = vpack.c.b16 %v726, %v724
      %v755 = vpack.c.b16 %v727, %v725
      %v756 = vpack.c.b16 %v730, %v728
      %v757 = vpack.c.b16 %v731, %v729
      %v758 = vpack.c.b16 %v734, %v732
      %v759 = vpack.c.b16 %v735, %v733
      %v760 = vpack.c.b16 %v738, %v736
      %v761 = vpack.c.b16 %v739, %v737
      %v762 = vpack.c.b16 %v742, %v740
      %v763 = vpack.c.b16 %v743, %v741
      %v764 = vpack.c.b16 %v746, %v744
      %v765 = vpack.c.b16 %v747, %v745
      %v766 = vpack.c.b16 %v750, %v748
      %v767 = vpack.c.b16 %v751, %v749
      %784 = vmatprep.subr.bf16.mxu0 %v767
      %785 = vmatpush1.bf16.msra.mxu0 %v766
      %786 = vmatprep.subr.bf16.mxu0 %v765
      %787 = vmatpush1.bf16.msra.mxu0 %v764
      %788 = vmatprep.subr.bf16.mxu0 %v763
      %789 = vmatpush1.bf16.msra.mxu0 %v762
      %790 = vmatprep.subr.bf16.mxu0 %v761
      %791 = vmatpush1.bf16.msra.mxu0 %v760
      %792 = vmatprep.subr.bf16.mxu0 %v759
      %793 = vmatpush1.bf16.msra.mxu0 %v758
      %794 = vmatprep.subr.bf16.mxu0 %v757
      %795 = vmatpush1.bf16.msra.mxu0 %v756
      %796 = vmatprep.subr.bf16.mxu0 %v755
      %797 = vmatpush1.bf16.msra.mxu0 %v754
      %798 = vmatprep.subr.bf16.mxu0 %v753
      %799 = vmatpush1.bf16.msra.mxu0 %v752
      %800 = vmatprep.subr.bf16.mxu0 0
      %801 = vmatpush2.bf16.msra.mxu0 0
      %802 = vmatprep.subr.bf16.mxu0 0
      %803 = vmatpush2.bf16.msra.mxu0 0
      %804 = vmatprep.subr.bf16.mxu0 0
      %805 = vmatpush2.bf16.msra.mxu0 0
      %806 = vmatprep.subr.bf16.mxu0 0
      %807 = vmatpush2.bf16.msra.mxu0 0
      %808 = vmatprep.subr.bf16.mxu0 0
      %809 = vmatpush2.bf16.msra.mxu0 0
      %810 = vmatprep.subr.bf16.mxu0 0
      %811 = vmatpush2.bf16.msra.mxu0 0
      %812 = vmatprep.subr.bf16.mxu0 0
      %813 = vmatpush2.bf16.msra.mxu0 0
      %814 = vmatprep.subr.bf16.mxu0 0
      %815 = vmatpush2.bf16.msra.mxu0 0
      %816 = vmatprep.mubr.bf16.mxu0 0
      %817 = vmatmul.mubr.bf16.gmra.mxu0 %v686
      %v818 = vpop.f32.mrf.mxu0
      %v819 = vadd.f32 0.0, %v818
      %v820 = vpop.f32.mrf.mxu0
      %v821 = vadd.f32 0.0, %v820
      %v822 = vpop.f32.mrf.mxu0
      %v823 = vpop.f32.mrf.mxu0
      %824 = vdwg.mxu0
      %v825 = vadd.f32 %v683, %v819
      %v826 = vadd.f32 %v684, %v821
      %s827 = scalar_lea.vmem %s242, 6
      %v828 = vld [vmem:[%s827] sm:$0x1]
      %s829 = scalar_lea.vmem %s1, 512
      %v830 = vld [vmem:[%s829] sm:$0xff]
      %v831 = vld [vmem:[%s829 + $0x8] sm:$0xff]
      %v832 = vld [vmem:[%s829 + $0x10] sm:$0xff]
      %v833 = vld [vmem:[%s829 + $0x18] sm:$0xff]
      %v834 = vld [vmem:[%s829 + $0x20] sm:$0xff]
      %v835 = vld [vmem:[%s829 + $0x28] sm:$0xff]
      %v836 = vld [vmem:[%s829 + $0x30] sm:$0xff]
      %v837 = vld [vmem:[%s829 + $0x38] sm:$0xff]
      %v838 = vld [vmem:[%s829 + $0x40] sm:$0xff]
      %v839 = vld [vmem:[%s829 + $0x48] sm:$0xff]
      %v840 = vld [vmem:[%s829 + $0x50] sm:$0xff]
      %v841 = vld [vmem:[%s829 + $0x58] sm:$0xff]
      %v842 = vld [vmem:[%s829 + $0x60] sm:$0xff]
      %v843 = vld [vmem:[%s829 + $0x68] sm:$0xff]
      %v844 = vld [vmem:[%s829 + $0x70] sm:$0xff]
      %v845 = vld [vmem:[%s829 + $0x78] sm:$0xff]
      %v862 = vunpack.c.l.b16 %v830
      %v863 = vunpack.c.h.b16 %v830
      %v864 = vunpack.c.l.b16 %v831
      %v865 = vunpack.c.h.b16 %v831
      %v866 = vunpack.c.l.b16 %v832
      %v867 = vunpack.c.h.b16 %v832
      %v868 = vunpack.c.l.b16 %v833
      %v869 = vunpack.c.h.b16 %v833
      %v870 = vunpack.c.l.b16 %v834
      %v871 = vunpack.c.h.b16 %v834
      %v872 = vunpack.c.l.b16 %v835
      %v873 = vunpack.c.h.b16 %v835
      %v874 = vunpack.c.l.b16 %v836
      %v875 = vunpack.c.h.b16 %v836
      %v876 = vunpack.c.l.b16 %v837
      %v877 = vunpack.c.h.b16 %v837
      %v878 = vunpack.c.l.b16 %v838
      %v879 = vunpack.c.h.b16 %v838
      %v880 = vunpack.c.l.b16 %v839
      %v881 = vunpack.c.h.b16 %v839
      %v882 = vunpack.c.l.b16 %v840
      %v883 = vunpack.c.h.b16 %v840
      %v884 = vunpack.c.l.b16 %v841
      %v885 = vunpack.c.h.b16 %v841
      %v886 = vunpack.c.l.b16 %v842
      %v887 = vunpack.c.h.b16 %v842
      %v888 = vunpack.c.l.b16 %v843
      %v889 = vunpack.c.h.b16 %v843
      %v890 = vunpack.c.l.b16 %v844
      %v891 = vunpack.c.h.b16 %v844
      %v892 = vunpack.c.l.b16 %v845
      %v893 = vunpack.c.h.b16 %v845
      %v894 = vpack.c.b16 %v864, %v862
      %v895 = vpack.c.b16 %v865, %v863
      %v896 = vpack.c.b16 %v868, %v866
      %v897 = vpack.c.b16 %v869, %v867
      %v898 = vpack.c.b16 %v872, %v870
      %v899 = vpack.c.b16 %v873, %v871
      %v900 = vpack.c.b16 %v876, %v874
      %v901 = vpack.c.b16 %v877, %v875
      %v902 = vpack.c.b16 %v880, %v878
      %v903 = vpack.c.b16 %v881, %v879
      %v904 = vpack.c.b16 %v884, %v882
      %v905 = vpack.c.b16 %v885, %v883
      %v906 = vpack.c.b16 %v888, %v886
      %v907 = vpack.c.b16 %v889, %v887
      %v908 = vpack.c.b16 %v892, %v890
      %v909 = vpack.c.b16 %v893, %v891
      %926 = vmatprep.subr.bf16.mxu0 %v909
      %927 = vmatpush1.bf16.msra.mxu0 %v908
      %928 = vmatprep.subr.bf16.mxu0 %v907
      %929 = vmatpush1.bf16.msra.mxu0 %v906
      %930 = vmatprep.subr.bf16.mxu0 %v905
      %931 = vmatpush1.bf16.msra.mxu0 %v904
      %932 = vmatprep.subr.bf16.mxu0 %v903
      %933 = vmatpush1.bf16.msra.mxu0 %v902
      %934 = vmatprep.subr.bf16.mxu0 %v901
      %935 = vmatpush1.bf16.msra.mxu0 %v900
      %936 = vmatprep.subr.bf16.mxu0 %v899
      %937 = vmatpush1.bf16.msra.mxu0 %v898
      %938 = vmatprep.subr.bf16.mxu0 %v897
      %939 = vmatpush1.bf16.msra.mxu0 %v896
      %940 = vmatprep.subr.bf16.mxu0 %v895
      %941 = vmatpush1.bf16.msra.mxu0 %v894
      %942 = vmatprep.subr.bf16.mxu0 0
      %943 = vmatpush2.bf16.msra.mxu0 0
      %944 = vmatprep.subr.bf16.mxu0 0
      %945 = vmatpush2.bf16.msra.mxu0 0
      %946 = vmatprep.subr.bf16.mxu0 0
      %947 = vmatpush2.bf16.msra.mxu0 0
      %948 = vmatprep.subr.bf16.mxu0 0
      %949 = vmatpush2.bf16.msra.mxu0 0
      %950 = vmatprep.subr.bf16.mxu0 0
      %951 = vmatpush2.bf16.msra.mxu0 0
      %952 = vmatprep.subr.bf16.mxu0 0
      %953 = vmatpush2.bf16.msra.mxu0 0
      %954 = vmatprep.subr.bf16.mxu0 0
      %955 = vmatpush2.bf16.msra.mxu0 0
      %956 = vmatprep.subr.bf16.mxu0 0
      %957 = vmatpush2.bf16.msra.mxu0 0
      %958 = vmatprep.mubr.bf16.mxu0 0
      %959 = vmatmul.mubr.bf16.gmra.mxu0 %v828
      %v960 = vpop.f32.mrf.mxu0
      %v961 = vadd.f32 0.0, %v960
      %v962 = vpop.f32.mrf.mxu0
      %v963 = vadd.f32 0.0, %v962
      %v964 = vpop.f32.mrf.mxu0
      %v965 = vpop.f32.mrf.mxu0
      %966 = vdwg.mxu0
      %v967 = vadd.f32 %v825, %v961
      %v968 = vadd.f32 %v826, %v963
      %s969 = scalar_lea.vmem %s1, 640
      %v970 = vld [vmem:[%s969] sm:$0xff]
      %v971 = vld [vmem:[%s969 + $0x8] sm:$0xff]
      %v972 = vld [vmem:[%s969 + $0x10] sm:$0xff]
      %v973 = vld [vmem:[%s969 + $0x18] sm:$0xff]
      %v974 = vld [vmem:[%s969 + $0x20] sm:$0xff]
      %v975 = vld [vmem:[%s969 + $0x28] sm:$0xff]
      %v976 = vld [vmem:[%s969 + $0x30] sm:$0xff]
      %v977 = vld [vmem:[%s969 + $0x38] sm:$0xff]
      %v978 = vld [vmem:[%s969 + $0x40] sm:$0xff]
      %v979 = vld [vmem:[%s969 + $0x48] sm:$0xff]
      %v980 = vld [vmem:[%s969 + $0x50] sm:$0xff]
      %v981 = vld [vmem:[%s969 + $0x58] sm:$0xff]
      %v982 = vld [vmem:[%s969 + $0x60] sm:$0xff]
      %v983 = vld [vmem:[%s969 + $0x68] sm:$0xff]
      %v984 = vld [vmem:[%s969 + $0x70] sm:$0xff]
      %v985 = vld [vmem:[%s969 + $0x78] sm:$0xff]
      %v988 = vunpack.c.l.s4 1966171168
      %v989 = vunpack.c.0.s8 %v988
      %v990 = vlaneseq
      %v991 = vshrl.u32 %v990, 7
      %v992 = vsub.s32 %v989, %v991
      %v993 = vrot.slane %v686, %v992
      %v995 = vunpack.c.l.s4 1966171168
      %v996 = vunpack.c.0.s8 %v995
      %v997 = vlaneseq
      %v998 = vshrl.u32 %v997, 7
      %v999 = vsub.s32 %v996, %v998
      %v1000 = vrot.slane %v993, %v999
      %v1002 = vshrl.u32 %v1000, 16
      %v1021 = vunpack.c.l.b16 %v970
      %v1022 = vunpack.c.h.b16 %v970
      %v1023 = vunpack.c.l.b16 %v971
      %v1024 = vunpack.c.h.b16 %v971
      %v1025 = vunpack.c.l.b16 %v972
      %v1026 = vunpack.c.h.b16 %v972
      %v1027 = vunpack.c.l.b16 %v973
      %v1028 = vunpack.c.h.b16 %v973
      %v1029 = vunpack.c.l.b16 %v974
      %v1030 = vunpack.c.h.b16 %v974
      %v1031 = vunpack.c.l.b16 %v975
      %v1032 = vunpack.c.h.b16 %v975
      %v1033 = vunpack.c.l.b16 %v976
      %v1034 = vunpack.c.h.b16 %v976
      %v1035 = vunpack.c.l.b16 %v977
      %v1036 = vunpack.c.h.b16 %v977
      %v1037 = vunpack.c.l.b16 %v978
      %v1038 = vunpack.c.h.b16 %v978
      %v1039 = vunpack.c.l.b16 %v979
      %v1040 = vunpack.c.h.b16 %v979
      %v1041 = vunpack.c.l.b16 %v980
      %v1042 = vunpack.c.h.b16 %v980
      %v1043 = vunpack.c.l.b16 %v981
      %v1044 = vunpack.c.h.b16 %v981
      %v1045 = vunpack.c.l.b16 %v982
      %v1046 = vunpack.c.h.b16 %v982
      %v1047 = vunpack.c.l.b16 %v983
      %v1048 = vunpack.c.h.b16 %v983
      %v1049 = vunpack.c.l.b16 %v984
      %v1050 = vunpack.c.h.b16 %v984
      %v1051 = vunpack.c.l.b16 %v985
      %v1052 = vunpack.c.h.b16 %v985
      %v1053 = vpack.c.b16 %v1023, %v1021
      %v1054 = vpack.c.b16 %v1024, %v1022
      %v1055 = vpack.c.b16 %v1027, %v1025
      %v1056 = vpack.c.b16 %v1028, %v1026
      %v1057 = vpack.c.b16 %v1031, %v1029
      %v1058 = vpack.c.b16 %v1032, %v1030
      %v1059 = vpack.c.b16 %v1035, %v1033
      %v1060 = vpack.c.b16 %v1036, %v1034
      %v1061 = vpack.c.b16 %v1039, %v1037
      %v1062 = vpack.c.b16 %v1040, %v1038
      %v1063 = vpack.c.b16 %v1043, %v1041
      %v1064 = vpack.c.b16 %v1044, %v1042
      %v1065 = vpack.c.b16 %v1047, %v1045
      %v1066 = vpack.c.b16 %v1048, %v1046
      %v1067 = vpack.c.b16 %v1051, %v1049
      %v1068 = vpack.c.b16 %v1052, %v1050
      %1085 = vmatprep.subr.bf16.mxu0 %v1068
      %1086 = vmatpush1.bf16.msra.mxu0 %v1067
      %1087 = vmatprep.subr.bf16.mxu0 %v1066
      %1088 = vmatpush1.bf16.msra.mxu0 %v1065
      %1089 = vmatprep.subr.bf16.mxu0 %v1064
      %1090 = vmatpush1.bf16.msra.mxu0 %v1063
      %1091 = vmatprep.subr.bf16.mxu0 %v1062
      %1092 = vmatpush1.bf16.msra.mxu0 %v1061
      %1093 = vmatprep.subr.bf16.mxu0 %v1060
      %1094 = vmatpush1.bf16.msra.mxu0 %v1059
      %1095 = vmatprep.subr.bf16.mxu0 %v1058
      %1096 = vmatpush1.bf16.msra.mxu0 %v1057
      %1097 = vmatprep.subr.bf16.mxu0 %v1056
      %1098 = vmatpush1.bf16.msra.mxu0 %v1055
      %1099 = vmatprep.subr.bf16.mxu0 %v1054
      %1100 = vmatpush1.bf16.msra.mxu0 %v1053
      %1101 = vmatprep.subr.bf16.mxu0 0
      %1102 = vmatpush2.bf16.msra.mxu0 0
      %1103 = vmatprep.subr.bf16.mxu0 0
      %1104 = vmatpush2.bf16.msra.mxu0 0
      %1105 = vmatprep.subr.bf16.mxu0 0
      %1106 = vmatpush2.bf16.msra.mxu0 0
      %1107 = vmatprep.subr.bf16.mxu0 0
      %1108 = vmatpush2.bf16.msra.mxu0 0
      %1109 = vmatprep.subr.bf16.mxu0 0
      %1110 = vmatpush2.bf16.msra.mxu0 0
      %1111 = vmatprep.subr.bf16.mxu0 0
      %1112 = vmatpush2.bf16.msra.mxu0 0
      %1113 = vmatprep.subr.bf16.mxu0 0
      %1114 = vmatpush2.bf16.msra.mxu0 0
      %1115 = vmatprep.subr.bf16.mxu0 0
      %1116 = vmatpush2.bf16.msra.mxu0 0
      %1117 = vmatprep.mubr.bf16.mxu0 0
      %1118 = vmatmul.mubr.bf16.gmra.mxu0 %v1002
      %v1119 = vpop.f32.mrf.mxu0
      %v1120 = vadd.f32 0.0, %v1119
      %v1121 = vpop.f32.mrf.mxu0
      %v1122 = vadd.f32 0.0, %v1121
      %v1123 = vpop.f32.mrf.mxu0
      %v1124 = vpop.f32.mrf.mxu0
      %1125 = vdwg.mxu0
      %v1126 = vadd.f32 %v967, %v1120
      %v1127 = vadd.f32 %v968, %v1122
      %s1128 = scalar_lea.vmem %s242, 1
      %v1129 = vld [vmem:[%s1128] sm:$0x1]
      %s1130 = scalar_lea.vmem %s1, 768
      %v1131 = vld [vmem:[%s1130] sm:$0xff]
      %v1132 = vld [vmem:[%s1130 + $0x8] sm:$0xff]
      %v1133 = vld [vmem:[%s1130 + $0x10] sm:$0xff]
      %v1134 = vld [vmem:[%s1130 + $0x18] sm:$0xff]
      %v1135 = vld [vmem:[%s1130 + $0x20] sm:$0xff]
      %v1136 = vld [vmem:[%s1130 + $0x28] sm:$0xff]
      %v1137 = vld [vmem:[%s1130 + $0x30] sm:$0xff]
      %v1138 = vld [vmem:[%s1130 + $0x38] sm:$0xff]
      %v1139 = vld [vmem:[%s1130 + $0x40] sm:$0xff]
      %v1140 = vld [vmem:[%s1130 + $0x48] sm:$0xff]
      %v1141 = vld [vmem:[%s1130 + $0x50] sm:$0xff]
      %v1142 = vld [vmem:[%s1130 + $0x58] sm:$0xff]
      %v1143 = vld [vmem:[%s1130 + $0x60] sm:$0xff]
      %v1144 = vld [vmem:[%s1130 + $0x68] sm:$0xff]
      %v1145 = vld [vmem:[%s1130 + $0x70] sm:$0xff]
      %v1146 = vld [vmem:[%s1130 + $0x78] sm:$0xff]
      %v1163 = vunpack.c.l.b16 %v1131
      %v1164 = vunpack.c.h.b16 %v1131
      %v1165 = vunpack.c.l.b16 %v1132
      %v1166 = vunpack.c.h.b16 %v1132
      %v1167 = vunpack.c.l.b16 %v1133
      %v1168 = vunpack.c.h.b16 %v1133
      %v1169 = vunpack.c.l.b16 %v1134
      %v1170 = vunpack.c.h.b16 %v1134
      %v1171 = vunpack.c.l.b16 %v1135
      %v1172 = vunpack.c.h.b16 %v1135
      %v1173 = vunpack.c.l.b16 %v1136
      %v1174 = vunpack.c.h.b16 %v1136
      %v1175 = vunpack.c.l.b16 %v1137
      %v1176 = vunpack.c.h.b16 %v1137
      %v1177 = vunpack.c.l.b16 %v1138
      %v1178 = vunpack.c.h.b16 %v1138
      %v1179 = vunpack.c.l.b16 %v1139
      %v1180 = vunpack.c.h.b16 %v1139
      %v1181 = vunpack.c.l.b16 %v1140
      %v1182 = vunpack.c.h.b16 %v1140
      %v1183 = vunpack.c.l.b16 %v1141
      %v1184 = vunpack.c.h.b16 %v1141
      %v1185 = vunpack.c.l.b16 %v1142
      %v1186 = vunpack.c.h.b16 %v1142
      %v1187 = vunpack.c.l.b16 %v1143
      %v1188 = vunpack.c.h.b16 %v1143
      %v1189 = vunpack.c.l.b16 %v1144
      %v1190 = vunpack.c.h.b16 %v1144
      %v1191 = vunpack.c.l.b16 %v1145
      %v1192 = vunpack.c.h.b16 %v1145
      %v1193 = vunpack.c.l.b16 %v1146
      %v1194 = vunpack.c.h.b16 %v1146
      %v1195 = vpack.c.b16 %v1165, %v1163
      %v1196 = vpack.c.b16 %v1166, %v1164
      %v1197 = vpack.c.b16 %v1169, %v1167
      %v1198 = vpack.c.b16 %v1170, %v1168
      %v1199 = vpack.c.b16 %v1173, %v1171
      %v1200 = vpack.c.b16 %v1174, %v1172
      %v1201 = vpack.c.b16 %v1177, %v1175
      %v1202 = vpack.c.b16 %v1178, %v1176
      %v1203 = vpack.c.b16 %v1181, %v1179
      %v1204 = vpack.c.b16 %v1182, %v1180
      %v1205 = vpack.c.b16 %v1185, %v1183
      %v1206 = vpack.c.b16 %v1186, %v1184
      %v1207 = vpack.c.b16 %v1189, %v1187
      %v1208 = vpack.c.b16 %v1190, %v1188
      %v1209 = vpack.c.b16 %v1193, %v1191
      %v1210 = vpack.c.b16 %v1194, %v1192
      %1227 = vmatprep.subr.bf16.mxu0 %v1210
      %1228 = vmatpush1.bf16.msra.mxu0 %v1209
      %1229 = vmatprep.subr.bf16.mxu0 %v1208
      %1230 = vmatpush1.bf16.msra.mxu0 %v1207
      %1231 = vmatprep.subr.bf16.mxu0 %v1206
      %1232 = vmatpush1.bf16.msra.mxu0 %v1205
      %1233 = vmatprep.subr.bf16.mxu0 %v1204
      %1234 = vmatpush1.bf16.msra.mxu0 %v1203
      %1235 = vmatprep.subr.bf16.mxu0 %v1202
      %1236 = vmatpush1.bf16.msra.mxu0 %v1201
      %1237 = vmatprep.subr.bf16.mxu0 %v1200
      %1238 = vmatpush1.bf16.msra.mxu0 %v1199
      %1239 = vmatprep.subr.bf16.mxu0 %v1198
      %1240 = vmatpush1.bf16.msra.mxu0 %v1197
      %1241 = vmatprep.subr.bf16.mxu0 %v1196
      %1242 = vmatpush1.bf16.msra.mxu0 %v1195
      %1243 = vmatprep.subr.bf16.mxu0 0
      %1244 = vmatpush2.bf16.msra.mxu0 0
      %1245 = vmatprep.subr.bf16.mxu0 0
      %1246 = vmatpush2.bf16.msra.mxu0 0
      %1247 = vmatprep.subr.bf16.mxu0 0
      %1248 = vmatpush2.bf16.msra.mxu0 0
      %1249 = vmatprep.subr.bf16.mxu0 0
      %1250 = vmatpush2.bf16.msra.mxu0 0
      %1251 = vmatprep.subr.bf16.mxu0 0
      %1252 = vmatpush2.bf16.msra.mxu0 0
      %1253 = vmatprep.subr.bf16.mxu0 0
      %1254 = vmatpush2.bf16.msra.mxu0 0
      %1255 = vmatprep.subr.bf16.mxu0 0
      %1256 = vmatpush2.bf16.msra.mxu0 0
      %1257 = vmatprep.subr.bf16.mxu0 0
      %1258 = vmatpush2.bf16.msra.mxu0 0
      %1259 = vmatprep.mubr.bf16.mxu0 0
      %1260 = vmatmul.mubr.bf16.gmra.mxu0 %v1129
      %v1261 = vpop.f32.mrf.mxu0
      %v1262 = vadd.f32 0.0, %v1261
      %v1263 = vpop.f32.mrf.mxu0
      %v1264 = vadd.f32 0.0, %v1263
      %v1265 = vpop.f32.mrf.mxu0
      %v1266 = vpop.f32.mrf.mxu0
      %1267 = vdwg.mxu0
      %v1268 = vadd.f32 %v1126, %v1262
      %v1269 = vadd.f32 %v1127, %v1264
      %s1270 = scalar_lea.vmem %s242, 3
      %v1271 = vld [vmem:[%s1270] sm:$0x1]
      %s1272 = scalar_lea.vmem %s1, 896
      %v1273 = vld [vmem:[%s1272] sm:$0xff]
      %v1274 = vld [vmem:[%s1272 + $0x8] sm:$0xff]
      %v1275 = vld [vmem:[%s1272 + $0x10] sm:$0xff]
      %v1276 = vld [vmem:[%s1272 + $0x18] sm:$0xff]
      %v1277 = vld [vmem:[%s1272 + $0x20] sm:$0xff]
      %v1278 = vld [vmem:[%s1272 + $0x28] sm:$0xff]
      %v1279 = vld [vmem:[%s1272 + $0x30] sm:$0xff]
      %v1280 = vld [vmem:[%s1272 + $0x38] sm:$0xff]
      %v1281 = vld [vmem:[%s1272 + $0x40] sm:$0xff]
      %v1282 = vld [vmem:[%s1272 + $0x48] sm:$0xff]
      %v1283 = vld [vmem:[%s1272 + $0x50] sm:$0xff]
      %v1284 = vld [vmem:[%s1272 + $0x58] sm:$0xff]
      %v1285 = vld [vmem:[%s1272 + $0x60] sm:$0xff]
      %v1286 = vld [vmem:[%s1272 + $0x68] sm:$0xff]
      %v1287 = vld [vmem:[%s1272 + $0x70] sm:$0xff]
      %v1288 = vld [vmem:[%s1272 + $0x78] sm:$0xff]
      %v1305 = vunpack.c.l.b16 %v1273
      %v1306 = vunpack.c.h.b16 %v1273
      %v1307 = vunpack.c.l.b16 %v1274
      %v1308 = vunpack.c.h.b16 %v1274
      %v1309 = vunpack.c.l.b16 %v1275
      %v1310 = vunpack.c.h.b16 %v1275
      %v1311 = vunpack.c.l.b16 %v1276
      %v1312 = vunpack.c.h.b16 %v1276
      %v1313 = vunpack.c.l.b16 %v1277
      %v1314 = vunpack.c.h.b16 %v1277
      %v1315 = vunpack.c.l.b16 %v1278
      %v1316 = vunpack.c.h.b16 %v1278
      %v1317 = vunpack.c.l.b16 %v1279
      %v1318 = vunpack.c.h.b16 %v1279
      %v1319 = vunpack.c.l.b16 %v1280
      %v1320 = vunpack.c.h.b16 %v1280
      %v1321 = vunpack.c.l.b16 %v1281
      %v1322 = vunpack.c.h.b16 %v1281
      %v1323 = vunpack.c.l.b16 %v1282
      %v1324 = vunpack.c.h.b16 %v1282
      %v1325 = vunpack.c.l.b16 %v1283
      %v1326 = vunpack.c.h.b16 %v1283
      %v1327 = vunpack.c.l.b16 %v1284
      %v1328 = vunpack.c.h.b16 %v1284
      %v1329 = vunpack.c.l.b16 %v1285
      %v1330 = vunpack.c.h.b16 %v1285
      %v1331 = vunpack.c.l.b16 %v1286
      %v1332 = vunpack.c.h.b16 %v1286
      %v1333 = vunpack.c.l.b16 %v1287
      %v1334 = vunpack.c.h.b16 %v1287
      %v1335 = vunpack.c.l.b16 %v1288
      %v1336 = vunpack.c.h.b16 %v1288
      %v1337 = vpack.c.b16 %v1307, %v1305
      %v1338 = vpack.c.b16 %v1308, %v1306
      %v1339 = vpack.c.b16 %v1311, %v1309
      %v1340 = vpack.c.b16 %v1312, %v1310
      %v1341 = vpack.c.b16 %v1315, %v1313
      %v1342 = vpack.c.b16 %v1316, %v1314
      %v1343 = vpack.c.b16 %v1319, %v1317
      %v1344 = vpack.c.b16 %v1320, %v1318
      %v1345 = vpack.c.b16 %v1323, %v1321
      %v1346 = vpack.c.b16 %v1324, %v1322
      %v1347 = vpack.c.b16 %v1327, %v1325
      %v1348 = vpack.c.b16 %v1328, %v1326
      %v1349 = vpack.c.b16 %v1331, %v1329
      %v1350 = vpack.c.b16 %v1332, %v1330
      %v1351 = vpack.c.b16 %v1335, %v1333
      %v1352 = vpack.c.b16 %v1336, %v1334
      %1369 = vmatprep.subr.bf16.mxu0 %v1352
      %1370 = vmatpush1.bf16.msra.mxu0 %v1351
      %1371 = vmatprep.subr.bf16.mxu0 %v1350
      %1372 = vmatpush1.bf16.msra.mxu0 %v1349
      %1373 = vmatprep.subr.bf16.mxu0 %v1348
      %1374 = vmatpush1.bf16.msra.mxu0 %v1347
      %1375 = vmatprep.subr.bf16.mxu0 %v1346
      %1376 = vmatpush1.bf16.msra.mxu0 %v1345
      %1377 = vmatprep.subr.bf16.mxu0 %v1344
      %1378 = vmatpush1.bf16.msra.mxu0 %v1343
      %1379 = vmatprep.subr.bf16.mxu0 %v1342
      %1380 = vmatpush1.bf16.msra.mxu0 %v1341
      %1381 = vmatprep.subr.bf16.mxu0 %v1340
      %1382 = vmatpush1.bf16.msra.mxu0 %v1339
      %1383 = vmatprep.subr.bf16.mxu0 %v1338
      %1384 = vmatpush1.bf16.msra.mxu0 %v1337
      %1385 = vmatprep.subr.bf16.mxu0 0
      %1386 = vmatpush2.bf16.msra.mxu0 0
      %1387 = vmatprep.subr.bf16.mxu0 0
      %1388 = vmatpush2.bf16.msra.mxu0 0
      %1389 = vmatprep.subr.bf16.mxu0 0
      %1390 = vmatpush2.bf16.msra.mxu0 0
      %1391 = vmatprep.subr.bf16.mxu0 0
      %1392 = vmatpush2.bf16.msra.mxu0 0
      %1393 = vmatprep.subr.bf16.mxu0 0
      %1394 = vmatpush2.bf16.msra.mxu0 0
      %1395 = vmatprep.subr.bf16.mxu0 0
      %1396 = vmatpush2.bf16.msra.mxu0 0
      %1397 = vmatprep.subr.bf16.mxu0 0
      %1398 = vmatpush2.bf16.msra.mxu0 0
      %1399 = vmatprep.subr.bf16.mxu0 0
      %1400 = vmatpush2.bf16.msra.mxu0 0
      %1401 = vmatprep.mubr.bf16.mxu0 0
      %1402 = vmatmul.mubr.bf16.gmra.mxu0 %v1271
      %v1403 = vpop.f32.mrf.mxu0
      %v1404 = vadd.f32 0.0, %v1403
      %v1405 = vpop.f32.mrf.mxu0
      %v1406 = vadd.f32 0.0, %v1405
      %v1407 = vpop.f32.mrf.mxu0
      %v1408 = vpop.f32.mrf.mxu0
      %1409 = vdwg.mxu0
      %v1410 = vadd.f32 %v1268, %v1404
      %v1411 = vadd.f32 %v1269, %v1406
      %s1412 = scalar_lea.vmem %s1, 1024
      %v1413 = vld [vmem:[%s1412] sm:$0xff]
      %v1414 = vld [vmem:[%s1412 + $0x8] sm:$0xff]
      %v1415 = vld [vmem:[%s1412 + $0x10] sm:$0xff]
      %v1416 = vld [vmem:[%s1412 + $0x18] sm:$0xff]
      %v1417 = vld [vmem:[%s1412 + $0x20] sm:$0xff]
      %v1418 = vld [vmem:[%s1412 + $0x28] sm:$0xff]
      %v1419 = vld [vmem:[%s1412 + $0x30] sm:$0xff]
      %v1420 = vld [vmem:[%s1412 + $0x38] sm:$0xff]
      %v1421 = vld [vmem:[%s1412 + $0x40] sm:$0xff]
      %v1422 = vld [vmem:[%s1412 + $0x48] sm:$0xff]
      %v1423 = vld [vmem:[%s1412 + $0x50] sm:$0xff]
      %v1424 = vld [vmem:[%s1412 + $0x58] sm:$0xff]
      %v1425 = vld [vmem:[%s1412 + $0x60] sm:$0xff]
      %v1426 = vld [vmem:[%s1412 + $0x68] sm:$0xff]
      %v1427 = vld [vmem:[%s1412 + $0x70] sm:$0xff]
      %v1428 = vld [vmem:[%s1412 + $0x78] sm:$0xff]
      %v1431 = vunpack.c.l.s4 1966171168
      %v1432 = vunpack.c.0.s8 %v1431
      %v1433 = vlaneseq
      %v1434 = vshrl.u32 %v1433, 7
      %v1435 = vsub.s32 %v1432, %v1434
      %v1436 = vrot.slane %v1129, %v1435
      %v1438 = vunpack.c.l.s4 1966171168
      %v1439 = vunpack.c.0.s8 %v1438
      %v1440 = vlaneseq
      %v1441 = vshrl.u32 %v1440, 7
      %v1442 = vsub.s32 %v1439, %v1441
      %v1443 = vrot.slane %v1436, %v1442
      %v1445 = vshrl.u32 %v1443, 16
      %v1464 = vunpack.c.l.b16 %v1413
      %v1465 = vunpack.c.h.b16 %v1413
      %v1466 = vunpack.c.l.b16 %v1414
      %v1467 = vunpack.c.h.b16 %v1414
      %v1468 = vunpack.c.l.b16 %v1415
      %v1469 = vunpack.c.h.b16 %v1415
      %v1470 = vunpack.c.l.b16 %v1416
      %v1471 = vunpack.c.h.b16 %v1416
      %v1472 = vunpack.c.l.b16 %v1417
      %v1473 = vunpack.c.h.b16 %v1417
      %v1474 = vunpack.c.l.b16 %v1418
      %v1475 = vunpack.c.h.b16 %v1418
      %v1476 = vunpack.c.l.b16 %v1419
      %v1477 = vunpack.c.h.b16 %v1419
      %v1478 = vunpack.c.l.b16 %v1420
      %v1479 = vunpack.c.h.b16 %v1420
      %v1480 = vunpack.c.l.b16 %v1421
      %v1481 = vunpack.c.h.b16 %v1421
      %v1482 = vunpack.c.l.b16 %v1422
      %v1483 = vunpack.c.h.b16 %v1422
      %v1484 = vunpack.c.l.b16 %v1423
      %v1485 = vunpack.c.h.b16 %v1423
      %v1486 = vunpack.c.l.b16 %v1424
      %v1487 = vunpack.c.h.b16 %v1424
      %v1488 = vunpack.c.l.b16 %v1425
      %v1489 = vunpack.c.h.b16 %v1425
      %v1490 = vunpack.c.l.b16 %v1426
      %v1491 = vunpack.c.h.b16 %v1426
      %v1492 = vunpack.c.l.b16 %v1427
      %v1493 = vunpack.c.h.b16 %v1427
      %v1494 = vunpack.c.l.b16 %v1428
      %v1495 = vunpack.c.h.b16 %v1428
      %v1496 = vpack.c.b16 %v1466, %v1464
      %v1497 = vpack.c.b16 %v1467, %v1465
      %v1498 = vpack.c.b16 %v1470, %v1468
      %v1499 = vpack.c.b16 %v1471, %v1469
      %v1500 = vpack.c.b16 %v1474, %v1472
      %v1501 = vpack.c.b16 %v1475, %v1473
      %v1502 = vpack.c.b16 %v1478, %v1476
      %v1503 = vpack.c.b16 %v1479, %v1477
      %v1504 = vpack.c.b16 %v1482, %v1480
      %v1505 = vpack.c.b16 %v1483, %v1481
      %v1506 = vpack.c.b16 %v1486, %v1484
      %v1507 = vpack.c.b16 %v1487, %v1485
      %v1508 = vpack.c.b16 %v1490, %v1488
      %v1509 = vpack.c.b16 %v1491, %v1489
      %v1510 = vpack.c.b16 %v1494, %v1492
      %v1511 = vpack.c.b16 %v1495, %v1493
      %1528 = vmatprep.subr.bf16.mxu0 %v1511
      %1529 = vmatpush1.bf16.msra.mxu0 %v1510
      %1530 = vmatprep.subr.bf16.mxu0 %v1509
      %1531 = vmatpush1.bf16.msra.mxu0 %v1508
      %1532 = vmatprep.subr.bf16.mxu0 %v1507
      %1533 = vmatpush1.bf16.msra.mxu0 %v1506
      %1534 = vmatprep.subr.bf16.mxu0 %v1505
      %1535 = vmatpush1.bf16.msra.mxu0 %v1504
      %1536 = vmatprep.subr.bf16.mxu0 %v1503
      %1537 = vmatpush1.bf16.msra.mxu0 %v1502
      %1538 = vmatprep.subr.bf16.mxu0 %v1501
      %1539 = vmatpush1.bf16.msra.mxu0 %v1500
      %1540 = vmatprep.subr.bf16.mxu0 %v1499
      %1541 = vmatpush1.bf16.msra.mxu0 %v1498
      %1542 = vmatprep.subr.bf16.mxu0 %v1497
      %1543 = vmatpush1.bf16.msra.mxu0 %v1496
      %1544 = vmatprep.subr.bf16.mxu0 0
      %1545 = vmatpush2.bf16.msra.mxu0 0
      %1546 = vmatprep.subr.bf16.mxu0 0
      %1547 = vmatpush2.bf16.msra.mxu0 0
      %1548 = vmatprep.subr.bf16.mxu0 0
      %1549 = vmatpush2.bf16.msra.mxu0 0
      %1550 = vmatprep.subr.bf16.mxu0 0
      %1551 = vmatpush2.bf16.msra.mxu0 0
      %1552 = vmatprep.subr.bf16.mxu0 0
      %1553 = vmatpush2.bf16.msra.mxu0 0
      %1554 = vmatprep.subr.bf16.mxu0 0
      %1555 = vmatpush2.bf16.msra.mxu0 0
      %1556 = vmatprep.subr.bf16.mxu0 0
      %1557 = vmatpush2.bf16.msra.mxu0 0
      %1558 = vmatprep.subr.bf16.mxu0 0
      %1559 = vmatpush2.bf16.msra.mxu0 0
      %1560 = vmatprep.mubr.bf16.mxu0 0
      %1561 = vmatmul.mubr.bf16.gmra.mxu0 %v1445
      %v1562 = vpop.f32.mrf.mxu0
      %v1563 = vadd.f32 0.0, %v1562
      %v1564 = vpop.f32.mrf.mxu0
      %v1565 = vadd.f32 0.0, %v1564
      %v1566 = vpop.f32.mrf.mxu0
      %v1567 = vpop.f32.mrf.mxu0
      %1568 = vdwg.mxu0
      %v1569 = vadd.f32 %v1410, %v1563
      %v1570 = vadd.f32 %v1411, %v1565
      %v1571 = vld [vmem:[%s2] sm:$0x3]
      %v1572 = vld [vmem:[%s3] sm:$0x3]
      %v1574 = vlaneseq
      %v1575 = vshrl.u32 %v1574, 7
      %v1576 = vsub.s32 0, %v1575
      %v1577 = vrot.slane %v1571, %v1576
      %v1578 = vlaneseq
      %v1579 = vshrl.u32 %v1578, 7
      %v1580 = vsub.s32 1, %v1579
      %v1581 = vrot.slane %v1571, %v1580
      %v1584 = vmul.f32 %v1569, %v1577
      %v1585 = vmul.f32 %v1570, %v1581
      %v1587 = vlaneseq
      %v1588 = vshrl.u32 %v1587, 7
      %v1589 = vsub.s32 0, %v1588
      %v1590 = vrot.slane %v1572, %v1589
      %v1591 = vlaneseq
      %v1592 = vshrl.u32 %v1591, 7
      %v1593 = vsub.s32 1, %v1592
      %v1594 = vrot.slane %v1572, %v1593
      %v1597 = vadd.f32 %v1584, %v1590
      %v1598 = vadd.f32 %v1585, %v1594
      %v1599 = vmul.f32 %v1597, 0.01
      %v1600 = vmul.f32 %v1598, 0.01
      %v1601 = vmax.f32 %v1597, %v1599
      %v1602 = vmax.f32 %v1598, %v1600
      %v1603 = vadd.f32 %v1601, 0.0
      %v1604 = vadd.f32 %v1602, 0.0
      %v1605 = vpack.c.bf16 %v1603, %v1603
      %v1606 = vpack.c.bf16 %v1604, %v1604
      %v1607 = vld [vmem:[%s4] sm:$0xff]
      %v1608 = vld [vmem:[%s4 + $0x8] sm:$0xff]
      %v1609 = vld [vmem:[%s4 + $0x10] sm:$0xff]
      %v1610 = vld [vmem:[%s4 + $0x18] sm:$0xff]
      %v1611 = vld [vmem:[%s4 + $0x20] sm:$0xff]
      %v1612 = vld [vmem:[%s4 + $0x28] sm:$0xff]
      %v1613 = vld [vmem:[%s4 + $0x30] sm:$0xff]
      %v1614 = vld [vmem:[%s4 + $0x38] sm:$0xff]
      %v1615 = vld [vmem:[%s4 + $0x40] sm:$0xff]
      %v1616 = vld [vmem:[%s4 + $0x48] sm:$0xff]
      %v1617 = vld [vmem:[%s4 + $0x50] sm:$0xff]
      %v1618 = vld [vmem:[%s4 + $0x58] sm:$0xff]
      %v1619 = vld [vmem:[%s4 + $0x60] sm:$0xff]
      %v1620 = vld [vmem:[%s4 + $0x68] sm:$0xff]
      %v1621 = vld [vmem:[%s4 + $0x70] sm:$0xff]
      %v1622 = vld [vmem:[%s4 + $0x78] sm:$0xff]
      %v1623 = vld [vmem:[%s4 + $0x80] sm:$0xff]
      %v1624 = vld [vmem:[%s4 + $0x88] sm:$0xff]
      %v1625 = vld [vmem:[%s4 + $0x90] sm:$0xff]
      %v1626 = vld [vmem:[%s4 + $0x98] sm:$0xff]
      %v1627 = vld [vmem:[%s4 + $0xa0] sm:$0xff]
      %v1628 = vld [vmem:[%s4 + $0xa8] sm:$0xff]
      %v1629 = vld [vmem:[%s4 + $0xb0] sm:$0xff]
      %v1630 = vld [vmem:[%s4 + $0xb8] sm:$0xff]
      %v1631 = vld [vmem:[%s4 + $0xc0] sm:$0xff]
      %v1632 = vld [vmem:[%s4 + $0xc8] sm:$0xff]
      %v1633 = vld [vmem:[%s4 + $0xd0] sm:$0xff]
      %v1634 = vld [vmem:[%s4 + $0xd8] sm:$0xff]
      %v1635 = vld [vmem:[%s4 + $0xe0] sm:$0xff]
      %v1636 = vld [vmem:[%s4 + $0xe8] sm:$0xff]
      %v1637 = vld [vmem:[%s4 + $0xf0] sm:$0xff]
      %v1638 = vld [vmem:[%s4 + $0xf8] sm:$0xff]
      %v1639 = vld [vmem:[%s4 + $0x100] sm:$0xff]
      %v1640 = vld [vmem:[%s4 + $0x108] sm:$0xff]
      %v1641 = vld [vmem:[%s4 + $0x110] sm:$0xff]
      %v1642 = vld [vmem:[%s4 + $0x118] sm:$0xff]
      %v1643 = vld [vmem:[%s4 + $0x120] sm:$0xff]
      %v1644 = vld [vmem:[%s4 + $0x128] sm:$0xff]
      %v1645 = vld [vmem:[%s4 + $0x130] sm:$0xff]
      %v1646 = vld [vmem:[%s4 + $0x138] sm:$0xff]
      %v1647 = vld [vmem:[%s4 + $0x140] sm:$0xff]
      %v1648 = vld [vmem:[%s4 + $0x148] sm:$0xff]
      %v1649 = vld [vmem:[%s4 + $0x150] sm:$0xff]
      %v1650 = vld [vmem:[%s4 + $0x158] sm:$0xff]
      %v1651 = vld [vmem:[%s4 + $0x160] sm:$0xff]
      %v1652 = vld [vmem:[%s4 + $0x168] sm:$0xff]
      %v1653 = vld [vmem:[%s4 + $0x170] sm:$0xff]
      %v1654 = vld [vmem:[%s4 + $0x178] sm:$0xff]
      %v1655 = vld [vmem:[%s4 + $0x180] sm:$0xff]
      %v1656 = vld [vmem:[%s4 + $0x188] sm:$0xff]
      %v1657 = vld [vmem:[%s4 + $0x190] sm:$0xff]
      %v1658 = vld [vmem:[%s4 + $0x198] sm:$0xff]
      %v1659 = vld [vmem:[%s4 + $0x1a0] sm:$0xff]
      %v1660 = vld [vmem:[%s4 + $0x1a8] sm:$0xff]
      %v1661 = vld [vmem:[%s4 + $0x1b0] sm:$0xff]
      %v1662 = vld [vmem:[%s4 + $0x1b8] sm:$0xff]
      %v1663 = vld [vmem:[%s4 + $0x1c0] sm:$0xff]
      %v1664 = vld [vmem:[%s4 + $0x1c8] sm:$0xff]
      %v1665 = vld [vmem:[%s4 + $0x1d0] sm:$0xff]
      %v1666 = vld [vmem:[%s4 + $0x1d8] sm:$0xff]
      %v1667 = vld [vmem:[%s4 + $0x1e0] sm:$0xff]
      %v1668 = vld [vmem:[%s4 + $0x1e8] sm:$0xff]
      %v1669 = vld [vmem:[%s4 + $0x1f0] sm:$0xff]
      %v1670 = vld [vmem:[%s4 + $0x1f8] sm:$0xff]
      %v1671 = vld [vmem:[%s5] sm:$0xf]
      %v1736 = vunpack.c.l.b16 %v1607
      %v1737 = vunpack.c.h.b16 %v1607
      %v1738 = vunpack.c.l.b16 %v1608
      %v1739 = vunpack.c.h.b16 %v1608
      %v1740 = vunpack.c.l.b16 %v1609
      %v1741 = vunpack.c.h.b16 %v1609
      %v1742 = vunpack.c.l.b16 %v1610
      %v1743 = vunpack.c.h.b16 %v1610
      %v1744 = vunpack.c.l.b16 %v1611
      %v1745 = vunpack.c.h.b16 %v1611
      %v1746 = vunpack.c.l.b16 %v1612
      %v1747 = vunpack.c.h.b16 %v1612
      %v1748 = vunpack.c.l.b16 %v1613
      %v1749 = vunpack.c.h.b16 %v1613
      %v1750 = vunpack.c.l.b16 %v1614
      %v1751 = vunpack.c.h.b16 %v1614
      %v1752 = vunpack.c.l.b16 %v1615
      %v1753 = vunpack.c.h.b16 %v1615
      %v1754 = vunpack.c.l.b16 %v1616
      %v1755 = vunpack.c.h.b16 %v1616
      %v1756 = vunpack.c.l.b16 %v1617
      %v1757 = vunpack.c.h.b16 %v1617
      %v1758 = vunpack.c.l.b16 %v1618
      %v1759 = vunpack.c.h.b16 %v1618
      %v1760 = vunpack.c.l.b16 %v1619
      %v1761 = vunpack.c.h.b16 %v1619
      %v1762 = vunpack.c.l.b16 %v1620
      %v1763 = vunpack.c.h.b16 %v1620
      %v1764 = vunpack.c.l.b16 %v1621
      %v1765 = vunpack.c.h.b16 %v1621
      %v1766 = vunpack.c.l.b16 %v1622
      %v1767 = vunpack.c.h.b16 %v1622
      %v1768 = vunpack.c.l.b16 %v1623
      %v1769 = vunpack.c.h.b16 %v1623
      %v1770 = vunpack.c.l.b16 %v1624
      %v1771 = vunpack.c.h.b16 %v1624
      %v1772 = vunpack.c.l.b16 %v1625
      %v1773 = vunpack.c.h.b16 %v1625
      %v1774 = vunpack.c.l.b16 %v1626
      %v1775 = vunpack.c.h.b16 %v1626
      %v1776 = vunpack.c.l.b16 %v1627
      %v1777 = vunpack.c.h.b16 %v1627
      %v1778 = vunpack.c.l.b16 %v1628
      %v1779 = vunpack.c.h.b16 %v1628
      %v1780 = vunpack.c.l.b16 %v1629
      %v1781 = vunpack.c.h.b16 %v1629
      %v1782 = vunpack.c.l.b16 %v1630
      %v1783 = vunpack.c.h.b16 %v1630
      %v1784 = vunpack.c.l.b16 %v1631
      %v1785 = vunpack.c.h.b16 %v1631
      %v1786 = vunpack.c.l.b16 %v1632
      %v1787 = vunpack.c.h.b16 %v1632
      %v1788 = vunpack.c.l.b16 %v1633
      %v1789 = vunpack.c.h.b16 %v1633
      %v1790 = vunpack.c.l.b16 %v1634
      %v1791 = vunpack.c.h.b16 %v1634
      %v1792 = vunpack.c.l.b16 %v1635
      %v1793 = vunpack.c.h.b16 %v1635
      %v1794 = vunpack.c.l.b16 %v1636
      %v1795 = vunpack.c.h.b16 %v1636
      %v1796 = vunpack.c.l.b16 %v1637
      %v1797 = vunpack.c.h.b16 %v1637
      %v1798 = vunpack.c.l.b16 %v1638
      %v1799 = vunpack.c.h.b16 %v1638
      %v1800 = vunpack.c.l.b16 %v1639
      %v1801 = vunpack.c.h.b16 %v1639
      %v1802 = vunpack.c.l.b16 %v1640
      %v1803 = vunpack.c.h.b16 %v1640
      %v1804 = vunpack.c.l.b16 %v1641
      %v1805 = vunpack.c.h.b16 %v1641
      %v1806 = vunpack.c.l.b16 %v1642
      %v1807 = vunpack.c.h.b16 %v1642
      %v1808 = vunpack.c.l.b16 %v1643
      %v1809 = vunpack.c.h.b16 %v1643
      %v1810 = vunpack.c.l.b16 %v1644
      %v1811 = vunpack.c.h.b16 %v1644
      %v1812 = vunpack.c.l.b16 %v1645
      %v1813 = vunpack.c.h.b16 %v1645
      %v1814 = vunpack.c.l.b16 %v1646
      %v1815 = vunpack.c.h.b16 %v1646
      %v1816 = vunpack.c.l.b16 %v1647
      %v1817 = vunpack.c.h.b16 %v1647
      %v1818 = vunpack.c.l.b16 %v1648
      %v1819 = vunpack.c.h.b16 %v1648
      %v1820 = vunpack.c.l.b16 %v1649
      %v1821 = vunpack.c.h.b16 %v1649
      %v1822 = vunpack.c.l.b16 %v1650
      %v1823 = vunpack.c.h.b16 %v1650
      %v1824 = vunpack.c.l.b16 %v1651
      %v1825 = vunpack.c.h.b16 %v1651
      %v1826 = vunpack.c.l.b16 %v1652
      %v1827 = vunpack.c.h.b16 %v1652
      %v1828 = vunpack.c.l.b16 %v1653
      %v1829 = vunpack.c.h.b16 %v1653
      %v1830 = vunpack.c.l.b16 %v1654
      %v1831 = vunpack.c.h.b16 %v1654
      %v1832 = vunpack.c.l.b16 %v1655
      %v1833 = vunpack.c.h.b16 %v1655
      %v1834 = vunpack.c.l.b16 %v1656
      %v1835 = vunpack.c.h.b16 %v1656
      %v1836 = vunpack.c.l.b16 %v1657
      %v1837 = vunpack.c.h.b16 %v1657
      %v1838 = vunpack.c.l.b16 %v1658
      %v1839 = vunpack.c.h.b16 %v1658
      %v1840 = vunpack.c.l.b16 %v1659
      %v1841 = vunpack.c.h.b16 %v1659
      %v1842 = vunpack.c.l.b16 %v1660
      %v1843 = vunpack.c.h.b16 %v1660
      %v1844 = vunpack.c.l.b16 %v1661
      %v1845 = vunpack.c.h.b16 %v1661
      %v1846 = vunpack.c.l.b16 %v1662
      %v1847 = vunpack.c.h.b16 %v1662
      %v1848 = vunpack.c.l.b16 %v1663
      %v1849 = vunpack.c.h.b16 %v1663
      %v1850 = vunpack.c.l.b16 %v1664
      %v1851 = vunpack.c.h.b16 %v1664
      %v1852 = vunpack.c.l.b16 %v1665
      %v1853 = vunpack.c.h.b16 %v1665
      %v1854 = vunpack.c.l.b16 %v1666
      %v1855 = vunpack.c.h.b16 %v1666
      %v1856 = vunpack.c.l.b16 %v1667
      %v1857 = vunpack.c.h.b16 %v1667
      %v1858 = vunpack.c.l.b16 %v1668
      %v1859 = vunpack.c.h.b16 %v1668
      %v1860 = vunpack.c.l.b16 %v1669
      %v1861 = vunpack.c.h.b16 %v1669
      %v1862 = vunpack.c.l.b16 %v1670
      %v1863 = vunpack.c.h.b16 %v1670
      %v1864 = vpack.c.b16 %v1740, %v1736
      %v1865 = vpack.c.b16 %v1741, %v1737
      %v1866 = vpack.c.b16 %v1742, %v1738
      %v1867 = vpack.c.b16 %v1743, %v1739
      %v1868 = vpack.c.b16 %v1748, %v1744
      %v1869 = vpack.c.b16 %v1749, %v1745
      %v1870 = vpack.c.b16 %v1750, %v1746
      %v1871 = vpack.c.b16 %v1751, %v1747
      %v1872 = vpack.c.b16 %v1756, %v1752
      %v1873 = vpack.c.b16 %v1757, %v1753
      %v1874 = vpack.c.b16 %v1758, %v1754
      %v1875 = vpack.c.b16 %v1759, %v1755
      %v1876 = vpack.c.b16 %v1764, %v1760
      %v1877 = vpack.c.b16 %v1765, %v1761
      %v1878 = vpack.c.b16 %v1766, %v1762
      %v1879 = vpack.c.b16 %v1767, %v1763
      %v1880 = vpack.c.b16 %v1772, %v1768
      %v1881 = vpack.c.b16 %v1773, %v1769
      %v1882 = vpack.c.b16 %v1774, %v1770
      %v1883 = vpack.c.b16 %v1775, %v1771
      %v1884 = vpack.c.b16 %v1780, %v1776
      %v1885 = vpack.c.b16 %v1781, %v1777
      %v1886 = vpack.c.b16 %v1782, %v1778
      %v1887 = vpack.c.b16 %v1783, %v1779
      %v1888 = vpack.c.b16 %v1788, %v1784
      %v1889 = vpack.c.b16 %v1789, %v1785
      %v1890 = vpack.c.b16 %v1790, %v1786
      %v1891 = vpack.c.b16 %v1791, %v1787
      %v1892 = vpack.c.b16 %v1796, %v1792
      %v1893 = vpack.c.b16 %v1797, %v1793
      %v1894 = vpack.c.b16 %v1798, %v1794
      %v1895 = vpack.c.b16 %v1799, %v1795
      %v1896 = vpack.c.b16 %v1804, %v1800
      %v1897 = vpack.c.b16 %v1805, %v1801
      %v1898 = vpack.c.b16 %v1806, %v1802
      %v1899 = vpack.c.b16 %v1807, %v1803
      %v1900 = vpack.c.b16 %v1812, %v1808
      %v1901 = vpack.c.b16 %v1813, %v1809
      %v1902 = vpack.c.b16 %v1814, %v1810
      %v1903 = vpack.c.b16 %v1815, %v1811
      %v1904 = vpack.c.b16 %v1820, %v1816
      %v1905 = vpack.c.b16 %v1821, %v1817
      %v1906 = vpack.c.b16 %v1822, %v1818
      %v1907 = vpack.c.b16 %v1823, %v1819
      %v1908 = vpack.c.b16 %v1828, %v1824
      %v1909 = vpack.c.b16 %v1829, %v1825
      %v1910 = vpack.c.b16 %v1830, %v1826
      %v1911 = vpack.c.b16 %v1831, %v1827
      %v1912 = vpack.c.b16 %v1836, %v1832
      %v1913 = vpack.c.b16 %v1837, %v1833
      %v1914 = vpack.c.b16 %v1838, %v1834
      %v1915 = vpack.c.b16 %v1839, %v1835
      %v1916 = vpack.c.b16 %v1844, %v1840
      %v1917 = vpack.c.b16 %v1845, %v1841
      %v1918 = vpack.c.b16 %v1846, %v1842
      %v1919 = vpack.c.b16 %v1847, %v1843
      %v1920 = vpack.c.b16 %v1852, %v1848
      %v1921 = vpack.c.b16 %v1853, %v1849
      %v1922 = vpack.c.b16 %v1854, %v1850
      %v1923 = vpack.c.b16 %v1855, %v1851
      %v1924 = vpack.c.b16 %v1860, %v1856
      %v1925 = vpack.c.b16 %v1861, %v1857
      %v1926 = vpack.c.b16 %v1862, %v1858
      %v1927 = vpack.c.b16 %v1863, %v1859
      %v1993 = vlaneseq
      %v1994 = vshrl.u32 %v1993, 7
      %v1995 = vsub.s32 0, %v1994
      %v1996 = vrot.slane %v1671, %v1995
      %v1997 = vlaneseq
      %v1998 = vshrl.u32 %v1997, 7
      %v1999 = vsub.s32 1, %v1998
      %v2000 = vrot.slane %v1671, %v1999
      %v2001 = vlaneseq
      %v2002 = vshrl.u32 %v2001, 7
      %v2003 = vsub.s32 2, %v2002
      %v2004 = vrot.slane %v1671, %v2003
      %v2005 = vlaneseq
      %v2006 = vshrl.u32 %v2005, 7
      %v2007 = vsub.s32 3, %v2006
      %v2008 = vrot.slane %v1671, %v2007
      %2013 = vmatprep.subr.bf16.mxu0 %v1893
      %2014 = vmatpush1.bf16.msra.mxu0 %v1892
      %2015 = vmatprep.subr.bf16.mxu0 %v1889
      %2016 = vmatpush1.bf16.msra.mxu0 %v1888
      %2017 = vmatprep.subr.bf16.mxu0 %v1885
      %2018 = vmatpush1.bf16.msra.mxu0 %v1884
      %2019 = vmatprep.subr.bf16.mxu0 %v1881
      %2020 = vmatpush1.bf16.msra.mxu0 %v1880
      %2021 = vmatprep.subr.bf16.mxu0 %v1877
      %2022 = vmatpush1.bf16.msra.mxu0 %v1876
      %2023 = vmatprep.subr.bf16.mxu0 %v1873
      %2024 = vmatpush1.bf16.msra.mxu0 %v1872
      %2025 = vmatprep.subr.bf16.mxu0 %v1869
      %2026 = vmatpush1.bf16.msra.mxu0 %v1868
      %2027 = vmatprep.subr.bf16.mxu0 %v1865
      %2028 = vmatpush1.bf16.msra.mxu0 %v1864
      %2029 = vmatprep.subr.bf16.mxu0 %v1925
      %2030 = vmatpush2.bf16.msra.mxu0 %v1924
      %2031 = vmatprep.subr.bf16.mxu0 %v1921
      %2032 = vmatpush2.bf16.msra.mxu0 %v1920
      %2033 = vmatprep.subr.bf16.mxu0 %v1917
      %2034 = vmatpush2.bf16.msra.mxu0 %v1916
      %2035 = vmatprep.subr.bf16.mxu0 %v1913
      %2036 = vmatpush2.bf16.msra.mxu0 %v1912
      %2037 = vmatprep.subr.bf16.mxu0 %v1909
      %2038 = vmatpush2.bf16.msra.mxu0 %v1908
      %2039 = vmatprep.subr.bf16.mxu0 %v1905
      %2040 = vmatpush2.bf16.msra.mxu0 %v1904
      %2041 = vmatprep.subr.bf16.mxu0 %v1901
      %2042 = vmatpush2.bf16.msra.mxu0 %v1900
      %2043 = vmatprep.subr.bf16.mxu0 %v1897
      %2044 = vmatpush2.bf16.msra.mxu0 %v1896
      %2045 = vmatprep.mubr.bf16.mxu0 %v1606
      %2046 = vmatmul.mubr.bf16.gmra.mxu0 %v1605
      %v2047 = vpop.f32.mrf.mxu0
      %v2048 = vadd.f32 %v1996, %v2047
      %v2049 = vpop.f32.mrf.mxu0
      %v2050 = vadd.f32 %v2000, %v2049
      %v2051 = vpop.f32.mrf.mxu0
      %v2052 = vpop.f32.mrf.mxu0
      %2053 = vdwg.mxu0
      %2054 = vmatprep.subr.bf16.mxu0 %v1895
      %2055 = vmatpush1.bf16.msra.mxu0 %v1894
      %2056 = vmatprep.subr.bf16.mxu0 %v1891
      %2057 = vmatpush1.bf16.msra.mxu0 %v1890
      %2058 = vmatprep.subr.bf16.mxu0 %v1887
      %2059 = vmatpush1.bf16.msra.mxu0 %v1886
      %2060 = vmatprep.subr.bf16.mxu0 %v1883
      %2061 = vmatpush1.bf16.msra.mxu0 %v1882
      %2062 = vmatprep.subr.bf16.mxu0 %v1879
      %2063 = vmatpush1.bf16.msra.mxu0 %v1878
      %2064 = vmatprep.subr.bf16.mxu0 %v1875
      %2065 = vmatpush1.bf16.msra.mxu0 %v1874
      %2066 = vmatprep.subr.bf16.mxu0 %v1871
      %2067 = vmatpush1.bf16.msra.mxu0 %v1870
      %2068 = vmatprep.subr.bf16.mxu0 %v1867
      %2069 = vmatpush1.bf16.msra.mxu0 %v1866
      %2070 = vmatprep.subr.bf16.mxu0 %v1927
      %2071 = vmatpush2.bf16.msra.mxu0 %v1926
      %2072 = vmatprep.subr.bf16.mxu0 %v1923
      %2073 = vmatpush2.bf16.msra.mxu0 %v1922
      %2074 = vmatprep.subr.bf16.mxu0 %v1919
      %2075 = vmatpush2.bf16.msra.mxu0 %v1918
      %2076 = vmatprep.subr.bf16.mxu0 %v1915
      %2077 = vmatpush2.bf16.msra.mxu0 %v1914
      %2078 = vmatprep.subr.bf16.mxu0 %v1911
      %2079 = vmatpush2.bf16.msra.mxu0 %v1910
      %2080 = vmatprep.subr.bf16.mxu0 %v1907
      %2081 = vmatpush2.bf16.msra.mxu0 %v1906
      %2082 = vmatprep.subr.bf16.mxu0 %v1903
      %2083 = vmatpush2.bf16.msra.mxu0 %v1902
      %2084 = vmatprep.subr.bf16.mxu0 %v1899
      %2085 = vmatpush2.bf16.msra.mxu0 %v1898
      %2086 = vmatprep.mubr.bf16.mxu0 %v1606
      %2087 = vmatmul.mubr.bf16.gmra.mxu0 %v1605
      %v2088 = vpop.f32.mrf.mxu0
      %v2089 = vadd.f32 %v2004, %v2088
      %v2090 = vpop.f32.mrf.mxu0
      %v2091 = vadd.f32 %v2008, %v2090
      %v2092 = vpop.f32.mrf.mxu0
      %v2093 = vpop.f32.mrf.mxu0
      %2094 = vdwg.mxu0
      %v2095 = vtanh.pop %v2048
      %v2096 = vtanh.pop %v2050
      %v2097 = vtanh.pop %v2089
      %v2098 = vtanh.pop %v2091
      %v2103 = vcombine.low %v2095, %v2096
      %v2104 = vcombine.low %v2097, %v2098
      %v2106 = vunpack.c.l.s4 1966171168
      %v2107 = vunpack.c.0.s8 %v2106
      %v2108 = vlaneseq
      %v2109 = vshrl.u32 %v2108, 7
      %v2110 = vsub.s32 %v2107, %v2109
      %v2111 = vrot.slane %v2103, %v2110
      %v2113 = vunpack.c.l.s4 1966171168
      %v2114 = vunpack.c.0.s8 %v2113
      %v2115 = vlaneseq
      %v2116 = vshrl.u32 %v2115, 7
      %v2117 = vsub.s32 %v2114, %v2116
      %v2118 = vrot.slane %v2104, %v2117
      %v2119 = vcombine.low %v2111, %v2118
      %v2121 = vunpack.c.l.s4 1966171168
      %v2122 = vunpack.c.0.s8 %v2121
      %v2123 = vlaneseq
      %v2124 = vshrl.u32 %v2123, 7
      %v2125 = vsub.s32 %v2122, %v2124
      %v2126 = vrot.slane %v2119, %v2125
      %v2128 = vlaneseq
      %vm2129 = vcmp.ge.s32.totalorder %v2128, 0
      %vm2130 = vcmp.lt.s32.totalorder %v2128, 512
      %vm2131 = vmand %vm2129, %vm2130
      %2132 = vst.msk [vmem:[%s246] sm:$0xf] %vm2131, %v2126
      %p2133 = scmp.lt.s32.totalorder %s17, 1
      %s2134 = scalar_select %p2133, %s17, 1
      %s2135 = smul.addr %s2134, 4
      %s2136 = scalar_lea.vmem %s6, %s2135
      // Predicated region
      $region45: #{font_classifier_forward.9} parent=43 // pred_check
        %p2137 = pneg %p166
      $region46: #{font_classifier_forward.9} parent=43 // pred_check_branch
        %2139 = sbr.rel (%p2137) target = $region48
      $region47: #{font_classifier_forward.9} parent=43 // pred_region
        _
      $region48: #{font_classifier_forward.9} parent=43 // pred_fallthru
        _
    $region44: #{font_classifier_forward.9} parent=5 // pred_fallthru
      _
    %p2140 = scmp.le.s32.totalorder 2, %s12
    // Predicated region
    $region49: #{font_classifier_forward.9} parent=5 // pred_check
      %p2141 = pneg %p2140
    $region50: #{font_classifier_forward.9} parent=5 // pred_check_branch
      %2143 = sbr.rel (%p2141) target = $region52
    $region51: #{font_classifier_forward.9} parent=5 // pred_region
      %s2144 = ssub.s32 %s12, 2
      // Predicated region
      $region53: #{font_classifier_forward.9} parent=51 // pred_check
        %p2145 = pneg %p172
      $region54: #{font_classifier_forward.9} parent=51 // pred_check_branch
        %2147 = sbr.rel (%p2145) target = $region56
      $region55: #{font_classifier_forward.9} parent=51 // pred_region
        %p2148 = scmp.lt.s32.totalorder %s18, 1
        %s2149 = scalar_select %p2148, %s18, 1
        %s2150 = smul.addr %s2149, 4
        %s2151 = scalar_lea.vmem %s6, %s2150
      $region56: #{font_classifier_forward.9} parent=51 // pred_fallthru
        _
    $region52: #{font_classifier_forward.9} parent=5 // pred_fallthru
      _
  $region6: #{font_classifier_forward.9} parent=0 // loop_footer
    %s16 = sadd.s32 1, %s12
  $region7: #{font_classifier_forward.9} parent=0 // loop_footer_branch
    %11 = sbr.rel target = $region3
  $region8: #{font_classifier_forward.9} parent=0 // loop_exit
    _

</llo_original>
